<compile_context>
chip_gen: v5e
topology: v5e:2x2
jax: 0.10.0
libtpu: 0.0.40
codegen_flags: <defaults>
</compile_context>

<pallas_src>
import functools

import numpy as np
import jax
import jax.numpy as jnp
from jax.experimental import pallas as pl
from jax.experimental.pallas import tpu as pltpu


# ---------------------------------------------------------------------------
# Fused glow-step kernel (one grid step == one image)
# ---------------------------------------------------------------------------
def _glow_step_kernel(x_ref, w1_ref, b1_ref, c1w_ref, c1b_ref, blkw_ref, blkb_ref,
                      c2w_ref, c2b_ref, resc_ref, o_ref, ypad_ref, hpad_ref,
                      *, C, half, mid, num_blocks, H, W):
    # Zero the padded scratch buffers: the untouched 1-pixel border is the "SAME"
    # zero padding of the two 3x3 convolutions.
    ypad_ref[...] = jnp.zeros_like(ypad_ref)
    hpad_ref[...] = jnp.zeros_like(hpad_ref)

    # ---- ActNorm + invertible 1x1 conv (ActNorm folded into w1/b1 by the wrapper) ----
    # y[o] = b1[o] + sum_c w1[o, c] * x[c]   -- per-pixel channel mix as VPU FMAs.
    xin = [x_ref[0, c, :, :] for c in range(C)]          # C planes of (H, W)
    y = []
    for o in range(C):
        acc = None
        for c in range(C):
            term = w1_ref[o * C + c] * xin[c]
            acc = term if acc is None else acc + term
        y.append(acc + b1_ref[o])

    x_id = y[:half]    # identity half (st-net input, copied to output unchanged)
    x_ch = y[half:]    # change half  (affine-coupled at the end)

    for c in range(half):
        o_ref[0, c, :, :] = x_id[c]                       # direct concat-free write
        ypad_ref[c, 1:H + 1, 1:W + 1] = x_id[c]           # zero-padded st-net input

    # ---- st-net: 3x3 conv -> ReLU -> num_blocks x (1x1 conv -> ReLU) -> 3x3 conv ----
    def conv3x3(src_pad_ref, cin, cout, wf_ref, bf_ref, relu):
        # cross-correlation (PyTorch conv semantics); each tap is a shifted window
        # of the padded plane, weights are SMEM scalars -> unrolled VPU FMAs.
        accs = [None] * cout
        for ci in range(cin):
            for kh in range(3):
                for kw in range(3):
                    win = src_pad_ref[ci, kh:kh + H, kw:kw + W]
                    base = ((kh * 3 + kw) * cin + ci) * cout
                    for co in range(cout):
                        term = wf_ref[base + co] * win
                        accs[co] = term if accs[co] is None else accs[co] + term
        out = []
        for co in range(cout):
            v = accs[co] + bf_ref[co]
            if relu:
                v = jnp.maximum(v, 0.0)
            out.append(v)
        return out

    h = conv3x3(ypad_ref, half, mid, c1w_ref, c1b_ref, relu=True)

    for k in range(num_blocks):                           # 1x1 conv + ReLU blocks
        new_h = []
        for co in range(mid):
            acc = None
            for ci in range(mid):
                term = blkw_ref[(k * mid + ci) * mid + co] * h[ci]
                acc = term if acc is None else acc + term
            new_h.append(jnp.maximum(acc + blkb_ref[k * mid + co], 0.0))
        h = new_h

    for c in range(mid):                                  # zero-padded conv2 input
        hpad_ref[c, 1:H + 1, 1:W + 1] = h[c]

    st = conv3x3(hpad_ref, mid, 2 * half, c2w_ref, c2b_ref, relu=False)

    # ---- coupling epilogue: out = x_ch * exp(rescale * tanh(s)) + t  (EUP ops) ----
    for c in range(half):
        s = resc_ref[c] * jnp.tanh(st[c])
        o_ref[0, half + c, :, :] = x_ch[c] * jnp.exp(s) + st[half + c]


# ---------------------------------------------------------------------------
# Wrapper: fold ActNorm, flatten weights, launch one fused kernel
# ---------------------------------------------------------------------------
def glow_step_forward(x_nchw, p, mid, num_blocks):
    N, C, H, W = x_nchw.shape
    half = C // 2
    f32 = jnp.float32
    x = x_nchw.astype(f32)

    # Fold ActNorm into the invertible 1x1 conv:
    #   z = W @ (x * exp(ls) + b)  ==  (W * exp(ls)) @ x + (W @ b)
    scale = jnp.exp(p["an_log_scale"])
    w1 = (p["w_1x1"] * scale[None, :]).reshape(-1)        # (C*C,)  row-major [o, c]
    b1 = p["w_1x1"] @ p["an_bias"]                        # (C,)

    c1w = p["c1_w"].reshape(-1)                           # (3*3*half*mid,)  HWIO order
    c2w = p["c2_w"].reshape(-1)                           # (3*3*mid*2*half,)
    if num_blocks > 0:
        blkw = jnp.stack([p[f"blk{k}_w"] for k in range(num_blocks)]).reshape(-1)
        blkb = jnp.stack([p[f"blk{k}_b"] for k in range(num_blocks)]).reshape(-1)
    else:
        blkw = jnp.zeros((1,), f32)
        blkb = jnp.zeros((1,), f32)

    smem = pl.BlockSpec(memory_space=pltpu.MemorySpace.SMEM)
    kern = functools.partial(_glow_step_kernel, C=C, half=half, mid=mid,
                             num_blocks=num_blocks, H=H, W=W)

    return pl.pallas_call(
        kern,
        out_shape=jax.ShapeDtypeStruct((N, C, H, W), f32),
        grid=(N,),
        in_specs=[pl.BlockSpec((1, C, H, W), lambda n: (n, 0, 0, 0))] + [smem] * 9,
        out_specs=pl.BlockSpec((1, C, H, W), lambda n: (n, 0, 0, 0)),
        scratch_shapes=[pltpu.VMEM((half, H + 2, W + 2), f32),   # padded x_id
                        pltpu.VMEM((mid, H + 2, W + 2), f32)],   # padded h (conv2 input)
        compiler_params=pltpu.CompilerParams(
            dimension_semantics=("parallel",)),                  # 2 TCs on v7x
    )(x, w1, b1, c1w, p["c1_b"], blkw, blkb, c2w, p["c2_b"], p["rescale"])


# ---------------------------------------------------------------------------
# Pure-JAX reference (correctness check)
# ---------------------------------------------------------------------------
def reference_forward(x_nchw, p, mid, num_blocks):
    x = jnp.transpose(x_nchw, (0, 2, 3, 1)).astype(jnp.float32)
    y = x * jnp.exp(p["an_log_scale"]) + p["an_bias"]
    y = jnp.einsum("nhwc,oc->nhwo", y, p["w_1x1"])
    half = y.shape[-1] // 2
    x_id, x_ch = y[..., :half], y[..., half:]

    def conv(h, w, b):
        return jax.lax.conv_general_dilated(
            h, w, (1, 1), "SAME",
            dimension_numbers=("NHWC", "HWIO", "NHWC")) + b

    h = jax.nn.relu(conv(x_id, p["c1_w"], p["c1_b"]))
    for k in range(num_blocks):
        h = jax.nn.relu(jnp.einsum("nhwc,co->nhwo", h, p[f"blk{k}_w"]) + p[f"blk{k}_b"])
    st = conv(h, p["c2_w"], p["c2_b"])
    s_raw, t = st[..., :half], st[..., half:]
    s = p["rescale"] * jnp.tanh(s_raw)
    out = jnp.concatenate([x_id, x_ch * jnp.exp(s) + t], axis=-1)
    return jnp.transpose(out, (0, 3, 1, 2))


# ---------------------------------------------------------------------------
# Deterministic parameter init (shapes dictated by GlowBase._glow_step)
# ---------------------------------------------------------------------------
def init_params(key, C, mid, num_blocks):
    half = C // 2
    ks = jax.random.split(key, 8 + 2 * num_blocks)
    p = {}
    p["an_log_scale"] = 0.05 * jax.random.normal(ks[0], (C,), jnp.float32)
    p["an_bias"] = 0.05 * jax.random.normal(ks[1], (C,), jnp.float32)
    w = jax.random.normal(ks[2], (C, C), jnp.float32)
    q, _ = jnp.linalg.qr(w)                               # random orthogonal (iConv1x1 init)
    p["w_1x1"] = q                                        # (Cout, Cin)
    p["c1_w"] = 0.1 * jax.random.normal(ks[3], (3, 3, half, mid), jnp.float32)
    p["c1_b"] = 0.1 * jax.random.normal(ks[4], (mid,), jnp.float32)
    for k in range(num_blocks):
        p[f"blk{k}_w"] = 0.1 * jax.random.normal(ks[5 + 2 * k], (mid, mid), jnp.float32)
        p[f"blk{k}_b"] = 0.1 * jax.random.normal(ks[6 + 2 * k], (mid,), jnp.float32)
    p["c2_w"] = 0.1 * jax.random.normal(ks[5 + 2 * num_blocks], (3, 3, mid, 2 * half), jnp.float32)
    p["c2_b"] = 0.1 * jax.random.normal(ks[6 + 2 * num_blocks], (2 * half,), jnp.float32)
    p["rescale"] = jnp.ones((half,), jnp.float32)
    return p


if __name__ == "__main__":
    key = jax.random.PRNGKey(0)
    kx, kp = jax.random.split(key)

    N, C, H, W = 2, 4, 16, 16          # NCHW, matching the PyTorch conv-input convention
    mid_channels, num_blocks = 8, 2

    x = jax.random.normal(kx, (N, C, H, W), jnp.float32)
    params = init_params(kp, C, mid_channels, num_blocks)

    fwd = jax.jit(functools.partial(glow_step_forward,
                                    mid=mid_channels, num_blocks=num_blocks))
    out = fwd(x, params)
    out = jax.block_until_ready(out)
    assert out.shape == (N, C, H, W) and out.dtype == jnp.float32

    ref = reference_forward(x, params, mid_channels, num_blocks)
    np.testing.assert_allclose(np.asarray(out), np.asarray(ref), rtol=1e-4, atol=1e-4)

    print("KERNEL_OK")
</pallas_src>

<mosaic_0001>
module attributes {stable_mosaic.version = 11 : i64} {
  func.func @_glow_step_kernel(%arg0: i32, %arg1: memref<1x4x16x16xf32, #tpu.memory_space<vmem>>, %arg2: memref<16xf32, #tpu.memory_space<smem>>, %arg3: memref<4xf32, #tpu.memory_space<smem>>, %arg4: memref<144xf32, #tpu.memory_space<smem>>, %arg5: memref<8xf32, #tpu.memory_space<smem>>, %arg6: memref<128xf32, #tpu.memory_space<smem>>, %arg7: memref<16xf32, #tpu.memory_space<smem>>, %arg8: memref<288xf32, #tpu.memory_space<smem>>, %arg9: memref<4xf32, #tpu.memory_space<smem>>, %arg10: memref<2xf32, #tpu.memory_space<smem>>, %arg11: memref<1x4x16x16xf32, #tpu.memory_space<vmem>>, %arg12: memref<2x18x18xf32, #tpu.memory_space<vmem>>, %arg13: memref<8x18x18xf32, #tpu.memory_space<vmem>>) attributes {dimension_semantics = [#tpu.dimension_semantics<parallel>], iteration_bounds = array<i64: 2>, scalar_prefetch = 0 : i64, scratch_operands = 2 : i64, tpu.core_type = #tpu.core_type<tc>, window_params = [{transform_indices = @transform_0, window_bounds = array<i64: 1, 4, 16, 16>}, {transform_indices = @transform_1, window_bounds = array<i64: 16>}, {transform_indices = @transform_2, window_bounds = array<i64: 4>}, {transform_indices = @transform_3, window_bounds = array<i64: 144>}, {transform_indices = @transform_4, window_bounds = array<i64: 8>}, {transform_indices = @transform_5, window_bounds = array<i64: 128>}, {transform_indices = @transform_6, window_bounds = array<i64: 16>}, {transform_indices = @transform_7, window_bounds = array<i64: 288>}, {transform_indices = @transform_8, window_bounds = array<i64: 4>}, {transform_indices = @transform_9, window_bounds = array<i64: 2>}, {transform_indices = @transform_10, window_bounds = array<i64: 1, 4, 16, 16>}]} {
    %cst = arith.constant 0.000000e+00 : f32
    %0 = vector.broadcast %cst : f32 to vector<2x18x18xf32>
    %c0 = arith.constant 0 : index
    %c0_0 = arith.constant 0 : index
    %c0_1 = arith.constant 0 : index
    %1 = vector.load %arg12[%c0, %c0_0, %c0_1] : memref<2x18x18xf32, #tpu.memory_space<vmem>>, vector<2x18x18xf32>
    tpu.vector_store %arg12[%c0, %c0_0, %c0_1], %0 {strides = array<i32>} : memref<2x18x18xf32, #tpu.memory_space<vmem>>, vector<2x18x18xf32>,
    %cst_2 = arith.constant 0.000000e+00 : f32
    %2 = vector.broadcast %cst_2 : f32 to vector<8x18x18xf32>
    %c0_3 = arith.constant 0 : index
    %c0_4 = arith.constant 0 : index
    %c0_5 = arith.constant 0 : index
    %3 = vector.load %arg13[%c0_3, %c0_4, %c0_5] : memref<8x18x18xf32, #tpu.memory_space<vmem>>, vector<8x18x18xf32>
    tpu.vector_store %arg13[%c0_3, %c0_4, %c0_5], %2 {strides = array<i32>} : memref<8x18x18xf32, #tpu.memory_space<vmem>>, vector<8x18x18xf32>,
    %c0_6 = arith.constant 0 : index
    %c0_7 = arith.constant 0 : index
    %c0_8 = arith.constant 0 : index
    %c0_9 = arith.constant 0 : index
    %4 = vector.load %arg1[%c0_6, %c0_7, %c0_8, %c0_9] : memref<1x4x16x16xf32, #tpu.memory_space<vmem>>, vector<1x1x16x16xf32>
    %5 = vector.shape_cast %4 : vector<1x1x16x16xf32> to vector<16x16xf32>
    %c0_10 = arith.constant 0 : index
    %c1 = arith.constant 1 : index
    %c0_11 = arith.constant 0 : index
    %c0_12 = arith.constant 0 : index
    %6 = vector.load %arg1[%c0_10, %c1, %c0_11, %c0_12] : memref<1x4x16x16xf32, #tpu.memory_space<vmem>>, vector<1x1x16x16xf32>
    %7 = vector.shape_cast %6 : vector<1x1x16x16xf32> to vector<16x16xf32>
    %c0_13 = arith.constant 0 : index
    %c2 = arith.constant 2 : index
    %c0_14 = arith.constant 0 : index
    %c0_15 = arith.constant 0 : index
    %8 = vector.load %arg1[%c0_13, %c2, %c0_14, %c0_15] : memref<1x4x16x16xf32, #tpu.memory_space<vmem>>, vector<1x1x16x16xf32>
    %9 = vector.shape_cast %8 : vector<1x1x16x16xf32> to vector<16x16xf32>
    %c0_16 = arith.constant 0 : index
    %c3 = arith.constant 3 : index
    %c0_17 = arith.constant 0 : index
    %c0_18 = arith.constant 0 : index
    %10 = vector.load %arg1[%c0_16, %c3, %c0_17, %c0_18] : memref<1x4x16x16xf32, #tpu.memory_space<vmem>>, vector<1x1x16x16xf32>
    %11 = vector.shape_cast %10 : vector<1x1x16x16xf32> to vector<16x16xf32>
    %c0_19 = arith.constant 0 : index
    %12 = memref.load %arg2[%c0_19] : memref<16xf32, #tpu.memory_space<smem>>
    %13 = vector.broadcast %12 : f32 to vector<16x16xf32>
    %14 = arith.mulf %13, %5 : vector<16x16xf32>
    %c1_20 = arith.constant 1 : index
    %15 = memref.load %arg2[%c1_20] : memref<16xf32, #tpu.memory_space<smem>>
    %16 = vector.broadcast %15 : f32 to vector<16x16xf32>
    %17 = arith.mulf %16, %7 : vector<16x16xf32>
    %18 = arith.addf %14, %17 : vector<16x16xf32>
    %c2_21 = arith.constant 2 : index
    %19 = memref.load %arg2[%c2_21] : memref<16xf32, #tpu.memory_space<smem>>
    %20 = vector.broadcast %19 : f32 to vector<16x16xf32>
    %21 = arith.mulf %20, %9 : vector<16x16xf32>
    %22 = arith.addf %18, %21 : vector<16x16xf32>
    %c3_22 = arith.constant 3 : index
    %23 = memref.load %arg2[%c3_22] : memref<16xf32, #tpu.memory_space<smem>>
    %24 = vector.broadcast %23 : f32 to vector<16x16xf32>
    %25 = arith.mulf %24, %11 : vector<16x16xf32>
    %26 = arith.addf %22, %25 : vector<16x16xf32>
    %c0_23 = arith.constant 0 : index
    %27 = memref.load %arg3[%c0_23] : memref<4xf32, #tpu.memory_space<smem>>
    %28 = vector.broadcast %27 : f32 to vector<16x16xf32>
    %29 = arith.addf %26, %28 : vector<16x16xf32>
    %c4 = arith.constant 4 : index
    %30 = memref.load %arg2[%c4] : memref<16xf32, #tpu.memory_space<smem>>
    %31 = vector.broadcast %30 : f32 to vector<16x16xf32>
    %32 = arith.mulf %31, %5 : vector<16x16xf32>
    %c5 = arith.constant 5 : index
    %33 = memref.load %arg2[%c5] : memref<16xf32, #tpu.memory_space<smem>>
    %34 = vector.broadcast %33 : f32 to vector<16x16xf32>
    %35 = arith.mulf %34, %7 : vector<16x16xf32>
    %36 = arith.addf %32, %35 : vector<16x16xf32>
    %c6 = arith.constant 6 : index
    %37 = memref.load %arg2[%c6] : memref<16xf32, #tpu.memory_space<smem>>
    %38 = vector.broadcast %37 : f32 to vector<16x16xf32>
    %39 = arith.mulf %38, %9 : vector<16x16xf32>
    %40 = arith.addf %36, %39 : vector<16x16xf32>
    %c7 = arith.constant 7 : index
    %41 = memref.load %arg2[%c7] : memref<16xf32, #tpu.memory_space<smem>>
    %42 = vector.broadcast %41 : f32 to vector<16x16xf32>
    %43 = arith.mulf %42, %11 : vector<16x16xf32>
    %44 = arith.addf %40, %43 : vector<16x16xf32>
    %c1_24 = arith.constant 1 : index
    %45 = memref.load %arg3[%c1_24] : memref<4xf32, #tpu.memory_space<smem>>
    %46 = vector.broadcast %45 : f32 to vector<16x16xf32>
    %47 = arith.addf %44, %46 : vector<16x16xf32>
    %c8 = arith.constant 8 : index
    %48 = memref.load %arg2[%c8] : memref<16xf32, #tpu.memory_space<smem>>
    %49 = vector.broadcast %48 : f32 to vector<16x16xf32>
    %50 = arith.mulf %49, %5 : vector<16x16xf32>
    %c9 = arith.constant 9 : index
    %51 = memref.load %arg2[%c9] : memref<16xf32, #tpu.memory_space<smem>>
    %52 = vector.broadcast %51 : f32 to vector<16x16xf32>
    %53 = arith.mulf %52, %7 : vector<16x16xf32>
    %54 = arith.addf %50, %53 : vector<16x16xf32>
    %c10 = arith.constant 10 : index
    %55 = memref.load %arg2[%c10] : memref<16xf32, #tpu.memory_space<smem>>
    %56 = vector.broadcast %55 : f32 to vector<16x16xf32>
    %57 = arith.mulf %56, %9 : vector<16x16xf32>
    %58 = arith.addf %54, %57 : vector<16x16xf32>
    %c11 = arith.constant 11 : index
    %59 = memref.load %arg2[%c11] : memref<16xf32, #tpu.memory_space<smem>>
    %60 = vector.broadcast %59 : f32 to vector<16x16xf32>
    %61 = arith.mulf %60, %11 : vector<16x16xf32>
    %62 = arith.addf %58, %61 : vector<16x16xf32>
    %c2_25 = arith.constant 2 : index
    %63 = memref.load %arg3[%c2_25] : memref<4xf32, #tpu.memory_space<smem>>
    %64 = vector.broadcast %63 : f32 to vector<16x16xf32>
    %65 = arith.addf %62, %64 : vector<16x16xf32>
    %c12 = arith.constant 12 : index
    %66 = memref.load %arg2[%c12] : memref<16xf32, #tpu.memory_space<smem>>
    %67 = vector.broadcast %66 : f32 to vector<16x16xf32>
    %68 = arith.mulf %67, %5 : vector<16x16xf32>
    %c13 = arith.constant 13 : index
    %69 = memref.load %arg2[%c13] : memref<16xf32, #tpu.memory_space<smem>>
    %70 = vector.broadcast %69 : f32 to vector<16x16xf32>
    %71 = arith.mulf %70, %7 : vector<16x16xf32>
    %72 = arith.addf %68, %71 : vector<16x16xf32>
    %c14 = arith.constant 14 : index
    %73 = memref.load %arg2[%c14] : memref<16xf32, #tpu.memory_space<smem>>
    %74 = vector.broadcast %73 : f32 to vector<16x16xf32>
    %75 = arith.mulf %74, %9 : vector<16x16xf32>
    %76 = arith.addf %72, %75 : vector<16x16xf32>
    %c15 = arith.constant 15 : index
    %77 = memref.load %arg2[%c15] : memref<16xf32, #tpu.memory_space<smem>>
    %78 = vector.broadcast %77 : f32 to vector<16x16xf32>
    %79 = arith.mulf %78, %11 : vector<16x16xf32>
    %80 = arith.addf %76, %79 : vector<16x16xf32>
    %c3_26 = arith.constant 3 : index
    %81 = memref.load %arg3[%c3_26] : memref<4xf32, #tpu.memory_space<smem>>
    %82 = vector.broadcast %81 : f32 to vector<16x16xf32>
    %83 = arith.addf %80, %82 : vector<16x16xf32>
    %c0_27 = arith.constant 0 : index
    %c0_28 = arith.constant 0 : index
    %c0_29 = arith.constant 0 : index
    %c0_30 = arith.constant 0 : index
    %84 = vector.load %arg11[%c0_27, %c0_28, %c0_29, %c0_30] : memref<1x4x16x16xf32, #tpu.memory_space<vmem>>, vector<1x1x16x16xf32>
    %85 = vector.shape_cast %84 : vector<1x1x16x16xf32> to vector<16x16xf32>
    %86 = vector.shape_cast %29 : vector<16x16xf32> to vector<1x1x16x16xf32>
    tpu.vector_store %arg11[%c0_27, %c0_28, %c0_29, %c0_30], %86 {strides = array<i32>} : memref<1x4x16x16xf32, #tpu.memory_space<vmem>>, vector<1x1x16x16xf32>,
    %c0_31 = arith.constant 0 : index
    %c1_32 = arith.constant 1 : index
    %c1_33 = arith.constant 1 : index
    %87 = vector.load %arg12[%c0_31, %c1_32, %c1_33] : memref<2x18x18xf32, #tpu.memory_space<vmem>>, vector<1x16x16xf32>
    %88 = vector.shape_cast %87 : vector<1x16x16xf32> to vector<16x16xf32>
    %89 = vector.shape_cast %29 : vector<16x16xf32> to vector<1x16x16xf32>
    tpu.vector_store %arg12[%c0_31, %c1_32, %c1_33], %89 {strides = array<i32>} : memref<2x18x18xf32, #tpu.memory_space<vmem>>, vector<1x16x16xf32>,
    %c0_34 = arith.constant 0 : index
    %c1_35 = arith.constant 1 : index
    %c0_36 = arith.constant 0 : index
    %c0_37 = arith.constant 0 : index
    %90 = vector.load %arg11[%c0_34, %c1_35, %c0_36, %c0_37] : memref<1x4x16x16xf32, #tpu.memory_space<vmem>>, vector<1x1x16x16xf32>
    %91 = vector.shape_cast %90 : vector<1x1x16x16xf32> to vector<16x16xf32>
    %92 = vector.shape_cast %47 : vector<16x16xf32> to vector<1x1x16x16xf32>
    tpu.vector_store %arg11[%c0_34, %c1_35, %c0_36, %c0_37], %92 {strides = array<i32>} : memref<1x4x16x16xf32, #tpu.memory_space<vmem>>, vector<1x1x16x16xf32>,
    %c1_38 = arith.constant 1 : index
    %c1_39 = arith.constant 1 : index
    %c1_40 = arith.constant 1 : index
    %93 = vector.load %arg12[%c1_38, %c1_39, %c1_40] : memref<2x18x18xf32, #tpu.memory_space<vmem>>, vector<1x16x16xf32>
    %94 = vector.shape_cast %93 : vector<1x16x16xf32> to vector<16x16xf32>
    %95 = vector.shape_cast %47 : vector<16x16xf32> to vector<1x16x16xf32>
    tpu.vector_store %arg12[%c1_38, %c1_39, %c1_40], %95 {strides = array<i32>} : memref<2x18x18xf32, #tpu.memory_space<vmem>>, vector<1x16x16xf32>,
    %c0_41 = arith.constant 0 : index
    %c0_42 = arith.constant 0 : index
    %c0_43 = arith.constant 0 : index
    %96 = vector.load %arg12[%c0_41, %c0_42, %c0_43] : memref<2x18x18xf32, #tpu.memory_space<vmem>>, vector<1x16x16xf32>
    %97 = vector.shape_cast %96 : vector<1x16x16xf32> to vector<16x16xf32>
    %c0_44 = arith.constant 0 : index
    %98 = memref.load %arg4[%c0_44] : memref<144xf32, #tpu.memory_space<smem>>
    %99 = vector.broadcast %98 : f32 to vector<16x16xf32>
    %100 = arith.mulf %99, %97 : vector<16x16xf32>
    %c1_45 = arith.constant 1 : index
    %101 = memref.load %arg4[%c1_45] : memref<144xf32, #tpu.memory_space<smem>>
    %102 = vector.broadcast %101 : f32 to vector<16x16xf32>
    %103 = arith.mulf %102, %97 : vector<16x16xf32>
    %c2_46 = arith.constant 2 : index
    %104 = memref.load %arg4[%c2_46] : memref<144xf32, #tpu.memory_space<smem>>
    %105 = vector.broadcast %104 : f32 to vector<16x16xf32>
    %106 = arith.mulf %105, %97 : vector<16x16xf32>
    %c3_47 = arith.constant 3 : index
    %107 = memref.load %arg4[%c3_47] : memref<144xf32, #tpu.memory_space<smem>>
    %108 = vector.broadcast %107 : f32 to vector<16x16xf32>
    %109 = arith.mulf %108, %97 : vector<16x16xf32>
    %c4_48 = arith.constant 4 : index
    %110 = memref.load %arg4[%c4_48] : memref<144xf32, #tpu.memory_space<smem>>
    %111 = vector.broadcast %110 : f32 to vector<16x16xf32>
    %112 = arith.mulf %111, %97 : vector<16x16xf32>
    %c5_49 = arith.constant 5 : index
    %113 = memref.load %arg4[%c5_49] : memref<144xf32, #tpu.memory_space<smem>>
    %114 = vector.broadcast %113 : f32 to vector<16x16xf32>
    %115 = arith.mulf %114, %97 : vector<16x16xf32>
    %c6_50 = arith.constant 6 : index
    %116 = memref.load %arg4[%c6_50] : memref<144xf32, #tpu.memory_space<smem>>
    %117 = vector.broadcast %116 : f32 to vector<16x16xf32>
    %118 = arith.mulf %117, %97 : vector<16x16xf32>
    %c7_51 = arith.constant 7 : index
    %119 = memref.load %arg4[%c7_51] : memref<144xf32, #tpu.memory_space<smem>>
    %120 = vector.broadcast %119 : f32 to vector<16x16xf32>
    %121 = arith.mulf %120, %97 : vector<16x16xf32>
    %c0_52 = arith.constant 0 : index
    %c0_53 = arith.constant 0 : index
    %c1_54 = arith.constant 1 : index
    %122 = vector.load %arg12[%c0_52, %c0_53, %c1_54] : memref<2x18x18xf32, #tpu.memory_space<vmem>>, vector<1x16x16xf32>
    %123 = vector.shape_cast %122 : vector<1x16x16xf32> to vector<16x16xf32>
    %c16 = arith.constant 16 : index
    %124 = memref.load %arg4[%c16] : memref<144xf32, #tpu.memory_space<smem>>
    %125 = vector.broadcast %124 : f32 to vector<16x16xf32>
    %126 = arith.mulf %125, %123 : vector<16x16xf32>
    %127 = arith.addf %100, %126 : vector<16x16xf32>
    %c17 = arith.constant 17 : index
    %128 = memref.load %arg4[%c17] : memref<144xf32, #tpu.memory_space<smem>>
    %129 = vector.broadcast %128 : f32 to vector<16x16xf32>
    %130 = arith.mulf %129, %123 : vector<16x16xf32>
    %131 = arith.addf %103, %130 : vector<16x16xf32>
    %c18 = arith.constant 18 : index
    %132 = memref.load %arg4[%c18] : memref<144xf32, #tpu.memory_space<smem>>
    %133 = vector.broadcast %132 : f32 to vector<16x16xf32>
    %134 = arith.mulf %133, %123 : vector<16x16xf32>
    %135 = arith.addf %106, %134 : vector<16x16xf32>
    %c19 = arith.constant 19 : index
    %136 = memref.load %arg4[%c19] : memref<144xf32, #tpu.memory_space<smem>>
    %137 = vector.broadcast %136 : f32 to vector<16x16xf32>
    %138 = arith.mulf %137, %123 : vector<16x16xf32>
    %139 = arith.addf %109, %138 : vector<16x16xf32>
    %c20 = arith.constant 20 : index
    %140 = memref.load %arg4[%c20] : memref<144xf32, #tpu.memory_space<smem>>
    %141 = vector.broadcast %140 : f32 to vector<16x16xf32>
    %142 = arith.mulf %141, %123 : vector<16x16xf32>
    %143 = arith.addf %112, %142 : vector<16x16xf32>
    %c21 = arith.constant 21 : index
    %144 = memref.load %arg4[%c21] : memref<144xf32, #tpu.memory_space<smem>>
    %145 = vector.broadcast %144 : f32 to vector<16x16xf32>
    %146 = arith.mulf %145, %123 : vector<16x16xf32>
    %147 = arith.addf %115, %146 : vector<16x16xf32>
    %c22 = arith.constant 22 : index
    %148 = memref.load %arg4[%c22] : memref<144xf32, #tpu.memory_space<smem>>
    %149 = vector.broadcast %148 : f32 to vector<16x16xf32>
    %150 = arith.mulf %149, %123 : vector<16x16xf32>
    %151 = arith.addf %118, %150 : vector<16x16xf32>
    %c23 = arith.constant 23 : index
    %152 = memref.load %arg4[%c23] : memref<144xf32, #tpu.memory_space<smem>>
    %153 = vector.broadcast %152 : f32 to vector<16x16xf32>
    %154 = arith.mulf %153, %123 : vector<16x16xf32>
    %155 = arith.addf %121, %154 : vector<16x16xf32>
    %c0_55 = arith.constant 0 : index
    %c0_56 = arith.constant 0 : index
    %c2_57 = arith.constant 2 : index
    %156 = vector.load %arg12[%c0_55, %c0_56, %c2_57] : memref<2x18x18xf32, #tpu.memory_space<vmem>>, vector<1x16x16xf32>
    %157 = vector.shape_cast %156 : vector<1x16x16xf32> to vector<16x16xf32>
    %c32 = arith.constant 32 : index
    %158 = memref.load %arg4[%c32] : memref<144xf32, #tpu.memory_space<smem>>
    %159 = vector.broadcast %158 : f32 to vector<16x16xf32>
    %160 = arith.mulf %159, %157 : vector<16x16xf32>
    %161 = arith.addf %127, %160 : vector<16x16xf32>
    %c33 = arith.constant 33 : index
    %162 = memref.load %arg4[%c33] : memref<144xf32, #tpu.memory_space<smem>>
    %163 = vector.broadcast %162 : f32 to vector<16x16xf32>
    %164 = arith.mulf %163, %157 : vector<16x16xf32>
    %165 = arith.addf %131, %164 : vector<16x16xf32>
    %c34 = arith.constant 34 : index
    %166 = memref.load %arg4[%c34] : memref<144xf32, #tpu.memory_space<smem>>
    %167 = vector.broadcast %166 : f32 to vector<16x16xf32>
    %168 = arith.mulf %167, %157 : vector<16x16xf32>
    %169 = arith.addf %135, %168 : vector<16x16xf32>
    %c35 = arith.constant 35 : index
    %170 = memref.load %arg4[%c35] : memref<144xf32, #tpu.memory_space<smem>>
    %171 = vector.broadcast %170 : f32 to vector<16x16xf32>
    %172 = arith.mulf %171, %157 : vector<16x16xf32>
    %173 = arith.addf %139, %172 : vector<16x16xf32>
    %c36 = arith.constant 36 : index
    %174 = memref.load %arg4[%c36] : memref<144xf32, #tpu.memory_space<smem>>
    %175 = vector.broadcast %174 : f32 to vector<16x16xf32>
    %176 = arith.mulf %175, %157 : vector<16x16xf32>
    %177 = arith.addf %143, %176 : vector<16x16xf32>
    %c37 = arith.constant 37 : index
    %178 = memref.load %arg4[%c37] : memref<144xf32, #tpu.memory_space<smem>>
    %179 = vector.broadcast %178 : f32 to vector<16x16xf32>
    %180 = arith.mulf %179, %157 : vector<16x16xf32>
    %181 = arith.addf %147, %180 : vector<16x16xf32>
    %c38 = arith.constant 38 : index
    %182 = memref.load %arg4[%c38] : memref<144xf32, #tpu.memory_space<smem>>
    %183 = vector.broadcast %182 : f32 to vector<16x16xf32>
    %184 = arith.mulf %183, %157 : vector<16x16xf32>
    %185 = arith.addf %151, %184 : vector<16x16xf32>
    %c39 = arith.constant 39 : index
    %186 = memref.load %arg4[%c39] : memref<144xf32, #tpu.memory_space<smem>>
    %187 = vector.broadcast %186 : f32 to vector<16x16xf32>
    %188 = arith.mulf %187, %157 : vector<16x16xf32>
    %189 = arith.addf %155, %188 : vector<16x16xf32>
    %c0_58 = arith.constant 0 : index
    %c1_59 = arith.constant 1 : index
    %c0_60 = arith.constant 0 : index
    %190 = vector.load %arg12[%c0_58, %c1_59, %c0_60] : memref<2x18x18xf32, #tpu.memory_space<vmem>>, vector<1x16x16xf32>
    %191 = vector.shape_cast %190 : vector<1x16x16xf32> to vector<16x16xf32>
    %c48 = arith.constant 48 : index
    %192 = memref.load %arg4[%c48] : memref<144xf32, #tpu.memory_space<smem>>
    %193 = vector.broadcast %192 : f32 to vector<16x16xf32>
    %194 = arith.mulf %193, %191 : vector<16x16xf32>
    %195 = arith.addf %161, %194 : vector<16x16xf32>
    %c49 = arith.constant 49 : index
    %196 = memref.load %arg4[%c49] : memref<144xf32, #tpu.memory_space<smem>>
    %197 = vector.broadcast %196 : f32 to vector<16x16xf32>
    %198 = arith.mulf %197, %191 : vector<16x16xf32>
    %199 = arith.addf %165, %198 : vector<16x16xf32>
    %c50 = arith.constant 50 : index
    %200 = memref.load %arg4[%c50] : memref<144xf32, #tpu.memory_space<smem>>
    %201 = vector.broadcast %200 : f32 to vector<16x16xf32>
    %202 = arith.mulf %201, %191 : vector<16x16xf32>
    %203 = arith.addf %169, %202 : vector<16x16xf32>
    %c51 = arith.constant 51 : index
    %204 = memref.load %arg4[%c51] : memref<144xf32, #tpu.memory_space<smem>>
    %205 = vector.broadcast %204 : f32 to vector<16x16xf32>
    %206 = arith.mulf %205, %191 : vector<16x16xf32>
    %207 = arith.addf %173, %206 : vector<16x16xf32>
    %c52 = arith.constant 52 : index
    %208 = memref.load %arg4[%c52] : memref<144xf32, #tpu.memory_space<smem>>
    %209 = vector.broadcast %208 : f32 to vector<16x16xf32>
    %210 = arith.mulf %209, %191 : vector<16x16xf32>
    %211 = arith.addf %177, %210 : vector<16x16xf32>
    %c53 = arith.constant 53 : index
    %212 = memref.load %arg4[%c53] : memref<144xf32, #tpu.memory_space<smem>>
    %213 = vector.broadcast %212 : f32 to vector<16x16xf32>
    %214 = arith.mulf %213, %191 : vector<16x16xf32>
    %215 = arith.addf %181, %214 : vector<16x16xf32>
    %c54 = arith.constant 54 : index
    %216 = memref.load %arg4[%c54] : memref<144xf32, #tpu.memory_space<smem>>
    %217 = vector.broadcast %216 : f32 to vector<16x16xf32>
    %218 = arith.mulf %217, %191 : vector<16x16xf32>
    %219 = arith.addf %185, %218 : vector<16x16xf32>
    %c55 = arith.constant 55 : index
    %220 = memref.load %arg4[%c55] : memref<144xf32, #tpu.memory_space<smem>>
    %221 = vector.broadcast %220 : f32 to vector<16x16xf32>
    %222 = arith.mulf %221, %191 : vector<16x16xf32>
    %223 = arith.addf %189, %222 : vector<16x16xf32>
    %c0_61 = arith.constant 0 : index
    %c1_62 = arith.constant 1 : index
    %c1_63 = arith.constant 1 : index
    %224 = vector.load %arg12[%c0_61, %c1_62, %c1_63] : memref<2x18x18xf32, #tpu.memory_space<vmem>>, vector<1x16x16xf32>
    %225 = vector.shape_cast %224 : vector<1x16x16xf32> to vector<16x16xf32>
    %c64 = arith.constant 64 : index
    %226 = memref.load %arg4[%c64] : memref<144xf32, #tpu.memory_space<smem>>
    %227 = vector.broadcast %226 : f32 to vector<16x16xf32>
    %228 = arith.mulf %227, %225 : vector<16x16xf32>
    %229 = arith.addf %195, %228 : vector<16x16xf32>
    %c65 = arith.constant 65 : index
    %230 = memref.load %arg4[%c65] : memref<144xf32, #tpu.memory_space<smem>>
    %231 = vector.broadcast %230 : f32 to vector<16x16xf32>
    %232 = arith.mulf %231, %225 : vector<16x16xf32>
    %233 = arith.addf %199, %232 : vector<16x16xf32>
    %c66 = arith.constant 66 : index
    %234 = memref.load %arg4[%c66] : memref<144xf32, #tpu.memory_space<smem>>
    %235 = vector.broadcast %234 : f32 to vector<16x16xf32>
    %236 = arith.mulf %235, %225 : vector<16x16xf32>
    %237 = arith.addf %203, %236 : vector<16x16xf32>
    %c67 = arith.constant 67 : index
    %238 = memref.load %arg4[%c67] : memref<144xf32, #tpu.memory_space<smem>>
    %239 = vector.broadcast %238 : f32 to vector<16x16xf32>
    %240 = arith.mulf %239, %225 : vector<16x16xf32>
    %241 = arith.addf %207, %240 : vector<16x16xf32>
    %c68 = arith.constant 68 : index
    %242 = memref.load %arg4[%c68] : memref<144xf32, #tpu.memory_space<smem>>
    %243 = vector.broadcast %242 : f32 to vector<16x16xf32>
    %244 = arith.mulf %243, %225 : vector<16x16xf32>
    %245 = arith.addf %211, %244 : vector<16x16xf32>
    %c69 = arith.constant 69 : index
    %246 = memref.load %arg4[%c69] : memref<144xf32, #tpu.memory_space<smem>>
    %247 = vector.broadcast %246 : f32 to vector<16x16xf32>
    %248 = arith.mulf %247, %225 : vector<16x16xf32>
    %249 = arith.addf %215, %248 : vector<16x16xf32>
    %c70 = arith.constant 70 : index
    %250 = memref.load %arg4[%c70] : memref<144xf32, #tpu.memory_space<smem>>
    %251 = vector.broadcast %250 : f32 to vector<16x16xf32>
    %252 = arith.mulf %251, %225 : vector<16x16xf32>
    %253 = arith.addf %219, %252 : vector<16x16xf32>
    %c71 = arith.constant 71 : index
    %254 = memref.load %arg4[%c71] : memref<144xf32, #tpu.memory_space<smem>>
    %255 = vector.broadcast %254 : f32 to vector<16x16xf32>
    %256 = arith.mulf %255, %225 : vector<16x16xf32>
    %257 = arith.addf %223, %256 : vector<16x16xf32>
    %c0_64 = arith.constant 0 : index
    %c1_65 = arith.constant 1 : index
    %c2_66 = arith.constant 2 : index
    %258 = vector.load %arg12[%c0_64, %c1_65, %c2_66] : memref<2x18x18xf32, #tpu.memory_space<vmem>>, vector<1x16x16xf32>
    %259 = vector.shape_cast %258 : vector<1x16x16xf32> to vector<16x16xf32>
    %c80 = arith.constant 80 : index
    %260 = memref.load %arg4[%c80] : memref<144xf32, #tpu.memory_space<smem>>
    %261 = vector.broadcast %260 : f32 to vector<16x16xf32>
    %262 = arith.mulf %261, %259 : vector<16x16xf32>
    %263 = arith.addf %229, %262 : vector<16x16xf32>
    %c81 = arith.constant 81 : index
    %264 = memref.load %arg4[%c81] : memref<144xf32, #tpu.memory_space<smem>>
    %265 = vector.broadcast %264 : f32 to vector<16x16xf32>
    %266 = arith.mulf %265, %259 : vector<16x16xf32>
    %267 = arith.addf %233, %266 : vector<16x16xf32>
    %c82 = arith.constant 82 : index
    %268 = memref.load %arg4[%c82] : memref<144xf32, #tpu.memory_space<smem>>
    %269 = vector.broadcast %268 : f32 to vector<16x16xf32>
    %270 = arith.mulf %269, %259 : vector<16x16xf32>
    %271 = arith.addf %237, %270 : vector<16x16xf32>
    %c83 = arith.constant 83 : index
    %272 = memref.load %arg4[%c83] : memref<144xf32, #tpu.memory_space<smem>>
    %273 = vector.broadcast %272 : f32 to vector<16x16xf32>
    %274 = arith.mulf %273, %259 : vector<16x16xf32>
    %275 = arith.addf %241, %274 : vector<16x16xf32>
    %c84 = arith.constant 84 : index
    %276 = memref.load %arg4[%c84] : memref<144xf32, #tpu.memory_space<smem>>
    %277 = vector.broadcast %276 : f32 to vector<16x16xf32>
    %278 = arith.mulf %277, %259 : vector<16x16xf32>
    %279 = arith.addf %245, %278 : vector<16x16xf32>
    %c85 = arith.constant 85 : index
    %280 = memref.load %arg4[%c85] : memref<144xf32, #tpu.memory_space<smem>>
    %281 = vector.broadcast %280 : f32 to vector<16x16xf32>
    %282 = arith.mulf %281, %259 : vector<16x16xf32>
    %283 = arith.addf %249, %282 : vector<16x16xf32>
    %c86 = arith.constant 86 : index
    %284 = memref.load %arg4[%c86] : memref<144xf32, #tpu.memory_space<smem>>
    %285 = vector.broadcast %284 : f32 to vector<16x16xf32>
    %286 = arith.mulf %285, %259 : vector<16x16xf32>
    %287 = arith.addf %253, %286 : vector<16x16xf32>
    %c87 = arith.constant 87 : index
    %288 = memref.load %arg4[%c87] : memref<144xf32, #tpu.memory_space<smem>>
    %289 = vector.broadcast %288 : f32 to vector<16x16xf32>
    %290 = arith.mulf %289, %259 : vector<16x16xf32>
    %291 = arith.addf %257, %290 : vector<16x16xf32>
    %c0_67 = arith.constant 0 : index
    %c2_68 = arith.constant 2 : index
    %c0_69 = arith.constant 0 : index
    %292 = vector.load %arg12[%c0_67, %c2_68, %c0_69] : memref<2x18x18xf32, #tpu.memory_space<vmem>>, vector<1x16x16xf32>
    %293 = vector.shape_cast %292 : vector<1x16x16xf32> to vector<16x16xf32>
    %c96 = arith.constant 96 : index
    %294 = memref.load %arg4[%c96] : memref<144xf32, #tpu.memory_space<smem>>
    %295 = vector.broadcast %294 : f32 to vector<16x16xf32>
    %296 = arith.mulf %295, %293 : vector<16x16xf32>
    %297 = arith.addf %263, %296 : vector<16x16xf32>
    %c97 = arith.constant 97 : index
    %298 = memref.load %arg4[%c97] : memref<144xf32, #tpu.memory_space<smem>>
    %299 = vector.broadcast %298 : f32 to vector<16x16xf32>
    %300 = arith.mulf %299, %293 : vector<16x16xf32>
    %301 = arith.addf %267, %300 : vector<16x16xf32>
    %c98 = arith.constant 98 : index
    %302 = memref.load %arg4[%c98] : memref<144xf32, #tpu.memory_space<smem>>
    %303 = vector.broadcast %302 : f32 to vector<16x16xf32>
    %304 = arith.mulf %303, %293 : vector<16x16xf32>
    %305 = arith.addf %271, %304 : vector<16x16xf32>
    %c99 = arith.constant 99 : index
    %306 = memref.load %arg4[%c99] : memref<144xf32, #tpu.memory_space<smem>>
    %307 = vector.broadcast %306 : f32 to vector<16x16xf32>
    %308 = arith.mulf %307, %293 : vector<16x16xf32>
    %309 = arith.addf %275, %308 : vector<16x16xf32>
    %c100 = arith.constant 100 : index
    %310 = memref.load %arg4[%c100] : memref<144xf32, #tpu.memory_space<smem>>
    %311 = vector.broadcast %310 : f32 to vector<16x16xf32>
    %312 = arith.mulf %311, %293 : vector<16x16xf32>
    %313 = arith.addf %279, %312 : vector<16x16xf32>
    %c101 = arith.constant 101 : index
    %314 = memref.load %arg4[%c101] : memref<144xf32, #tpu.memory_space<smem>>
    %315 = vector.broadcast %314 : f32 to vector<16x16xf32>
    %316 = arith.mulf %315, %293 : vector<16x16xf32>
    %317 = arith.addf %283, %316 : vector<16x16xf32>
    %c102 = arith.constant 102 : index
    %318 = memref.load %arg4[%c102] : memref<144xf32, #tpu.memory_space<smem>>
    %319 = vector.broadcast %318 : f32 to vector<16x16xf32>
    %320 = arith.mulf %319, %293 : vector<16x16xf32>
    %321 = arith.addf %287, %320 : vector<16x16xf32>
    %c103 = arith.constant 103 : index
    %322 = memref.load %arg4[%c103] : memref<144xf32, #tpu.memory_space<smem>>
    %323 = vector.broadcast %322 : f32 to vector<16x16xf32>
    %324 = arith.mulf %323, %293 : vector<16x16xf32>
    %325 = arith.addf %291, %324 : vector<16x16xf32>
    %c0_70 = arith.constant 0 : index
    %c2_71 = arith.constant 2 : index
    %c1_72 = arith.constant 1 : index
    %326 = vector.load %arg12[%c0_70, %c2_71, %c1_72] : memref<2x18x18xf32, #tpu.memory_space<vmem>>, vector<1x16x16xf32>
    %327 = vector.shape_cast %326 : vector<1x16x16xf32> to vector<16x16xf32>
    %c112 = arith.constant 112 : index
    %328 = memref.load %arg4[%c112] : memref<144xf32, #tpu.memory_space<smem>>
    %329 = vector.broadcast %328 : f32 to vector<16x16xf32>
    %330 = arith.mulf %329, %327 : vector<16x16xf32>
    %331 = arith.addf %297, %330 : vector<16x16xf32>
    %c113 = arith.constant 113 : index
    %332 = memref.load %arg4[%c113] : memref<144xf32, #tpu.memory_space<smem>>
    %333 = vector.broadcast %332 : f32 to vector<16x16xf32>
    %334 = arith.mulf %333, %327 : vector<16x16xf32>
    %335 = arith.addf %301, %334 : vector<16x16xf32>
    %c114 = arith.constant 114 : index
    %336 = memref.load %arg4[%c114] : memref<144xf32, #tpu.memory_space<smem>>
    %337 = vector.broadcast %336 : f32 to vector<16x16xf32>
    %338 = arith.mulf %337, %327 : vector<16x16xf32>
    %339 = arith.addf %305, %338 : vector<16x16xf32>
    %c115 = arith.constant 115 : index
    %340 = memref.load %arg4[%c115] : memref<144xf32, #tpu.memory_space<smem>>
    %341 = vector.broadcast %340 : f32 to vector<16x16xf32>
    %342 = arith.mulf %341, %327 : vector<16x16xf32>
    %343 = arith.addf %309, %342 : vector<16x16xf32>
    %c116 = arith.constant 116 : index
    %344 = memref.load %arg4[%c116] : memref<144xf32, #tpu.memory_space<smem>>
    %345 = vector.broadcast %344 : f32 to vector<16x16xf32>
    %346 = arith.mulf %345, %327 : vector<16x16xf32>
    %347 = arith.addf %313, %346 : vector<16x16xf32>
    %c117 = arith.constant 117 : index
    %348 = memref.load %arg4[%c117] : memref<144xf32, #tpu.memory_space<smem>>
    %349 = vector.broadcast %348 : f32 to vector<16x16xf32>
    %350 = arith.mulf %349, %327 : vector<16x16xf32>
    %351 = arith.addf %317, %350 : vector<16x16xf32>
    %c118 = arith.constant 118 : index
    %352 = memref.load %arg4[%c118] : memref<144xf32, #tpu.memory_space<smem>>
    %353 = vector.broadcast %352 : f32 to vector<16x16xf32>
    %354 = arith.mulf %353, %327 : vector<16x16xf32>
    %355 = arith.addf %321, %354 : vector<16x16xf32>
    %c119 = arith.constant 119 : index
    %356 = memref.load %arg4[%c119] : memref<144xf32, #tpu.memory_space<smem>>
    %357 = vector.broadcast %356 : f32 to vector<16x16xf32>
    %358 = arith.mulf %357, %327 : vector<16x16xf32>
    %359 = arith.addf %325, %358 : vector<16x16xf32>
    %c0_73 = arith.constant 0 : index
    %c2_74 = arith.constant 2 : index
    %c2_75 = arith.constant 2 : index
    %360 = vector.load %arg12[%c0_73, %c2_74, %c2_75] : memref<2x18x18xf32, #tpu.memory_space<vmem>>, vector<1x16x16xf32>
    %361 = vector.shape_cast %360 : vector<1x16x16xf32> to vector<16x16xf32>
    %c128 = arith.constant 128 : index
    %362 = memref.load %arg4[%c128] : memref<144xf32, #tpu.memory_space<smem>>
    %363 = vector.broadcast %362 : f32 to vector<16x16xf32>
    %364 = arith.mulf %363, %361 : vector<16x16xf32>
    %365 = arith.addf %331, %364 : vector<16x16xf32>
    %c129 = arith.constant 129 : index
    %366 = memref.load %arg4[%c129] : memref<144xf32, #tpu.memory_space<smem>>
    %367 = vector.broadcast %366 : f32 to vector<16x16xf32>
    %368 = arith.mulf %367, %361 : vector<16x16xf32>
    %369 = arith.addf %335, %368 : vector<16x16xf32>
    %c130 = arith.constant 130 : index
    %370 = memref.load %arg4[%c130] : memref<144xf32, #tpu.memory_space<smem>>
    %371 = vector.broadcast %370 : f32 to vector<16x16xf32>
    %372 = arith.mulf %371, %361 : vector<16x16xf32>
    %373 = arith.addf %339, %372 : vector<16x16xf32>
    %c131 = arith.constant 131 : index
    %374 = memref.load %arg4[%c131] : memref<144xf32, #tpu.memory_space<smem>>
    %375 = vector.broadcast %374 : f32 to vector<16x16xf32>
    %376 = arith.mulf %375, %361 : vector<16x16xf32>
    %377 = arith.addf %343, %376 : vector<16x16xf32>
    %c132 = arith.constant 132 : index
    %378 = memref.load %arg4[%c132] : memref<144xf32, #tpu.memory_space<smem>>
    %379 = vector.broadcast %378 : f32 to vector<16x16xf32>
    %380 = arith.mulf %379, %361 : vector<16x16xf32>
    %381 = arith.addf %347, %380 : vector<16x16xf32>
    %c133 = arith.constant 133 : index
    %382 = memref.load %arg4[%c133] : memref<144xf32, #tpu.memory_space<smem>>
    %383 = vector.broadcast %382 : f32 to vector<16x16xf32>
    %384 = arith.mulf %383, %361 : vector<16x16xf32>
    %385 = arith.addf %351, %384 : vector<16x16xf32>
    %c134 = arith.constant 134 : index
    %386 = memref.load %arg4[%c134] : memref<144xf32, #tpu.memory_space<smem>>
    %387 = vector.broadcast %386 : f32 to vector<16x16xf32>
    %388 = arith.mulf %387, %361 : vector<16x16xf32>
    %389 = arith.addf %355, %388 : vector<16x16xf32>
    %c135 = arith.constant 135 : index
    %390 = memref.load %arg4[%c135] : memref<144xf32, #tpu.memory_space<smem>>
    %391 = vector.broadcast %390 : f32 to vector<16x16xf32>
    %392 = arith.mulf %391, %361 : vector<16x16xf32>
    %393 = arith.addf %359, %392 : vector<16x16xf32>
    %c1_76 = arith.constant 1 : index
    %c0_77 = arith.constant 0 : index
    %c0_78 = arith.constant 0 : index
    %394 = vector.load %arg12[%c1_76, %c0_77, %c0_78] : memref<2x18x18xf32, #tpu.memory_space<vmem>>, vector<1x16x16xf32>
    %395 = vector.shape_cast %394 : vector<1x16x16xf32> to vector<16x16xf32>
    %c8_79 = arith.constant 8 : index
    %396 = memref.load %arg4[%c8_79] : memref<144xf32, #tpu.memory_space<smem>>
    %397 = vector.broadcast %396 : f32 to vector<16x16xf32>
    %398 = arith.mulf %397, %395 : vector<16x16xf32>
    %399 = arith.addf %365, %398 : vector<16x16xf32>
    %c9_80 = arith.constant 9 : index
    %400 = memref.load %arg4[%c9_80] : memref<144xf32, #tpu.memory_space<smem>>
    %401 = vector.broadcast %400 : f32 to vector<16x16xf32>
    %402 = arith.mulf %401, %395 : vector<16x16xf32>
    %403 = arith.addf %369, %402 : vector<16x16xf32>
    %c10_81 = arith.constant 10 : index
    %404 = memref.load %arg4[%c10_81] : memref<144xf32, #tpu.memory_space<smem>>
    %405 = vector.broadcast %404 : f32 to vector<16x16xf32>
    %406 = arith.mulf %405, %395 : vector<16x16xf32>
    %407 = arith.addf %373, %406 : vector<16x16xf32>
    %c11_82 = arith.constant 11 : index
    %408 = memref.load %arg4[%c11_82] : memref<144xf32, #tpu.memory_space<smem>>
    %409 = vector.broadcast %408 : f32 to vector<16x16xf32>
    %410 = arith.mulf %409, %395 : vector<16x16xf32>
    %411 = arith.addf %377, %410 : vector<16x16xf32>
    %c12_83 = arith.constant 12 : index
    %412 = memref.load %arg4[%c12_83] : memref<144xf32, #tpu.memory_space<smem>>
    %413 = vector.broadcast %412 : f32 to vector<16x16xf32>
    %414 = arith.mulf %413, %395 : vector<16x16xf32>
    %415 = arith.addf %381, %414 : vector<16x16xf32>
    %c13_84 = arith.constant 13 : index
    %416 = memref.load %arg4[%c13_84] : memref<144xf32, #tpu.memory_space<smem>>
    %417 = vector.broadcast %416 : f32 to vector<16x16xf32>
    %418 = arith.mulf %417, %395 : vector<16x16xf32>
    %419 = arith.addf %385, %418 : vector<16x16xf32>
    %c14_85 = arith.constant 14 : index
    %420 = memref.load %arg4[%c14_85] : memref<144xf32, #tpu.memory_space<smem>>
    %421 = vector.broadcast %420 : f32 to vector<16x16xf32>
    %422 = arith.mulf %421, %395 : vector<16x16xf32>
    %423 = arith.addf %389, %422 : vector<16x16xf32>
    %c15_86 = arith.constant 15 : index
    %424 = memref.load %arg4[%c15_86] : memref<144xf32, #tpu.memory_space<smem>>
    %425 = vector.broadcast %424 : f32 to vector<16x16xf32>
    %426 = arith.mulf %425, %395 : vector<16x16xf32>
    %427 = arith.addf %393, %426 : vector<16x16xf32>
    %c1_87 = arith.constant 1 : index
    %c0_88 = arith.constant 0 : index
    %c1_89 = arith.constant 1 : index
    %428 = vector.load %arg12[%c1_87, %c0_88, %c1_89] : memref<2x18x18xf32, #tpu.memory_space<vmem>>, vector<1x16x16xf32>
    %429 = vector.shape_cast %428 : vector<1x16x16xf32> to vector<16x16xf32>
    %c24 = arith.constant 24 : index
    %430 = memref.load %arg4[%c24] : memref<144xf32, #tpu.memory_space<smem>>
    %431 = vector.broadcast %430 : f32 to vector<16x16xf32>
    %432 = arith.mulf %431, %429 : vector<16x16xf32>
    %433 = arith.addf %399, %432 : vector<16x16xf32>
    %c25 = arith.constant 25 : index
    %434 = memref.load %arg4[%c25] : memref<144xf32, #tpu.memory_space<smem>>
    %435 = vector.broadcast %434 : f32 to vector<16x16xf32>
    %436 = arith.mulf %435, %429 : vector<16x16xf32>
    %437 = arith.addf %403, %436 : vector<16x16xf32>
    %c26 = arith.constant 26 : index
    %438 = memref.load %arg4[%c26] : memref<144xf32, #tpu.memory_space<smem>>
    %439 = vector.broadcast %438 : f32 to vector<16x16xf32>
    %440 = arith.mulf %439, %429 : vector<16x16xf32>
    %441 = arith.addf %407, %440 : vector<16x16xf32>
    %c27 = arith.constant 27 : index
    %442 = memref.load %arg4[%c27] : memref<144xf32, #tpu.memory_space<smem>>
    %443 = vector.broadcast %442 : f32 to vector<16x16xf32>
    %444 = arith.mulf %443, %429 : vector<16x16xf32>
    %445 = arith.addf %411, %444 : vector<16x16xf32>
    %c28 = arith.constant 28 : index
    %446 = memref.load %arg4[%c28] : memref<144xf32, #tpu.memory_space<smem>>
    %447 = vector.broadcast %446 : f32 to vector<16x16xf32>
    %448 = arith.mulf %447, %429 : vector<16x16xf32>
    %449 = arith.addf %415, %448 : vector<16x16xf32>
    %c29 = arith.constant 29 : index
    %450 = memref.load %arg4[%c29] : memref<144xf32, #tpu.memory_space<smem>>
    %451 = vector.broadcast %450 : f32 to vector<16x16xf32>
    %452 = arith.mulf %451, %429 : vector<16x16xf32>
    %453 = arith.addf %419, %452 : vector<16x16xf32>
    %c30 = arith.constant 30 : index
    %454 = memref.load %arg4[%c30] : memref<144xf32, #tpu.memory_space<smem>>
    %455 = vector.broadcast %454 : f32 to vector<16x16xf32>
    %456 = arith.mulf %455, %429 : vector<16x16xf32>
    %457 = arith.addf %423, %456 : vector<16x16xf32>
    %c31 = arith.constant 31 : index
    %458 = memref.load %arg4[%c31] : memref<144xf32, #tpu.memory_space<smem>>
    %459 = vector.broadcast %458 : f32 to vector<16x16xf32>
    %460 = arith.mulf %459, %429 : vector<16x16xf32>
    %461 = arith.addf %427, %460 : vector<16x16xf32>
    %c1_90 = arith.constant 1 : index
    %c0_91 = arith.constant 0 : index
    %c2_92 = arith.constant 2 : index
    %462 = vector.load %arg12[%c1_90, %c0_91, %c2_92] : memref<2x18x18xf32, #tpu.memory_space<vmem>>, vector<1x16x16xf32>
    %463 = vector.shape_cast %462 : vector<1x16x16xf32> to vector<16x16xf32>
    %c40 = arith.constant 40 : index
    %464 = memref.load %arg4[%c40] : memref<144xf32, #tpu.memory_space<smem>>
    %465 = vector.broadcast %464 : f32 to vector<16x16xf32>
    %466 = arith.mulf %465, %463 : vector<16x16xf32>
    %467 = arith.addf %433, %466 : vector<16x16xf32>
    %c41 = arith.constant 41 : index
    %468 = memref.load %arg4[%c41] : memref<144xf32, #tpu.memory_space<smem>>
    %469 = vector.broadcast %468 : f32 to vector<16x16xf32>
    %470 = arith.mulf %469, %463 : vector<16x16xf32>
    %471 = arith.addf %437, %470 : vector<16x16xf32>
    %c42 = arith.constant 42 : index
    %472 = memref.load %arg4[%c42] : memref<144xf32, #tpu.memory_space<smem>>
    %473 = vector.broadcast %472 : f32 to vector<16x16xf32>
    %474 = arith.mulf %473, %463 : vector<16x16xf32>
    %475 = arith.addf %441, %474 : vector<16x16xf32>
    %c43 = arith.constant 43 : index
    %476 = memref.load %arg4[%c43] : memref<144xf32, #tpu.memory_space<smem>>
    %477 = vector.broadcast %476 : f32 to vector<16x16xf32>
    %478 = arith.mulf %477, %463 : vector<16x16xf32>
    %479 = arith.addf %445, %478 : vector<16x16xf32>
    %c44 = arith.constant 44 : index
    %480 = memref.load %arg4[%c44] : memref<144xf32, #tpu.memory_space<smem>>
    %481 = vector.broadcast %480 : f32 to vector<16x16xf32>
    %482 = arith.mulf %481, %463 : vector<16x16xf32>
    %483 = arith.addf %449, %482 : vector<16x16xf32>
    %c45 = arith.constant 45 : index
    %484 = memref.load %arg4[%c45] : memref<144xf32, #tpu.memory_space<smem>>
    %485 = vector.broadcast %484 : f32 to vector<16x16xf32>
    %486 = arith.mulf %485, %463 : vector<16x16xf32>
    %487 = arith.addf %453, %486 : vector<16x16xf32>
    %c46 = arith.constant 46 : index
    %488 = memref.load %arg4[%c46] : memref<144xf32, #tpu.memory_space<smem>>
    %489 = vector.broadcast %488 : f32 to vector<16x16xf32>
    %490 = arith.mulf %489, %463 : vector<16x16xf32>
    %491 = arith.addf %457, %490 : vector<16x16xf32>
    %c47 = arith.constant 47 : index
    %492 = memref.load %arg4[%c47] : memref<144xf32, #tpu.memory_space<smem>>
    %493 = vector.broadcast %492 : f32 to vector<16x16xf32>
    %494 = arith.mulf %493, %463 : vector<16x16xf32>
    %495 = arith.addf %461, %494 : vector<16x16xf32>
    %c1_93 = arith.constant 1 : index
    %c1_94 = arith.constant 1 : index
    %c0_95 = arith.constant 0 : index
    %496 = vector.load %arg12[%c1_93, %c1_94, %c0_95] : memref<2x18x18xf32, #tpu.memory_space<vmem>>, vector<1x16x16xf32>
    %497 = vector.shape_cast %496 : vector<1x16x16xf32> to vector<16x16xf32>
    %c56 = arith.constant 56 : index
    %498 = memref.load %arg4[%c56] : memref<144xf32, #tpu.memory_space<smem>>
    %499 = vector.broadcast %498 : f32 to vector<16x16xf32>
    %500 = arith.mulf %499, %497 : vector<16x16xf32>
    %501 = arith.addf %467, %500 : vector<16x16xf32>
    %c57 = arith.constant 57 : index
    %502 = memref.load %arg4[%c57] : memref<144xf32, #tpu.memory_space<smem>>
    %503 = vector.broadcast %502 : f32 to vector<16x16xf32>
    %504 = arith.mulf %503, %497 : vector<16x16xf32>
    %505 = arith.addf %471, %504 : vector<16x16xf32>
    %c58 = arith.constant 58 : index
    %506 = memref.load %arg4[%c58] : memref<144xf32, #tpu.memory_space<smem>>
    %507 = vector.broadcast %506 : f32 to vector<16x16xf32>
    %508 = arith.mulf %507, %497 : vector<16x16xf32>
    %509 = arith.addf %475, %508 : vector<16x16xf32>
    %c59 = arith.constant 59 : index
    %510 = memref.load %arg4[%c59] : memref<144xf32, #tpu.memory_space<smem>>
    %511 = vector.broadcast %510 : f32 to vector<16x16xf32>
    %512 = arith.mulf %511, %497 : vector<16x16xf32>
    %513 = arith.addf %479, %512 : vector<16x16xf32>
    %c60 = arith.constant 60 : index
    %514 = memref.load %arg4[%c60] : memref<144xf32, #tpu.memory_space<smem>>
    %515 = vector.broadcast %514 : f32 to vector<16x16xf32>
    %516 = arith.mulf %515, %497 : vector<16x16xf32>
    %517 = arith.addf %483, %516 : vector<16x16xf32>
    %c61 = arith.constant 61 : index
    %518 = memref.load %arg4[%c61] : memref<144xf32, #tpu.memory_space<smem>>
    %519 = vector.broadcast %518 : f32 to vector<16x16xf32>
    %520 = arith.mulf %519, %497 : vector<16x16xf32>
    %521 = arith.addf %487, %520 : vector<16x16xf32>
    %c62 = arith.constant 62 : index
    %522 = memref.load %arg4[%c62] : memref<144xf32, #tpu.memory_space<smem>>
    %523 = vector.broadcast %522 : f32 to vector<16x16xf32>
    %524 = arith.mulf %523, %497 : vector<16x16xf32>
    %525 = arith.addf %491, %524 : vector<16x16xf32>
    %c63 = arith.constant 63 : index
    %526 = memref.load %arg4[%c63] : memref<144xf32, #tpu.memory_space<smem>>
    %527 = vector.broadcast %526 : f32 to vector<16x16xf32>
    %528 = arith.mulf %527, %497 : vector<16x16xf32>
    %529 = arith.addf %495, %528 : vector<16x16xf32>
    %c1_96 = arith.constant 1 : index
    %c1_97 = arith.constant 1 : index
    %c1_98 = arith.constant 1 : index
    %530 = vector.load %arg12[%c1_96, %c1_97, %c1_98] : memref<2x18x18xf32, #tpu.memory_space<vmem>>, vector<1x16x16xf32>
    %531 = vector.shape_cast %530 : vector<1x16x16xf32> to vector<16x16xf32>
    %c72 = arith.constant 72 : index
    %532 = memref.load %arg4[%c72] : memref<144xf32, #tpu.memory_space<smem>>
    %533 = vector.broadcast %532 : f32 to vector<16x16xf32>
    %534 = arith.mulf %533, %531 : vector<16x16xf32>
    %535 = arith.addf %501, %534 : vector<16x16xf32>
    %c73 = arith.constant 73 : index
    %536 = memref.load %arg4[%c73] : memref<144xf32, #tpu.memory_space<smem>>
    %537 = vector.broadcast %536 : f32 to vector<16x16xf32>
    %538 = arith.mulf %537, %531 : vector<16x16xf32>
    %539 = arith.addf %505, %538 : vector<16x16xf32>
    %c74 = arith.constant 74 : index
    %540 = memref.load %arg4[%c74] : memref<144xf32, #tpu.memory_space<smem>>
    %541 = vector.broadcast %540 : f32 to vector<16x16xf32>
    %542 = arith.mulf %541, %531 : vector<16x16xf32>
    %543 = arith.addf %509, %542 : vector<16x16xf32>
    %c75 = arith.constant 75 : index
    %544 = memref.load %arg4[%c75] : memref<144xf32, #tpu.memory_space<smem>>
    %545 = vector.broadcast %544 : f32 to vector<16x16xf32>
    %546 = arith.mulf %545, %531 : vector<16x16xf32>
    %547 = arith.addf %513, %546 : vector<16x16xf32>
    %c76 = arith.constant 76 : index
    %548 = memref.load %arg4[%c76] : memref<144xf32, #tpu.memory_space<smem>>
    %549 = vector.broadcast %548 : f32 to vector<16x16xf32>
    %550 = arith.mulf %549, %531 : vector<16x16xf32>
    %551 = arith.addf %517, %550 : vector<16x16xf32>
    %c77 = arith.constant 77 : index
    %552 = memref.load %arg4[%c77] : memref<144xf32, #tpu.memory_space<smem>>
    %553 = vector.broadcast %552 : f32 to vector<16x16xf32>
    %554 = arith.mulf %553, %531 : vector<16x16xf32>
    %555 = arith.addf %521, %554 : vector<16x16xf32>
    %c78 = arith.constant 78 : index
    %556 = memref.load %arg4[%c78] : memref<144xf32, #tpu.memory_space<smem>>
    %557 = vector.broadcast %556 : f32 to vector<16x16xf32>
    %558 = arith.mulf %557, %531 : vector<16x16xf32>
    %559 = arith.addf %525, %558 : vector<16x16xf32>
    %c79 = arith.constant 79 : index
    %560 = memref.load %arg4[%c79] : memref<144xf32, #tpu.memory_space<smem>>
    %561 = vector.broadcast %560 : f32 to vector<16x16xf32>
    %562 = arith.mulf %561, %531 : vector<16x16xf32>
    %563 = arith.addf %529, %562 : vector<16x16xf32>
    %c1_99 = arith.constant 1 : index
    %c1_100 = arith.constant 1 : index
    %c2_101 = arith.constant 2 : index
    %564 = vector.load %arg12[%c1_99, %c1_100, %c2_101] : memref<2x18x18xf32, #tpu.memory_space<vmem>>, vector<1x16x16xf32>
    %565 = vector.shape_cast %564 : vector<1x16x16xf32> to vector<16x16xf32>
    %c88 = arith.constant 88 : index
    %566 = memref.load %arg4[%c88] : memref<144xf32, #tpu.memory_space<smem>>
    %567 = vector.broadcast %566 : f32 to vector<16x16xf32>
    %568 = arith.mulf %567, %565 : vector<16x16xf32>
    %569 = arith.addf %535, %568 : vector<16x16xf32>
    %c89 = arith.constant 89 : index
    %570 = memref.load %arg4[%c89] : memref<144xf32, #tpu.memory_space<smem>>
    %571 = vector.broadcast %570 : f32 to vector<16x16xf32>
    %572 = arith.mulf %571, %565 : vector<16x16xf32>
    %573 = arith.addf %539, %572 : vector<16x16xf32>
    %c90 = arith.constant 90 : index
    %574 = memref.load %arg4[%c90] : memref<144xf32, #tpu.memory_space<smem>>
    %575 = vector.broadcast %574 : f32 to vector<16x16xf32>
    %576 = arith.mulf %575, %565 : vector<16x16xf32>
    %577 = arith.addf %543, %576 : vector<16x16xf32>
    %c91 = arith.constant 91 : index
    %578 = memref.load %arg4[%c91] : memref<144xf32, #tpu.memory_space<smem>>
    %579 = vector.broadcast %578 : f32 to vector<16x16xf32>
    %580 = arith.mulf %579, %565 : vector<16x16xf32>
    %581 = arith.addf %547, %580 : vector<16x16xf32>
    %c92 = arith.constant 92 : index
    %582 = memref.load %arg4[%c92] : memref<144xf32, #tpu.memory_space<smem>>
    %583 = vector.broadcast %582 : f32 to vector<16x16xf32>
    %584 = arith.mulf %583, %565 : vector<16x16xf32>
    %585 = arith.addf %551, %584 : vector<16x16xf32>
    %c93 = arith.constant 93 : index
    %586 = memref.load %arg4[%c93] : memref<144xf32, #tpu.memory_space<smem>>
    %587 = vector.broadcast %586 : f32 to vector<16x16xf32>
    %588 = arith.mulf %587, %565 : vector<16x16xf32>
    %589 = arith.addf %555, %588 : vector<16x16xf32>
    %c94 = arith.constant 94 : index
    %590 = memref.load %arg4[%c94] : memref<144xf32, #tpu.memory_space<smem>>
    %591 = vector.broadcast %590 : f32 to vector<16x16xf32>
    %592 = arith.mulf %591, %565 : vector<16x16xf32>
    %593 = arith.addf %559, %592 : vector<16x16xf32>
    %c95 = arith.constant 95 : index
    %594 = memref.load %arg4[%c95] : memref<144xf32, #tpu.memory_space<smem>>
    %595 = vector.broadcast %594 : f32 to vector<16x16xf32>
    %596 = arith.mulf %595, %565 : vector<16x16xf32>
    %597 = arith.addf %563, %596 : vector<16x16xf32>
    %c1_102 = arith.constant 1 : index
    %c2_103 = arith.constant 2 : index
    %c0_104 = arith.constant 0 : index
    %598 = vector.load %arg12[%c1_102, %c2_103, %c0_104] : memref<2x18x18xf32, #tpu.memory_space<vmem>>, vector<1x16x16xf32>
    %599 = vector.shape_cast %598 : vector<1x16x16xf32> to vector<16x16xf32>
    %c104 = arith.constant 104 : index
    %600 = memref.load %arg4[%c104] : memref<144xf32, #tpu.memory_space<smem>>
    %601 = vector.broadcast %600 : f32 to vector<16x16xf32>
    %602 = arith.mulf %601, %599 : vector<16x16xf32>
    %603 = arith.addf %569, %602 : vector<16x16xf32>
    %c105 = arith.constant 105 : index
    %604 = memref.load %arg4[%c105] : memref<144xf32, #tpu.memory_space<smem>>
    %605 = vector.broadcast %604 : f32 to vector<16x16xf32>
    %606 = arith.mulf %605, %599 : vector<16x16xf32>
    %607 = arith.addf %573, %606 : vector<16x16xf32>
    %c106 = arith.constant 106 : index
    %608 = memref.load %arg4[%c106] : memref<144xf32, #tpu.memory_space<smem>>
    %609 = vector.broadcast %608 : f32 to vector<16x16xf32>
    %610 = arith.mulf %609, %599 : vector<16x16xf32>
    %611 = arith.addf %577, %610 : vector<16x16xf32>
    %c107 = arith.constant 107 : index
    %612 = memref.load %arg4[%c107] : memref<144xf32, #tpu.memory_space<smem>>
    %613 = vector.broadcast %612 : f32 to vector<16x16xf32>
    %614 = arith.mulf %613, %599 : vector<16x16xf32>
    %615 = arith.addf %581, %614 : vector<16x16xf32>
    %c108 = arith.constant 108 : index
    %616 = memref.load %arg4[%c108] : memref<144xf32, #tpu.memory_space<smem>>
    %617 = vector.broadcast %616 : f32 to vector<16x16xf32>
    %618 = arith.mulf %617, %599 : vector<16x16xf32>
    %619 = arith.addf %585, %618 : vector<16x16xf32>
    %c109 = arith.constant 109 : index
    %620 = memref.load %arg4[%c109] : memref<144xf32, #tpu.memory_space<smem>>
    %621 = vector.broadcast %620 : f32 to vector<16x16xf32>
    %622 = arith.mulf %621, %599 : vector<16x16xf32>
    %623 = arith.addf %589, %622 : vector<16x16xf32>
    %c110 = arith.constant 110 : index
    %624 = memref.load %arg4[%c110] : memref<144xf32, #tpu.memory_space<smem>>
    %625 = vector.broadcast %624 : f32 to vector<16x16xf32>
    %626 = arith.mulf %625, %599 : vector<16x16xf32>
    %627 = arith.addf %593, %626 : vector<16x16xf32>
    %c111 = arith.constant 111 : index
    %628 = memref.load %arg4[%c111] : memref<144xf32, #tpu.memory_space<smem>>
    %629 = vector.broadcast %628 : f32 to vector<16x16xf32>
    %630 = arith.mulf %629, %599 : vector<16x16xf32>
    %631 = arith.addf %597, %630 : vector<16x16xf32>
    %c1_105 = arith.constant 1 : index
    %c2_106 = arith.constant 2 : index
    %c1_107 = arith.constant 1 : index
    %632 = vector.load %arg12[%c1_105, %c2_106, %c1_107] : memref<2x18x18xf32, #tpu.memory_space<vmem>>, vector<1x16x16xf32>
    %633 = vector.shape_cast %632 : vector<1x16x16xf32> to vector<16x16xf32>
    %c120 = arith.constant 120 : index
    %634 = memref.load %arg4[%c120] : memref<144xf32, #tpu.memory_space<smem>>
    %635 = vector.broadcast %634 : f32 to vector<16x16xf32>
    %636 = arith.mulf %635, %633 : vector<16x16xf32>
    %637 = arith.addf %603, %636 : vector<16x16xf32>
    %c121 = arith.constant 121 : index
    %638 = memref.load %arg4[%c121] : memref<144xf32, #tpu.memory_space<smem>>
    %639 = vector.broadcast %638 : f32 to vector<16x16xf32>
    %640 = arith.mulf %639, %633 : vector<16x16xf32>
    %641 = arith.addf %607, %640 : vector<16x16xf32>
    %c122 = arith.constant 122 : index
    %642 = memref.load %arg4[%c122] : memref<144xf32, #tpu.memory_space<smem>>
    %643 = vector.broadcast %642 : f32 to vector<16x16xf32>
    %644 = arith.mulf %643, %633 : vector<16x16xf32>
    %645 = arith.addf %611, %644 : vector<16x16xf32>
    %c123 = arith.constant 123 : index
    %646 = memref.load %arg4[%c123] : memref<144xf32, #tpu.memory_space<smem>>
    %647 = vector.broadcast %646 : f32 to vector<16x16xf32>
    %648 = arith.mulf %647, %633 : vector<16x16xf32>
    %649 = arith.addf %615, %648 : vector<16x16xf32>
    %c124 = arith.constant 124 : index
    %650 = memref.load %arg4[%c124] : memref<144xf32, #tpu.memory_space<smem>>
    %651 = vector.broadcast %650 : f32 to vector<16x16xf32>
    %652 = arith.mulf %651, %633 : vector<16x16xf32>
    %653 = arith.addf %619, %652 : vector<16x16xf32>
    %c125 = arith.constant 125 : index
    %654 = memref.load %arg4[%c125] : memref<144xf32, #tpu.memory_space<smem>>
    %655 = vector.broadcast %654 : f32 to vector<16x16xf32>
    %656 = arith.mulf %655, %633 : vector<16x16xf32>
    %657 = arith.addf %623, %656 : vector<16x16xf32>
    %c126 = arith.constant 126 : index
    %658 = memref.load %arg4[%c126] : memref<144xf32, #tpu.memory_space<smem>>
    %659 = vector.broadcast %658 : f32 to vector<16x16xf32>
    %660 = arith.mulf %659, %633 : vector<16x16xf32>
    %661 = arith.addf %627, %660 : vector<16x16xf32>
    %c127 = arith.constant 127 : index
    %662 = memref.load %arg4[%c127] : memref<144xf32, #tpu.memory_space<smem>>
    %663 = vector.broadcast %662 : f32 to vector<16x16xf32>
    %664 = arith.mulf %663, %633 : vector<16x16xf32>
    %665 = arith.addf %631, %664 : vector<16x16xf32>
    %c1_108 = arith.constant 1 : index
    %c2_109 = arith.constant 2 : index
    %c2_110 = arith.constant 2 : index
    %666 = vector.load %arg12[%c1_108, %c2_109, %c2_110] : memref<2x18x18xf32, #tpu.memory_space<vmem>>, vector<1x16x16xf32>
    %667 = vector.shape_cast %666 : vector<1x16x16xf32> to vector<16x16xf32>
    %c136 = arith.constant 136 : index
    %668 = memref.load %arg4[%c136] : memref<144xf32, #tpu.memory_space<smem>>
    %669 = vector.broadcast %668 : f32 to vector<16x16xf32>
    %670 = arith.mulf %669, %667 : vector<16x16xf32>
    %671 = arith.addf %637, %670 : vector<16x16xf32>
    %c137 = arith.constant 137 : index
    %672 = memref.load %arg4[%c137] : memref<144xf32, #tpu.memory_space<smem>>
    %673 = vector.broadcast %672 : f32 to vector<16x16xf32>
    %674 = arith.mulf %673, %667 : vector<16x16xf32>
    %675 = arith.addf %641, %674 : vector<16x16xf32>
    %c138 = arith.constant 138 : index
    %676 = memref.load %arg4[%c138] : memref<144xf32, #tpu.memory_space<smem>>
    %677 = vector.broadcast %676 : f32 to vector<16x16xf32>
    %678 = arith.mulf %677, %667 : vector<16x16xf32>
    %679 = arith.addf %645, %678 : vector<16x16xf32>
    %c139 = arith.constant 139 : index
    %680 = memref.load %arg4[%c139] : memref<144xf32, #tpu.memory_space<smem>>
    %681 = vector.broadcast %680 : f32 to vector<16x16xf32>
    %682 = arith.mulf %681, %667 : vector<16x16xf32>
    %683 = arith.addf %649, %682 : vector<16x16xf32>
    %c140 = arith.constant 140 : index
    %684 = memref.load %arg4[%c140] : memref<144xf32, #tpu.memory_space<smem>>
    %685 = vector.broadcast %684 : f32 to vector<16x16xf32>
    %686 = arith.mulf %685, %667 : vector<16x16xf32>
    %687 = arith.addf %653, %686 : vector<16x16xf32>
    %c141 = arith.constant 141 : index
    %688 = memref.load %arg4[%c141] : memref<144xf32, #tpu.memory_space<smem>>
    %689 = vector.broadcast %688 : f32 to vector<16x16xf32>
    %690 = arith.mulf %689, %667 : vector<16x16xf32>
    %691 = arith.addf %657, %690 : vector<16x16xf32>
    %c142 = arith.constant 142 : index
    %692 = memref.load %arg4[%c142] : memref<144xf32, #tpu.memory_space<smem>>
    %693 = vector.broadcast %692 : f32 to vector<16x16xf32>
    %694 = arith.mulf %693, %667 : vector<16x16xf32>
    %695 = arith.addf %661, %694 : vector<16x16xf32>
    %c143 = arith.constant 143 : index
    %696 = memref.load %arg4[%c143] : memref<144xf32, #tpu.memory_space<smem>>
    %697 = vector.broadcast %696 : f32 to vector<16x16xf32>
    %698 = arith.mulf %697, %667 : vector<16x16xf32>
    %699 = arith.addf %665, %698 : vector<16x16xf32>
    %c0_111 = arith.constant 0 : index
    %700 = memref.load %arg5[%c0_111] : memref<8xf32, #tpu.memory_space<smem>>
    %701 = vector.broadcast %700 : f32 to vector<16x16xf32>
    %702 = arith.addf %671, %701 : vector<16x16xf32>
    %cst_112 = arith.constant 0.000000e+00 : f32
    %703 = vector.broadcast %cst_112 : f32 to vector<16x16xf32>
    %704 = arith.maximumf %702, %703 : vector<16x16xf32>
    %c1_113 = arith.constant 1 : index
    %705 = memref.load %arg5[%c1_113] : memref<8xf32, #tpu.memory_space<smem>>
    %706 = vector.broadcast %705 : f32 to vector<16x16xf32>
    %707 = arith.addf %675, %706 : vector<16x16xf32>
    %cst_114 = arith.constant 0.000000e+00 : f32
    %708 = vector.broadcast %cst_114 : f32 to vector<16x16xf32>
    %709 = arith.maximumf %707, %708 : vector<16x16xf32>
    %c2_115 = arith.constant 2 : index
    %710 = memref.load %arg5[%c2_115] : memref<8xf32, #tpu.memory_space<smem>>
    %711 = vector.broadcast %710 : f32 to vector<16x16xf32>
    %712 = arith.addf %679, %711 : vector<16x16xf32>
    %cst_116 = arith.constant 0.000000e+00 : f32
    %713 = vector.broadcast %cst_116 : f32 to vector<16x16xf32>
    %714 = arith.maximumf %712, %713 : vector<16x16xf32>
    %c3_117 = arith.constant 3 : index
    %715 = memref.load %arg5[%c3_117] : memref<8xf32, #tpu.memory_space<smem>>
    %716 = vector.broadcast %715 : f32 to vector<16x16xf32>
    %717 = arith.addf %683, %716 : vector<16x16xf32>
    %cst_118 = arith.constant 0.000000e+00 : f32
    %718 = vector.broadcast %cst_118 : f32 to vector<16x16xf32>
    %719 = arith.maximumf %717, %718 : vector<16x16xf32>
    %c4_119 = arith.constant 4 : index
    %720 = memref.load %arg5[%c4_119] : memref<8xf32, #tpu.memory_space<smem>>
    %721 = vector.broadcast %720 : f32 to vector<16x16xf32>
    %722 = arith.addf %687, %721 : vector<16x16xf32>
    %cst_120 = arith.constant 0.000000e+00 : f32
    %723 = vector.broadcast %cst_120 : f32 to vector<16x16xf32>
    %724 = arith.maximumf %722, %723 : vector<16x16xf32>
    %c5_121 = arith.constant 5 : index
    %725 = memref.load %arg5[%c5_121] : memref<8xf32, #tpu.memory_space<smem>>
    %726 = vector.broadcast %725 : f32 to vector<16x16xf32>
    %727 = arith.addf %691, %726 : vector<16x16xf32>
    %cst_122 = arith.constant 0.000000e+00 : f32
    %728 = vector.broadcast %cst_122 : f32 to vector<16x16xf32>
    %729 = arith.maximumf %727, %728 : vector<16x16xf32>
    %c6_123 = arith.constant 6 : index
    %730 = memref.load %arg5[%c6_123] : memref<8xf32, #tpu.memory_space<smem>>
    %731 = vector.broadcast %730 : f32 to vector<16x16xf32>
    %732 = arith.addf %695, %731 : vector<16x16xf32>
    %cst_124 = arith.constant 0.000000e+00 : f32
    %733 = vector.broadcast %cst_124 : f32 to vector<16x16xf32>
    %734 = arith.maximumf %732, %733 : vector<16x16xf32>
    %c7_125 = arith.constant 7 : index
    %735 = memref.load %arg5[%c7_125] : memref<8xf32, #tpu.memory_space<smem>>
    %736 = vector.broadcast %735 : f32 to vector<16x16xf32>
    %737 = arith.addf %699, %736 : vector<16x16xf32>
    %cst_126 = arith.constant 0.000000e+00 : f32
    %738 = vector.broadcast %cst_126 : f32 to vector<16x16xf32>
    %739 = arith.maximumf %737, %738 : vector<16x16xf32>
    %c0_127 = arith.constant 0 : index
    %740 = memref.load %arg6[%c0_127] : memref<128xf32, #tpu.memory_space<smem>>
    %741 = vector.broadcast %740 : f32 to vector<16x16xf32>
    %742 = arith.mulf %741, %704 : vector<16x16xf32>
    %c8_128 = arith.constant 8 : index
    %743 = memref.load %arg6[%c8_128] : memref<128xf32, #tpu.memory_space<smem>>
    %744 = vector.broadcast %743 : f32 to vector<16x16xf32>
    %745 = arith.mulf %744, %709 : vector<16x16xf32>
    %746 = arith.addf %742, %745 : vector<16x16xf32>
    %c16_129 = arith.constant 16 : index
    %747 = memref.load %arg6[%c16_129] : memref<128xf32, #tpu.memory_space<smem>>
    %748 = vector.broadcast %747 : f32 to vector<16x16xf32>
    %749 = arith.mulf %748, %714 : vector<16x16xf32>
    %750 = arith.addf %746, %749 : vector<16x16xf32>
    %c24_130 = arith.constant 24 : index
    %751 = memref.load %arg6[%c24_130] : memref<128xf32, #tpu.memory_space<smem>>
    %752 = vector.broadcast %751 : f32 to vector<16x16xf32>
    %753 = arith.mulf %752, %719 : vector<16x16xf32>
    %754 = arith.addf %750, %753 : vector<16x16xf32>
    %c32_131 = arith.constant 32 : index
    %755 = memref.load %arg6[%c32_131] : memref<128xf32, #tpu.memory_space<smem>>
    %756 = vector.broadcast %755 : f32 to vector<16x16xf32>
    %757 = arith.mulf %756, %724 : vector<16x16xf32>
    %758 = arith.addf %754, %757 : vector<16x16xf32>
    %c40_132 = arith.constant 40 : index
    %759 = memref.load %arg6[%c40_132] : memref<128xf32, #tpu.memory_space<smem>>
    %760 = vector.broadcast %759 : f32 to vector<16x16xf32>
    %761 = arith.mulf %760, %729 : vector<16x16xf32>
    %762 = arith.addf %758, %761 : vector<16x16xf32>
    %c48_133 = arith.constant 48 : index
    %763 = memref.load %arg6[%c48_133] : memref<128xf32, #tpu.memory_space<smem>>
    %764 = vector.broadcast %763 : f32 to vector<16x16xf32>
    %765 = arith.mulf %764, %734 : vector<16x16xf32>
    %766 = arith.addf %762, %765 : vector<16x16xf32>
    %c56_134 = arith.constant 56 : index
    %767 = memref.load %arg6[%c56_134] : memref<128xf32, #tpu.memory_space<smem>>
    %768 = vector.broadcast %767 : f32 to vector<16x16xf32>
    %769 = arith.mulf %768, %739 : vector<16x16xf32>
    %770 = arith.addf %766, %769 : vector<16x16xf32>
    %c0_135 = arith.constant 0 : index
    %771 = memref.load %arg7[%c0_135] : memref<16xf32, #tpu.memory_space<smem>>
    %772 = vector.broadcast %771 : f32 to vector<16x16xf32>
    %773 = arith.addf %770, %772 : vector<16x16xf32>
    %cst_136 = arith.constant 0.000000e+00 : f32
    %774 = vector.broadcast %cst_136 : f32 to vector<16x16xf32>
    %775 = arith.maximumf %773, %774 : vector<16x16xf32>
    %c1_137 = arith.constant 1 : index
    %776 = memref.load %arg6[%c1_137] : memref<128xf32, #tpu.memory_space<smem>>
    %777 = vector.broadcast %776 : f32 to vector<16x16xf32>
    %778 = arith.mulf %777, %704 : vector<16x16xf32>
    %c9_138 = arith.constant 9 : index
    %779 = memref.load %arg6[%c9_138] : memref<128xf32, #tpu.memory_space<smem>>
    %780 = vector.broadcast %779 : f32 to vector<16x16xf32>
    %781 = arith.mulf %780, %709 : vector<16x16xf32>
    %782 = arith.addf %778, %781 : vector<16x16xf32>
    %c17_139 = arith.constant 17 : index
    %783 = memref.load %arg6[%c17_139] : memref<128xf32, #tpu.memory_space<smem>>
    %784 = vector.broadcast %783 : f32 to vector<16x16xf32>
    %785 = arith.mulf %784, %714 : vector<16x16xf32>
    %786 = arith.addf %782, %785 : vector<16x16xf32>
    %c25_140 = arith.constant 25 : index
    %787 = memref.load %arg6[%c25_140] : memref<128xf32, #tpu.memory_space<smem>>
    %788 = vector.broadcast %787 : f32 to vector<16x16xf32>
    %789 = arith.mulf %788, %719 : vector<16x16xf32>
    %790 = arith.addf %786, %789 : vector<16x16xf32>
    %c33_141 = arith.constant 33 : index
    %791 = memref.load %arg6[%c33_141] : memref<128xf32, #tpu.memory_space<smem>>
    %792 = vector.broadcast %791 : f32 to vector<16x16xf32>
    %793 = arith.mulf %792, %724 : vector<16x16xf32>
    %794 = arith.addf %790, %793 : vector<16x16xf32>
    %c41_142 = arith.constant 41 : index
    %795 = memref.load %arg6[%c41_142] : memref<128xf32, #tpu.memory_space<smem>>
    %796 = vector.broadcast %795 : f32 to vector<16x16xf32>
    %797 = arith.mulf %796, %729 : vector<16x16xf32>
    %798 = arith.addf %794, %797 : vector<16x16xf32>
    %c49_143 = arith.constant 49 : index
    %799 = memref.load %arg6[%c49_143] : memref<128xf32, #tpu.memory_space<smem>>
    %800 = vector.broadcast %799 : f32 to vector<16x16xf32>
    %801 = arith.mulf %800, %734 : vector<16x16xf32>
    %802 = arith.addf %798, %801 : vector<16x16xf32>
    %c57_144 = arith.constant 57 : index
    %803 = memref.load %arg6[%c57_144] : memref<128xf32, #tpu.memory_space<smem>>
    %804 = vector.broadcast %803 : f32 to vector<16x16xf32>
    %805 = arith.mulf %804, %739 : vector<16x16xf32>
    %806 = arith.addf %802, %805 : vector<16x16xf32>
    %c1_145 = arith.constant 1 : index
    %807 = memref.load %arg7[%c1_145] : memref<16xf32, #tpu.memory_space<smem>>
    %808 = vector.broadcast %807 : f32 to vector<16x16xf32>
    %809 = arith.addf %806, %808 : vector<16x16xf32>
    %cst_146 = arith.constant 0.000000e+00 : f32
    %810 = vector.broadcast %cst_146 : f32 to vector<16x16xf32>
    %811 = arith.maximumf %809, %810 : vector<16x16xf32>
    %c2_147 = arith.constant 2 : index
    %812 = memref.load %arg6[%c2_147] : memref<128xf32, #tpu.memory_space<smem>>
    %813 = vector.broadcast %812 : f32 to vector<16x16xf32>
    %814 = arith.mulf %813, %704 : vector<16x16xf32>
    %c10_148 = arith.constant 10 : index
    %815 = memref.load %arg6[%c10_148] : memref<128xf32, #tpu.memory_space<smem>>
    %816 = vector.broadcast %815 : f32 to vector<16x16xf32>
    %817 = arith.mulf %816, %709 : vector<16x16xf32>
    %818 = arith.addf %814, %817 : vector<16x16xf32>
    %c18_149 = arith.constant 18 : index
    %819 = memref.load %arg6[%c18_149] : memref<128xf32, #tpu.memory_space<smem>>
    %820 = vector.broadcast %819 : f32 to vector<16x16xf32>
    %821 = arith.mulf %820, %714 : vector<16x16xf32>
    %822 = arith.addf %818, %821 : vector<16x16xf32>
    %c26_150 = arith.constant 26 : index
    %823 = memref.load %arg6[%c26_150] : memref<128xf32, #tpu.memory_space<smem>>
    %824 = vector.broadcast %823 : f32 to vector<16x16xf32>
    %825 = arith.mulf %824, %719 : vector<16x16xf32>
    %826 = arith.addf %822, %825 : vector<16x16xf32>
    %c34_151 = arith.constant 34 : index
    %827 = memref.load %arg6[%c34_151] : memref<128xf32, #tpu.memory_space<smem>>
    %828 = vector.broadcast %827 : f32 to vector<16x16xf32>
    %829 = arith.mulf %828, %724 : vector<16x16xf32>
    %830 = arith.addf %826, %829 : vector<16x16xf32>
    %c42_152 = arith.constant 42 : index
    %831 = memref.load %arg6[%c42_152] : memref<128xf32, #tpu.memory_space<smem>>
    %832 = vector.broadcast %831 : f32 to vector<16x16xf32>
    %833 = arith.mulf %832, %729 : vector<16x16xf32>
    %834 = arith.addf %830, %833 : vector<16x16xf32>
    %c50_153 = arith.constant 50 : index
    %835 = memref.load %arg6[%c50_153] : memref<128xf32, #tpu.memory_space<smem>>
    %836 = vector.broadcast %835 : f32 to vector<16x16xf32>
    %837 = arith.mulf %836, %734 : vector<16x16xf32>
    %838 = arith.addf %834, %837 : vector<16x16xf32>
    %c58_154 = arith.constant 58 : index
    %839 = memref.load %arg6[%c58_154] : memref<128xf32, #tpu.memory_space<smem>>
    %840 = vector.broadcast %839 : f32 to vector<16x16xf32>
    %841 = arith.mulf %840, %739 : vector<16x16xf32>
    %842 = arith.addf %838, %841 : vector<16x16xf32>
    %c2_155 = arith.constant 2 : index
    %843 = memref.load %arg7[%c2_155] : memref<16xf32, #tpu.memory_space<smem>>
    %844 = vector.broadcast %843 : f32 to vector<16x16xf32>
    %845 = arith.addf %842, %844 : vector<16x16xf32>
    %cst_156 = arith.constant 0.000000e+00 : f32
    %846 = vector.broadcast %cst_156 : f32 to vector<16x16xf32>
    %847 = arith.maximumf %845, %846 : vector<16x16xf32>
    %c3_157 = arith.constant 3 : index
    %848 = memref.load %arg6[%c3_157] : memref<128xf32, #tpu.memory_space<smem>>
    %849 = vector.broadcast %848 : f32 to vector<16x16xf32>
    %850 = arith.mulf %849, %704 : vector<16x16xf32>
    %c11_158 = arith.constant 11 : index
    %851 = memref.load %arg6[%c11_158] : memref<128xf32, #tpu.memory_space<smem>>
    %852 = vector.broadcast %851 : f32 to vector<16x16xf32>
    %853 = arith.mulf %852, %709 : vector<16x16xf32>
    %854 = arith.addf %850, %853 : vector<16x16xf32>
    %c19_159 = arith.constant 19 : index
    %855 = memref.load %arg6[%c19_159] : memref<128xf32, #tpu.memory_space<smem>>
    %856 = vector.broadcast %855 : f32 to vector<16x16xf32>
    %857 = arith.mulf %856, %714 : vector<16x16xf32>
    %858 = arith.addf %854, %857 : vector<16x16xf32>
    %c27_160 = arith.constant 27 : index
    %859 = memref.load %arg6[%c27_160] : memref<128xf32, #tpu.memory_space<smem>>
    %860 = vector.broadcast %859 : f32 to vector<16x16xf32>
    %861 = arith.mulf %860, %719 : vector<16x16xf32>
    %862 = arith.addf %858, %861 : vector<16x16xf32>
    %c35_161 = arith.constant 35 : index
    %863 = memref.load %arg6[%c35_161] : memref<128xf32, #tpu.memory_space<smem>>
    %864 = vector.broadcast %863 : f32 to vector<16x16xf32>
    %865 = arith.mulf %864, %724 : vector<16x16xf32>
    %866 = arith.addf %862, %865 : vector<16x16xf32>
    %c43_162 = arith.constant 43 : index
    %867 = memref.load %arg6[%c43_162] : memref<128xf32, #tpu.memory_space<smem>>
    %868 = vector.broadcast %867 : f32 to vector<16x16xf32>
    %869 = arith.mulf %868, %729 : vector<16x16xf32>
    %870 = arith.addf %866, %869 : vector<16x16xf32>
    %c51_163 = arith.constant 51 : index
    %871 = memref.load %arg6[%c51_163] : memref<128xf32, #tpu.memory_space<smem>>
    %872 = vector.broadcast %871 : f32 to vector<16x16xf32>
    %873 = arith.mulf %872, %734 : vector<16x16xf32>
    %874 = arith.addf %870, %873 : vector<16x16xf32>
    %c59_164 = arith.constant 59 : index
    %875 = memref.load %arg6[%c59_164] : memref<128xf32, #tpu.memory_space<smem>>
    %876 = vector.broadcast %875 : f32 to vector<16x16xf32>
    %877 = arith.mulf %876, %739 : vector<16x16xf32>
    %878 = arith.addf %874, %877 : vector<16x16xf32>
    %c3_165 = arith.constant 3 : index
    %879 = memref.load %arg7[%c3_165] : memref<16xf32, #tpu.memory_space<smem>>
    %880 = vector.broadcast %879 : f32 to vector<16x16xf32>
    %881 = arith.addf %878, %880 : vector<16x16xf32>
    %cst_166 = arith.constant 0.000000e+00 : f32
    %882 = vector.broadcast %cst_166 : f32 to vector<16x16xf32>
    %883 = arith.maximumf %881, %882 : vector<16x16xf32>
    %c4_167 = arith.constant 4 : index
    %884 = memref.load %arg6[%c4_167] : memref<128xf32, #tpu.memory_space<smem>>
    %885 = vector.broadcast %884 : f32 to vector<16x16xf32>
    %886 = arith.mulf %885, %704 : vector<16x16xf32>
    %c12_168 = arith.constant 12 : index
    %887 = memref.load %arg6[%c12_168] : memref<128xf32, #tpu.memory_space<smem>>
    %888 = vector.broadcast %887 : f32 to vector<16x16xf32>
    %889 = arith.mulf %888, %709 : vector<16x16xf32>
    %890 = arith.addf %886, %889 : vector<16x16xf32>
    %c20_169 = arith.constant 20 : index
    %891 = memref.load %arg6[%c20_169] : memref<128xf32, #tpu.memory_space<smem>>
    %892 = vector.broadcast %891 : f32 to vector<16x16xf32>
    %893 = arith.mulf %892, %714 : vector<16x16xf32>
    %894 = arith.addf %890, %893 : vector<16x16xf32>
    %c28_170 = arith.constant 28 : index
    %895 = memref.load %arg6[%c28_170] : memref<128xf32, #tpu.memory_space<smem>>
    %896 = vector.broadcast %895 : f32 to vector<16x16xf32>
    %897 = arith.mulf %896, %719 : vector<16x16xf32>
    %898 = arith.addf %894, %897 : vector<16x16xf32>
    %c36_171 = arith.constant 36 : index
    %899 = memref.load %arg6[%c36_171] : memref<128xf32, #tpu.memory_space<smem>>
    %900 = vector.broadcast %899 : f32 to vector<16x16xf32>
    %901 = arith.mulf %900, %724 : vector<16x16xf32>
    %902 = arith.addf %898, %901 : vector<16x16xf32>
    %c44_172 = arith.constant 44 : index
    %903 = memref.load %arg6[%c44_172] : memref<128xf32, #tpu.memory_space<smem>>
    %904 = vector.broadcast %903 : f32 to vector<16x16xf32>
    %905 = arith.mulf %904, %729 : vector<16x16xf32>
    %906 = arith.addf %902, %905 : vector<16x16xf32>
    %c52_173 = arith.constant 52 : index
    %907 = memref.load %arg6[%c52_173] : memref<128xf32, #tpu.memory_space<smem>>
    %908 = vector.broadcast %907 : f32 to vector<16x16xf32>
    %909 = arith.mulf %908, %734 : vector<16x16xf32>
    %910 = arith.addf %906, %909 : vector<16x16xf32>
    %c60_174 = arith.constant 60 : index
    %911 = memref.load %arg6[%c60_174] : memref<128xf32, #tpu.memory_space<smem>>
    %912 = vector.broadcast %911 : f32 to vector<16x16xf32>
    %913 = arith.mulf %912, %739 : vector<16x16xf32>
    %914 = arith.addf %910, %913 : vector<16x16xf32>
    %c4_175 = arith.constant 4 : index
    %915 = memref.load %arg7[%c4_175] : memref<16xf32, #tpu.memory_space<smem>>
    %916 = vector.broadcast %915 : f32 to vector<16x16xf32>
    %917 = arith.addf %914, %916 : vector<16x16xf32>
    %cst_176 = arith.constant 0.000000e+00 : f32
    %918 = vector.broadcast %cst_176 : f32 to vector<16x16xf32>
    %919 = arith.maximumf %917, %918 : vector<16x16xf32>
    %c5_177 = arith.constant 5 : index
    %920 = memref.load %arg6[%c5_177] : memref<128xf32, #tpu.memory_space<smem>>
    %921 = vector.broadcast %920 : f32 to vector<16x16xf32>
    %922 = arith.mulf %921, %704 : vector<16x16xf32>
    %c13_178 = arith.constant 13 : index
    %923 = memref.load %arg6[%c13_178] : memref<128xf32, #tpu.memory_space<smem>>
    %924 = vector.broadcast %923 : f32 to vector<16x16xf32>
    %925 = arith.mulf %924, %709 : vector<16x16xf32>
    %926 = arith.addf %922, %925 : vector<16x16xf32>
    %c21_179 = arith.constant 21 : index
    %927 = memref.load %arg6[%c21_179] : memref<128xf32, #tpu.memory_space<smem>>
    %928 = vector.broadcast %927 : f32 to vector<16x16xf32>
    %929 = arith.mulf %928, %714 : vector<16x16xf32>
    %930 = arith.addf %926, %929 : vector<16x16xf32>
    %c29_180 = arith.constant 29 : index
    %931 = memref.load %arg6[%c29_180] : memref<128xf32, #tpu.memory_space<smem>>
    %932 = vector.broadcast %931 : f32 to vector<16x16xf32>
    %933 = arith.mulf %932, %719 : vector<16x16xf32>
    %934 = arith.addf %930, %933 : vector<16x16xf32>
    %c37_181 = arith.constant 37 : index
    %935 = memref.load %arg6[%c37_181] : memref<128xf32, #tpu.memory_space<smem>>
    %936 = vector.broadcast %935 : f32 to vector<16x16xf32>
    %937 = arith.mulf %936, %724 : vector<16x16xf32>
    %938 = arith.addf %934, %937 : vector<16x16xf32>
    %c45_182 = arith.constant 45 : index
    %939 = memref.load %arg6[%c45_182] : memref<128xf32, #tpu.memory_space<smem>>
    %940 = vector.broadcast %939 : f32 to vector<16x16xf32>
    %941 = arith.mulf %940, %729 : vector<16x16xf32>
    %942 = arith.addf %938, %941 : vector<16x16xf32>
    %c53_183 = arith.constant 53 : index
    %943 = memref.load %arg6[%c53_183] : memref<128xf32, #tpu.memory_space<smem>>
    %944 = vector.broadcast %943 : f32 to vector<16x16xf32>
    %945 = arith.mulf %944, %734 : vector<16x16xf32>
    %946 = arith.addf %942, %945 : vector<16x16xf32>
    %c61_184 = arith.constant 61 : index
    %947 = memref.load %arg6[%c61_184] : memref<128xf32, #tpu.memory_space<smem>>
    %948 = vector.broadcast %947 : f32 to vector<16x16xf32>
    %949 = arith.mulf %948, %739 : vector<16x16xf32>
    %950 = arith.addf %946, %949 : vector<16x16xf32>
    %c5_185 = arith.constant 5 : index
    %951 = memref.load %arg7[%c5_185] : memref<16xf32, #tpu.memory_space<smem>>
    %952 = vector.broadcast %951 : f32 to vector<16x16xf32>
    %953 = arith.addf %950, %952 : vector<16x16xf32>
    %cst_186 = arith.constant 0.000000e+00 : f32
    %954 = vector.broadcast %cst_186 : f32 to vector<16x16xf32>
    %955 = arith.maximumf %953, %954 : vector<16x16xf32>
    %c6_187 = arith.constant 6 : index
    %956 = memref.load %arg6[%c6_187] : memref<128xf32, #tpu.memory_space<smem>>
    %957 = vector.broadcast %956 : f32 to vector<16x16xf32>
    %958 = arith.mulf %957, %704 : vector<16x16xf32>
    %c14_188 = arith.constant 14 : index
    %959 = memref.load %arg6[%c14_188] : memref<128xf32, #tpu.memory_space<smem>>
    %960 = vector.broadcast %959 : f32 to vector<16x16xf32>
    %961 = arith.mulf %960, %709 : vector<16x16xf32>
    %962 = arith.addf %958, %961 : vector<16x16xf32>
    %c22_189 = arith.constant 22 : index
    %963 = memref.load %arg6[%c22_189] : memref<128xf32, #tpu.memory_space<smem>>
    %964 = vector.broadcast %963 : f32 to vector<16x16xf32>
    %965 = arith.mulf %964, %714 : vector<16x16xf32>
    %966 = arith.addf %962, %965 : vector<16x16xf32>
    %c30_190 = arith.constant 30 : index
    %967 = memref.load %arg6[%c30_190] : memref<128xf32, #tpu.memory_space<smem>>
    %968 = vector.broadcast %967 : f32 to vector<16x16xf32>
    %969 = arith.mulf %968, %719 : vector<16x16xf32>
    %970 = arith.addf %966, %969 : vector<16x16xf32>
    %c38_191 = arith.constant 38 : index
    %971 = memref.load %arg6[%c38_191] : memref<128xf32, #tpu.memory_space<smem>>
    %972 = vector.broadcast %971 : f32 to vector<16x16xf32>
    %973 = arith.mulf %972, %724 : vector<16x16xf32>
    %974 = arith.addf %970, %973 : vector<16x16xf32>
    %c46_192 = arith.constant 46 : index
    %975 = memref.load %arg6[%c46_192] : memref<128xf32, #tpu.memory_space<smem>>
    %976 = vector.broadcast %975 : f32 to vector<16x16xf32>
    %977 = arith.mulf %976, %729 : vector<16x16xf32>
    %978 = arith.addf %974, %977 : vector<16x16xf32>
    %c54_193 = arith.constant 54 : index
    %979 = memref.load %arg6[%c54_193] : memref<128xf32, #tpu.memory_space<smem>>
    %980 = vector.broadcast %979 : f32 to vector<16x16xf32>
    %981 = arith.mulf %980, %734 : vector<16x16xf32>
    %982 = arith.addf %978, %981 : vector<16x16xf32>
    %c62_194 = arith.constant 62 : index
    %983 = memref.load %arg6[%c62_194] : memref<128xf32, #tpu.memory_space<smem>>
    %984 = vector.broadcast %983 : f32 to vector<16x16xf32>
    %985 = arith.mulf %984, %739 : vector<16x16xf32>
    %986 = arith.addf %982, %985 : vector<16x16xf32>
    %c6_195 = arith.constant 6 : index
    %987 = memref.load %arg7[%c6_195] : memref<16xf32, #tpu.memory_space<smem>>
    %988 = vector.broadcast %987 : f32 to vector<16x16xf32>
    %989 = arith.addf %986, %988 : vector<16x16xf32>
    %cst_196 = arith.constant 0.000000e+00 : f32
    %990 = vector.broadcast %cst_196 : f32 to vector<16x16xf32>
    %991 = arith.maximumf %989, %990 : vector<16x16xf32>
    %c7_197 = arith.constant 7 : index
    %992 = memref.load %arg6[%c7_197] : memref<128xf32, #tpu.memory_space<smem>>
    %993 = vector.broadcast %992 : f32 to vector<16x16xf32>
    %994 = arith.mulf %993, %704 : vector<16x16xf32>
    %c15_198 = arith.constant 15 : index
    %995 = memref.load %arg6[%c15_198] : memref<128xf32, #tpu.memory_space<smem>>
    %996 = vector.broadcast %995 : f32 to vector<16x16xf32>
    %997 = arith.mulf %996, %709 : vector<16x16xf32>
    %998 = arith.addf %994, %997 : vector<16x16xf32>
    %c23_199 = arith.constant 23 : index
    %999 = memref.load %arg6[%c23_199] : memref<128xf32, #tpu.memory_space<smem>>
    %1000 = vector.broadcast %999 : f32 to vector<16x16xf32>
    %1001 = arith.mulf %1000, %714 : vector<16x16xf32>
    %1002 = arith.addf %998, %1001 : vector<16x16xf32>
    %c31_200 = arith.constant 31 : index
    %1003 = memref.load %arg6[%c31_200] : memref<128xf32, #tpu.memory_space<smem>>
    %1004 = vector.broadcast %1003 : f32 to vector<16x16xf32>
    %1005 = arith.mulf %1004, %719 : vector<16x16xf32>
    %1006 = arith.addf %1002, %1005 : vector<16x16xf32>
    %c39_201 = arith.constant 39 : index
    %1007 = memref.load %arg6[%c39_201] : memref<128xf32, #tpu.memory_space<smem>>
    %1008 = vector.broadcast %1007 : f32 to vector<16x16xf32>
    %1009 = arith.mulf %1008, %724 : vector<16x16xf32>
    %1010 = arith.addf %1006, %1009 : vector<16x16xf32>
    %c47_202 = arith.constant 47 : index
    %1011 = memref.load %arg6[%c47_202] : memref<128xf32, #tpu.memory_space<smem>>
    %1012 = vector.broadcast %1011 : f32 to vector<16x16xf32>
    %1013 = arith.mulf %1012, %729 : vector<16x16xf32>
    %1014 = arith.addf %1010, %1013 : vector<16x16xf32>
    %c55_203 = arith.constant 55 : index
    %1015 = memref.load %arg6[%c55_203] : memref<128xf32, #tpu.memory_space<smem>>
    %1016 = vector.broadcast %1015 : f32 to vector<16x16xf32>
    %1017 = arith.mulf %1016, %734 : vector<16x16xf32>
    %1018 = arith.addf %1014, %1017 : vector<16x16xf32>
    %c63_204 = arith.constant 63 : index
    %1019 = memref.load %arg6[%c63_204] : memref<128xf32, #tpu.memory_space<smem>>
    %1020 = vector.broadcast %1019 : f32 to vector<16x16xf32>
    %1021 = arith.mulf %1020, %739 : vector<16x16xf32>
    %1022 = arith.addf %1018, %1021 : vector<16x16xf32>
    %c7_205 = arith.constant 7 : index
    %1023 = memref.load %arg7[%c7_205] : memref<16xf32, #tpu.memory_space<smem>>
    %1024 = vector.broadcast %1023 : f32 to vector<16x16xf32>
    %1025 = arith.addf %1022, %1024 : vector<16x16xf32>
    %cst_206 = arith.constant 0.000000e+00 : f32
    %1026 = vector.broadcast %cst_206 : f32 to vector<16x16xf32>
    %1027 = arith.maximumf %1025, %1026 : vector<16x16xf32>
    %c64_207 = arith.constant 64 : index
    %1028 = memref.load %arg6[%c64_207] : memref<128xf32, #tpu.memory_space<smem>>
    %1029 = vector.broadcast %1028 : f32 to vector<16x16xf32>
    %1030 = arith.mulf %1029, %775 : vector<16x16xf32>
    %c72_208 = arith.constant 72 : index
    %1031 = memref.load %arg6[%c72_208] : memref<128xf32, #tpu.memory_space<smem>>
    %1032 = vector.broadcast %1031 : f32 to vector<16x16xf32>
    %1033 = arith.mulf %1032, %811 : vector<16x16xf32>
    %1034 = arith.addf %1030, %1033 : vector<16x16xf32>
    %c80_209 = arith.constant 80 : index
    %1035 = memref.load %arg6[%c80_209] : memref<128xf32, #tpu.memory_space<smem>>
    %1036 = vector.broadcast %1035 : f32 to vector<16x16xf32>
    %1037 = arith.mulf %1036, %847 : vector<16x16xf32>
    %1038 = arith.addf %1034, %1037 : vector<16x16xf32>
    %c88_210 = arith.constant 88 : index
    %1039 = memref.load %arg6[%c88_210] : memref<128xf32, #tpu.memory_space<smem>>
    %1040 = vector.broadcast %1039 : f32 to vector<16x16xf32>
    %1041 = arith.mulf %1040, %883 : vector<16x16xf32>
    %1042 = arith.addf %1038, %1041 : vector<16x16xf32>
    %c96_211 = arith.constant 96 : index
    %1043 = memref.load %arg6[%c96_211] : memref<128xf32, #tpu.memory_space<smem>>
    %1044 = vector.broadcast %1043 : f32 to vector<16x16xf32>
    %1045 = arith.mulf %1044, %919 : vector<16x16xf32>
    %1046 = arith.addf %1042, %1045 : vector<16x16xf32>
    %c104_212 = arith.constant 104 : index
    %1047 = memref.load %arg6[%c104_212] : memref<128xf32, #tpu.memory_space<smem>>
    %1048 = vector.broadcast %1047 : f32 to vector<16x16xf32>
    %1049 = arith.mulf %1048, %955 : vector<16x16xf32>
    %1050 = arith.addf %1046, %1049 : vector<16x16xf32>
    %c112_213 = arith.constant 112 : index
    %1051 = memref.load %arg6[%c112_213] : memref<128xf32, #tpu.memory_space<smem>>
    %1052 = vector.broadcast %1051 : f32 to vector<16x16xf32>
    %1053 = arith.mulf %1052, %991 : vector<16x16xf32>
    %1054 = arith.addf %1050, %1053 : vector<16x16xf32>
    %c120_214 = arith.constant 120 : index
    %1055 = memref.load %arg6[%c120_214] : memref<128xf32, #tpu.memory_space<smem>>
    %1056 = vector.broadcast %1055 : f32 to vector<16x16xf32>
    %1057 = arith.mulf %1056, %1027 : vector<16x16xf32>
    %1058 = arith.addf %1054, %1057 : vector<16x16xf32>
    %c8_215 = arith.constant 8 : index
    %1059 = memref.load %arg7[%c8_215] : memref<16xf32, #tpu.memory_space<smem>>
    %1060 = vector.broadcast %1059 : f32 to vector<16x16xf32>
    %1061 = arith.addf %1058, %1060 : vector<16x16xf32>
    %cst_216 = arith.constant 0.000000e+00 : f32
    %1062 = vector.broadcast %cst_216 : f32 to vector<16x16xf32>
    %1063 = arith.maximumf %1061, %1062 : vector<16x16xf32>
    %c65_217 = arith.constant 65 : index
    %1064 = memref.load %arg6[%c65_217] : memref<128xf32, #tpu.memory_space<smem>>
    %1065 = vector.broadcast %1064 : f32 to vector<16x16xf32>
    %1066 = arith.mulf %1065, %775 : vector<16x16xf32>
    %c73_218 = arith.constant 73 : index
    %1067 = memref.load %arg6[%c73_218] : memref<128xf32, #tpu.memory_space<smem>>
    %1068 = vector.broadcast %1067 : f32 to vector<16x16xf32>
    %1069 = arith.mulf %1068, %811 : vector<16x16xf32>
    %1070 = arith.addf %1066, %1069 : vector<16x16xf32>
    %c81_219 = arith.constant 81 : index
    %1071 = memref.load %arg6[%c81_219] : memref<128xf32, #tpu.memory_space<smem>>
    %1072 = vector.broadcast %1071 : f32 to vector<16x16xf32>
    %1073 = arith.mulf %1072, %847 : vector<16x16xf32>
    %1074 = arith.addf %1070, %1073 : vector<16x16xf32>
    %c89_220 = arith.constant 89 : index
    %1075 = memref.load %arg6[%c89_220] : memref<128xf32, #tpu.memory_space<smem>>
    %1076 = vector.broadcast %1075 : f32 to vector<16x16xf32>
    %1077 = arith.mulf %1076, %883 : vector<16x16xf32>
    %1078 = arith.addf %1074, %1077 : vector<16x16xf32>
    %c97_221 = arith.constant 97 : index
    %1079 = memref.load %arg6[%c97_221] : memref<128xf32, #tpu.memory_space<smem>>
    %1080 = vector.broadcast %1079 : f32 to vector<16x16xf32>
    %1081 = arith.mulf %1080, %919 : vector<16x16xf32>
    %1082 = arith.addf %1078, %1081 : vector<16x16xf32>
    %c105_222 = arith.constant 105 : index
    %1083 = memref.load %arg6[%c105_222] : memref<128xf32, #tpu.memory_space<smem>>
    %1084 = vector.broadcast %1083 : f32 to vector<16x16xf32>
    %1085 = arith.mulf %1084, %955 : vector<16x16xf32>
    %1086 = arith.addf %1082, %1085 : vector<16x16xf32>
    %c113_223 = arith.constant 113 : index
    %1087 = memref.load %arg6[%c113_223] : memref<128xf32, #tpu.memory_space<smem>>
    %1088 = vector.broadcast %1087 : f32 to vector<16x16xf32>
    %1089 = arith.mulf %1088, %991 : vector<16x16xf32>
    %1090 = arith.addf %1086, %1089 : vector<16x16xf32>
    %c121_224 = arith.constant 121 : index
    %1091 = memref.load %arg6[%c121_224] : memref<128xf32, #tpu.memory_space<smem>>
    %1092 = vector.broadcast %1091 : f32 to vector<16x16xf32>
    %1093 = arith.mulf %1092, %1027 : vector<16x16xf32>
    %1094 = arith.addf %1090, %1093 : vector<16x16xf32>
    %c9_225 = arith.constant 9 : index
    %1095 = memref.load %arg7[%c9_225] : memref<16xf32, #tpu.memory_space<smem>>
    %1096 = vector.broadcast %1095 : f32 to vector<16x16xf32>
    %1097 = arith.addf %1094, %1096 : vector<16x16xf32>
    %cst_226 = arith.constant 0.000000e+00 : f32
    %1098 = vector.broadcast %cst_226 : f32 to vector<16x16xf32>
    %1099 = arith.maximumf %1097, %1098 : vector<16x16xf32>
    %c66_227 = arith.constant 66 : index
    %1100 = memref.load %arg6[%c66_227] : memref<128xf32, #tpu.memory_space<smem>>
    %1101 = vector.broadcast %1100 : f32 to vector<16x16xf32>
    %1102 = arith.mulf %1101, %775 : vector<16x16xf32>
    %c74_228 = arith.constant 74 : index
    %1103 = memref.load %arg6[%c74_228] : memref<128xf32, #tpu.memory_space<smem>>
    %1104 = vector.broadcast %1103 : f32 to vector<16x16xf32>
    %1105 = arith.mulf %1104, %811 : vector<16x16xf32>
    %1106 = arith.addf %1102, %1105 : vector<16x16xf32>
    %c82_229 = arith.constant 82 : index
    %1107 = memref.load %arg6[%c82_229] : memref<128xf32, #tpu.memory_space<smem>>
    %1108 = vector.broadcast %1107 : f32 to vector<16x16xf32>
    %1109 = arith.mulf %1108, %847 : vector<16x16xf32>
    %1110 = arith.addf %1106, %1109 : vector<16x16xf32>
    %c90_230 = arith.constant 90 : index
    %1111 = memref.load %arg6[%c90_230] : memref<128xf32, #tpu.memory_space<smem>>
    %1112 = vector.broadcast %1111 : f32 to vector<16x16xf32>
    %1113 = arith.mulf %1112, %883 : vector<16x16xf32>
    %1114 = arith.addf %1110, %1113 : vector<16x16xf32>
    %c98_231 = arith.constant 98 : index
    %1115 = memref.load %arg6[%c98_231] : memref<128xf32, #tpu.memory_space<smem>>
    %1116 = vector.broadcast %1115 : f32 to vector<16x16xf32>
    %1117 = arith.mulf %1116, %919 : vector<16x16xf32>
    %1118 = arith.addf %1114, %1117 : vector<16x16xf32>
    %c106_232 = arith.constant 106 : index
    %1119 = memref.load %arg6[%c106_232] : memref<128xf32, #tpu.memory_space<smem>>
    %1120 = vector.broadcast %1119 : f32 to vector<16x16xf32>
    %1121 = arith.mulf %1120, %955 : vector<16x16xf32>
    %1122 = arith.addf %1118, %1121 : vector<16x16xf32>
    %c114_233 = arith.constant 114 : index
    %1123 = memref.load %arg6[%c114_233] : memref<128xf32, #tpu.memory_space<smem>>
    %1124 = vector.broadcast %1123 : f32 to vector<16x16xf32>
    %1125 = arith.mulf %1124, %991 : vector<16x16xf32>
    %1126 = arith.addf %1122, %1125 : vector<16x16xf32>
    %c122_234 = arith.constant 122 : index
    %1127 = memref.load %arg6[%c122_234] : memref<128xf32, #tpu.memory_space<smem>>
    %1128 = vector.broadcast %1127 : f32 to vector<16x16xf32>
    %1129 = arith.mulf %1128, %1027 : vector<16x16xf32>
    %1130 = arith.addf %1126, %1129 : vector<16x16xf32>
    %c10_235 = arith.constant 10 : index
    %1131 = memref.load %arg7[%c10_235] : memref<16xf32, #tpu.memory_space<smem>>
    %1132 = vector.broadcast %1131 : f32 to vector<16x16xf32>
    %1133 = arith.addf %1130, %1132 : vector<16x16xf32>
    %cst_236 = arith.constant 0.000000e+00 : f32
    %1134 = vector.broadcast %cst_236 : f32 to vector<16x16xf32>
    %1135 = arith.maximumf %1133, %1134 : vector<16x16xf32>
    %c67_237 = arith.constant 67 : index
    %1136 = memref.load %arg6[%c67_237] : memref<128xf32, #tpu.memory_space<smem>>
    %1137 = vector.broadcast %1136 : f32 to vector<16x16xf32>
    %1138 = arith.mulf %1137, %775 : vector<16x16xf32>
    %c75_238 = arith.constant 75 : index
    %1139 = memref.load %arg6[%c75_238] : memref<128xf32, #tpu.memory_space<smem>>
    %1140 = vector.broadcast %1139 : f32 to vector<16x16xf32>
    %1141 = arith.mulf %1140, %811 : vector<16x16xf32>
    %1142 = arith.addf %1138, %1141 : vector<16x16xf32>
    %c83_239 = arith.constant 83 : index
    %1143 = memref.load %arg6[%c83_239] : memref<128xf32, #tpu.memory_space<smem>>
    %1144 = vector.broadcast %1143 : f32 to vector<16x16xf32>
    %1145 = arith.mulf %1144, %847 : vector<16x16xf32>
    %1146 = arith.addf %1142, %1145 : vector<16x16xf32>
    %c91_240 = arith.constant 91 : index
    %1147 = memref.load %arg6[%c91_240] : memref<128xf32, #tpu.memory_space<smem>>
    %1148 = vector.broadcast %1147 : f32 to vector<16x16xf32>
    %1149 = arith.mulf %1148, %883 : vector<16x16xf32>
    %1150 = arith.addf %1146, %1149 : vector<16x16xf32>
    %c99_241 = arith.constant 99 : index
    %1151 = memref.load %arg6[%c99_241] : memref<128xf32, #tpu.memory_space<smem>>
    %1152 = vector.broadcast %1151 : f32 to vector<16x16xf32>
    %1153 = arith.mulf %1152, %919 : vector<16x16xf32>
    %1154 = arith.addf %1150, %1153 : vector<16x16xf32>
    %c107_242 = arith.constant 107 : index
    %1155 = memref.load %arg6[%c107_242] : memref<128xf32, #tpu.memory_space<smem>>
    %1156 = vector.broadcast %1155 : f32 to vector<16x16xf32>
    %1157 = arith.mulf %1156, %955 : vector<16x16xf32>
    %1158 = arith.addf %1154, %1157 : vector<16x16xf32>
    %c115_243 = arith.constant 115 : index
    %1159 = memref.load %arg6[%c115_243] : memref<128xf32, #tpu.memory_space<smem>>
    %1160 = vector.broadcast %1159 : f32 to vector<16x16xf32>
    %1161 = arith.mulf %1160, %991 : vector<16x16xf32>
    %1162 = arith.addf %1158, %1161 : vector<16x16xf32>
    %c123_244 = arith.constant 123 : index
    %1163 = memref.load %arg6[%c123_244] : memref<128xf32, #tpu.memory_space<smem>>
    %1164 = vector.broadcast %1163 : f32 to vector<16x16xf32>
    %1165 = arith.mulf %1164, %1027 : vector<16x16xf32>
    %1166 = arith.addf %1162, %1165 : vector<16x16xf32>
    %c11_245 = arith.constant 11 : index
    %1167 = memref.load %arg7[%c11_245] : memref<16xf32, #tpu.memory_space<smem>>
    %1168 = vector.broadcast %1167 : f32 to vector<16x16xf32>
    %1169 = arith.addf %1166, %1168 : vector<16x16xf32>
    %cst_246 = arith.constant 0.000000e+00 : f32
    %1170 = vector.broadcast %cst_246 : f32 to vector<16x16xf32>
    %1171 = arith.maximumf %1169, %1170 : vector<16x16xf32>
    %c68_247 = arith.constant 68 : index
    %1172 = memref.load %arg6[%c68_247] : memref<128xf32, #tpu.memory_space<smem>>
    %1173 = vector.broadcast %1172 : f32 to vector<16x16xf32>
    %1174 = arith.mulf %1173, %775 : vector<16x16xf32>
    %c76_248 = arith.constant 76 : index
    %1175 = memref.load %arg6[%c76_248] : memref<128xf32, #tpu.memory_space<smem>>
    %1176 = vector.broadcast %1175 : f32 to vector<16x16xf32>
    %1177 = arith.mulf %1176, %811 : vector<16x16xf32>
    %1178 = arith.addf %1174, %1177 : vector<16x16xf32>
    %c84_249 = arith.constant 84 : index
    %1179 = memref.load %arg6[%c84_249] : memref<128xf32, #tpu.memory_space<smem>>
    %1180 = vector.broadcast %1179 : f32 to vector<16x16xf32>
    %1181 = arith.mulf %1180, %847 : vector<16x16xf32>
    %1182 = arith.addf %1178, %1181 : vector<16x16xf32>
    %c92_250 = arith.constant 92 : index
    %1183 = memref.load %arg6[%c92_250] : memref<128xf32, #tpu.memory_space<smem>>
    %1184 = vector.broadcast %1183 : f32 to vector<16x16xf32>
    %1185 = arith.mulf %1184, %883 : vector<16x16xf32>
    %1186 = arith.addf %1182, %1185 : vector<16x16xf32>
    %c100_251 = arith.constant 100 : index
    %1187 = memref.load %arg6[%c100_251] : memref<128xf32, #tpu.memory_space<smem>>
    %1188 = vector.broadcast %1187 : f32 to vector<16x16xf32>
    %1189 = arith.mulf %1188, %919 : vector<16x16xf32>
    %1190 = arith.addf %1186, %1189 : vector<16x16xf32>
    %c108_252 = arith.constant 108 : index
    %1191 = memref.load %arg6[%c108_252] : memref<128xf32, #tpu.memory_space<smem>>
    %1192 = vector.broadcast %1191 : f32 to vector<16x16xf32>
    %1193 = arith.mulf %1192, %955 : vector<16x16xf32>
    %1194 = arith.addf %1190, %1193 : vector<16x16xf32>
    %c116_253 = arith.constant 116 : index
    %1195 = memref.load %arg6[%c116_253] : memref<128xf32, #tpu.memory_space<smem>>
    %1196 = vector.broadcast %1195 : f32 to vector<16x16xf32>
    %1197 = arith.mulf %1196, %991 : vector<16x16xf32>
    %1198 = arith.addf %1194, %1197 : vector<16x16xf32>
    %c124_254 = arith.constant 124 : index
    %1199 = memref.load %arg6[%c124_254] : memref<128xf32, #tpu.memory_space<smem>>
    %1200 = vector.broadcast %1199 : f32 to vector<16x16xf32>
    %1201 = arith.mulf %1200, %1027 : vector<16x16xf32>
    %1202 = arith.addf %1198, %1201 : vector<16x16xf32>
    %c12_255 = arith.constant 12 : index
    %1203 = memref.load %arg7[%c12_255] : memref<16xf32, #tpu.memory_space<smem>>
    %1204 = vector.broadcast %1203 : f32 to vector<16x16xf32>
    %1205 = arith.addf %1202, %1204 : vector<16x16xf32>
    %cst_256 = arith.constant 0.000000e+00 : f32
    %1206 = vector.broadcast %cst_256 : f32 to vector<16x16xf32>
    %1207 = arith.maximumf %1205, %1206 : vector<16x16xf32>
    %c69_257 = arith.constant 69 : index
    %1208 = memref.load %arg6[%c69_257] : memref<128xf32, #tpu.memory_space<smem>>
    %1209 = vector.broadcast %1208 : f32 to vector<16x16xf32>
    %1210 = arith.mulf %1209, %775 : vector<16x16xf32>
    %c77_258 = arith.constant 77 : index
    %1211 = memref.load %arg6[%c77_258] : memref<128xf32, #tpu.memory_space<smem>>
    %1212 = vector.broadcast %1211 : f32 to vector<16x16xf32>
    %1213 = arith.mulf %1212, %811 : vector<16x16xf32>
    %1214 = arith.addf %1210, %1213 : vector<16x16xf32>
    %c85_259 = arith.constant 85 : index
    %1215 = memref.load %arg6[%c85_259] : memref<128xf32, #tpu.memory_space<smem>>
    %1216 = vector.broadcast %1215 : f32 to vector<16x16xf32>
    %1217 = arith.mulf %1216, %847 : vector<16x16xf32>
    %1218 = arith.addf %1214, %1217 : vector<16x16xf32>
    %c93_260 = arith.constant 93 : index
    %1219 = memref.load %arg6[%c93_260] : memref<128xf32, #tpu.memory_space<smem>>
    %1220 = vector.broadcast %1219 : f32 to vector<16x16xf32>
    %1221 = arith.mulf %1220, %883 : vector<16x16xf32>
    %1222 = arith.addf %1218, %1221 : vector<16x16xf32>
    %c101_261 = arith.constant 101 : index
    %1223 = memref.load %arg6[%c101_261] : memref<128xf32, #tpu.memory_space<smem>>
    %1224 = vector.broadcast %1223 : f32 to vector<16x16xf32>
    %1225 = arith.mulf %1224, %919 : vector<16x16xf32>
    %1226 = arith.addf %1222, %1225 : vector<16x16xf32>
    %c109_262 = arith.constant 109 : index
    %1227 = memref.load %arg6[%c109_262] : memref<128xf32, #tpu.memory_space<smem>>
    %1228 = vector.broadcast %1227 : f32 to vector<16x16xf32>
    %1229 = arith.mulf %1228, %955 : vector<16x16xf32>
    %1230 = arith.addf %1226, %1229 : vector<16x16xf32>
    %c117_263 = arith.constant 117 : index
    %1231 = memref.load %arg6[%c117_263] : memref<128xf32, #tpu.memory_space<smem>>
    %1232 = vector.broadcast %1231 : f32 to vector<16x16xf32>
    %1233 = arith.mulf %1232, %991 : vector<16x16xf32>
    %1234 = arith.addf %1230, %1233 : vector<16x16xf32>
    %c125_264 = arith.constant 125 : index
    %1235 = memref.load %arg6[%c125_264] : memref<128xf32, #tpu.memory_space<smem>>
    %1236 = vector.broadcast %1235 : f32 to vector<16x16xf32>
    %1237 = arith.mulf %1236, %1027 : vector<16x16xf32>
    %1238 = arith.addf %1234, %1237 : vector<16x16xf32>
    %c13_265 = arith.constant 13 : index
    %1239 = memref.load %arg7[%c13_265] : memref<16xf32, #tpu.memory_space<smem>>
    %1240 = vector.broadcast %1239 : f32 to vector<16x16xf32>
    %1241 = arith.addf %1238, %1240 : vector<16x16xf32>
    %cst_266 = arith.constant 0.000000e+00 : f32
    %1242 = vector.broadcast %cst_266 : f32 to vector<16x16xf32>
    %1243 = arith.maximumf %1241, %1242 : vector<16x16xf32>
    %c70_267 = arith.constant 70 : index
    %1244 = memref.load %arg6[%c70_267] : memref<128xf32, #tpu.memory_space<smem>>
    %1245 = vector.broadcast %1244 : f32 to vector<16x16xf32>
    %1246 = arith.mulf %1245, %775 : vector<16x16xf32>
    %c78_268 = arith.constant 78 : index
    %1247 = memref.load %arg6[%c78_268] : memref<128xf32, #tpu.memory_space<smem>>
    %1248 = vector.broadcast %1247 : f32 to vector<16x16xf32>
    %1249 = arith.mulf %1248, %811 : vector<16x16xf32>
    %1250 = arith.addf %1246, %1249 : vector<16x16xf32>
    %c86_269 = arith.constant 86 : index
    %1251 = memref.load %arg6[%c86_269] : memref<128xf32, #tpu.memory_space<smem>>
    %1252 = vector.broadcast %1251 : f32 to vector<16x16xf32>
    %1253 = arith.mulf %1252, %847 : vector<16x16xf32>
    %1254 = arith.addf %1250, %1253 : vector<16x16xf32>
    %c94_270 = arith.constant 94 : index
    %1255 = memref.load %arg6[%c94_270] : memref<128xf32, #tpu.memory_space<smem>>
    %1256 = vector.broadcast %1255 : f32 to vector<16x16xf32>
    %1257 = arith.mulf %1256, %883 : vector<16x16xf32>
    %1258 = arith.addf %1254, %1257 : vector<16x16xf32>
    %c102_271 = arith.constant 102 : index
    %1259 = memref.load %arg6[%c102_271] : memref<128xf32, #tpu.memory_space<smem>>
    %1260 = vector.broadcast %1259 : f32 to vector<16x16xf32>
    %1261 = arith.mulf %1260, %919 : vector<16x16xf32>
    %1262 = arith.addf %1258, %1261 : vector<16x16xf32>
    %c110_272 = arith.constant 110 : index
    %1263 = memref.load %arg6[%c110_272] : memref<128xf32, #tpu.memory_space<smem>>
    %1264 = vector.broadcast %1263 : f32 to vector<16x16xf32>
    %1265 = arith.mulf %1264, %955 : vector<16x16xf32>
    %1266 = arith.addf %1262, %1265 : vector<16x16xf32>
    %c118_273 = arith.constant 118 : index
    %1267 = memref.load %arg6[%c118_273] : memref<128xf32, #tpu.memory_space<smem>>
    %1268 = vector.broadcast %1267 : f32 to vector<16x16xf32>
    %1269 = arith.mulf %1268, %991 : vector<16x16xf32>
    %1270 = arith.addf %1266, %1269 : vector<16x16xf32>
    %c126_274 = arith.constant 126 : index
    %1271 = memref.load %arg6[%c126_274] : memref<128xf32, #tpu.memory_space<smem>>
    %1272 = vector.broadcast %1271 : f32 to vector<16x16xf32>
    %1273 = arith.mulf %1272, %1027 : vector<16x16xf32>
    %1274 = arith.addf %1270, %1273 : vector<16x16xf32>
    %c14_275 = arith.constant 14 : index
    %1275 = memref.load %arg7[%c14_275] : memref<16xf32, #tpu.memory_space<smem>>
    %1276 = vector.broadcast %1275 : f32 to vector<16x16xf32>
    %1277 = arith.addf %1274, %1276 : vector<16x16xf32>
    %cst_276 = arith.constant 0.000000e+00 : f32
    %1278 = vector.broadcast %cst_276 : f32 to vector<16x16xf32>
    %1279 = arith.maximumf %1277, %1278 : vector<16x16xf32>
    %c71_277 = arith.constant 71 : index
    %1280 = memref.load %arg6[%c71_277] : memref<128xf32, #tpu.memory_space<smem>>
    %1281 = vector.broadcast %1280 : f32 to vector<16x16xf32>
    %1282 = arith.mulf %1281, %775 : vector<16x16xf32>
    %c79_278 = arith.constant 79 : index
    %1283 = memref.load %arg6[%c79_278] : memref<128xf32, #tpu.memory_space<smem>>
    %1284 = vector.broadcast %1283 : f32 to vector<16x16xf32>
    %1285 = arith.mulf %1284, %811 : vector<16x16xf32>
    %1286 = arith.addf %1282, %1285 : vector<16x16xf32>
    %c87_279 = arith.constant 87 : index
    %1287 = memref.load %arg6[%c87_279] : memref<128xf32, #tpu.memory_space<smem>>
    %1288 = vector.broadcast %1287 : f32 to vector<16x16xf32>
    %1289 = arith.mulf %1288, %847 : vector<16x16xf32>
    %1290 = arith.addf %1286, %1289 : vector<16x16xf32>
    %c95_280 = arith.constant 95 : index
    %1291 = memref.load %arg6[%c95_280] : memref<128xf32, #tpu.memory_space<smem>>
    %1292 = vector.broadcast %1291 : f32 to vector<16x16xf32>
    %1293 = arith.mulf %1292, %883 : vector<16x16xf32>
    %1294 = arith.addf %1290, %1293 : vector<16x16xf32>
    %c103_281 = arith.constant 103 : index
    %1295 = memref.load %arg6[%c103_281] : memref<128xf32, #tpu.memory_space<smem>>
    %1296 = vector.broadcast %1295 : f32 to vector<16x16xf32>
    %1297 = arith.mulf %1296, %919 : vector<16x16xf32>
    %1298 = arith.addf %1294, %1297 : vector<16x16xf32>
    %c111_282 = arith.constant 111 : index
    %1299 = memref.load %arg6[%c111_282] : memref<128xf32, #tpu.memory_space<smem>>
    %1300 = vector.broadcast %1299 : f32 to vector<16x16xf32>
    %1301 = arith.mulf %1300, %955 : vector<16x16xf32>
    %1302 = arith.addf %1298, %1301 : vector<16x16xf32>
    %c119_283 = arith.constant 119 : index
    %1303 = memref.load %arg6[%c119_283] : memref<128xf32, #tpu.memory_space<smem>>
    %1304 = vector.broadcast %1303 : f32 to vector<16x16xf32>
    %1305 = arith.mulf %1304, %991 : vector<16x16xf32>
    %1306 = arith.addf %1302, %1305 : vector<16x16xf32>
    %c127_284 = arith.constant 127 : index
    %1307 = memref.load %arg6[%c127_284] : memref<128xf32, #tpu.memory_space<smem>>
    %1308 = vector.broadcast %1307 : f32 to vector<16x16xf32>
    %1309 = arith.mulf %1308, %1027 : vector<16x16xf32>
    %1310 = arith.addf %1306, %1309 : vector<16x16xf32>
    %c15_285 = arith.constant 15 : index
    %1311 = memref.load %arg7[%c15_285] : memref<16xf32, #tpu.memory_space<smem>>
    %1312 = vector.broadcast %1311 : f32 to vector<16x16xf32>
    %1313 = arith.addf %1310, %1312 : vector<16x16xf32>
    %cst_286 = arith.constant 0.000000e+00 : f32
    %1314 = vector.broadcast %cst_286 : f32 to vector<16x16xf32>
    %1315 = arith.maximumf %1313, %1314 : vector<16x16xf32>
    %c0_287 = arith.constant 0 : index
    %c1_288 = arith.constant 1 : index
    %c1_289 = arith.constant 1 : index
    %1316 = vector.load %arg13[%c0_287, %c1_288, %c1_289] : memref<8x18x18xf32, #tpu.memory_space<vmem>>, vector<1x16x16xf32>
    %1317 = vector.shape_cast %1316 : vector<1x16x16xf32> to vector<16x16xf32>
    %1318 = vector.shape_cast %1063 : vector<16x16xf32> to vector<1x16x16xf32>
    tpu.vector_store %arg13[%c0_287, %c1_288, %c1_289], %1318 {strides = array<i32>} : memref<8x18x18xf32, #tpu.memory_space<vmem>>, vector<1x16x16xf32>,
    %c1_290 = arith.constant 1 : index
    %c1_291 = arith.constant 1 : index
    %c1_292 = arith.constant 1 : index
    %1319 = vector.load %arg13[%c1_290, %c1_291, %c1_292] : memref<8x18x18xf32, #tpu.memory_space<vmem>>, vector<1x16x16xf32>
    %1320 = vector.shape_cast %1319 : vector<1x16x16xf32> to vector<16x16xf32>
    %1321 = vector.shape_cast %1099 : vector<16x16xf32> to vector<1x16x16xf32>
    tpu.vector_store %arg13[%c1_290, %c1_291, %c1_292], %1321 {strides = array<i32>} : memref<8x18x18xf32, #tpu.memory_space<vmem>>, vector<1x16x16xf32>,
    %c2_293 = arith.constant 2 : index
    %c1_294 = arith.constant 1 : index
    %c1_295 = arith.constant 1 : index
    %1322 = vector.load %arg13[%c2_293, %c1_294, %c1_295] : memref<8x18x18xf32, #tpu.memory_space<vmem>>, vector<1x16x16xf32>
    %1323 = vector.shape_cast %1322 : vector<1x16x16xf32> to vector<16x16xf32>
    %1324 = vector.shape_cast %1135 : vector<16x16xf32> to vector<1x16x16xf32>
    tpu.vector_store %arg13[%c2_293, %c1_294, %c1_295], %1324 {strides = array<i32>} : memref<8x18x18xf32, #tpu.memory_space<vmem>>, vector<1x16x16xf32>,
    %c3_296 = arith.constant 3 : index
    %c1_297 = arith.constant 1 : index
    %c1_298 = arith.constant 1 : index
    %1325 = vector.load %arg13[%c3_296, %c1_297, %c1_298] : memref<8x18x18xf32, #tpu.memory_space<vmem>>, vector<1x16x16xf32>
    %1326 = vector.shape_cast %1325 : vector<1x16x16xf32> to vector<16x16xf32>
    %1327 = vector.shape_cast %1171 : vector<16x16xf32> to vector<1x16x16xf32>
    tpu.vector_store %arg13[%c3_296, %c1_297, %c1_298], %1327 {strides = array<i32>} : memref<8x18x18xf32, #tpu.memory_space<vmem>>, vector<1x16x16xf32>,
    %c4_299 = arith.constant 4 : index
    %c1_300 = arith.constant 1 : index
    %c1_301 = arith.constant 1 : index
    %1328 = vector.load %arg13[%c4_299, %c1_300, %c1_301] : memref<8x18x18xf32, #tpu.memory_space<vmem>>, vector<1x16x16xf32>
    %1329 = vector.shape_cast %1328 : vector<1x16x16xf32> to vector<16x16xf32>
    %1330 = vector.shape_cast %1207 : vector<16x16xf32> to vector<1x16x16xf32>
    tpu.vector_store %arg13[%c4_299, %c1_300, %c1_301], %1330 {strides = array<i32>} : memref<8x18x18xf32, #tpu.memory_space<vmem>>, vector<1x16x16xf32>,
    %c5_302 = arith.constant 5 : index
    %c1_303 = arith.constant 1 : index
    %c1_304 = arith.constant 1 : index
    %1331 = vector.load %arg13[%c5_302, %c1_303, %c1_304] : memref<8x18x18xf32, #tpu.memory_space<vmem>>, vector<1x16x16xf32>
    %1332 = vector.shape_cast %1331 : vector<1x16x16xf32> to vector<16x16xf32>
    %1333 = vector.shape_cast %1243 : vector<16x16xf32> to vector<1x16x16xf32>
    tpu.vector_store %arg13[%c5_302, %c1_303, %c1_304], %1333 {strides = array<i32>} : memref<8x18x18xf32, #tpu.memory_space<vmem>>, vector<1x16x16xf32>,
    %c6_305 = arith.constant 6 : index
    %c1_306 = arith.constant 1 : index
    %c1_307 = arith.constant 1 : index
    %1334 = vector.load %arg13[%c6_305, %c1_306, %c1_307] : memref<8x18x18xf32, #tpu.memory_space<vmem>>, vector<1x16x16xf32>
    %1335 = vector.shape_cast %1334 : vector<1x16x16xf32> to vector<16x16xf32>
    %1336 = vector.shape_cast %1279 : vector<16x16xf32> to vector<1x16x16xf32>
    tpu.vector_store %arg13[%c6_305, %c1_306, %c1_307], %1336 {strides = array<i32>} : memref<8x18x18xf32, #tpu.memory_space<vmem>>, vector<1x16x16xf32>,
    %c7_308 = arith.constant 7 : index
    %c1_309 = arith.constant 1 : index
    %c1_310 = arith.constant 1 : index
    %1337 = vector.load %arg13[%c7_308, %c1_309, %c1_310] : memref<8x18x18xf32, #tpu.memory_space<vmem>>, vector<1x16x16xf32>
    %1338 = vector.shape_cast %1337 : vector<1x16x16xf32> to vector<16x16xf32>
    %1339 = vector.shape_cast %1315 : vector<16x16xf32> to vector<1x16x16xf32>
    tpu.vector_store %arg13[%c7_308, %c1_309, %c1_310], %1339 {strides = array<i32>} : memref<8x18x18xf32, #tpu.memory_space<vmem>>, vector<1x16x16xf32>,
    %c0_311 = arith.constant 0 : index
    %c0_312 = arith.constant 0 : index
    %c0_313 = arith.constant 0 : index
    %1340 = vector.load %arg13[%c0_311, %c0_312, %c0_313] : memref<8x18x18xf32, #tpu.memory_space<vmem>>, vector<1x16x16xf32>
    %1341 = vector.shape_cast %1340 : vector<1x16x16xf32> to vector<16x16xf32>
    %c0_314 = arith.constant 0 : index
    %1342 = memref.load %arg8[%c0_314] : memref<288xf32, #tpu.memory_space<smem>>
    %1343 = vector.broadcast %1342 : f32 to vector<16x16xf32>
    %1344 = arith.mulf %1343, %1341 : vector<16x16xf32>
    %c1_315 = arith.constant 1 : index
    %1345 = memref.load %arg8[%c1_315] : memref<288xf32, #tpu.memory_space<smem>>
    %1346 = vector.broadcast %1345 : f32 to vector<16x16xf32>
    %1347 = arith.mulf %1346, %1341 : vector<16x16xf32>
    %c2_316 = arith.constant 2 : index
    %1348 = memref.load %arg8[%c2_316] : memref<288xf32, #tpu.memory_space<smem>>
    %1349 = vector.broadcast %1348 : f32 to vector<16x16xf32>
    %1350 = arith.mulf %1349, %1341 : vector<16x16xf32>
    %c3_317 = arith.constant 3 : index
    %1351 = memref.load %arg8[%c3_317] : memref<288xf32, #tpu.memory_space<smem>>
    %1352 = vector.broadcast %1351 : f32 to vector<16x16xf32>
    %1353 = arith.mulf %1352, %1341 : vector<16x16xf32>
    %c0_318 = arith.constant 0 : index
    %c0_319 = arith.constant 0 : index
    %c1_320 = arith.constant 1 : index
    %1354 = vector.load %arg13[%c0_318, %c0_319, %c1_320] : memref<8x18x18xf32, #tpu.memory_space<vmem>>, vector<1x16x16xf32>
    %1355 = vector.shape_cast %1354 : vector<1x16x16xf32> to vector<16x16xf32>
    %c32_321 = arith.constant 32 : index
    %1356 = memref.load %arg8[%c32_321] : memref<288xf32, #tpu.memory_space<smem>>
    %1357 = vector.broadcast %1356 : f32 to vector<16x16xf32>
    %1358 = arith.mulf %1357, %1355 : vector<16x16xf32>
    %1359 = arith.addf %1344, %1358 : vector<16x16xf32>
    %c33_322 = arith.constant 33 : index
    %1360 = memref.load %arg8[%c33_322] : memref<288xf32, #tpu.memory_space<smem>>
    %1361 = vector.broadcast %1360 : f32 to vector<16x16xf32>
    %1362 = arith.mulf %1361, %1355 : vector<16x16xf32>
    %1363 = arith.addf %1347, %1362 : vector<16x16xf32>
    %c34_323 = arith.constant 34 : index
    %1364 = memref.load %arg8[%c34_323] : memref<288xf32, #tpu.memory_space<smem>>
    %1365 = vector.broadcast %1364 : f32 to vector<16x16xf32>
    %1366 = arith.mulf %1365, %1355 : vector<16x16xf32>
    %1367 = arith.addf %1350, %1366 : vector<16x16xf32>
    %c35_324 = arith.constant 35 : index
    %1368 = memref.load %arg8[%c35_324] : memref<288xf32, #tpu.memory_space<smem>>
    %1369 = vector.broadcast %1368 : f32 to vector<16x16xf32>
    %1370 = arith.mulf %1369, %1355 : vector<16x16xf32>
    %1371 = arith.addf %1353, %1370 : vector<16x16xf32>
    %c0_325 = arith.constant 0 : index
    %c0_326 = arith.constant 0 : index
    %c2_327 = arith.constant 2 : index
    %1372 = vector.load %arg13[%c0_325, %c0_326, %c2_327] : memref<8x18x18xf32, #tpu.memory_space<vmem>>, vector<1x16x16xf32>
    %1373 = vector.shape_cast %1372 : vector<1x16x16xf32> to vector<16x16xf32>
    %c64_328 = arith.constant 64 : index
    %1374 = memref.load %arg8[%c64_328] : memref<288xf32, #tpu.memory_space<smem>>
    %1375 = vector.broadcast %1374 : f32 to vector<16x16xf32>
    %1376 = arith.mulf %1375, %1373 : vector<16x16xf32>
    %1377 = arith.addf %1359, %1376 : vector<16x16xf32>
    %c65_329 = arith.constant 65 : index
    %1378 = memref.load %arg8[%c65_329] : memref<288xf32, #tpu.memory_space<smem>>
    %1379 = vector.broadcast %1378 : f32 to vector<16x16xf32>
    %1380 = arith.mulf %1379, %1373 : vector<16x16xf32>
    %1381 = arith.addf %1363, %1380 : vector<16x16xf32>
    %c66_330 = arith.constant 66 : index
    %1382 = memref.load %arg8[%c66_330] : memref<288xf32, #tpu.memory_space<smem>>
    %1383 = vector.broadcast %1382 : f32 to vector<16x16xf32>
    %1384 = arith.mulf %1383, %1373 : vector<16x16xf32>
    %1385 = arith.addf %1367, %1384 : vector<16x16xf32>
    %c67_331 = arith.constant 67 : index
    %1386 = memref.load %arg8[%c67_331] : memref<288xf32, #tpu.memory_space<smem>>
    %1387 = vector.broadcast %1386 : f32 to vector<16x16xf32>
    %1388 = arith.mulf %1387, %1373 : vector<16x16xf32>
    %1389 = arith.addf %1371, %1388 : vector<16x16xf32>
    %c0_332 = arith.constant 0 : index
    %c1_333 = arith.constant 1 : index
    %c0_334 = arith.constant 0 : index
    %1390 = vector.load %arg13[%c0_332, %c1_333, %c0_334] : memref<8x18x18xf32, #tpu.memory_space<vmem>>, vector<1x16x16xf32>
    %1391 = vector.shape_cast %1390 : vector<1x16x16xf32> to vector<16x16xf32>
    %c96_335 = arith.constant 96 : index
    %1392 = memref.load %arg8[%c96_335] : memref<288xf32, #tpu.memory_space<smem>>
    %1393 = vector.broadcast %1392 : f32 to vector<16x16xf32>
    %1394 = arith.mulf %1393, %1391 : vector<16x16xf32>
    %1395 = arith.addf %1377, %1394 : vector<16x16xf32>
    %c97_336 = arith.constant 97 : index
    %1396 = memref.load %arg8[%c97_336] : memref<288xf32, #tpu.memory_space<smem>>
    %1397 = vector.broadcast %1396 : f32 to vector<16x16xf32>
    %1398 = arith.mulf %1397, %1391 : vector<16x16xf32>
    %1399 = arith.addf %1381, %1398 : vector<16x16xf32>
    %c98_337 = arith.constant 98 : index
    %1400 = memref.load %arg8[%c98_337] : memref<288xf32, #tpu.memory_space<smem>>
    %1401 = vector.broadcast %1400 : f32 to vector<16x16xf32>
    %1402 = arith.mulf %1401, %1391 : vector<16x16xf32>
    %1403 = arith.addf %1385, %1402 : vector<16x16xf32>
    %c99_338 = arith.constant 99 : index
    %1404 = memref.load %arg8[%c99_338] : memref<288xf32, #tpu.memory_space<smem>>
    %1405 = vector.broadcast %1404 : f32 to vector<16x16xf32>
    %1406 = arith.mulf %1405, %1391 : vector<16x16xf32>
    %1407 = arith.addf %1389, %1406 : vector<16x16xf32>
    %c0_339 = arith.constant 0 : index
    %c1_340 = arith.constant 1 : index
    %c1_341 = arith.constant 1 : index
    %1408 = vector.load %arg13[%c0_339, %c1_340, %c1_341] : memref<8x18x18xf32, #tpu.memory_space<vmem>>, vector<1x16x16xf32>
    %1409 = vector.shape_cast %1408 : vector<1x16x16xf32> to vector<16x16xf32>
    %c128_342 = arith.constant 128 : index
    %1410 = memref.load %arg8[%c128_342] : memref<288xf32, #tpu.memory_space<smem>>
    %1411 = vector.broadcast %1410 : f32 to vector<16x16xf32>
    %1412 = arith.mulf %1411, %1409 : vector<16x16xf32>
    %1413 = arith.addf %1395, %1412 : vector<16x16xf32>
    %c129_343 = arith.constant 129 : index
    %1414 = memref.load %arg8[%c129_343] : memref<288xf32, #tpu.memory_space<smem>>
    %1415 = vector.broadcast %1414 : f32 to vector<16x16xf32>
    %1416 = arith.mulf %1415, %1409 : vector<16x16xf32>
    %1417 = arith.addf %1399, %1416 : vector<16x16xf32>
    %c130_344 = arith.constant 130 : index
    %1418 = memref.load %arg8[%c130_344] : memref<288xf32, #tpu.memory_space<smem>>
    %1419 = vector.broadcast %1418 : f32 to vector<16x16xf32>
    %1420 = arith.mulf %1419, %1409 : vector<16x16xf32>
    %1421 = arith.addf %1403, %1420 : vector<16x16xf32>
    %c131_345 = arith.constant 131 : index
    %1422 = memref.load %arg8[%c131_345] : memref<288xf32, #tpu.memory_space<smem>>
    %1423 = vector.broadcast %1422 : f32 to vector<16x16xf32>
    %1424 = arith.mulf %1423, %1409 : vector<16x16xf32>
    %1425 = arith.addf %1407, %1424 : vector<16x16xf32>
    %c0_346 = arith.constant 0 : index
    %c1_347 = arith.constant 1 : index
    %c2_348 = arith.constant 2 : index
    %1426 = vector.load %arg13[%c0_346, %c1_347, %c2_348] : memref<8x18x18xf32, #tpu.memory_space<vmem>>, vector<1x16x16xf32>
    %1427 = vector.shape_cast %1426 : vector<1x16x16xf32> to vector<16x16xf32>
    %c160 = arith.constant 160 : index
    %1428 = memref.load %arg8[%c160] : memref<288xf32, #tpu.memory_space<smem>>
    %1429 = vector.broadcast %1428 : f32 to vector<16x16xf32>
    %1430 = arith.mulf %1429, %1427 : vector<16x16xf32>
    %1431 = arith.addf %1413, %1430 : vector<16x16xf32>
    %c161 = arith.constant 161 : index
    %1432 = memref.load %arg8[%c161] : memref<288xf32, #tpu.memory_space<smem>>
    %1433 = vector.broadcast %1432 : f32 to vector<16x16xf32>
    %1434 = arith.mulf %1433, %1427 : vector<16x16xf32>
    %1435 = arith.addf %1417, %1434 : vector<16x16xf32>
    %c162 = arith.constant 162 : index
    %1436 = memref.load %arg8[%c162] : memref<288xf32, #tpu.memory_space<smem>>
    %1437 = vector.broadcast %1436 : f32 to vector<16x16xf32>
    %1438 = arith.mulf %1437, %1427 : vector<16x16xf32>
    %1439 = arith.addf %1421, %1438 : vector<16x16xf32>
    %c163 = arith.constant 163 : index
    %1440 = memref.load %arg8[%c163] : memref<288xf32, #tpu.memory_space<smem>>
    %1441 = vector.broadcast %1440 : f32 to vector<16x16xf32>
    %1442 = arith.mulf %1441, %1427 : vector<16x16xf32>
    %1443 = arith.addf %1425, %1442 : vector<16x16xf32>
    %c0_349 = arith.constant 0 : index
    %c2_350 = arith.constant 2 : index
    %c0_351 = arith.constant 0 : index
    %1444 = vector.load %arg13[%c0_349, %c2_350, %c0_351] : memref<8x18x18xf32, #tpu.memory_space<vmem>>, vector<1x16x16xf32>
    %1445 = vector.shape_cast %1444 : vector<1x16x16xf32> to vector<16x16xf32>
    %c192 = arith.constant 192 : index
    %1446 = memref.load %arg8[%c192] : memref<288xf32, #tpu.memory_space<smem>>
    %1447 = vector.broadcast %1446 : f32 to vector<16x16xf32>
    %1448 = arith.mulf %1447, %1445 : vector<16x16xf32>
    %1449 = arith.addf %1431, %1448 : vector<16x16xf32>
    %c193 = arith.constant 193 : index
    %1450 = memref.load %arg8[%c193] : memref<288xf32, #tpu.memory_space<smem>>
    %1451 = vector.broadcast %1450 : f32 to vector<16x16xf32>
    %1452 = arith.mulf %1451, %1445 : vector<16x16xf32>
    %1453 = arith.addf %1435, %1452 : vector<16x16xf32>
    %c194 = arith.constant 194 : index
    %1454 = memref.load %arg8[%c194] : memref<288xf32, #tpu.memory_space<smem>>
    %1455 = vector.broadcast %1454 : f32 to vector<16x16xf32>
    %1456 = arith.mulf %1455, %1445 : vector<16x16xf32>
    %1457 = arith.addf %1439, %1456 : vector<16x16xf32>
    %c195 = arith.constant 195 : index
    %1458 = memref.load %arg8[%c195] : memref<288xf32, #tpu.memory_space<smem>>
    %1459 = vector.broadcast %1458 : f32 to vector<16x16xf32>
    %1460 = arith.mulf %1459, %1445 : vector<16x16xf32>
    %1461 = arith.addf %1443, %1460 : vector<16x16xf32>
    %c0_352 = arith.constant 0 : index
    %c2_353 = arith.constant 2 : index
    %c1_354 = arith.constant 1 : index
    %1462 = vector.load %arg13[%c0_352, %c2_353, %c1_354] : memref<8x18x18xf32, #tpu.memory_space<vmem>>, vector<1x16x16xf32>
    %1463 = vector.shape_cast %1462 : vector<1x16x16xf32> to vector<16x16xf32>
    %c224 = arith.constant 224 : index
    %1464 = memref.load %arg8[%c224] : memref<288xf32, #tpu.memory_space<smem>>
    %1465 = vector.broadcast %1464 : f32 to vector<16x16xf32>
    %1466 = arith.mulf %1465, %1463 : vector<16x16xf32>
    %1467 = arith.addf %1449, %1466 : vector<16x16xf32>
    %c225 = arith.constant 225 : index
    %1468 = memref.load %arg8[%c225] : memref<288xf32, #tpu.memory_space<smem>>
    %1469 = vector.broadcast %1468 : f32 to vector<16x16xf32>
    %1470 = arith.mulf %1469, %1463 : vector<16x16xf32>
    %1471 = arith.addf %1453, %1470 : vector<16x16xf32>
    %c226 = arith.constant 226 : index
    %1472 = memref.load %arg8[%c226] : memref<288xf32, #tpu.memory_space<smem>>
    %1473 = vector.broadcast %1472 : f32 to vector<16x16xf32>
    %1474 = arith.mulf %1473, %1463 : vector<16x16xf32>
    %1475 = arith.addf %1457, %1474 : vector<16x16xf32>
    %c227 = arith.constant 227 : index
    %1476 = memref.load %arg8[%c227] : memref<288xf32, #tpu.memory_space<smem>>
    %1477 = vector.broadcast %1476 : f32 to vector<16x16xf32>
    %1478 = arith.mulf %1477, %1463 : vector<16x16xf32>
    %1479 = arith.addf %1461, %1478 : vector<16x16xf32>
    %c0_355 = arith.constant 0 : index
    %c2_356 = arith.constant 2 : index
    %c2_357 = arith.constant 2 : index
    %1480 = vector.load %arg13[%c0_355, %c2_356, %c2_357] : memref<8x18x18xf32, #tpu.memory_space<vmem>>, vector<1x16x16xf32>
    %1481 = vector.shape_cast %1480 : vector<1x16x16xf32> to vector<16x16xf32>
    %c256 = arith.constant 256 : index
    %1482 = memref.load %arg8[%c256] : memref<288xf32, #tpu.memory_space<smem>>
    %1483 = vector.broadcast %1482 : f32 to vector<16x16xf32>
    %1484 = arith.mulf %1483, %1481 : vector<16x16xf32>
    %1485 = arith.addf %1467, %1484 : vector<16x16xf32>
    %c257 = arith.constant 257 : index
    %1486 = memref.load %arg8[%c257] : memref<288xf32, #tpu.memory_space<smem>>
    %1487 = vector.broadcast %1486 : f32 to vector<16x16xf32>
    %1488 = arith.mulf %1487, %1481 : vector<16x16xf32>
    %1489 = arith.addf %1471, %1488 : vector<16x16xf32>
    %c258 = arith.constant 258 : index
    %1490 = memref.load %arg8[%c258] : memref<288xf32, #tpu.memory_space<smem>>
    %1491 = vector.broadcast %1490 : f32 to vector<16x16xf32>
    %1492 = arith.mulf %1491, %1481 : vector<16x16xf32>
    %1493 = arith.addf %1475, %1492 : vector<16x16xf32>
    %c259 = arith.constant 259 : index
    %1494 = memref.load %arg8[%c259] : memref<288xf32, #tpu.memory_space<smem>>
    %1495 = vector.broadcast %1494 : f32 to vector<16x16xf32>
    %1496 = arith.mulf %1495, %1481 : vector<16x16xf32>
    %1497 = arith.addf %1479, %1496 : vector<16x16xf32>
    %c1_358 = arith.constant 1 : index
    %c0_359 = arith.constant 0 : index
    %c0_360 = arith.constant 0 : index
    %1498 = vector.load %arg13[%c1_358, %c0_359, %c0_360] : memref<8x18x18xf32, #tpu.memory_space<vmem>>, vector<1x16x16xf32>
    %1499 = vector.shape_cast %1498 : vector<1x16x16xf32> to vector<16x16xf32>
    %c4_361 = arith.constant 4 : index
    %1500 = memref.load %arg8[%c4_361] : memref<288xf32, #tpu.memory_space<smem>>
    %1501 = vector.broadcast %1500 : f32 to vector<16x16xf32>
    %1502 = arith.mulf %1501, %1499 : vector<16x16xf32>
    %1503 = arith.addf %1485, %1502 : vector<16x16xf32>
    %c5_362 = arith.constant 5 : index
    %1504 = memref.load %arg8[%c5_362] : memref<288xf32, #tpu.memory_space<smem>>
    %1505 = vector.broadcast %1504 : f32 to vector<16x16xf32>
    %1506 = arith.mulf %1505, %1499 : vector<16x16xf32>
    %1507 = arith.addf %1489, %1506 : vector<16x16xf32>
    %c6_363 = arith.constant 6 : index
    %1508 = memref.load %arg8[%c6_363] : memref<288xf32, #tpu.memory_space<smem>>
    %1509 = vector.broadcast %1508 : f32 to vector<16x16xf32>
    %1510 = arith.mulf %1509, %1499 : vector<16x16xf32>
    %1511 = arith.addf %1493, %1510 : vector<16x16xf32>
    %c7_364 = arith.constant 7 : index
    %1512 = memref.load %arg8[%c7_364] : memref<288xf32, #tpu.memory_space<smem>>
    %1513 = vector.broadcast %1512 : f32 to vector<16x16xf32>
    %1514 = arith.mulf %1513, %1499 : vector<16x16xf32>
    %1515 = arith.addf %1497, %1514 : vector<16x16xf32>
    %c1_365 = arith.constant 1 : index
    %c0_366 = arith.constant 0 : index
    %c1_367 = arith.constant 1 : index
    %1516 = vector.load %arg13[%c1_365, %c0_366, %c1_367] : memref<8x18x18xf32, #tpu.memory_space<vmem>>, vector<1x16x16xf32>
    %1517 = vector.shape_cast %1516 : vector<1x16x16xf32> to vector<16x16xf32>
    %c36_368 = arith.constant 36 : index
    %1518 = memref.load %arg8[%c36_368] : memref<288xf32, #tpu.memory_space<smem>>
    %1519 = vector.broadcast %1518 : f32 to vector<16x16xf32>
    %1520 = arith.mulf %1519, %1517 : vector<16x16xf32>
    %1521 = arith.addf %1503, %1520 : vector<16x16xf32>
    %c37_369 = arith.constant 37 : index
    %1522 = memref.load %arg8[%c37_369] : memref<288xf32, #tpu.memory_space<smem>>
    %1523 = vector.broadcast %1522 : f32 to vector<16x16xf32>
    %1524 = arith.mulf %1523, %1517 : vector<16x16xf32>
    %1525 = arith.addf %1507, %1524 : vector<16x16xf32>
    %c38_370 = arith.constant 38 : index
    %1526 = memref.load %arg8[%c38_370] : memref<288xf32, #tpu.memory_space<smem>>
    %1527 = vector.broadcast %1526 : f32 to vector<16x16xf32>
    %1528 = arith.mulf %1527, %1517 : vector<16x16xf32>
    %1529 = arith.addf %1511, %1528 : vector<16x16xf32>
    %c39_371 = arith.constant 39 : index
    %1530 = memref.load %arg8[%c39_371] : memref<288xf32, #tpu.memory_space<smem>>
    %1531 = vector.broadcast %1530 : f32 to vector<16x16xf32>
    %1532 = arith.mulf %1531, %1517 : vector<16x16xf32>
    %1533 = arith.addf %1515, %1532 : vector<16x16xf32>
    %c1_372 = arith.constant 1 : index
    %c0_373 = arith.constant 0 : index
    %c2_374 = arith.constant 2 : index
    %1534 = vector.load %arg13[%c1_372, %c0_373, %c2_374] : memref<8x18x18xf32, #tpu.memory_space<vmem>>, vector<1x16x16xf32>
    %1535 = vector.shape_cast %1534 : vector<1x16x16xf32> to vector<16x16xf32>
    %c68_375 = arith.constant 68 : index
    %1536 = memref.load %arg8[%c68_375] : memref<288xf32, #tpu.memory_space<smem>>
    %1537 = vector.broadcast %1536 : f32 to vector<16x16xf32>
    %1538 = arith.mulf %1537, %1535 : vector<16x16xf32>
    %1539 = arith.addf %1521, %1538 : vector<16x16xf32>
    %c69_376 = arith.constant 69 : index
    %1540 = memref.load %arg8[%c69_376] : memref<288xf32, #tpu.memory_space<smem>>
    %1541 = vector.broadcast %1540 : f32 to vector<16x16xf32>
    %1542 = arith.mulf %1541, %1535 : vector<16x16xf32>
    %1543 = arith.addf %1525, %1542 : vector<16x16xf32>
    %c70_377 = arith.constant 70 : index
    %1544 = memref.load %arg8[%c70_377] : memref<288xf32, #tpu.memory_space<smem>>
    %1545 = vector.broadcast %1544 : f32 to vector<16x16xf32>
    %1546 = arith.mulf %1545, %1535 : vector<16x16xf32>
    %1547 = arith.addf %1529, %1546 : vector<16x16xf32>
    %c71_378 = arith.constant 71 : index
    %1548 = memref.load %arg8[%c71_378] : memref<288xf32, #tpu.memory_space<smem>>
    %1549 = vector.broadcast %1548 : f32 to vector<16x16xf32>
    %1550 = arith.mulf %1549, %1535 : vector<16x16xf32>
    %1551 = arith.addf %1533, %1550 : vector<16x16xf32>
    %c1_379 = arith.constant 1 : index
    %c1_380 = arith.constant 1 : index
    %c0_381 = arith.constant 0 : index
    %1552 = vector.load %arg13[%c1_379, %c1_380, %c0_381] : memref<8x18x18xf32, #tpu.memory_space<vmem>>, vector<1x16x16xf32>
    %1553 = vector.shape_cast %1552 : vector<1x16x16xf32> to vector<16x16xf32>
    %c100_382 = arith.constant 100 : index
    %1554 = memref.load %arg8[%c100_382] : memref<288xf32, #tpu.memory_space<smem>>
    %1555 = vector.broadcast %1554 : f32 to vector<16x16xf32>
    %1556 = arith.mulf %1555, %1553 : vector<16x16xf32>
    %1557 = arith.addf %1539, %1556 : vector<16x16xf32>
    %c101_383 = arith.constant 101 : index
    %1558 = memref.load %arg8[%c101_383] : memref<288xf32, #tpu.memory_space<smem>>
    %1559 = vector.broadcast %1558 : f32 to vector<16x16xf32>
    %1560 = arith.mulf %1559, %1553 : vector<16x16xf32>
    %1561 = arith.addf %1543, %1560 : vector<16x16xf32>
    %c102_384 = arith.constant 102 : index
    %1562 = memref.load %arg8[%c102_384] : memref<288xf32, #tpu.memory_space<smem>>
    %1563 = vector.broadcast %1562 : f32 to vector<16x16xf32>
    %1564 = arith.mulf %1563, %1553 : vector<16x16xf32>
    %1565 = arith.addf %1547, %1564 : vector<16x16xf32>
    %c103_385 = arith.constant 103 : index
    %1566 = memref.load %arg8[%c103_385] : memref<288xf32, #tpu.memory_space<smem>>
    %1567 = vector.broadcast %1566 : f32 to vector<16x16xf32>
    %1568 = arith.mulf %1567, %1553 : vector<16x16xf32>
    %1569 = arith.addf %1551, %1568 : vector<16x16xf32>
    %c1_386 = arith.constant 1 : index
    %c1_387 = arith.constant 1 : index
    %c1_388 = arith.constant 1 : index
    %1570 = vector.load %arg13[%c1_386, %c1_387, %c1_388] : memref<8x18x18xf32, #tpu.memory_space<vmem>>, vector<1x16x16xf32>
    %1571 = vector.shape_cast %1570 : vector<1x16x16xf32> to vector<16x16xf32>
    %c132_389 = arith.constant 132 : index
    %1572 = memref.load %arg8[%c132_389] : memref<288xf32, #tpu.memory_space<smem>>
    %1573 = vector.broadcast %1572 : f32 to vector<16x16xf32>
    %1574 = arith.mulf %1573, %1571 : vector<16x16xf32>
    %1575 = arith.addf %1557, %1574 : vector<16x16xf32>
    %c133_390 = arith.constant 133 : index
    %1576 = memref.load %arg8[%c133_390] : memref<288xf32, #tpu.memory_space<smem>>
    %1577 = vector.broadcast %1576 : f32 to vector<16x16xf32>
    %1578 = arith.mulf %1577, %1571 : vector<16x16xf32>
    %1579 = arith.addf %1561, %1578 : vector<16x16xf32>
    %c134_391 = arith.constant 134 : index
    %1580 = memref.load %arg8[%c134_391] : memref<288xf32, #tpu.memory_space<smem>>
    %1581 = vector.broadcast %1580 : f32 to vector<16x16xf32>
    %1582 = arith.mulf %1581, %1571 : vector<16x16xf32>
    %1583 = arith.addf %1565, %1582 : vector<16x16xf32>
    %c135_392 = arith.constant 135 : index
    %1584 = memref.load %arg8[%c135_392] : memref<288xf32, #tpu.memory_space<smem>>
    %1585 = vector.broadcast %1584 : f32 to vector<16x16xf32>
    %1586 = arith.mulf %1585, %1571 : vector<16x16xf32>
    %1587 = arith.addf %1569, %1586 : vector<16x16xf32>
    %c1_393 = arith.constant 1 : index
    %c1_394 = arith.constant 1 : index
    %c2_395 = arith.constant 2 : index
    %1588 = vector.load %arg13[%c1_393, %c1_394, %c2_395] : memref<8x18x18xf32, #tpu.memory_space<vmem>>, vector<1x16x16xf32>
    %1589 = vector.shape_cast %1588 : vector<1x16x16xf32> to vector<16x16xf32>
    %c164 = arith.constant 164 : index
    %1590 = memref.load %arg8[%c164] : memref<288xf32, #tpu.memory_space<smem>>
    %1591 = vector.broadcast %1590 : f32 to vector<16x16xf32>
    %1592 = arith.mulf %1591, %1589 : vector<16x16xf32>
    %1593 = arith.addf %1575, %1592 : vector<16x16xf32>
    %c165 = arith.constant 165 : index
    %1594 = memref.load %arg8[%c165] : memref<288xf32, #tpu.memory_space<smem>>
    %1595 = vector.broadcast %1594 : f32 to vector<16x16xf32>
    %1596 = arith.mulf %1595, %1589 : vector<16x16xf32>
    %1597 = arith.addf %1579, %1596 : vector<16x16xf32>
    %c166 = arith.constant 166 : index
    %1598 = memref.load %arg8[%c166] : memref<288xf32, #tpu.memory_space<smem>>
    %1599 = vector.broadcast %1598 : f32 to vector<16x16xf32>
    %1600 = arith.mulf %1599, %1589 : vector<16x16xf32>
    %1601 = arith.addf %1583, %1600 : vector<16x16xf32>
    %c167 = arith.constant 167 : index
    %1602 = memref.load %arg8[%c167] : memref<288xf32, #tpu.memory_space<smem>>
    %1603 = vector.broadcast %1602 : f32 to vector<16x16xf32>
    %1604 = arith.mulf %1603, %1589 : vector<16x16xf32>
    %1605 = arith.addf %1587, %1604 : vector<16x16xf32>
    %c1_396 = arith.constant 1 : index
    %c2_397 = arith.constant 2 : index
    %c0_398 = arith.constant 0 : index
    %1606 = vector.load %arg13[%c1_396, %c2_397, %c0_398] : memref<8x18x18xf32, #tpu.memory_space<vmem>>, vector<1x16x16xf32>
    %1607 = vector.shape_cast %1606 : vector<1x16x16xf32> to vector<16x16xf32>
    %c196 = arith.constant 196 : index
    %1608 = memref.load %arg8[%c196] : memref<288xf32, #tpu.memory_space<smem>>
    %1609 = vector.broadcast %1608 : f32 to vector<16x16xf32>
    %1610 = arith.mulf %1609, %1607 : vector<16x16xf32>
    %1611 = arith.addf %1593, %1610 : vector<16x16xf32>
    %c197 = arith.constant 197 : index
    %1612 = memref.load %arg8[%c197] : memref<288xf32, #tpu.memory_space<smem>>
    %1613 = vector.broadcast %1612 : f32 to vector<16x16xf32>
    %1614 = arith.mulf %1613, %1607 : vector<16x16xf32>
    %1615 = arith.addf %1597, %1614 : vector<16x16xf32>
    %c198 = arith.constant 198 : index
    %1616 = memref.load %arg8[%c198] : memref<288xf32, #tpu.memory_space<smem>>
    %1617 = vector.broadcast %1616 : f32 to vector<16x16xf32>
    %1618 = arith.mulf %1617, %1607 : vector<16x16xf32>
    %1619 = arith.addf %1601, %1618 : vector<16x16xf32>
    %c199 = arith.constant 199 : index
    %1620 = memref.load %arg8[%c199] : memref<288xf32, #tpu.memory_space<smem>>
    %1621 = vector.broadcast %1620 : f32 to vector<16x16xf32>
    %1622 = arith.mulf %1621, %1607 : vector<16x16xf32>
    %1623 = arith.addf %1605, %1622 : vector<16x16xf32>
    %c1_399 = arith.constant 1 : index
    %c2_400 = arith.constant 2 : index
    %c1_401 = arith.constant 1 : index
    %1624 = vector.load %arg13[%c1_399, %c2_400, %c1_401] : memref<8x18x18xf32, #tpu.memory_space<vmem>>, vector<1x16x16xf32>
    %1625 = vector.shape_cast %1624 : vector<1x16x16xf32> to vector<16x16xf32>
    %c228 = arith.constant 228 : index
    %1626 = memref.load %arg8[%c228] : memref<288xf32, #tpu.memory_space<smem>>
    %1627 = vector.broadcast %1626 : f32 to vector<16x16xf32>
    %1628 = arith.mulf %1627, %1625 : vector<16x16xf32>
    %1629 = arith.addf %1611, %1628 : vector<16x16xf32>
    %c229 = arith.constant 229 : index
    %1630 = memref.load %arg8[%c229] : memref<288xf32, #tpu.memory_space<smem>>
    %1631 = vector.broadcast %1630 : f32 to vector<16x16xf32>
    %1632 = arith.mulf %1631, %1625 : vector<16x16xf32>
    %1633 = arith.addf %1615, %1632 : vector<16x16xf32>
    %c230 = arith.constant 230 : index
    %1634 = memref.load %arg8[%c230] : memref<288xf32, #tpu.memory_space<smem>>
    %1635 = vector.broadcast %1634 : f32 to vector<16x16xf32>
    %1636 = arith.mulf %1635, %1625 : vector<16x16xf32>
    %1637 = arith.addf %1619, %1636 : vector<16x16xf32>
    %c231 = arith.constant 231 : index
    %1638 = memref.load %arg8[%c231] : memref<288xf32, #tpu.memory_space<smem>>
    %1639 = vector.broadcast %1638 : f32 to vector<16x16xf32>
    %1640 = arith.mulf %1639, %1625 : vector<16x16xf32>
    %1641 = arith.addf %1623, %1640 : vector<16x16xf32>
    %c1_402 = arith.constant 1 : index
    %c2_403 = arith.constant 2 : index
    %c2_404 = arith.constant 2 : index
    %1642 = vector.load %arg13[%c1_402, %c2_403, %c2_404] : memref<8x18x18xf32, #tpu.memory_space<vmem>>, vector<1x16x16xf32>
    %1643 = vector.shape_cast %1642 : vector<1x16x16xf32> to vector<16x16xf32>
    %c260 = arith.constant 260 : index
    %1644 = memref.load %arg8[%c260] : memref<288xf32, #tpu.memory_space<smem>>
    %1645 = vector.broadcast %1644 : f32 to vector<16x16xf32>
    %1646 = arith.mulf %1645, %1643 : vector<16x16xf32>
    %1647 = arith.addf %1629, %1646 : vector<16x16xf32>
    %c261 = arith.constant 261 : index
    %1648 = memref.load %arg8[%c261] : memref<288xf32, #tpu.memory_space<smem>>
    %1649 = vector.broadcast %1648 : f32 to vector<16x16xf32>
    %1650 = arith.mulf %1649, %1643 : vector<16x16xf32>
    %1651 = arith.addf %1633, %1650 : vector<16x16xf32>
    %c262 = arith.constant 262 : index
    %1652 = memref.load %arg8[%c262] : memref<288xf32, #tpu.memory_space<smem>>
    %1653 = vector.broadcast %1652 : f32 to vector<16x16xf32>
    %1654 = arith.mulf %1653, %1643 : vector<16x16xf32>
    %1655 = arith.addf %1637, %1654 : vector<16x16xf32>
    %c263 = arith.constant 263 : index
    %1656 = memref.load %arg8[%c263] : memref<288xf32, #tpu.memory_space<smem>>
    %1657 = vector.broadcast %1656 : f32 to vector<16x16xf32>
    %1658 = arith.mulf %1657, %1643 : vector<16x16xf32>
    %1659 = arith.addf %1641, %1658 : vector<16x16xf32>
    %c2_405 = arith.constant 2 : index
    %c0_406 = arith.constant 0 : index
    %c0_407 = arith.constant 0 : index
    %1660 = vector.load %arg13[%c2_405, %c0_406, %c0_407] : memref<8x18x18xf32, #tpu.memory_space<vmem>>, vector<1x16x16xf32>
    %1661 = vector.shape_cast %1660 : vector<1x16x16xf32> to vector<16x16xf32>
    %c8_408 = arith.constant 8 : index
    %1662 = memref.load %arg8[%c8_408] : memref<288xf32, #tpu.memory_space<smem>>
    %1663 = vector.broadcast %1662 : f32 to vector<16x16xf32>
    %1664 = arith.mulf %1663, %1661 : vector<16x16xf32>
    %1665 = arith.addf %1647, %1664 : vector<16x16xf32>
    %c9_409 = arith.constant 9 : index
    %1666 = memref.load %arg8[%c9_409] : memref<288xf32, #tpu.memory_space<smem>>
    %1667 = vector.broadcast %1666 : f32 to vector<16x16xf32>
    %1668 = arith.mulf %1667, %1661 : vector<16x16xf32>
    %1669 = arith.addf %1651, %1668 : vector<16x16xf32>
    %c10_410 = arith.constant 10 : index
    %1670 = memref.load %arg8[%c10_410] : memref<288xf32, #tpu.memory_space<smem>>
    %1671 = vector.broadcast %1670 : f32 to vector<16x16xf32>
    %1672 = arith.mulf %1671, %1661 : vector<16x16xf32>
    %1673 = arith.addf %1655, %1672 : vector<16x16xf32>
    %c11_411 = arith.constant 11 : index
    %1674 = memref.load %arg8[%c11_411] : memref<288xf32, #tpu.memory_space<smem>>
    %1675 = vector.broadcast %1674 : f32 to vector<16x16xf32>
    %1676 = arith.mulf %1675, %1661 : vector<16x16xf32>
    %1677 = arith.addf %1659, %1676 : vector<16x16xf32>
    %c2_412 = arith.constant 2 : index
    %c0_413 = arith.constant 0 : index
    %c1_414 = arith.constant 1 : index
    %1678 = vector.load %arg13[%c2_412, %c0_413, %c1_414] : memref<8x18x18xf32, #tpu.memory_space<vmem>>, vector<1x16x16xf32>
    %1679 = vector.shape_cast %1678 : vector<1x16x16xf32> to vector<16x16xf32>
    %c40_415 = arith.constant 40 : index
    %1680 = memref.load %arg8[%c40_415] : memref<288xf32, #tpu.memory_space<smem>>
    %1681 = vector.broadcast %1680 : f32 to vector<16x16xf32>
    %1682 = arith.mulf %1681, %1679 : vector<16x16xf32>
    %1683 = arith.addf %1665, %1682 : vector<16x16xf32>
    %c41_416 = arith.constant 41 : index
    %1684 = memref.load %arg8[%c41_416] : memref<288xf32, #tpu.memory_space<smem>>
    %1685 = vector.broadcast %1684 : f32 to vector<16x16xf32>
    %1686 = arith.mulf %1685, %1679 : vector<16x16xf32>
    %1687 = arith.addf %1669, %1686 : vector<16x16xf32>
    %c42_417 = arith.constant 42 : index
    %1688 = memref.load %arg8[%c42_417] : memref<288xf32, #tpu.memory_space<smem>>
    %1689 = vector.broadcast %1688 : f32 to vector<16x16xf32>
    %1690 = arith.mulf %1689, %1679 : vector<16x16xf32>
    %1691 = arith.addf %1673, %1690 : vector<16x16xf32>
    %c43_418 = arith.constant 43 : index
    %1692 = memref.load %arg8[%c43_418] : memref<288xf32, #tpu.memory_space<smem>>
    %1693 = vector.broadcast %1692 : f32 to vector<16x16xf32>
    %1694 = arith.mulf %1693, %1679 : vector<16x16xf32>
    %1695 = arith.addf %1677, %1694 : vector<16x16xf32>
    %c2_419 = arith.constant 2 : index
    %c0_420 = arith.constant 0 : index
    %c2_421 = arith.constant 2 : index
    %1696 = vector.load %arg13[%c2_419, %c0_420, %c2_421] : memref<8x18x18xf32, #tpu.memory_space<vmem>>, vector<1x16x16xf32>
    %1697 = vector.shape_cast %1696 : vector<1x16x16xf32> to vector<16x16xf32>
    %c72_422 = arith.constant 72 : index
    %1698 = memref.load %arg8[%c72_422] : memref<288xf32, #tpu.memory_space<smem>>
    %1699 = vector.broadcast %1698 : f32 to vector<16x16xf32>
    %1700 = arith.mulf %1699, %1697 : vector<16x16xf32>
    %1701 = arith.addf %1683, %1700 : vector<16x16xf32>
    %c73_423 = arith.constant 73 : index
    %1702 = memref.load %arg8[%c73_423] : memref<288xf32, #tpu.memory_space<smem>>
    %1703 = vector.broadcast %1702 : f32 to vector<16x16xf32>
    %1704 = arith.mulf %1703, %1697 : vector<16x16xf32>
    %1705 = arith.addf %1687, %1704 : vector<16x16xf32>
    %c74_424 = arith.constant 74 : index
    %1706 = memref.load %arg8[%c74_424] : memref<288xf32, #tpu.memory_space<smem>>
    %1707 = vector.broadcast %1706 : f32 to vector<16x16xf32>
    %1708 = arith.mulf %1707, %1697 : vector<16x16xf32>
    %1709 = arith.addf %1691, %1708 : vector<16x16xf32>
    %c75_425 = arith.constant 75 : index
    %1710 = memref.load %arg8[%c75_425] : memref<288xf32, #tpu.memory_space<smem>>
    %1711 = vector.broadcast %1710 : f32 to vector<16x16xf32>
    %1712 = arith.mulf %1711, %1697 : vector<16x16xf32>
    %1713 = arith.addf %1695, %1712 : vector<16x16xf32>
    %c2_426 = arith.constant 2 : index
    %c1_427 = arith.constant 1 : index
    %c0_428 = arith.constant 0 : index
    %1714 = vector.load %arg13[%c2_426, %c1_427, %c0_428] : memref<8x18x18xf32, #tpu.memory_space<vmem>>, vector<1x16x16xf32>
    %1715 = vector.shape_cast %1714 : vector<1x16x16xf32> to vector<16x16xf32>
    %c104_429 = arith.constant 104 : index
    %1716 = memref.load %arg8[%c104_429] : memref<288xf32, #tpu.memory_space<smem>>
    %1717 = vector.broadcast %1716 : f32 to vector<16x16xf32>
    %1718 = arith.mulf %1717, %1715 : vector<16x16xf32>
    %1719 = arith.addf %1701, %1718 : vector<16x16xf32>
    %c105_430 = arith.constant 105 : index
    %1720 = memref.load %arg8[%c105_430] : memref<288xf32, #tpu.memory_space<smem>>
    %1721 = vector.broadcast %1720 : f32 to vector<16x16xf32>
    %1722 = arith.mulf %1721, %1715 : vector<16x16xf32>
    %1723 = arith.addf %1705, %1722 : vector<16x16xf32>
    %c106_431 = arith.constant 106 : index
    %1724 = memref.load %arg8[%c106_431] : memref<288xf32, #tpu.memory_space<smem>>
    %1725 = vector.broadcast %1724 : f32 to vector<16x16xf32>
    %1726 = arith.mulf %1725, %1715 : vector<16x16xf32>
    %1727 = arith.addf %1709, %1726 : vector<16x16xf32>
    %c107_432 = arith.constant 107 : index
    %1728 = memref.load %arg8[%c107_432] : memref<288xf32, #tpu.memory_space<smem>>
    %1729 = vector.broadcast %1728 : f32 to vector<16x16xf32>
    %1730 = arith.mulf %1729, %1715 : vector<16x16xf32>
    %1731 = arith.addf %1713, %1730 : vector<16x16xf32>
    %c2_433 = arith.constant 2 : index
    %c1_434 = arith.constant 1 : index
    %c1_435 = arith.constant 1 : index
    %1732 = vector.load %arg13[%c2_433, %c1_434, %c1_435] : memref<8x18x18xf32, #tpu.memory_space<vmem>>, vector<1x16x16xf32>
    %1733 = vector.shape_cast %1732 : vector<1x16x16xf32> to vector<16x16xf32>
    %c136_436 = arith.constant 136 : index
    %1734 = memref.load %arg8[%c136_436] : memref<288xf32, #tpu.memory_space<smem>>
    %1735 = vector.broadcast %1734 : f32 to vector<16x16xf32>
    %1736 = arith.mulf %1735, %1733 : vector<16x16xf32>
    %1737 = arith.addf %1719, %1736 : vector<16x16xf32>
    %c137_437 = arith.constant 137 : index
    %1738 = memref.load %arg8[%c137_437] : memref<288xf32, #tpu.memory_space<smem>>
    %1739 = vector.broadcast %1738 : f32 to vector<16x16xf32>
    %1740 = arith.mulf %1739, %1733 : vector<16x16xf32>
    %1741 = arith.addf %1723, %1740 : vector<16x16xf32>
    %c138_438 = arith.constant 138 : index
    %1742 = memref.load %arg8[%c138_438] : memref<288xf32, #tpu.memory_space<smem>>
    %1743 = vector.broadcast %1742 : f32 to vector<16x16xf32>
    %1744 = arith.mulf %1743, %1733 : vector<16x16xf32>
    %1745 = arith.addf %1727, %1744 : vector<16x16xf32>
    %c139_439 = arith.constant 139 : index
    %1746 = memref.load %arg8[%c139_439] : memref<288xf32, #tpu.memory_space<smem>>
    %1747 = vector.broadcast %1746 : f32 to vector<16x16xf32>
    %1748 = arith.mulf %1747, %1733 : vector<16x16xf32>
    %1749 = arith.addf %1731, %1748 : vector<16x16xf32>
    %c2_440 = arith.constant 2 : index
    %c1_441 = arith.constant 1 : index
    %c2_442 = arith.constant 2 : index
    %1750 = vector.load %arg13[%c2_440, %c1_441, %c2_442] : memref<8x18x18xf32, #tpu.memory_space<vmem>>, vector<1x16x16xf32>
    %1751 = vector.shape_cast %1750 : vector<1x16x16xf32> to vector<16x16xf32>
    %c168 = arith.constant 168 : index
    %1752 = memref.load %arg8[%c168] : memref<288xf32, #tpu.memory_space<smem>>
    %1753 = vector.broadcast %1752 : f32 to vector<16x16xf32>
    %1754 = arith.mulf %1753, %1751 : vector<16x16xf32>
    %1755 = arith.addf %1737, %1754 : vector<16x16xf32>
    %c169 = arith.constant 169 : index
    %1756 = memref.load %arg8[%c169] : memref<288xf32, #tpu.memory_space<smem>>
    %1757 = vector.broadcast %1756 : f32 to vector<16x16xf32>
    %1758 = arith.mulf %1757, %1751 : vector<16x16xf32>
    %1759 = arith.addf %1741, %1758 : vector<16x16xf32>
    %c170 = arith.constant 170 : index
    %1760 = memref.load %arg8[%c170] : memref<288xf32, #tpu.memory_space<smem>>
    %1761 = vector.broadcast %1760 : f32 to vector<16x16xf32>
    %1762 = arith.mulf %1761, %1751 : vector<16x16xf32>
    %1763 = arith.addf %1745, %1762 : vector<16x16xf32>
    %c171 = arith.constant 171 : index
    %1764 = memref.load %arg8[%c171] : memref<288xf32, #tpu.memory_space<smem>>
    %1765 = vector.broadcast %1764 : f32 to vector<16x16xf32>
    %1766 = arith.mulf %1765, %1751 : vector<16x16xf32>
    %1767 = arith.addf %1749, %1766 : vector<16x16xf32>
    %c2_443 = arith.constant 2 : index
    %c2_444 = arith.constant 2 : index
    %c0_445 = arith.constant 0 : index
    %1768 = vector.load %arg13[%c2_443, %c2_444, %c0_445] : memref<8x18x18xf32, #tpu.memory_space<vmem>>, vector<1x16x16xf32>
    %1769 = vector.shape_cast %1768 : vector<1x16x16xf32> to vector<16x16xf32>
    %c200 = arith.constant 200 : index
    %1770 = memref.load %arg8[%c200] : memref<288xf32, #tpu.memory_space<smem>>
    %1771 = vector.broadcast %1770 : f32 to vector<16x16xf32>
    %1772 = arith.mulf %1771, %1769 : vector<16x16xf32>
    %1773 = arith.addf %1755, %1772 : vector<16x16xf32>
    %c201 = arith.constant 201 : index
    %1774 = memref.load %arg8[%c201] : memref<288xf32, #tpu.memory_space<smem>>
    %1775 = vector.broadcast %1774 : f32 to vector<16x16xf32>
    %1776 = arith.mulf %1775, %1769 : vector<16x16xf32>
    %1777 = arith.addf %1759, %1776 : vector<16x16xf32>
    %c202 = arith.constant 202 : index
    %1778 = memref.load %arg8[%c202] : memref<288xf32, #tpu.memory_space<smem>>
    %1779 = vector.broadcast %1778 : f32 to vector<16x16xf32>
    %1780 = arith.mulf %1779, %1769 : vector<16x16xf32>
    %1781 = arith.addf %1763, %1780 : vector<16x16xf32>
    %c203 = arith.constant 203 : index
    %1782 = memref.load %arg8[%c203] : memref<288xf32, #tpu.memory_space<smem>>
    %1783 = vector.broadcast %1782 : f32 to vector<16x16xf32>
    %1784 = arith.mulf %1783, %1769 : vector<16x16xf32>
    %1785 = arith.addf %1767, %1784 : vector<16x16xf32>
    %c2_446 = arith.constant 2 : index
    %c2_447 = arith.constant 2 : index
    %c1_448 = arith.constant 1 : index
    %1786 = vector.load %arg13[%c2_446, %c2_447, %c1_448] : memref<8x18x18xf32, #tpu.memory_space<vmem>>, vector<1x16x16xf32>
    %1787 = vector.shape_cast %1786 : vector<1x16x16xf32> to vector<16x16xf32>
    %c232 = arith.constant 232 : index
    %1788 = memref.load %arg8[%c232] : memref<288xf32, #tpu.memory_space<smem>>
    %1789 = vector.broadcast %1788 : f32 to vector<16x16xf32>
    %1790 = arith.mulf %1789, %1787 : vector<16x16xf32>
    %1791 = arith.addf %1773, %1790 : vector<16x16xf32>
    %c233 = arith.constant 233 : index
    %1792 = memref.load %arg8[%c233] : memref<288xf32, #tpu.memory_space<smem>>
    %1793 = vector.broadcast %1792 : f32 to vector<16x16xf32>
    %1794 = arith.mulf %1793, %1787 : vector<16x16xf32>
    %1795 = arith.addf %1777, %1794 : vector<16x16xf32>
    %c234 = arith.constant 234 : index
    %1796 = memref.load %arg8[%c234] : memref<288xf32, #tpu.memory_space<smem>>
    %1797 = vector.broadcast %1796 : f32 to vector<16x16xf32>
    %1798 = arith.mulf %1797, %1787 : vector<16x16xf32>
    %1799 = arith.addf %1781, %1798 : vector<16x16xf32>
    %c235 = arith.constant 235 : index
    %1800 = memref.load %arg8[%c235] : memref<288xf32, #tpu.memory_space<smem>>
    %1801 = vector.broadcast %1800 : f32 to vector<16x16xf32>
    %1802 = arith.mulf %1801, %1787 : vector<16x16xf32>
    %1803 = arith.addf %1785, %1802 : vector<16x16xf32>
    %c2_449 = arith.constant 2 : index
    %c2_450 = arith.constant 2 : index
    %c2_451 = arith.constant 2 : index
    %1804 = vector.load %arg13[%c2_449, %c2_450, %c2_451] : memref<8x18x18xf32, #tpu.memory_space<vmem>>, vector<1x16x16xf32>
    %1805 = vector.shape_cast %1804 : vector<1x16x16xf32> to vector<16x16xf32>
    %c264 = arith.constant 264 : index
    %1806 = memref.load %arg8[%c264] : memref<288xf32, #tpu.memory_space<smem>>
    %1807 = vector.broadcast %1806 : f32 to vector<16x16xf32>
    %1808 = arith.mulf %1807, %1805 : vector<16x16xf32>
    %1809 = arith.addf %1791, %1808 : vector<16x16xf32>
    %c265 = arith.constant 265 : index
    %1810 = memref.load %arg8[%c265] : memref<288xf32, #tpu.memory_space<smem>>
    %1811 = vector.broadcast %1810 : f32 to vector<16x16xf32>
    %1812 = arith.mulf %1811, %1805 : vector<16x16xf32>
    %1813 = arith.addf %1795, %1812 : vector<16x16xf32>
    %c266 = arith.constant 266 : index
    %1814 = memref.load %arg8[%c266] : memref<288xf32, #tpu.memory_space<smem>>
    %1815 = vector.broadcast %1814 : f32 to vector<16x16xf32>
    %1816 = arith.mulf %1815, %1805 : vector<16x16xf32>
    %1817 = arith.addf %1799, %1816 : vector<16x16xf32>
    %c267 = arith.constant 267 : index
    %1818 = memref.load %arg8[%c267] : memref<288xf32, #tpu.memory_space<smem>>
    %1819 = vector.broadcast %1818 : f32 to vector<16x16xf32>
    %1820 = arith.mulf %1819, %1805 : vector<16x16xf32>
    %1821 = arith.addf %1803, %1820 : vector<16x16xf32>
    %c3_452 = arith.constant 3 : index
    %c0_453 = arith.constant 0 : index
    %c0_454 = arith.constant 0 : index
    %1822 = vector.load %arg13[%c3_452, %c0_453, %c0_454] : memref<8x18x18xf32, #tpu.memory_space<vmem>>, vector<1x16x16xf32>
    %1823 = vector.shape_cast %1822 : vector<1x16x16xf32> to vector<16x16xf32>
    %c12_455 = arith.constant 12 : index
    %1824 = memref.load %arg8[%c12_455] : memref<288xf32, #tpu.memory_space<smem>>
    %1825 = vector.broadcast %1824 : f32 to vector<16x16xf32>
    %1826 = arith.mulf %1825, %1823 : vector<16x16xf32>
    %1827 = arith.addf %1809, %1826 : vector<16x16xf32>
    %c13_456 = arith.constant 13 : index
    %1828 = memref.load %arg8[%c13_456] : memref<288xf32, #tpu.memory_space<smem>>
    %1829 = vector.broadcast %1828 : f32 to vector<16x16xf32>
    %1830 = arith.mulf %1829, %1823 : vector<16x16xf32>
    %1831 = arith.addf %1813, %1830 : vector<16x16xf32>
    %c14_457 = arith.constant 14 : index
    %1832 = memref.load %arg8[%c14_457] : memref<288xf32, #tpu.memory_space<smem>>
    %1833 = vector.broadcast %1832 : f32 to vector<16x16xf32>
    %1834 = arith.mulf %1833, %1823 : vector<16x16xf32>
    %1835 = arith.addf %1817, %1834 : vector<16x16xf32>
    %c15_458 = arith.constant 15 : index
    %1836 = memref.load %arg8[%c15_458] : memref<288xf32, #tpu.memory_space<smem>>
    %1837 = vector.broadcast %1836 : f32 to vector<16x16xf32>
    %1838 = arith.mulf %1837, %1823 : vector<16x16xf32>
    %1839 = arith.addf %1821, %1838 : vector<16x16xf32>
    %c3_459 = arith.constant 3 : index
    %c0_460 = arith.constant 0 : index
    %c1_461 = arith.constant 1 : index
    %1840 = vector.load %arg13[%c3_459, %c0_460, %c1_461] : memref<8x18x18xf32, #tpu.memory_space<vmem>>, vector<1x16x16xf32>
    %1841 = vector.shape_cast %1840 : vector<1x16x16xf32> to vector<16x16xf32>
    %c44_462 = arith.constant 44 : index
    %1842 = memref.load %arg8[%c44_462] : memref<288xf32, #tpu.memory_space<smem>>
    %1843 = vector.broadcast %1842 : f32 to vector<16x16xf32>
    %1844 = arith.mulf %1843, %1841 : vector<16x16xf32>
    %1845 = arith.addf %1827, %1844 : vector<16x16xf32>
    %c45_463 = arith.constant 45 : index
    %1846 = memref.load %arg8[%c45_463] : memref<288xf32, #tpu.memory_space<smem>>
    %1847 = vector.broadcast %1846 : f32 to vector<16x16xf32>
    %1848 = arith.mulf %1847, %1841 : vector<16x16xf32>
    %1849 = arith.addf %1831, %1848 : vector<16x16xf32>
    %c46_464 = arith.constant 46 : index
    %1850 = memref.load %arg8[%c46_464] : memref<288xf32, #tpu.memory_space<smem>>
    %1851 = vector.broadcast %1850 : f32 to vector<16x16xf32>
    %1852 = arith.mulf %1851, %1841 : vector<16x16xf32>
    %1853 = arith.addf %1835, %1852 : vector<16x16xf32>
    %c47_465 = arith.constant 47 : index
    %1854 = memref.load %arg8[%c47_465] : memref<288xf32, #tpu.memory_space<smem>>
    %1855 = vector.broadcast %1854 : f32 to vector<16x16xf32>
    %1856 = arith.mulf %1855, %1841 : vector<16x16xf32>
    %1857 = arith.addf %1839, %1856 : vector<16x16xf32>
    %c3_466 = arith.constant 3 : index
    %c0_467 = arith.constant 0 : index
    %c2_468 = arith.constant 2 : index
    %1858 = vector.load %arg13[%c3_466, %c0_467, %c2_468] : memref<8x18x18xf32, #tpu.memory_space<vmem>>, vector<1x16x16xf32>
    %1859 = vector.shape_cast %1858 : vector<1x16x16xf32> to vector<16x16xf32>
    %c76_469 = arith.constant 76 : index
    %1860 = memref.load %arg8[%c76_469] : memref<288xf32, #tpu.memory_space<smem>>
    %1861 = vector.broadcast %1860 : f32 to vector<16x16xf32>
    %1862 = arith.mulf %1861, %1859 : vector<16x16xf32>
    %1863 = arith.addf %1845, %1862 : vector<16x16xf32>
    %c77_470 = arith.constant 77 : index
    %1864 = memref.load %arg8[%c77_470] : memref<288xf32, #tpu.memory_space<smem>>
    %1865 = vector.broadcast %1864 : f32 to vector<16x16xf32>
    %1866 = arith.mulf %1865, %1859 : vector<16x16xf32>
    %1867 = arith.addf %1849, %1866 : vector<16x16xf32>
    %c78_471 = arith.constant 78 : index
    %1868 = memref.load %arg8[%c78_471] : memref<288xf32, #tpu.memory_space<smem>>
    %1869 = vector.broadcast %1868 : f32 to vector<16x16xf32>
    %1870 = arith.mulf %1869, %1859 : vector<16x16xf32>
    %1871 = arith.addf %1853, %1870 : vector<16x16xf32>
    %c79_472 = arith.constant 79 : index
    %1872 = memref.load %arg8[%c79_472] : memref<288xf32, #tpu.memory_space<smem>>
    %1873 = vector.broadcast %1872 : f32 to vector<16x16xf32>
    %1874 = arith.mulf %1873, %1859 : vector<16x16xf32>
    %1875 = arith.addf %1857, %1874 : vector<16x16xf32>
    %c3_473 = arith.constant 3 : index
    %c1_474 = arith.constant 1 : index
    %c0_475 = arith.constant 0 : index
    %1876 = vector.load %arg13[%c3_473, %c1_474, %c0_475] : memref<8x18x18xf32, #tpu.memory_space<vmem>>, vector<1x16x16xf32>
    %1877 = vector.shape_cast %1876 : vector<1x16x16xf32> to vector<16x16xf32>
    %c108_476 = arith.constant 108 : index
    %1878 = memref.load %arg8[%c108_476] : memref<288xf32, #tpu.memory_space<smem>>
    %1879 = vector.broadcast %1878 : f32 to vector<16x16xf32>
    %1880 = arith.mulf %1879, %1877 : vector<16x16xf32>
    %1881 = arith.addf %1863, %1880 : vector<16x16xf32>
    %c109_477 = arith.constant 109 : index
    %1882 = memref.load %arg8[%c109_477] : memref<288xf32, #tpu.memory_space<smem>>
    %1883 = vector.broadcast %1882 : f32 to vector<16x16xf32>
    %1884 = arith.mulf %1883, %1877 : vector<16x16xf32>
    %1885 = arith.addf %1867, %1884 : vector<16x16xf32>
    %c110_478 = arith.constant 110 : index
    %1886 = memref.load %arg8[%c110_478] : memref<288xf32, #tpu.memory_space<smem>>
    %1887 = vector.broadcast %1886 : f32 to vector<16x16xf32>
    %1888 = arith.mulf %1887, %1877 : vector<16x16xf32>
    %1889 = arith.addf %1871, %1888 : vector<16x16xf32>
    %c111_479 = arith.constant 111 : index
    %1890 = memref.load %arg8[%c111_479] : memref<288xf32, #tpu.memory_space<smem>>
    %1891 = vector.broadcast %1890 : f32 to vector<16x16xf32>
    %1892 = arith.mulf %1891, %1877 : vector<16x16xf32>
    %1893 = arith.addf %1875, %1892 : vector<16x16xf32>
    %c3_480 = arith.constant 3 : index
    %c1_481 = arith.constant 1 : index
    %c1_482 = arith.constant 1 : index
    %1894 = vector.load %arg13[%c3_480, %c1_481, %c1_482] : memref<8x18x18xf32, #tpu.memory_space<vmem>>, vector<1x16x16xf32>
    %1895 = vector.shape_cast %1894 : vector<1x16x16xf32> to vector<16x16xf32>
    %c140_483 = arith.constant 140 : index
    %1896 = memref.load %arg8[%c140_483] : memref<288xf32, #tpu.memory_space<smem>>
    %1897 = vector.broadcast %1896 : f32 to vector<16x16xf32>
    %1898 = arith.mulf %1897, %1895 : vector<16x16xf32>
    %1899 = arith.addf %1881, %1898 : vector<16x16xf32>
    %c141_484 = arith.constant 141 : index
    %1900 = memref.load %arg8[%c141_484] : memref<288xf32, #tpu.memory_space<smem>>
    %1901 = vector.broadcast %1900 : f32 to vector<16x16xf32>
    %1902 = arith.mulf %1901, %1895 : vector<16x16xf32>
    %1903 = arith.addf %1885, %1902 : vector<16x16xf32>
    %c142_485 = arith.constant 142 : index
    %1904 = memref.load %arg8[%c142_485] : memref<288xf32, #tpu.memory_space<smem>>
    %1905 = vector.broadcast %1904 : f32 to vector<16x16xf32>
    %1906 = arith.mulf %1905, %1895 : vector<16x16xf32>
    %1907 = arith.addf %1889, %1906 : vector<16x16xf32>
    %c143_486 = arith.constant 143 : index
    %1908 = memref.load %arg8[%c143_486] : memref<288xf32, #tpu.memory_space<smem>>
    %1909 = vector.broadcast %1908 : f32 to vector<16x16xf32>
    %1910 = arith.mulf %1909, %1895 : vector<16x16xf32>
    %1911 = arith.addf %1893, %1910 : vector<16x16xf32>
    %c3_487 = arith.constant 3 : index
    %c1_488 = arith.constant 1 : index
    %c2_489 = arith.constant 2 : index
    %1912 = vector.load %arg13[%c3_487, %c1_488, %c2_489] : memref<8x18x18xf32, #tpu.memory_space<vmem>>, vector<1x16x16xf32>
    %1913 = vector.shape_cast %1912 : vector<1x16x16xf32> to vector<16x16xf32>
    %c172 = arith.constant 172 : index
    %1914 = memref.load %arg8[%c172] : memref<288xf32, #tpu.memory_space<smem>>
    %1915 = vector.broadcast %1914 : f32 to vector<16x16xf32>
    %1916 = arith.mulf %1915, %1913 : vector<16x16xf32>
    %1917 = arith.addf %1899, %1916 : vector<16x16xf32>
    %c173 = arith.constant 173 : index
    %1918 = memref.load %arg8[%c173] : memref<288xf32, #tpu.memory_space<smem>>
    %1919 = vector.broadcast %1918 : f32 to vector<16x16xf32>
    %1920 = arith.mulf %1919, %1913 : vector<16x16xf32>
    %1921 = arith.addf %1903, %1920 : vector<16x16xf32>
    %c174 = arith.constant 174 : index
    %1922 = memref.load %arg8[%c174] : memref<288xf32, #tpu.memory_space<smem>>
    %1923 = vector.broadcast %1922 : f32 to vector<16x16xf32>
    %1924 = arith.mulf %1923, %1913 : vector<16x16xf32>
    %1925 = arith.addf %1907, %1924 : vector<16x16xf32>
    %c175 = arith.constant 175 : index
    %1926 = memref.load %arg8[%c175] : memref<288xf32, #tpu.memory_space<smem>>
    %1927 = vector.broadcast %1926 : f32 to vector<16x16xf32>
    %1928 = arith.mulf %1927, %1913 : vector<16x16xf32>
    %1929 = arith.addf %1911, %1928 : vector<16x16xf32>
    %c3_490 = arith.constant 3 : index
    %c2_491 = arith.constant 2 : index
    %c0_492 = arith.constant 0 : index
    %1930 = vector.load %arg13[%c3_490, %c2_491, %c0_492] : memref<8x18x18xf32, #tpu.memory_space<vmem>>, vector<1x16x16xf32>
    %1931 = vector.shape_cast %1930 : vector<1x16x16xf32> to vector<16x16xf32>
    %c204 = arith.constant 204 : index
    %1932 = memref.load %arg8[%c204] : memref<288xf32, #tpu.memory_space<smem>>
    %1933 = vector.broadcast %1932 : f32 to vector<16x16xf32>
    %1934 = arith.mulf %1933, %1931 : vector<16x16xf32>
    %1935 = arith.addf %1917, %1934 : vector<16x16xf32>
    %c205 = arith.constant 205 : index
    %1936 = memref.load %arg8[%c205] : memref<288xf32, #tpu.memory_space<smem>>
    %1937 = vector.broadcast %1936 : f32 to vector<16x16xf32>
    %1938 = arith.mulf %1937, %1931 : vector<16x16xf32>
    %1939 = arith.addf %1921, %1938 : vector<16x16xf32>
    %c206 = arith.constant 206 : index
    %1940 = memref.load %arg8[%c206] : memref<288xf32, #tpu.memory_space<smem>>
    %1941 = vector.broadcast %1940 : f32 to vector<16x16xf32>
    %1942 = arith.mulf %1941, %1931 : vector<16x16xf32>
    %1943 = arith.addf %1925, %1942 : vector<16x16xf32>
    %c207 = arith.constant 207 : index
    %1944 = memref.load %arg8[%c207] : memref<288xf32, #tpu.memory_space<smem>>
    %1945 = vector.broadcast %1944 : f32 to vector<16x16xf32>
    %1946 = arith.mulf %1945, %1931 : vector<16x16xf32>
    %1947 = arith.addf %1929, %1946 : vector<16x16xf32>
    %c3_493 = arith.constant 3 : index
    %c2_494 = arith.constant 2 : index
    %c1_495 = arith.constant 1 : index
    %1948 = vector.load %arg13[%c3_493, %c2_494, %c1_495] : memref<8x18x18xf32, #tpu.memory_space<vmem>>, vector<1x16x16xf32>
    %1949 = vector.shape_cast %1948 : vector<1x16x16xf32> to vector<16x16xf32>
    %c236 = arith.constant 236 : index
    %1950 = memref.load %arg8[%c236] : memref<288xf32, #tpu.memory_space<smem>>
    %1951 = vector.broadcast %1950 : f32 to vector<16x16xf32>
    %1952 = arith.mulf %1951, %1949 : vector<16x16xf32>
    %1953 = arith.addf %1935, %1952 : vector<16x16xf32>
    %c237 = arith.constant 237 : index
    %1954 = memref.load %arg8[%c237] : memref<288xf32, #tpu.memory_space<smem>>
    %1955 = vector.broadcast %1954 : f32 to vector<16x16xf32>
    %1956 = arith.mulf %1955, %1949 : vector<16x16xf32>
    %1957 = arith.addf %1939, %1956 : vector<16x16xf32>
    %c238 = arith.constant 238 : index
    %1958 = memref.load %arg8[%c238] : memref<288xf32, #tpu.memory_space<smem>>
    %1959 = vector.broadcast %1958 : f32 to vector<16x16xf32>
    %1960 = arith.mulf %1959, %1949 : vector<16x16xf32>
    %1961 = arith.addf %1943, %1960 : vector<16x16xf32>
    %c239 = arith.constant 239 : index
    %1962 = memref.load %arg8[%c239] : memref<288xf32, #tpu.memory_space<smem>>
    %1963 = vector.broadcast %1962 : f32 to vector<16x16xf32>
    %1964 = arith.mulf %1963, %1949 : vector<16x16xf32>
    %1965 = arith.addf %1947, %1964 : vector<16x16xf32>
    %c3_496 = arith.constant 3 : index
    %c2_497 = arith.constant 2 : index
    %c2_498 = arith.constant 2 : index
    %1966 = vector.load %arg13[%c3_496, %c2_497, %c2_498] : memref<8x18x18xf32, #tpu.memory_space<vmem>>, vector<1x16x16xf32>
    %1967 = vector.shape_cast %1966 : vector<1x16x16xf32> to vector<16x16xf32>
    %c268 = arith.constant 268 : index
    %1968 = memref.load %arg8[%c268] : memref<288xf32, #tpu.memory_space<smem>>
    %1969 = vector.broadcast %1968 : f32 to vector<16x16xf32>
    %1970 = arith.mulf %1969, %1967 : vector<16x16xf32>
    %1971 = arith.addf %1953, %1970 : vector<16x16xf32>
    %c269 = arith.constant 269 : index
    %1972 = memref.load %arg8[%c269] : memref<288xf32, #tpu.memory_space<smem>>
    %1973 = vector.broadcast %1972 : f32 to vector<16x16xf32>
    %1974 = arith.mulf %1973, %1967 : vector<16x16xf32>
    %1975 = arith.addf %1957, %1974 : vector<16x16xf32>
    %c270 = arith.constant 270 : index
    %1976 = memref.load %arg8[%c270] : memref<288xf32, #tpu.memory_space<smem>>
    %1977 = vector.broadcast %1976 : f32 to vector<16x16xf32>
    %1978 = arith.mulf %1977, %1967 : vector<16x16xf32>
    %1979 = arith.addf %1961, %1978 : vector<16x16xf32>
    %c271 = arith.constant 271 : index
    %1980 = memref.load %arg8[%c271] : memref<288xf32, #tpu.memory_space<smem>>
    %1981 = vector.broadcast %1980 : f32 to vector<16x16xf32>
    %1982 = arith.mulf %1981, %1967 : vector<16x16xf32>
    %1983 = arith.addf %1965, %1982 : vector<16x16xf32>
    %c4_499 = arith.constant 4 : index
    %c0_500 = arith.constant 0 : index
    %c0_501 = arith.constant 0 : index
    %1984 = vector.load %arg13[%c4_499, %c0_500, %c0_501] : memref<8x18x18xf32, #tpu.memory_space<vmem>>, vector<1x16x16xf32>
    %1985 = vector.shape_cast %1984 : vector<1x16x16xf32> to vector<16x16xf32>
    %c16_502 = arith.constant 16 : index
    %1986 = memref.load %arg8[%c16_502] : memref<288xf32, #tpu.memory_space<smem>>
    %1987 = vector.broadcast %1986 : f32 to vector<16x16xf32>
    %1988 = arith.mulf %1987, %1985 : vector<16x16xf32>
    %1989 = arith.addf %1971, %1988 : vector<16x16xf32>
    %c17_503 = arith.constant 17 : index
    %1990 = memref.load %arg8[%c17_503] : memref<288xf32, #tpu.memory_space<smem>>
    %1991 = vector.broadcast %1990 : f32 to vector<16x16xf32>
    %1992 = arith.mulf %1991, %1985 : vector<16x16xf32>
    %1993 = arith.addf %1975, %1992 : vector<16x16xf32>
    %c18_504 = arith.constant 18 : index
    %1994 = memref.load %arg8[%c18_504] : memref<288xf32, #tpu.memory_space<smem>>
    %1995 = vector.broadcast %1994 : f32 to vector<16x16xf32>
    %1996 = arith.mulf %1995, %1985 : vector<16x16xf32>
    %1997 = arith.addf %1979, %1996 : vector<16x16xf32>
    %c19_505 = arith.constant 19 : index
    %1998 = memref.load %arg8[%c19_505] : memref<288xf32, #tpu.memory_space<smem>>
    %1999 = vector.broadcast %1998 : f32 to vector<16x16xf32>
    %2000 = arith.mulf %1999, %1985 : vector<16x16xf32>
    %2001 = arith.addf %1983, %2000 : vector<16x16xf32>
    %c4_506 = arith.constant 4 : index
    %c0_507 = arith.constant 0 : index
    %c1_508 = arith.constant 1 : index
    %2002 = vector.load %arg13[%c4_506, %c0_507, %c1_508] : memref<8x18x18xf32, #tpu.memory_space<vmem>>, vector<1x16x16xf32>
    %2003 = vector.shape_cast %2002 : vector<1x16x16xf32> to vector<16x16xf32>
    %c48_509 = arith.constant 48 : index
    %2004 = memref.load %arg8[%c48_509] : memref<288xf32, #tpu.memory_space<smem>>
    %2005 = vector.broadcast %2004 : f32 to vector<16x16xf32>
    %2006 = arith.mulf %2005, %2003 : vector<16x16xf32>
    %2007 = arith.addf %1989, %2006 : vector<16x16xf32>
    %c49_510 = arith.constant 49 : index
    %2008 = memref.load %arg8[%c49_510] : memref<288xf32, #tpu.memory_space<smem>>
    %2009 = vector.broadcast %2008 : f32 to vector<16x16xf32>
    %2010 = arith.mulf %2009, %2003 : vector<16x16xf32>
    %2011 = arith.addf %1993, %2010 : vector<16x16xf32>
    %c50_511 = arith.constant 50 : index
    %2012 = memref.load %arg8[%c50_511] : memref<288xf32, #tpu.memory_space<smem>>
    %2013 = vector.broadcast %2012 : f32 to vector<16x16xf32>
    %2014 = arith.mulf %2013, %2003 : vector<16x16xf32>
    %2015 = arith.addf %1997, %2014 : vector<16x16xf32>
    %c51_512 = arith.constant 51 : index
    %2016 = memref.load %arg8[%c51_512] : memref<288xf32, #tpu.memory_space<smem>>
    %2017 = vector.broadcast %2016 : f32 to vector<16x16xf32>
    %2018 = arith.mulf %2017, %2003 : vector<16x16xf32>
    %2019 = arith.addf %2001, %2018 : vector<16x16xf32>
    %c4_513 = arith.constant 4 : index
    %c0_514 = arith.constant 0 : index
    %c2_515 = arith.constant 2 : index
    %2020 = vector.load %arg13[%c4_513, %c0_514, %c2_515] : memref<8x18x18xf32, #tpu.memory_space<vmem>>, vector<1x16x16xf32>
    %2021 = vector.shape_cast %2020 : vector<1x16x16xf32> to vector<16x16xf32>
    %c80_516 = arith.constant 80 : index
    %2022 = memref.load %arg8[%c80_516] : memref<288xf32, #tpu.memory_space<smem>>
    %2023 = vector.broadcast %2022 : f32 to vector<16x16xf32>
    %2024 = arith.mulf %2023, %2021 : vector<16x16xf32>
    %2025 = arith.addf %2007, %2024 : vector<16x16xf32>
    %c81_517 = arith.constant 81 : index
    %2026 = memref.load %arg8[%c81_517] : memref<288xf32, #tpu.memory_space<smem>>
    %2027 = vector.broadcast %2026 : f32 to vector<16x16xf32>
    %2028 = arith.mulf %2027, %2021 : vector<16x16xf32>
    %2029 = arith.addf %2011, %2028 : vector<16x16xf32>
    %c82_518 = arith.constant 82 : index
    %2030 = memref.load %arg8[%c82_518] : memref<288xf32, #tpu.memory_space<smem>>
    %2031 = vector.broadcast %2030 : f32 to vector<16x16xf32>
    %2032 = arith.mulf %2031, %2021 : vector<16x16xf32>
    %2033 = arith.addf %2015, %2032 : vector<16x16xf32>
    %c83_519 = arith.constant 83 : index
    %2034 = memref.load %arg8[%c83_519] : memref<288xf32, #tpu.memory_space<smem>>
    %2035 = vector.broadcast %2034 : f32 to vector<16x16xf32>
    %2036 = arith.mulf %2035, %2021 : vector<16x16xf32>
    %2037 = arith.addf %2019, %2036 : vector<16x16xf32>
    %c4_520 = arith.constant 4 : index
    %c1_521 = arith.constant 1 : index
    %c0_522 = arith.constant 0 : index
    %2038 = vector.load %arg13[%c4_520, %c1_521, %c0_522] : memref<8x18x18xf32, #tpu.memory_space<vmem>>, vector<1x16x16xf32>
    %2039 = vector.shape_cast %2038 : vector<1x16x16xf32> to vector<16x16xf32>
    %c112_523 = arith.constant 112 : index
    %2040 = memref.load %arg8[%c112_523] : memref<288xf32, #tpu.memory_space<smem>>
    %2041 = vector.broadcast %2040 : f32 to vector<16x16xf32>
    %2042 = arith.mulf %2041, %2039 : vector<16x16xf32>
    %2043 = arith.addf %2025, %2042 : vector<16x16xf32>
    %c113_524 = arith.constant 113 : index
    %2044 = memref.load %arg8[%c113_524] : memref<288xf32, #tpu.memory_space<smem>>
    %2045 = vector.broadcast %2044 : f32 to vector<16x16xf32>
    %2046 = arith.mulf %2045, %2039 : vector<16x16xf32>
    %2047 = arith.addf %2029, %2046 : vector<16x16xf32>
    %c114_525 = arith.constant 114 : index
    %2048 = memref.load %arg8[%c114_525] : memref<288xf32, #tpu.memory_space<smem>>
    %2049 = vector.broadcast %2048 : f32 to vector<16x16xf32>
    %2050 = arith.mulf %2049, %2039 : vector<16x16xf32>
    %2051 = arith.addf %2033, %2050 : vector<16x16xf32>
    %c115_526 = arith.constant 115 : index
    %2052 = memref.load %arg8[%c115_526] : memref<288xf32, #tpu.memory_space<smem>>
    %2053 = vector.broadcast %2052 : f32 to vector<16x16xf32>
    %2054 = arith.mulf %2053, %2039 : vector<16x16xf32>
    %2055 = arith.addf %2037, %2054 : vector<16x16xf32>
    %c4_527 = arith.constant 4 : index
    %c1_528 = arith.constant 1 : index
    %c1_529 = arith.constant 1 : index
    %2056 = vector.load %arg13[%c4_527, %c1_528, %c1_529] : memref<8x18x18xf32, #tpu.memory_space<vmem>>, vector<1x16x16xf32>
    %2057 = vector.shape_cast %2056 : vector<1x16x16xf32> to vector<16x16xf32>
    %c144 = arith.constant 144 : index
    %2058 = memref.load %arg8[%c144] : memref<288xf32, #tpu.memory_space<smem>>
    %2059 = vector.broadcast %2058 : f32 to vector<16x16xf32>
    %2060 = arith.mulf %2059, %2057 : vector<16x16xf32>
    %2061 = arith.addf %2043, %2060 : vector<16x16xf32>
    %c145 = arith.constant 145 : index
    %2062 = memref.load %arg8[%c145] : memref<288xf32, #tpu.memory_space<smem>>
    %2063 = vector.broadcast %2062 : f32 to vector<16x16xf32>
    %2064 = arith.mulf %2063, %2057 : vector<16x16xf32>
    %2065 = arith.addf %2047, %2064 : vector<16x16xf32>
    %c146 = arith.constant 146 : index
    %2066 = memref.load %arg8[%c146] : memref<288xf32, #tpu.memory_space<smem>>
    %2067 = vector.broadcast %2066 : f32 to vector<16x16xf32>
    %2068 = arith.mulf %2067, %2057 : vector<16x16xf32>
    %2069 = arith.addf %2051, %2068 : vector<16x16xf32>
    %c147 = arith.constant 147 : index
    %2070 = memref.load %arg8[%c147] : memref<288xf32, #tpu.memory_space<smem>>
    %2071 = vector.broadcast %2070 : f32 to vector<16x16xf32>
    %2072 = arith.mulf %2071, %2057 : vector<16x16xf32>
    %2073 = arith.addf %2055, %2072 : vector<16x16xf32>
    %c4_530 = arith.constant 4 : index
    %c1_531 = arith.constant 1 : index
    %c2_532 = arith.constant 2 : index
    %2074 = vector.load %arg13[%c4_530, %c1_531, %c2_532] : memref<8x18x18xf32, #tpu.memory_space<vmem>>, vector<1x16x16xf32>
    %2075 = vector.shape_cast %2074 : vector<1x16x16xf32> to vector<16x16xf32>
    %c176 = arith.constant 176 : index
    %2076 = memref.load %arg8[%c176] : memref<288xf32, #tpu.memory_space<smem>>
    %2077 = vector.broadcast %2076 : f32 to vector<16x16xf32>
    %2078 = arith.mulf %2077, %2075 : vector<16x16xf32>
    %2079 = arith.addf %2061, %2078 : vector<16x16xf32>
    %c177 = arith.constant 177 : index
    %2080 = memref.load %arg8[%c177] : memref<288xf32, #tpu.memory_space<smem>>
    %2081 = vector.broadcast %2080 : f32 to vector<16x16xf32>
    %2082 = arith.mulf %2081, %2075 : vector<16x16xf32>
    %2083 = arith.addf %2065, %2082 : vector<16x16xf32>
    %c178 = arith.constant 178 : index
    %2084 = memref.load %arg8[%c178] : memref<288xf32, #tpu.memory_space<smem>>
    %2085 = vector.broadcast %2084 : f32 to vector<16x16xf32>
    %2086 = arith.mulf %2085, %2075 : vector<16x16xf32>
    %2087 = arith.addf %2069, %2086 : vector<16x16xf32>
    %c179 = arith.constant 179 : index
    %2088 = memref.load %arg8[%c179] : memref<288xf32, #tpu.memory_space<smem>>
    %2089 = vector.broadcast %2088 : f32 to vector<16x16xf32>
    %2090 = arith.mulf %2089, %2075 : vector<16x16xf32>
    %2091 = arith.addf %2073, %2090 : vector<16x16xf32>
    %c4_533 = arith.constant 4 : index
    %c2_534 = arith.constant 2 : index
    %c0_535 = arith.constant 0 : index
    %2092 = vector.load %arg13[%c4_533, %c2_534, %c0_535] : memref<8x18x18xf32, #tpu.memory_space<vmem>>, vector<1x16x16xf32>
    %2093 = vector.shape_cast %2092 : vector<1x16x16xf32> to vector<16x16xf32>
    %c208 = arith.constant 208 : index
    %2094 = memref.load %arg8[%c208] : memref<288xf32, #tpu.memory_space<smem>>
    %2095 = vector.broadcast %2094 : f32 to vector<16x16xf32>
    %2096 = arith.mulf %2095, %2093 : vector<16x16xf32>
    %2097 = arith.addf %2079, %2096 : vector<16x16xf32>
    %c209 = arith.constant 209 : index
    %2098 = memref.load %arg8[%c209] : memref<288xf32, #tpu.memory_space<smem>>
    %2099 = vector.broadcast %2098 : f32 to vector<16x16xf32>
    %2100 = arith.mulf %2099, %2093 : vector<16x16xf32>
    %2101 = arith.addf %2083, %2100 : vector<16x16xf32>
    %c210 = arith.constant 210 : index
    %2102 = memref.load %arg8[%c210] : memref<288xf32, #tpu.memory_space<smem>>
    %2103 = vector.broadcast %2102 : f32 to vector<16x16xf32>
    %2104 = arith.mulf %2103, %2093 : vector<16x16xf32>
    %2105 = arith.addf %2087, %2104 : vector<16x16xf32>
    %c211 = arith.constant 211 : index
    %2106 = memref.load %arg8[%c211] : memref<288xf32, #tpu.memory_space<smem>>
    %2107 = vector.broadcast %2106 : f32 to vector<16x16xf32>
    %2108 = arith.mulf %2107, %2093 : vector<16x16xf32>
    %2109 = arith.addf %2091, %2108 : vector<16x16xf32>
    %c4_536 = arith.constant 4 : index
    %c2_537 = arith.constant 2 : index
    %c1_538 = arith.constant 1 : index
    %2110 = vector.load %arg13[%c4_536, %c2_537, %c1_538] : memref<8x18x18xf32, #tpu.memory_space<vmem>>, vector<1x16x16xf32>
    %2111 = vector.shape_cast %2110 : vector<1x16x16xf32> to vector<16x16xf32>
    %c240 = arith.constant 240 : index
    %2112 = memref.load %arg8[%c240] : memref<288xf32, #tpu.memory_space<smem>>
    %2113 = vector.broadcast %2112 : f32 to vector<16x16xf32>
    %2114 = arith.mulf %2113, %2111 : vector<16x16xf32>
    %2115 = arith.addf %2097, %2114 : vector<16x16xf32>
    %c241 = arith.constant 241 : index
    %2116 = memref.load %arg8[%c241] : memref<288xf32, #tpu.memory_space<smem>>
    %2117 = vector.broadcast %2116 : f32 to vector<16x16xf32>
    %2118 = arith.mulf %2117, %2111 : vector<16x16xf32>
    %2119 = arith.addf %2101, %2118 : vector<16x16xf32>
    %c242 = arith.constant 242 : index
    %2120 = memref.load %arg8[%c242] : memref<288xf32, #tpu.memory_space<smem>>
    %2121 = vector.broadcast %2120 : f32 to vector<16x16xf32>
    %2122 = arith.mulf %2121, %2111 : vector<16x16xf32>
    %2123 = arith.addf %2105, %2122 : vector<16x16xf32>
    %c243 = arith.constant 243 : index
    %2124 = memref.load %arg8[%c243] : memref<288xf32, #tpu.memory_space<smem>>
    %2125 = vector.broadcast %2124 : f32 to vector<16x16xf32>
    %2126 = arith.mulf %2125, %2111 : vector<16x16xf32>
    %2127 = arith.addf %2109, %2126 : vector<16x16xf32>
    %c4_539 = arith.constant 4 : index
    %c2_540 = arith.constant 2 : index
    %c2_541 = arith.constant 2 : index
    %2128 = vector.load %arg13[%c4_539, %c2_540, %c2_541] : memref<8x18x18xf32, #tpu.memory_space<vmem>>, vector<1x16x16xf32>
    %2129 = vector.shape_cast %2128 : vector<1x16x16xf32> to vector<16x16xf32>
    %c272 = arith.constant 272 : index
    %2130 = memref.load %arg8[%c272] : memref<288xf32, #tpu.memory_space<smem>>
    %2131 = vector.broadcast %2130 : f32 to vector<16x16xf32>
    %2132 = arith.mulf %2131, %2129 : vector<16x16xf32>
    %2133 = arith.addf %2115, %2132 : vector<16x16xf32>
    %c273 = arith.constant 273 : index
    %2134 = memref.load %arg8[%c273] : memref<288xf32, #tpu.memory_space<smem>>
    %2135 = vector.broadcast %2134 : f32 to vector<16x16xf32>
    %2136 = arith.mulf %2135, %2129 : vector<16x16xf32>
    %2137 = arith.addf %2119, %2136 : vector<16x16xf32>
    %c274 = arith.constant 274 : index
    %2138 = memref.load %arg8[%c274] : memref<288xf32, #tpu.memory_space<smem>>
    %2139 = vector.broadcast %2138 : f32 to vector<16x16xf32>
    %2140 = arith.mulf %2139, %2129 : vector<16x16xf32>
    %2141 = arith.addf %2123, %2140 : vector<16x16xf32>
    %c275 = arith.constant 275 : index
    %2142 = memref.load %arg8[%c275] : memref<288xf32, #tpu.memory_space<smem>>
    %2143 = vector.broadcast %2142 : f32 to vector<16x16xf32>
    %2144 = arith.mulf %2143, %2129 : vector<16x16xf32>
    %2145 = arith.addf %2127, %2144 : vector<16x16xf32>
    %c5_542 = arith.constant 5 : index
    %c0_543 = arith.constant 0 : index
    %c0_544 = arith.constant 0 : index
    %2146 = vector.load %arg13[%c5_542, %c0_543, %c0_544] : memref<8x18x18xf32, #tpu.memory_space<vmem>>, vector<1x16x16xf32>
    %2147 = vector.shape_cast %2146 : vector<1x16x16xf32> to vector<16x16xf32>
    %c20_545 = arith.constant 20 : index
    %2148 = memref.load %arg8[%c20_545] : memref<288xf32, #tpu.memory_space<smem>>
    %2149 = vector.broadcast %2148 : f32 to vector<16x16xf32>
    %2150 = arith.mulf %2149, %2147 : vector<16x16xf32>
    %2151 = arith.addf %2133, %2150 : vector<16x16xf32>
    %c21_546 = arith.constant 21 : index
    %2152 = memref.load %arg8[%c21_546] : memref<288xf32, #tpu.memory_space<smem>>
    %2153 = vector.broadcast %2152 : f32 to vector<16x16xf32>
    %2154 = arith.mulf %2153, %2147 : vector<16x16xf32>
    %2155 = arith.addf %2137, %2154 : vector<16x16xf32>
    %c22_547 = arith.constant 22 : index
    %2156 = memref.load %arg8[%c22_547] : memref<288xf32, #tpu.memory_space<smem>>
    %2157 = vector.broadcast %2156 : f32 to vector<16x16xf32>
    %2158 = arith.mulf %2157, %2147 : vector<16x16xf32>
    %2159 = arith.addf %2141, %2158 : vector<16x16xf32>
    %c23_548 = arith.constant 23 : index
    %2160 = memref.load %arg8[%c23_548] : memref<288xf32, #tpu.memory_space<smem>>
    %2161 = vector.broadcast %2160 : f32 to vector<16x16xf32>
    %2162 = arith.mulf %2161, %2147 : vector<16x16xf32>
    %2163 = arith.addf %2145, %2162 : vector<16x16xf32>
    %c5_549 = arith.constant 5 : index
    %c0_550 = arith.constant 0 : index
    %c1_551 = arith.constant 1 : index
    %2164 = vector.load %arg13[%c5_549, %c0_550, %c1_551] : memref<8x18x18xf32, #tpu.memory_space<vmem>>, vector<1x16x16xf32>
    %2165 = vector.shape_cast %2164 : vector<1x16x16xf32> to vector<16x16xf32>
    %c52_552 = arith.constant 52 : index
    %2166 = memref.load %arg8[%c52_552] : memref<288xf32, #tpu.memory_space<smem>>
    %2167 = vector.broadcast %2166 : f32 to vector<16x16xf32>
    %2168 = arith.mulf %2167, %2165 : vector<16x16xf32>
    %2169 = arith.addf %2151, %2168 : vector<16x16xf32>
    %c53_553 = arith.constant 53 : index
    %2170 = memref.load %arg8[%c53_553] : memref<288xf32, #tpu.memory_space<smem>>
    %2171 = vector.broadcast %2170 : f32 to vector<16x16xf32>
    %2172 = arith.mulf %2171, %2165 : vector<16x16xf32>
    %2173 = arith.addf %2155, %2172 : vector<16x16xf32>
    %c54_554 = arith.constant 54 : index
    %2174 = memref.load %arg8[%c54_554] : memref<288xf32, #tpu.memory_space<smem>>
    %2175 = vector.broadcast %2174 : f32 to vector<16x16xf32>
    %2176 = arith.mulf %2175, %2165 : vector<16x16xf32>
    %2177 = arith.addf %2159, %2176 : vector<16x16xf32>
    %c55_555 = arith.constant 55 : index
    %2178 = memref.load %arg8[%c55_555] : memref<288xf32, #tpu.memory_space<smem>>
    %2179 = vector.broadcast %2178 : f32 to vector<16x16xf32>
    %2180 = arith.mulf %2179, %2165 : vector<16x16xf32>
    %2181 = arith.addf %2163, %2180 : vector<16x16xf32>
    %c5_556 = arith.constant 5 : index
    %c0_557 = arith.constant 0 : index
    %c2_558 = arith.constant 2 : index
    %2182 = vector.load %arg13[%c5_556, %c0_557, %c2_558] : memref<8x18x18xf32, #tpu.memory_space<vmem>>, vector<1x16x16xf32>
    %2183 = vector.shape_cast %2182 : vector<1x16x16xf32> to vector<16x16xf32>
    %c84_559 = arith.constant 84 : index
    %2184 = memref.load %arg8[%c84_559] : memref<288xf32, #tpu.memory_space<smem>>
    %2185 = vector.broadcast %2184 : f32 to vector<16x16xf32>
    %2186 = arith.mulf %2185, %2183 : vector<16x16xf32>
    %2187 = arith.addf %2169, %2186 : vector<16x16xf32>
    %c85_560 = arith.constant 85 : index
    %2188 = memref.load %arg8[%c85_560] : memref<288xf32, #tpu.memory_space<smem>>
    %2189 = vector.broadcast %2188 : f32 to vector<16x16xf32>
    %2190 = arith.mulf %2189, %2183 : vector<16x16xf32>
    %2191 = arith.addf %2173, %2190 : vector<16x16xf32>
    %c86_561 = arith.constant 86 : index
    %2192 = memref.load %arg8[%c86_561] : memref<288xf32, #tpu.memory_space<smem>>
    %2193 = vector.broadcast %2192 : f32 to vector<16x16xf32>
    %2194 = arith.mulf %2193, %2183 : vector<16x16xf32>
    %2195 = arith.addf %2177, %2194 : vector<16x16xf32>
    %c87_562 = arith.constant 87 : index
    %2196 = memref.load %arg8[%c87_562] : memref<288xf32, #tpu.memory_space<smem>>
    %2197 = vector.broadcast %2196 : f32 to vector<16x16xf32>
    %2198 = arith.mulf %2197, %2183 : vector<16x16xf32>
    %2199 = arith.addf %2181, %2198 : vector<16x16xf32>
    %c5_563 = arith.constant 5 : index
    %c1_564 = arith.constant 1 : index
    %c0_565 = arith.constant 0 : index
    %2200 = vector.load %arg13[%c5_563, %c1_564, %c0_565] : memref<8x18x18xf32, #tpu.memory_space<vmem>>, vector<1x16x16xf32>
    %2201 = vector.shape_cast %2200 : vector<1x16x16xf32> to vector<16x16xf32>
    %c116_566 = arith.constant 116 : index
    %2202 = memref.load %arg8[%c116_566] : memref<288xf32, #tpu.memory_space<smem>>
    %2203 = vector.broadcast %2202 : f32 to vector<16x16xf32>
    %2204 = arith.mulf %2203, %2201 : vector<16x16xf32>
    %2205 = arith.addf %2187, %2204 : vector<16x16xf32>
    %c117_567 = arith.constant 117 : index
    %2206 = memref.load %arg8[%c117_567] : memref<288xf32, #tpu.memory_space<smem>>
    %2207 = vector.broadcast %2206 : f32 to vector<16x16xf32>
    %2208 = arith.mulf %2207, %2201 : vector<16x16xf32>
    %2209 = arith.addf %2191, %2208 : vector<16x16xf32>
    %c118_568 = arith.constant 118 : index
    %2210 = memref.load %arg8[%c118_568] : memref<288xf32, #tpu.memory_space<smem>>
    %2211 = vector.broadcast %2210 : f32 to vector<16x16xf32>
    %2212 = arith.mulf %2211, %2201 : vector<16x16xf32>
    %2213 = arith.addf %2195, %2212 : vector<16x16xf32>
    %c119_569 = arith.constant 119 : index
    %2214 = memref.load %arg8[%c119_569] : memref<288xf32, #tpu.memory_space<smem>>
    %2215 = vector.broadcast %2214 : f32 to vector<16x16xf32>
    %2216 = arith.mulf %2215, %2201 : vector<16x16xf32>
    %2217 = arith.addf %2199, %2216 : vector<16x16xf32>
    %c5_570 = arith.constant 5 : index
    %c1_571 = arith.constant 1 : index
    %c1_572 = arith.constant 1 : index
    %2218 = vector.load %arg13[%c5_570, %c1_571, %c1_572] : memref<8x18x18xf32, #tpu.memory_space<vmem>>, vector<1x16x16xf32>
    %2219 = vector.shape_cast %2218 : vector<1x16x16xf32> to vector<16x16xf32>
    %c148 = arith.constant 148 : index
    %2220 = memref.load %arg8[%c148] : memref<288xf32, #tpu.memory_space<smem>>
    %2221 = vector.broadcast %2220 : f32 to vector<16x16xf32>
    %2222 = arith.mulf %2221, %2219 : vector<16x16xf32>
    %2223 = arith.addf %2205, %2222 : vector<16x16xf32>
    %c149 = arith.constant 149 : index
    %2224 = memref.load %arg8[%c149] : memref<288xf32, #tpu.memory_space<smem>>
    %2225 = vector.broadcast %2224 : f32 to vector<16x16xf32>
    %2226 = arith.mulf %2225, %2219 : vector<16x16xf32>
    %2227 = arith.addf %2209, %2226 : vector<16x16xf32>
    %c150 = arith.constant 150 : index
    %2228 = memref.load %arg8[%c150] : memref<288xf32, #tpu.memory_space<smem>>
    %2229 = vector.broadcast %2228 : f32 to vector<16x16xf32>
    %2230 = arith.mulf %2229, %2219 : vector<16x16xf32>
    %2231 = arith.addf %2213, %2230 : vector<16x16xf32>
    %c151 = arith.constant 151 : index
    %2232 = memref.load %arg8[%c151] : memref<288xf32, #tpu.memory_space<smem>>
    %2233 = vector.broadcast %2232 : f32 to vector<16x16xf32>
    %2234 = arith.mulf %2233, %2219 : vector<16x16xf32>
    %2235 = arith.addf %2217, %2234 : vector<16x16xf32>
    %c5_573 = arith.constant 5 : index
    %c1_574 = arith.constant 1 : index
    %c2_575 = arith.constant 2 : index
    %2236 = vector.load %arg13[%c5_573, %c1_574, %c2_575] : memref<8x18x18xf32, #tpu.memory_space<vmem>>, vector<1x16x16xf32>
    %2237 = vector.shape_cast %2236 : vector<1x16x16xf32> to vector<16x16xf32>
    %c180 = arith.constant 180 : index
    %2238 = memref.load %arg8[%c180] : memref<288xf32, #tpu.memory_space<smem>>
    %2239 = vector.broadcast %2238 : f32 to vector<16x16xf32>
    %2240 = arith.mulf %2239, %2237 : vector<16x16xf32>
    %2241 = arith.addf %2223, %2240 : vector<16x16xf32>
    %c181 = arith.constant 181 : index
    %2242 = memref.load %arg8[%c181] : memref<288xf32, #tpu.memory_space<smem>>
    %2243 = vector.broadcast %2242 : f32 to vector<16x16xf32>
    %2244 = arith.mulf %2243, %2237 : vector<16x16xf32>
    %2245 = arith.addf %2227, %2244 : vector<16x16xf32>
    %c182 = arith.constant 182 : index
    %2246 = memref.load %arg8[%c182] : memref<288xf32, #tpu.memory_space<smem>>
    %2247 = vector.broadcast %2246 : f32 to vector<16x16xf32>
    %2248 = arith.mulf %2247, %2237 : vector<16x16xf32>
    %2249 = arith.addf %2231, %2248 : vector<16x16xf32>
    %c183 = arith.constant 183 : index
    %2250 = memref.load %arg8[%c183] : memref<288xf32, #tpu.memory_space<smem>>
    %2251 = vector.broadcast %2250 : f32 to vector<16x16xf32>
    %2252 = arith.mulf %2251, %2237 : vector<16x16xf32>
    %2253 = arith.addf %2235, %2252 : vector<16x16xf32>
    %c5_576 = arith.constant 5 : index
    %c2_577 = arith.constant 2 : index
    %c0_578 = arith.constant 0 : index
    %2254 = vector.load %arg13[%c5_576, %c2_577, %c0_578] : memref<8x18x18xf32, #tpu.memory_space<vmem>>, vector<1x16x16xf32>
    %2255 = vector.shape_cast %2254 : vector<1x16x16xf32> to vector<16x16xf32>
    %c212 = arith.constant 212 : index
    %2256 = memref.load %arg8[%c212] : memref<288xf32, #tpu.memory_space<smem>>
    %2257 = vector.broadcast %2256 : f32 to vector<16x16xf32>
    %2258 = arith.mulf %2257, %2255 : vector<16x16xf32>
    %2259 = arith.addf %2241, %2258 : vector<16x16xf32>
    %c213 = arith.constant 213 : index
    %2260 = memref.load %arg8[%c213] : memref<288xf32, #tpu.memory_space<smem>>
    %2261 = vector.broadcast %2260 : f32 to vector<16x16xf32>
    %2262 = arith.mulf %2261, %2255 : vector<16x16xf32>
    %2263 = arith.addf %2245, %2262 : vector<16x16xf32>
    %c214 = arith.constant 214 : index
    %2264 = memref.load %arg8[%c214] : memref<288xf32, #tpu.memory_space<smem>>
    %2265 = vector.broadcast %2264 : f32 to vector<16x16xf32>
    %2266 = arith.mulf %2265, %2255 : vector<16x16xf32>
    %2267 = arith.addf %2249, %2266 : vector<16x16xf32>
    %c215 = arith.constant 215 : index
    %2268 = memref.load %arg8[%c215] : memref<288xf32, #tpu.memory_space<smem>>
    %2269 = vector.broadcast %2268 : f32 to vector<16x16xf32>
    %2270 = arith.mulf %2269, %2255 : vector<16x16xf32>
    %2271 = arith.addf %2253, %2270 : vector<16x16xf32>
    %c5_579 = arith.constant 5 : index
    %c2_580 = arith.constant 2 : index
    %c1_581 = arith.constant 1 : index
    %2272 = vector.load %arg13[%c5_579, %c2_580, %c1_581] : memref<8x18x18xf32, #tpu.memory_space<vmem>>, vector<1x16x16xf32>
    %2273 = vector.shape_cast %2272 : vector<1x16x16xf32> to vector<16x16xf32>
    %c244 = arith.constant 244 : index
    %2274 = memref.load %arg8[%c244] : memref<288xf32, #tpu.memory_space<smem>>
    %2275 = vector.broadcast %2274 : f32 to vector<16x16xf32>
    %2276 = arith.mulf %2275, %2273 : vector<16x16xf32>
    %2277 = arith.addf %2259, %2276 : vector<16x16xf32>
    %c245 = arith.constant 245 : index
    %2278 = memref.load %arg8[%c245] : memref<288xf32, #tpu.memory_space<smem>>
    %2279 = vector.broadcast %2278 : f32 to vector<16x16xf32>
    %2280 = arith.mulf %2279, %2273 : vector<16x16xf32>
    %2281 = arith.addf %2263, %2280 : vector<16x16xf32>
    %c246 = arith.constant 246 : index
    %2282 = memref.load %arg8[%c246] : memref<288xf32, #tpu.memory_space<smem>>
    %2283 = vector.broadcast %2282 : f32 to vector<16x16xf32>
    %2284 = arith.mulf %2283, %2273 : vector<16x16xf32>
    %2285 = arith.addf %2267, %2284 : vector<16x16xf32>
    %c247 = arith.constant 247 : index
    %2286 = memref.load %arg8[%c247] : memref<288xf32, #tpu.memory_space<smem>>
    %2287 = vector.broadcast %2286 : f32 to vector<16x16xf32>
    %2288 = arith.mulf %2287, %2273 : vector<16x16xf32>
    %2289 = arith.addf %2271, %2288 : vector<16x16xf32>
    %c5_582 = arith.constant 5 : index
    %c2_583 = arith.constant 2 : index
    %c2_584 = arith.constant 2 : index
    %2290 = vector.load %arg13[%c5_582, %c2_583, %c2_584] : memref<8x18x18xf32, #tpu.memory_space<vmem>>, vector<1x16x16xf32>
    %2291 = vector.shape_cast %2290 : vector<1x16x16xf32> to vector<16x16xf32>
    %c276 = arith.constant 276 : index
    %2292 = memref.load %arg8[%c276] : memref<288xf32, #tpu.memory_space<smem>>
    %2293 = vector.broadcast %2292 : f32 to vector<16x16xf32>
    %2294 = arith.mulf %2293, %2291 : vector<16x16xf32>
    %2295 = arith.addf %2277, %2294 : vector<16x16xf32>
    %c277 = arith.constant 277 : index
    %2296 = memref.load %arg8[%c277] : memref<288xf32, #tpu.memory_space<smem>>
    %2297 = vector.broadcast %2296 : f32 to vector<16x16xf32>
    %2298 = arith.mulf %2297, %2291 : vector<16x16xf32>
    %2299 = arith.addf %2281, %2298 : vector<16x16xf32>
    %c278 = arith.constant 278 : index
    %2300 = memref.load %arg8[%c278] : memref<288xf32, #tpu.memory_space<smem>>
    %2301 = vector.broadcast %2300 : f32 to vector<16x16xf32>
    %2302 = arith.mulf %2301, %2291 : vector<16x16xf32>
    %2303 = arith.addf %2285, %2302 : vector<16x16xf32>
    %c279 = arith.constant 279 : index
    %2304 = memref.load %arg8[%c279] : memref<288xf32, #tpu.memory_space<smem>>
    %2305 = vector.broadcast %2304 : f32 to vector<16x16xf32>
    %2306 = arith.mulf %2305, %2291 : vector<16x16xf32>
    %2307 = arith.addf %2289, %2306 : vector<16x16xf32>
    %c6_585 = arith.constant 6 : index
    %c0_586 = arith.constant 0 : index
    %c0_587 = arith.constant 0 : index
    %2308 = vector.load %arg13[%c6_585, %c0_586, %c0_587] : memref<8x18x18xf32, #tpu.memory_space<vmem>>, vector<1x16x16xf32>
    %2309 = vector.shape_cast %2308 : vector<1x16x16xf32> to vector<16x16xf32>
    %c24_588 = arith.constant 24 : index
    %2310 = memref.load %arg8[%c24_588] : memref<288xf32, #tpu.memory_space<smem>>
    %2311 = vector.broadcast %2310 : f32 to vector<16x16xf32>
    %2312 = arith.mulf %2311, %2309 : vector<16x16xf32>
    %2313 = arith.addf %2295, %2312 : vector<16x16xf32>
    %c25_589 = arith.constant 25 : index
    %2314 = memref.load %arg8[%c25_589] : memref<288xf32, #tpu.memory_space<smem>>
    %2315 = vector.broadcast %2314 : f32 to vector<16x16xf32>
    %2316 = arith.mulf %2315, %2309 : vector<16x16xf32>
    %2317 = arith.addf %2299, %2316 : vector<16x16xf32>
    %c26_590 = arith.constant 26 : index
    %2318 = memref.load %arg8[%c26_590] : memref<288xf32, #tpu.memory_space<smem>>
    %2319 = vector.broadcast %2318 : f32 to vector<16x16xf32>
    %2320 = arith.mulf %2319, %2309 : vector<16x16xf32>
    %2321 = arith.addf %2303, %2320 : vector<16x16xf32>
    %c27_591 = arith.constant 27 : index
    %2322 = memref.load %arg8[%c27_591] : memref<288xf32, #tpu.memory_space<smem>>
    %2323 = vector.broadcast %2322 : f32 to vector<16x16xf32>
    %2324 = arith.mulf %2323, %2309 : vector<16x16xf32>
    %2325 = arith.addf %2307, %2324 : vector<16x16xf32>
    %c6_592 = arith.constant 6 : index
    %c0_593 = arith.constant 0 : index
    %c1_594 = arith.constant 1 : index
    %2326 = vector.load %arg13[%c6_592, %c0_593, %c1_594] : memref<8x18x18xf32, #tpu.memory_space<vmem>>, vector<1x16x16xf32>
    %2327 = vector.shape_cast %2326 : vector<1x16x16xf32> to vector<16x16xf32>
    %c56_595 = arith.constant 56 : index
    %2328 = memref.load %arg8[%c56_595] : memref<288xf32, #tpu.memory_space<smem>>
    %2329 = vector.broadcast %2328 : f32 to vector<16x16xf32>
    %2330 = arith.mulf %2329, %2327 : vector<16x16xf32>
    %2331 = arith.addf %2313, %2330 : vector<16x16xf32>
    %c57_596 = arith.constant 57 : index
    %2332 = memref.load %arg8[%c57_596] : memref<288xf32, #tpu.memory_space<smem>>
    %2333 = vector.broadcast %2332 : f32 to vector<16x16xf32>
    %2334 = arith.mulf %2333, %2327 : vector<16x16xf32>
    %2335 = arith.addf %2317, %2334 : vector<16x16xf32>
    %c58_597 = arith.constant 58 : index
    %2336 = memref.load %arg8[%c58_597] : memref<288xf32, #tpu.memory_space<smem>>
    %2337 = vector.broadcast %2336 : f32 to vector<16x16xf32>
    %2338 = arith.mulf %2337, %2327 : vector<16x16xf32>
    %2339 = arith.addf %2321, %2338 : vector<16x16xf32>
    %c59_598 = arith.constant 59 : index
    %2340 = memref.load %arg8[%c59_598] : memref<288xf32, #tpu.memory_space<smem>>
    %2341 = vector.broadcast %2340 : f32 to vector<16x16xf32>
    %2342 = arith.mulf %2341, %2327 : vector<16x16xf32>
    %2343 = arith.addf %2325, %2342 : vector<16x16xf32>
    %c6_599 = arith.constant 6 : index
    %c0_600 = arith.constant 0 : index
    %c2_601 = arith.constant 2 : index
    %2344 = vector.load %arg13[%c6_599, %c0_600, %c2_601] : memref<8x18x18xf32, #tpu.memory_space<vmem>>, vector<1x16x16xf32>
    %2345 = vector.shape_cast %2344 : vector<1x16x16xf32> to vector<16x16xf32>
    %c88_602 = arith.constant 88 : index
    %2346 = memref.load %arg8[%c88_602] : memref<288xf32, #tpu.memory_space<smem>>
    %2347 = vector.broadcast %2346 : f32 to vector<16x16xf32>
    %2348 = arith.mulf %2347, %2345 : vector<16x16xf32>
    %2349 = arith.addf %2331, %2348 : vector<16x16xf32>
    %c89_603 = arith.constant 89 : index
    %2350 = memref.load %arg8[%c89_603] : memref<288xf32, #tpu.memory_space<smem>>
    %2351 = vector.broadcast %2350 : f32 to vector<16x16xf32>
    %2352 = arith.mulf %2351, %2345 : vector<16x16xf32>
    %2353 = arith.addf %2335, %2352 : vector<16x16xf32>
    %c90_604 = arith.constant 90 : index
    %2354 = memref.load %arg8[%c90_604] : memref<288xf32, #tpu.memory_space<smem>>
    %2355 = vector.broadcast %2354 : f32 to vector<16x16xf32>
    %2356 = arith.mulf %2355, %2345 : vector<16x16xf32>
    %2357 = arith.addf %2339, %2356 : vector<16x16xf32>
    %c91_605 = arith.constant 91 : index
    %2358 = memref.load %arg8[%c91_605] : memref<288xf32, #tpu.memory_space<smem>>
    %2359 = vector.broadcast %2358 : f32 to vector<16x16xf32>
    %2360 = arith.mulf %2359, %2345 : vector<16x16xf32>
    %2361 = arith.addf %2343, %2360 : vector<16x16xf32>
    %c6_606 = arith.constant 6 : index
    %c1_607 = arith.constant 1 : index
    %c0_608 = arith.constant 0 : index
    %2362 = vector.load %arg13[%c6_606, %c1_607, %c0_608] : memref<8x18x18xf32, #tpu.memory_space<vmem>>, vector<1x16x16xf32>
    %2363 = vector.shape_cast %2362 : vector<1x16x16xf32> to vector<16x16xf32>
    %c120_609 = arith.constant 120 : index
    %2364 = memref.load %arg8[%c120_609] : memref<288xf32, #tpu.memory_space<smem>>
    %2365 = vector.broadcast %2364 : f32 to vector<16x16xf32>
    %2366 = arith.mulf %2365, %2363 : vector<16x16xf32>
    %2367 = arith.addf %2349, %2366 : vector<16x16xf32>
    %c121_610 = arith.constant 121 : index
    %2368 = memref.load %arg8[%c121_610] : memref<288xf32, #tpu.memory_space<smem>>
    %2369 = vector.broadcast %2368 : f32 to vector<16x16xf32>
    %2370 = arith.mulf %2369, %2363 : vector<16x16xf32>
    %2371 = arith.addf %2353, %2370 : vector<16x16xf32>
    %c122_611 = arith.constant 122 : index
    %2372 = memref.load %arg8[%c122_611] : memref<288xf32, #tpu.memory_space<smem>>
    %2373 = vector.broadcast %2372 : f32 to vector<16x16xf32>
    %2374 = arith.mulf %2373, %2363 : vector<16x16xf32>
    %2375 = arith.addf %2357, %2374 : vector<16x16xf32>
    %c123_612 = arith.constant 123 : index
    %2376 = memref.load %arg8[%c123_612] : memref<288xf32, #tpu.memory_space<smem>>
    %2377 = vector.broadcast %2376 : f32 to vector<16x16xf32>
    %2378 = arith.mulf %2377, %2363 : vector<16x16xf32>
    %2379 = arith.addf %2361, %2378 : vector<16x16xf32>
    %c6_613 = arith.constant 6 : index
    %c1_614 = arith.constant 1 : index
    %c1_615 = arith.constant 1 : index
    %2380 = vector.load %arg13[%c6_613, %c1_614, %c1_615] : memref<8x18x18xf32, #tpu.memory_space<vmem>>, vector<1x16x16xf32>
    %2381 = vector.shape_cast %2380 : vector<1x16x16xf32> to vector<16x16xf32>
    %c152 = arith.constant 152 : index
    %2382 = memref.load %arg8[%c152] : memref<288xf32, #tpu.memory_space<smem>>
    %2383 = vector.broadcast %2382 : f32 to vector<16x16xf32>
    %2384 = arith.mulf %2383, %2381 : vector<16x16xf32>
    %2385 = arith.addf %2367, %2384 : vector<16x16xf32>
    %c153 = arith.constant 153 : index
    %2386 = memref.load %arg8[%c153] : memref<288xf32, #tpu.memory_space<smem>>
    %2387 = vector.broadcast %2386 : f32 to vector<16x16xf32>
    %2388 = arith.mulf %2387, %2381 : vector<16x16xf32>
    %2389 = arith.addf %2371, %2388 : vector<16x16xf32>
    %c154 = arith.constant 154 : index
    %2390 = memref.load %arg8[%c154] : memref<288xf32, #tpu.memory_space<smem>>
    %2391 = vector.broadcast %2390 : f32 to vector<16x16xf32>
    %2392 = arith.mulf %2391, %2381 : vector<16x16xf32>
    %2393 = arith.addf %2375, %2392 : vector<16x16xf32>
    %c155 = arith.constant 155 : index
    %2394 = memref.load %arg8[%c155] : memref<288xf32, #tpu.memory_space<smem>>
    %2395 = vector.broadcast %2394 : f32 to vector<16x16xf32>
    %2396 = arith.mulf %2395, %2381 : vector<16x16xf32>
    %2397 = arith.addf %2379, %2396 : vector<16x16xf32>
    %c6_616 = arith.constant 6 : index
    %c1_617 = arith.constant 1 : index
    %c2_618 = arith.constant 2 : index
    %2398 = vector.load %arg13[%c6_616, %c1_617, %c2_618] : memref<8x18x18xf32, #tpu.memory_space<vmem>>, vector<1x16x16xf32>
    %2399 = vector.shape_cast %2398 : vector<1x16x16xf32> to vector<16x16xf32>
    %c184 = arith.constant 184 : index
    %2400 = memref.load %arg8[%c184] : memref<288xf32, #tpu.memory_space<smem>>
    %2401 = vector.broadcast %2400 : f32 to vector<16x16xf32>
    %2402 = arith.mulf %2401, %2399 : vector<16x16xf32>
    %2403 = arith.addf %2385, %2402 : vector<16x16xf32>
    %c185 = arith.constant 185 : index
    %2404 = memref.load %arg8[%c185] : memref<288xf32, #tpu.memory_space<smem>>
    %2405 = vector.broadcast %2404 : f32 to vector<16x16xf32>
    %2406 = arith.mulf %2405, %2399 : vector<16x16xf32>
    %2407 = arith.addf %2389, %2406 : vector<16x16xf32>
    %c186 = arith.constant 186 : index
    %2408 = memref.load %arg8[%c186] : memref<288xf32, #tpu.memory_space<smem>>
    %2409 = vector.broadcast %2408 : f32 to vector<16x16xf32>
    %2410 = arith.mulf %2409, %2399 : vector<16x16xf32>
    %2411 = arith.addf %2393, %2410 : vector<16x16xf32>
    %c187 = arith.constant 187 : index
    %2412 = memref.load %arg8[%c187] : memref<288xf32, #tpu.memory_space<smem>>
    %2413 = vector.broadcast %2412 : f32 to vector<16x16xf32>
    %2414 = arith.mulf %2413, %2399 : vector<16x16xf32>
    %2415 = arith.addf %2397, %2414 : vector<16x16xf32>
    %c6_619 = arith.constant 6 : index
    %c2_620 = arith.constant 2 : index
    %c0_621 = arith.constant 0 : index
    %2416 = vector.load %arg13[%c6_619, %c2_620, %c0_621] : memref<8x18x18xf32, #tpu.memory_space<vmem>>, vector<1x16x16xf32>
    %2417 = vector.shape_cast %2416 : vector<1x16x16xf32> to vector<16x16xf32>
    %c216 = arith.constant 216 : index
    %2418 = memref.load %arg8[%c216] : memref<288xf32, #tpu.memory_space<smem>>
    %2419 = vector.broadcast %2418 : f32 to vector<16x16xf32>
    %2420 = arith.mulf %2419, %2417 : vector<16x16xf32>
    %2421 = arith.addf %2403, %2420 : vector<16x16xf32>
    %c217 = arith.constant 217 : index
    %2422 = memref.load %arg8[%c217] : memref<288xf32, #tpu.memory_space<smem>>
    %2423 = vector.broadcast %2422 : f32 to vector<16x16xf32>
    %2424 = arith.mulf %2423, %2417 : vector<16x16xf32>
    %2425 = arith.addf %2407, %2424 : vector<16x16xf32>
    %c218 = arith.constant 218 : index
    %2426 = memref.load %arg8[%c218] : memref<288xf32, #tpu.memory_space<smem>>
    %2427 = vector.broadcast %2426 : f32 to vector<16x16xf32>
    %2428 = arith.mulf %2427, %2417 : vector<16x16xf32>
    %2429 = arith.addf %2411, %2428 : vector<16x16xf32>
    %c219 = arith.constant 219 : index
    %2430 = memref.load %arg8[%c219] : memref<288xf32, #tpu.memory_space<smem>>
    %2431 = vector.broadcast %2430 : f32 to vector<16x16xf32>
    %2432 = arith.mulf %2431, %2417 : vector<16x16xf32>
    %2433 = arith.addf %2415, %2432 : vector<16x16xf32>
    %c6_622 = arith.constant 6 : index
    %c2_623 = arith.constant 2 : index
    %c1_624 = arith.constant 1 : index
    %2434 = vector.load %arg13[%c6_622, %c2_623, %c1_624] : memref<8x18x18xf32, #tpu.memory_space<vmem>>, vector<1x16x16xf32>
    %2435 = vector.shape_cast %2434 : vector<1x16x16xf32> to vector<16x16xf32>
    %c248 = arith.constant 248 : index
    %2436 = memref.load %arg8[%c248] : memref<288xf32, #tpu.memory_space<smem>>
    %2437 = vector.broadcast %2436 : f32 to vector<16x16xf32>
    %2438 = arith.mulf %2437, %2435 : vector<16x16xf32>
    %2439 = arith.addf %2421, %2438 : vector<16x16xf32>
    %c249 = arith.constant 249 : index
    %2440 = memref.load %arg8[%c249] : memref<288xf32, #tpu.memory_space<smem>>
    %2441 = vector.broadcast %2440 : f32 to vector<16x16xf32>
    %2442 = arith.mulf %2441, %2435 : vector<16x16xf32>
    %2443 = arith.addf %2425, %2442 : vector<16x16xf32>
    %c250 = arith.constant 250 : index
    %2444 = memref.load %arg8[%c250] : memref<288xf32, #tpu.memory_space<smem>>
    %2445 = vector.broadcast %2444 : f32 to vector<16x16xf32>
    %2446 = arith.mulf %2445, %2435 : vector<16x16xf32>
    %2447 = arith.addf %2429, %2446 : vector<16x16xf32>
    %c251 = arith.constant 251 : index
    %2448 = memref.load %arg8[%c251] : memref<288xf32, #tpu.memory_space<smem>>
    %2449 = vector.broadcast %2448 : f32 to vector<16x16xf32>
    %2450 = arith.mulf %2449, %2435 : vector<16x16xf32>
    %2451 = arith.addf %2433, %2450 : vector<16x16xf32>
    %c6_625 = arith.constant 6 : index
    %c2_626 = arith.constant 2 : index
    %c2_627 = arith.constant 2 : index
    %2452 = vector.load %arg13[%c6_625, %c2_626, %c2_627] : memref<8x18x18xf32, #tpu.memory_space<vmem>>, vector<1x16x16xf32>
    %2453 = vector.shape_cast %2452 : vector<1x16x16xf32> to vector<16x16xf32>
    %c280 = arith.constant 280 : index
    %2454 = memref.load %arg8[%c280] : memref<288xf32, #tpu.memory_space<smem>>
    %2455 = vector.broadcast %2454 : f32 to vector<16x16xf32>
    %2456 = arith.mulf %2455, %2453 : vector<16x16xf32>
    %2457 = arith.addf %2439, %2456 : vector<16x16xf32>
    %c281 = arith.constant 281 : index
    %2458 = memref.load %arg8[%c281] : memref<288xf32, #tpu.memory_space<smem>>
    %2459 = vector.broadcast %2458 : f32 to vector<16x16xf32>
    %2460 = arith.mulf %2459, %2453 : vector<16x16xf32>
    %2461 = arith.addf %2443, %2460 : vector<16x16xf32>
    %c282 = arith.constant 282 : index
    %2462 = memref.load %arg8[%c282] : memref<288xf32, #tpu.memory_space<smem>>
    %2463 = vector.broadcast %2462 : f32 to vector<16x16xf32>
    %2464 = arith.mulf %2463, %2453 : vector<16x16xf32>
    %2465 = arith.addf %2447, %2464 : vector<16x16xf32>
    %c283 = arith.constant 283 : index
    %2466 = memref.load %arg8[%c283] : memref<288xf32, #tpu.memory_space<smem>>
    %2467 = vector.broadcast %2466 : f32 to vector<16x16xf32>
    %2468 = arith.mulf %2467, %2453 : vector<16x16xf32>
    %2469 = arith.addf %2451, %2468 : vector<16x16xf32>
    %c7_628 = arith.constant 7 : index
    %c0_629 = arith.constant 0 : index
    %c0_630 = arith.constant 0 : index
    %2470 = vector.load %arg13[%c7_628, %c0_629, %c0_630] : memref<8x18x18xf32, #tpu.memory_space<vmem>>, vector<1x16x16xf32>
    %2471 = vector.shape_cast %2470 : vector<1x16x16xf32> to vector<16x16xf32>
    %c28_631 = arith.constant 28 : index
    %2472 = memref.load %arg8[%c28_631] : memref<288xf32, #tpu.memory_space<smem>>
    %2473 = vector.broadcast %2472 : f32 to vector<16x16xf32>
    %2474 = arith.mulf %2473, %2471 : vector<16x16xf32>
    %2475 = arith.addf %2457, %2474 : vector<16x16xf32>
    %c29_632 = arith.constant 29 : index
    %2476 = memref.load %arg8[%c29_632] : memref<288xf32, #tpu.memory_space<smem>>
    %2477 = vector.broadcast %2476 : f32 to vector<16x16xf32>
    %2478 = arith.mulf %2477, %2471 : vector<16x16xf32>
    %2479 = arith.addf %2461, %2478 : vector<16x16xf32>
    %c30_633 = arith.constant 30 : index
    %2480 = memref.load %arg8[%c30_633] : memref<288xf32, #tpu.memory_space<smem>>
    %2481 = vector.broadcast %2480 : f32 to vector<16x16xf32>
    %2482 = arith.mulf %2481, %2471 : vector<16x16xf32>
    %2483 = arith.addf %2465, %2482 : vector<16x16xf32>
    %c31_634 = arith.constant 31 : index
    %2484 = memref.load %arg8[%c31_634] : memref<288xf32, #tpu.memory_space<smem>>
    %2485 = vector.broadcast %2484 : f32 to vector<16x16xf32>
    %2486 = arith.mulf %2485, %2471 : vector<16x16xf32>
    %2487 = arith.addf %2469, %2486 : vector<16x16xf32>
    %c7_635 = arith.constant 7 : index
    %c0_636 = arith.constant 0 : index
    %c1_637 = arith.constant 1 : index
    %2488 = vector.load %arg13[%c7_635, %c0_636, %c1_637] : memref<8x18x18xf32, #tpu.memory_space<vmem>>, vector<1x16x16xf32>
    %2489 = vector.shape_cast %2488 : vector<1x16x16xf32> to vector<16x16xf32>
    %c60_638 = arith.constant 60 : index
    %2490 = memref.load %arg8[%c60_638] : memref<288xf32, #tpu.memory_space<smem>>
    %2491 = vector.broadcast %2490 : f32 to vector<16x16xf32>
    %2492 = arith.mulf %2491, %2489 : vector<16x16xf32>
    %2493 = arith.addf %2475, %2492 : vector<16x16xf32>
    %c61_639 = arith.constant 61 : index
    %2494 = memref.load %arg8[%c61_639] : memref<288xf32, #tpu.memory_space<smem>>
    %2495 = vector.broadcast %2494 : f32 to vector<16x16xf32>
    %2496 = arith.mulf %2495, %2489 : vector<16x16xf32>
    %2497 = arith.addf %2479, %2496 : vector<16x16xf32>
    %c62_640 = arith.constant 62 : index
    %2498 = memref.load %arg8[%c62_640] : memref<288xf32, #tpu.memory_space<smem>>
    %2499 = vector.broadcast %2498 : f32 to vector<16x16xf32>
    %2500 = arith.mulf %2499, %2489 : vector<16x16xf32>
    %2501 = arith.addf %2483, %2500 : vector<16x16xf32>
    %c63_641 = arith.constant 63 : index
    %2502 = memref.load %arg8[%c63_641] : memref<288xf32, #tpu.memory_space<smem>>
    %2503 = vector.broadcast %2502 : f32 to vector<16x16xf32>
    %2504 = arith.mulf %2503, %2489 : vector<16x16xf32>
    %2505 = arith.addf %2487, %2504 : vector<16x16xf32>
    %c7_642 = arith.constant 7 : index
    %c0_643 = arith.constant 0 : index
    %c2_644 = arith.constant 2 : index
    %2506 = vector.load %arg13[%c7_642, %c0_643, %c2_644] : memref<8x18x18xf32, #tpu.memory_space<vmem>>, vector<1x16x16xf32>
    %2507 = vector.shape_cast %2506 : vector<1x16x16xf32> to vector<16x16xf32>
    %c92_645 = arith.constant 92 : index
    %2508 = memref.load %arg8[%c92_645] : memref<288xf32, #tpu.memory_space<smem>>
    %2509 = vector.broadcast %2508 : f32 to vector<16x16xf32>
    %2510 = arith.mulf %2509, %2507 : vector<16x16xf32>
    %2511 = arith.addf %2493, %2510 : vector<16x16xf32>
    %c93_646 = arith.constant 93 : index
    %2512 = memref.load %arg8[%c93_646] : memref<288xf32, #tpu.memory_space<smem>>
    %2513 = vector.broadcast %2512 : f32 to vector<16x16xf32>
    %2514 = arith.mulf %2513, %2507 : vector<16x16xf32>
    %2515 = arith.addf %2497, %2514 : vector<16x16xf32>
    %c94_647 = arith.constant 94 : index
    %2516 = memref.load %arg8[%c94_647] : memref<288xf32, #tpu.memory_space<smem>>
    %2517 = vector.broadcast %2516 : f32 to vector<16x16xf32>
    %2518 = arith.mulf %2517, %2507 : vector<16x16xf32>
    %2519 = arith.addf %2501, %2518 : vector<16x16xf32>
    %c95_648 = arith.constant 95 : index
    %2520 = memref.load %arg8[%c95_648] : memref<288xf32, #tpu.memory_space<smem>>
    %2521 = vector.broadcast %2520 : f32 to vector<16x16xf32>
    %2522 = arith.mulf %2521, %2507 : vector<16x16xf32>
    %2523 = arith.addf %2505, %2522 : vector<16x16xf32>
    %c7_649 = arith.constant 7 : index
    %c1_650 = arith.constant 1 : index
    %c0_651 = arith.constant 0 : index
    %2524 = vector.load %arg13[%c7_649, %c1_650, %c0_651] : memref<8x18x18xf32, #tpu.memory_space<vmem>>, vector<1x16x16xf32>
    %2525 = vector.shape_cast %2524 : vector<1x16x16xf32> to vector<16x16xf32>
    %c124_652 = arith.constant 124 : index
    %2526 = memref.load %arg8[%c124_652] : memref<288xf32, #tpu.memory_space<smem>>
    %2527 = vector.broadcast %2526 : f32 to vector<16x16xf32>
    %2528 = arith.mulf %2527, %2525 : vector<16x16xf32>
    %2529 = arith.addf %2511, %2528 : vector<16x16xf32>
    %c125_653 = arith.constant 125 : index
    %2530 = memref.load %arg8[%c125_653] : memref<288xf32, #tpu.memory_space<smem>>
    %2531 = vector.broadcast %2530 : f32 to vector<16x16xf32>
    %2532 = arith.mulf %2531, %2525 : vector<16x16xf32>
    %2533 = arith.addf %2515, %2532 : vector<16x16xf32>
    %c126_654 = arith.constant 126 : index
    %2534 = memref.load %arg8[%c126_654] : memref<288xf32, #tpu.memory_space<smem>>
    %2535 = vector.broadcast %2534 : f32 to vector<16x16xf32>
    %2536 = arith.mulf %2535, %2525 : vector<16x16xf32>
    %2537 = arith.addf %2519, %2536 : vector<16x16xf32>
    %c127_655 = arith.constant 127 : index
    %2538 = memref.load %arg8[%c127_655] : memref<288xf32, #tpu.memory_space<smem>>
    %2539 = vector.broadcast %2538 : f32 to vector<16x16xf32>
    %2540 = arith.mulf %2539, %2525 : vector<16x16xf32>
    %2541 = arith.addf %2523, %2540 : vector<16x16xf32>
    %c7_656 = arith.constant 7 : index
    %c1_657 = arith.constant 1 : index
    %c1_658 = arith.constant 1 : index
    %2542 = vector.load %arg13[%c7_656, %c1_657, %c1_658] : memref<8x18x18xf32, #tpu.memory_space<vmem>>, vector<1x16x16xf32>
    %2543 = vector.shape_cast %2542 : vector<1x16x16xf32> to vector<16x16xf32>
    %c156 = arith.constant 156 : index
    %2544 = memref.load %arg8[%c156] : memref<288xf32, #tpu.memory_space<smem>>
    %2545 = vector.broadcast %2544 : f32 to vector<16x16xf32>
    %2546 = arith.mulf %2545, %2543 : vector<16x16xf32>
    %2547 = arith.addf %2529, %2546 : vector<16x16xf32>
    %c157 = arith.constant 157 : index
    %2548 = memref.load %arg8[%c157] : memref<288xf32, #tpu.memory_space<smem>>
    %2549 = vector.broadcast %2548 : f32 to vector<16x16xf32>
    %2550 = arith.mulf %2549, %2543 : vector<16x16xf32>
    %2551 = arith.addf %2533, %2550 : vector<16x16xf32>
    %c158 = arith.constant 158 : index
    %2552 = memref.load %arg8[%c158] : memref<288xf32, #tpu.memory_space<smem>>
    %2553 = vector.broadcast %2552 : f32 to vector<16x16xf32>
    %2554 = arith.mulf %2553, %2543 : vector<16x16xf32>
    %2555 = arith.addf %2537, %2554 : vector<16x16xf32>
    %c159 = arith.constant 159 : index
    %2556 = memref.load %arg8[%c159] : memref<288xf32, #tpu.memory_space<smem>>
    %2557 = vector.broadcast %2556 : f32 to vector<16x16xf32>
    %2558 = arith.mulf %2557, %2543 : vector<16x16xf32>
    %2559 = arith.addf %2541, %2558 : vector<16x16xf32>
    %c7_659 = arith.constant 7 : index
    %c1_660 = arith.constant 1 : index
    %c2_661 = arith.constant 2 : index
    %2560 = vector.load %arg13[%c7_659, %c1_660, %c2_661] : memref<8x18x18xf32, #tpu.memory_space<vmem>>, vector<1x16x16xf32>
    %2561 = vector.shape_cast %2560 : vector<1x16x16xf32> to vector<16x16xf32>
    %c188 = arith.constant 188 : index
    %2562 = memref.load %arg8[%c188] : memref<288xf32, #tpu.memory_space<smem>>
    %2563 = vector.broadcast %2562 : f32 to vector<16x16xf32>
    %2564 = arith.mulf %2563, %2561 : vector<16x16xf32>
    %2565 = arith.addf %2547, %2564 : vector<16x16xf32>
    %c189 = arith.constant 189 : index
    %2566 = memref.load %arg8[%c189] : memref<288xf32, #tpu.memory_space<smem>>
    %2567 = vector.broadcast %2566 : f32 to vector<16x16xf32>
    %2568 = arith.mulf %2567, %2561 : vector<16x16xf32>
    %2569 = arith.addf %2551, %2568 : vector<16x16xf32>
    %c190 = arith.constant 190 : index
    %2570 = memref.load %arg8[%c190] : memref<288xf32, #tpu.memory_space<smem>>
    %2571 = vector.broadcast %2570 : f32 to vector<16x16xf32>
    %2572 = arith.mulf %2571, %2561 : vector<16x16xf32>
    %2573 = arith.addf %2555, %2572 : vector<16x16xf32>
    %c191 = arith.constant 191 : index
    %2574 = memref.load %arg8[%c191] : memref<288xf32, #tpu.memory_space<smem>>
    %2575 = vector.broadcast %2574 : f32 to vector<16x16xf32>
    %2576 = arith.mulf %2575, %2561 : vector<16x16xf32>
    %2577 = arith.addf %2559, %2576 : vector<16x16xf32>
    %c7_662 = arith.constant 7 : index
    %c2_663 = arith.constant 2 : index
    %c0_664 = arith.constant 0 : index
    %2578 = vector.load %arg13[%c7_662, %c2_663, %c0_664] : memref<8x18x18xf32, #tpu.memory_space<vmem>>, vector<1x16x16xf32>
    %2579 = vector.shape_cast %2578 : vector<1x16x16xf32> to vector<16x16xf32>
    %c220 = arith.constant 220 : index
    %2580 = memref.load %arg8[%c220] : memref<288xf32, #tpu.memory_space<smem>>
    %2581 = vector.broadcast %2580 : f32 to vector<16x16xf32>
    %2582 = arith.mulf %2581, %2579 : vector<16x16xf32>
    %2583 = arith.addf %2565, %2582 : vector<16x16xf32>
    %c221 = arith.constant 221 : index
    %2584 = memref.load %arg8[%c221] : memref<288xf32, #tpu.memory_space<smem>>
    %2585 = vector.broadcast %2584 : f32 to vector<16x16xf32>
    %2586 = arith.mulf %2585, %2579 : vector<16x16xf32>
    %2587 = arith.addf %2569, %2586 : vector<16x16xf32>
    %c222 = arith.constant 222 : index
    %2588 = memref.load %arg8[%c222] : memref<288xf32, #tpu.memory_space<smem>>
    %2589 = vector.broadcast %2588 : f32 to vector<16x16xf32>
    %2590 = arith.mulf %2589, %2579 : vector<16x16xf32>
    %2591 = arith.addf %2573, %2590 : vector<16x16xf32>
    %c223 = arith.constant 223 : index
    %2592 = memref.load %arg8[%c223] : memref<288xf32, #tpu.memory_space<smem>>
    %2593 = vector.broadcast %2592 : f32 to vector<16x16xf32>
    %2594 = arith.mulf %2593, %2579 : vector<16x16xf32>
    %2595 = arith.addf %2577, %2594 : vector<16x16xf32>
    %c7_665 = arith.constant 7 : index
    %c2_666 = arith.constant 2 : index
    %c1_667 = arith.constant 1 : index
    %2596 = vector.load %arg13[%c7_665, %c2_666, %c1_667] : memref<8x18x18xf32, #tpu.memory_space<vmem>>, vector<1x16x16xf32>
    %2597 = vector.shape_cast %2596 : vector<1x16x16xf32> to vector<16x16xf32>
    %c252 = arith.constant 252 : index
    %2598 = memref.load %arg8[%c252] : memref<288xf32, #tpu.memory_space<smem>>
    %2599 = vector.broadcast %2598 : f32 to vector<16x16xf32>
    %2600 = arith.mulf %2599, %2597 : vector<16x16xf32>
    %2601 = arith.addf %2583, %2600 : vector<16x16xf32>
    %c253 = arith.constant 253 : index
    %2602 = memref.load %arg8[%c253] : memref<288xf32, #tpu.memory_space<smem>>
    %2603 = vector.broadcast %2602 : f32 to vector<16x16xf32>
    %2604 = arith.mulf %2603, %2597 : vector<16x16xf32>
    %2605 = arith.addf %2587, %2604 : vector<16x16xf32>
    %c254 = arith.constant 254 : index
    %2606 = memref.load %arg8[%c254] : memref<288xf32, #tpu.memory_space<smem>>
    %2607 = vector.broadcast %2606 : f32 to vector<16x16xf32>
    %2608 = arith.mulf %2607, %2597 : vector<16x16xf32>
    %2609 = arith.addf %2591, %2608 : vector<16x16xf32>
    %c255 = arith.constant 255 : index
    %2610 = memref.load %arg8[%c255] : memref<288xf32, #tpu.memory_space<smem>>
    %2611 = vector.broadcast %2610 : f32 to vector<16x16xf32>
    %2612 = arith.mulf %2611, %2597 : vector<16x16xf32>
    %2613 = arith.addf %2595, %2612 : vector<16x16xf32>
    %c7_668 = arith.constant 7 : index
    %c2_669 = arith.constant 2 : index
    %c2_670 = arith.constant 2 : index
    %2614 = vector.load %arg13[%c7_668, %c2_669, %c2_670] : memref<8x18x18xf32, #tpu.memory_space<vmem>>, vector<1x16x16xf32>
    %2615 = vector.shape_cast %2614 : vector<1x16x16xf32> to vector<16x16xf32>
    %c284 = arith.constant 284 : index
    %2616 = memref.load %arg8[%c284] : memref<288xf32, #tpu.memory_space<smem>>
    %2617 = vector.broadcast %2616 : f32 to vector<16x16xf32>
    %2618 = arith.mulf %2617, %2615 : vector<16x16xf32>
    %2619 = arith.addf %2601, %2618 : vector<16x16xf32>
    %c285 = arith.constant 285 : index
    %2620 = memref.load %arg8[%c285] : memref<288xf32, #tpu.memory_space<smem>>
    %2621 = vector.broadcast %2620 : f32 to vector<16x16xf32>
    %2622 = arith.mulf %2621, %2615 : vector<16x16xf32>
    %2623 = arith.addf %2605, %2622 : vector<16x16xf32>
    %c286 = arith.constant 286 : index
    %2624 = memref.load %arg8[%c286] : memref<288xf32, #tpu.memory_space<smem>>
    %2625 = vector.broadcast %2624 : f32 to vector<16x16xf32>
    %2626 = arith.mulf %2625, %2615 : vector<16x16xf32>
    %2627 = arith.addf %2609, %2626 : vector<16x16xf32>
    %c287 = arith.constant 287 : index
    %2628 = memref.load %arg8[%c287] : memref<288xf32, #tpu.memory_space<smem>>
    %2629 = vector.broadcast %2628 : f32 to vector<16x16xf32>
    %2630 = arith.mulf %2629, %2615 : vector<16x16xf32>
    %2631 = arith.addf %2613, %2630 : vector<16x16xf32>
    %c0_671 = arith.constant 0 : index
    %2632 = memref.load %arg9[%c0_671] : memref<4xf32, #tpu.memory_space<smem>>
    %2633 = vector.broadcast %2632 : f32 to vector<16x16xf32>
    %2634 = arith.addf %2619, %2633 : vector<16x16xf32>
    %c1_672 = arith.constant 1 : index
    %2635 = memref.load %arg9[%c1_672] : memref<4xf32, #tpu.memory_space<smem>>
    %2636 = vector.broadcast %2635 : f32 to vector<16x16xf32>
    %2637 = arith.addf %2623, %2636 : vector<16x16xf32>
    %c2_673 = arith.constant 2 : index
    %2638 = memref.load %arg9[%c2_673] : memref<4xf32, #tpu.memory_space<smem>>
    %2639 = vector.broadcast %2638 : f32 to vector<16x16xf32>
    %2640 = arith.addf %2627, %2639 : vector<16x16xf32>
    %c3_674 = arith.constant 3 : index
    %2641 = memref.load %arg9[%c3_674] : memref<4xf32, #tpu.memory_space<smem>>
    %2642 = vector.broadcast %2641 : f32 to vector<16x16xf32>
    %2643 = arith.addf %2631, %2642 : vector<16x16xf32>
    %c0_675 = arith.constant 0 : index
    %2644 = memref.load %arg10[%c0_675] : memref<2xf32, #tpu.memory_space<smem>>
    %2645 = math.tanh %2634 : vector<16x16xf32>
    %2646 = vector.broadcast %2644 : f32 to vector<16x16xf32>
    %2647 = arith.mulf %2646, %2645 : vector<16x16xf32>
    %2648 = math.exp %2647 : vector<16x16xf32>
    %2649 = arith.mulf %65, %2648 : vector<16x16xf32>
    %2650 = arith.addf %2649, %2640 : vector<16x16xf32>
    %c0_676 = arith.constant 0 : index
    %c2_677 = arith.constant 2 : index
    %c0_678 = arith.constant 0 : index
    %c0_679 = arith.constant 0 : index
    %2651 = vector.load %arg11[%c0_676, %c2_677, %c0_678, %c0_679] : memref<1x4x16x16xf32, #tpu.memory_space<vmem>>, vector<1x1x16x16xf32>
    %2652 = vector.shape_cast %2651 : vector<1x1x16x16xf32> to vector<16x16xf32>
    %2653 = vector.shape_cast %2650 : vector<16x16xf32> to vector<1x1x16x16xf32>
    tpu.vector_store %arg11[%c0_676, %c2_677, %c0_678, %c0_679], %2653 {strides = array<i32>} : memref<1x4x16x16xf32, #tpu.memory_space<vmem>>, vector<1x1x16x16xf32>,
    %c1_680 = arith.constant 1 : index
    %2654 = memref.load %arg10[%c1_680] : memref<2xf32, #tpu.memory_space<smem>>
    %2655 = math.tanh %2637 : vector<16x16xf32>
    %2656 = vector.broadcast %2654 : f32 to vector<16x16xf32>
    %2657 = arith.mulf %2656, %2655 : vector<16x16xf32>
    %2658 = math.exp %2657 : vector<16x16xf32>
    %2659 = arith.mulf %83, %2658 : vector<16x16xf32>
    %2660 = arith.addf %2659, %2643 : vector<16x16xf32>
    %c0_681 = arith.constant 0 : index
    %c3_682 = arith.constant 3 : index
    %c0_683 = arith.constant 0 : index
    %c0_684 = arith.constant 0 : index
    %2661 = vector.load %arg11[%c0_681, %c3_682, %c0_683, %c0_684] : memref<1x4x16x16xf32, #tpu.memory_space<vmem>>, vector<1x1x16x16xf32>
    %2662 = vector.shape_cast %2661 : vector<1x1x16x16xf32> to vector<16x16xf32>
    %2663 = vector.shape_cast %2660 : vector<16x16xf32> to vector<1x1x16x16xf32>
    tpu.vector_store %arg11[%c0_681, %c3_682, %c0_683, %c0_684], %2663 {strides = array<i32>} : memref<1x4x16x16xf32, #tpu.memory_space<vmem>>, vector<1x1x16x16xf32>,
    return
  }
  func.func @transform_0(%arg0: i32) -> (i32, i32, i32, i32) {
    %c0_i32 = arith.constant 0 : i32
    %c0_i32_0 = arith.constant 0 : i32
    %c0_i32_1 = arith.constant 0 : i32
    %c0_i32_2 = arith.constant 0 : i32
    return %arg0, %c0_i32, %c0_i32_0, %c0_i32_1 : i32, i32, i32, i32
  }
  func.func @transform_1(%arg0: i32) -> i32 {
    %c0_i32 = arith.constant 0 : i32
    %c0_i32_0 = arith.constant 0 : i32
    return %c0_i32 : i32
  }
  func.func @transform_2(%arg0: i32) -> i32 {
    %c0_i32 = arith.constant 0 : i32
    %c0_i32_0 = arith.constant 0 : i32
    return %c0_i32 : i32
  }
  func.func @transform_3(%arg0: i32) -> i32 {
    %c0_i32 = arith.constant 0 : i32
    %c0_i32_0 = arith.constant 0 : i32
    return %c0_i32 : i32
  }
  func.func @transform_4(%arg0: i32) -> i32 {
    %c0_i32 = arith.constant 0 : i32
    %c0_i32_0 = arith.constant 0 : i32
    return %c0_i32 : i32
  }
  func.func @transform_5(%arg0: i32) -> i32 {
    %c0_i32 = arith.constant 0 : i32
    %c0_i32_0 = arith.constant 0 : i32
    return %c0_i32 : i32
  }
  func.func @transform_6(%arg0: i32) -> i32 {
    %c0_i32 = arith.constant 0 : i32
    %c0_i32_0 = arith.constant 0 : i32
    return %c0_i32 : i32
  }
  func.func @transform_7(%arg0: i32) -> i32 {
    %c0_i32 = arith.constant 0 : i32
    %c0_i32_0 = arith.constant 0 : i32
    return %c0_i32 : i32
  }
  func.func @transform_8(%arg0: i32) -> i32 {
    %c0_i32 = arith.constant 0 : i32
    %c0_i32_0 = arith.constant 0 : i32
    return %c0_i32 : i32
  }
  func.func @transform_9(%arg0: i32) -> i32 {
    %c0_i32 = arith.constant 0 : i32
    %c0_i32_0 = arith.constant 0 : i32
    return %c0_i32 : i32
  }
  func.func @transform_10(%arg0: i32) -> (i32, i32, i32, i32) {
    %c0_i32 = arith.constant 0 : i32
    %c0_i32_0 = arith.constant 0 : i32
    %c0_i32_1 = arith.constant 0 : i32
    %c0_i32_2 = arith.constant 0 : i32
    return %arg0, %c0_i32, %c0_i32_0, %c0_i32_1 : i32, i32, i32, i32
  }
}

</mosaic_0001>

<llo_original>
// kernel: glow_step_forward.1
$region0: #{glow_step_forward.1}
  #allocation0 [shape = 'u32[]', space=smem, size = 0x4, offset = 0x4, fixed_abs, tag = 'smem constant byte address 0x4 - core index']
  #allocation1 [shape = 'u32[72,128]{1,0:T(1,128)}', space=vmem, size = 0x9000, scoped, tag = 'internal scratch']
  #allocation2 [shape = 'f32[2,18,18]{2,1,0:T(8,128)}', space=vmem, size = 0x6000, scoped, tag = 'scratch operand']
  #allocation3 [shape = 'f32[8,18,18]{2,1,0:T(8,128)}', space=vmem, size = 0x18000, scoped, tag = 'scratch operand']
  %s0 = inlined_call_operand.vmem [shape: f32[2,4,16,16], index: 0, kind: input, shape index: {}]
  %s1 = inlined_call_operand.vmem [shape: f32[16], index: 1, kind: input, shape index: {}]
  %s2 = inlined_call_operand.vmem [shape: f32[4], index: 2, kind: input, shape index: {}]
  %s3 = inlined_call_operand.vmem [shape: f32[144], index: 3, kind: input, shape index: {}]
  %s4 = inlined_call_operand.vmem [shape: f32[8], index: 4, kind: input, shape index: {}]
  %s5 = inlined_call_operand.vmem [shape: f32[128], index: 5, kind: input, shape index: {}]
  %s6 = inlined_call_operand.vmem [shape: f32[16], index: 6, kind: input, shape index: {}]
  %s7 = inlined_call_operand.vmem [shape: f32[288], index: 7, kind: input, shape index: {}]
  %s8 = inlined_call_operand.vmem [shape: f32[4], index: 8, kind: input, shape index: {}]
  %s9 = inlined_call_operand.vmem [shape: f32[2], index: 9, kind: input, shape index: {}]
  %s10 = inlined_call_operand.hbm [shape: f32[2,4,16,16], index: 10, kind: output, shape index: {}]
  %s11 = sld [smem:[#allocation0]]
  $region109: #{glow_step_forward.1} parent=0
    _
  %s13 = ssub.s32 1, %s11
  %s14 = scalar_select 0, %s13, %s11
  $region1: #{glow_step_forward.1} parent=0
    #allocation4 [shape = 'u8[512]{0}', space=smem, size = 0x200, scoped, tag = 'input window, operand 1, single buffered']
    #allocation5 [shape = 's32[2]{0}', space=sflag, size = 0x8, scoped, tag = 'scoped memory for glow_step_forward.1']
    #allocation6 [shape = 's32[2]{0}', space=sflag, size = 0x8, scoped, tag = 'scoped memory for glow_step_forward.1']
    #allocation7 [shape = 'u8[512]{0}', space=smem, size = 0x200, scoped, tag = 'input window, operand 2, single buffered']
    #allocation8 [shape = 's32[1]{0}', space=sflag, size = 0x4, scoped, tag = 'scoped memory for glow_step_forward.1']
    #allocation9 [shape = 'u8[1024]{0}', space=smem, size = 0x400, scoped, tag = 'input window, operand 3, single buffered']
    #allocation10 [shape = 'u8[512]{0}', space=smem, size = 0x200, scoped, tag = 'input window, operand 4, single buffered']
    #allocation11 [shape = 's32[1]{0}', space=sflag, size = 0x4, scoped, tag = 'scoped memory for glow_step_forward.1']
    #allocation12 [shape = 'u8[512]{0}', space=smem, size = 0x200, scoped, tag = 'input window, operand 5, single buffered']
    #allocation13 [shape = 'u8[512]{0}', space=smem, size = 0x200, scoped, tag = 'input window, operand 6, single buffered']
    #allocation14 [shape = 's32[1]{0}', space=sflag, size = 0x4, scoped, tag = 'scoped memory for glow_step_forward.1']
    #allocation15 [shape = 'u8[1536]{0}', space=smem, size = 0x600, scoped, tag = 'input window, operand 7, single buffered']
    #allocation16 [shape = 'u8[512]{0}', space=smem, size = 0x200, scoped, tag = 'input window, operand 8, single buffered']
    #allocation17 [shape = 's32[1]{0}', space=sflag, size = 0x4, scoped, tag = 'scoped memory for glow_step_forward.1']
    #allocation18 [shape = 'u8[512]{0}', space=smem, size = 0x200, scoped, tag = 'input window, operand 9, single buffered']
    #allocation19 [shape = 'u8[65536]{0}', space=vmem, size = 0x10000, scoped, tag = 'output window, operand 0']
    %15 = vsyncpa [#allocation6], 0
    %16 = vsyncpa [#allocation8], 0
    %17 = vsyncpa [#allocation11], 0
    %18 = vsyncpa [#allocation14], 0
    %19 = vsyncpa [#allocation17], 0
    %20 = vsyncpa [#allocation5], 0
    %s21 = scalar_lea.sflag [#allocation5], 1
    %22 = vsyncpa %s21, 0
    loop: start=0, step=1, limit=4
    $region2: #{glow_step_forward.1} parent=1 // loop_pre_header
      _
    $region3: #{glow_step_forward.1} parent=1 // loop_header
      %s24 = sphi 0, %s28
      %p25 = scmp.ge.s32.totalorder %s24, 4
      %s34 = sphi 0, %s36
      %s37 = sphi 0, %s34
      %s38 = sphi 0, %s37
      %s54 = sphi 0, %s38
      %s58 = sphi 0, %s58
      %s60 = sphi 0, %s58
      %s61 = sphi 0, %s60
      %s75 = sphi 0, %s61
      %s79 = sphi 0, %s79
      %s81 = sphi 0, %s79
      %s82 = sphi 0, %s81
      %s96 = sphi 0, %s82
      %s100 = sphi 0, %s100
      %s102 = sphi 0, %s100
      %s103 = sphi 0, %s102
      %s117 = sphi 0, %s103
      %s121 = sphi 0, %s121
      %s123 = sphi 0, %s121
      %s124 = sphi 0, %s123
      %s138 = sphi 0, %s124
      %s142 = sphi 0, %s142
      %s144 = sphi 0, %s142
      %s145 = sphi 0, %s144
      %s159 = sphi 0, %s145
      %s163 = sphi 0, %s163
      %s165 = sphi 0, %s163
      %s166 = sphi 0, %s165
      %s180 = sphi 0, %s166
      %s184 = sphi 0, %s184
      %s186 = sphi 0, %s184
      %s187 = sphi 0, %s186
      %s201 = sphi 0, %s187
      %s205 = sphi 0, %s205
      %s207 = sphi 0, %s205
      %s208 = sphi 0, %s207
      %s222 = sphi 0, %s208
      %s226 = sphi 0, %s226
      %s228 = sphi 0, %s226
      %s229 = sphi 0, %s228
      %s243 = sphi 0, %s229
      %s249 = sphi 0, %s251
      %s252 = sphi 0, %s249
      %s253 = sphi 0, %s252
      %s269 = sphi 0, %s253
    $region4: #{glow_step_forward.1} parent=1 // loop_header_branch
      %27 = sbr.rel (%p25) target = $region8
    $region5: #{glow_step_forward.1} parent=1 // loop_body
      %s29 = ssub.s32 %s24, 1
      %s30 = ssub.s32 %s24, 2
      %s31 = sadd.s32 %s24, 1
      %s32 = ssub.s32 %s24, %s31
      %p33 = scmp.eq.s32.totalorder %s32, 0
      %s35 = sadd.s32 %s34, 1
      %s36 = scalar_select %p33, %s34, %s35
      %p39 = pneg %p33
      %p40 = scmp.eq.s32.totalorder %s24, 1
      %p41 = por %p39, %p40
      %p42 = scmp.ne.s32.totalorder %s34, %s37
      %p43 = scmp.eq.s32.totalorder %s24, 0
      %p44 = por %p42, %p43
      %p45 = scmp.ne.s32.totalorder %s34, %s37
      %p46 = scmp.eq.s32.totalorder %s29, 1
      %p47 = por %p45, %p46
      %p48 = scmp.ne.s32.totalorder %s37, %s38
      %p49 = scmp.eq.s32.totalorder %s29, 0
      %p50 = por %p48, %p49
      %p51 = scmp.ne.s32.totalorder %s37, %s38
      %p52 = scmp.eq.s32.totalorder %s30, 1
      %p53 = por %p51, %p52
      %p55 = scmp.ne.s32.totalorder %s38, %s54
      %p56 = scmp.eq.s32.totalorder %s30, 0
      %p57 = por %p55, %p56
      %s59 = sadd.s32 %s58, 1
      %p62 = scmp.eq.s32.totalorder %s24, 1
      %p63 = scmp.ne.s32.totalorder %s58, %s60
      %p64 = scmp.eq.s32.totalorder %s24, 0
      %p65 = por %p63, %p64
      %p66 = scmp.ne.s32.totalorder %s58, %s60
      %p67 = scmp.eq.s32.totalorder %s29, 1
      %p68 = por %p66, %p67
      %p69 = scmp.ne.s32.totalorder %s60, %s61
      %p70 = scmp.eq.s32.totalorder %s29, 0
      %p71 = por %p69, %p70
      %p72 = scmp.ne.s32.totalorder %s60, %s61
      %p73 = scmp.eq.s32.totalorder %s30, 1
      %p74 = por %p72, %p73
      %p76 = scmp.ne.s32.totalorder %s61, %s75
      %p77 = scmp.eq.s32.totalorder %s30, 0
      %p78 = por %p76, %p77
      %s80 = sadd.s32 %s79, 1
      %p83 = scmp.eq.s32.totalorder %s24, 1
      %p84 = scmp.ne.s32.totalorder %s79, %s81
      %p85 = scmp.eq.s32.totalorder %s24, 0
      %p86 = por %p84, %p85
      %p87 = scmp.ne.s32.totalorder %s79, %s81
      %p88 = scmp.eq.s32.totalorder %s29, 1
      %p89 = por %p87, %p88
      %p90 = scmp.ne.s32.totalorder %s81, %s82
      %p91 = scmp.eq.s32.totalorder %s29, 0
      %p92 = por %p90, %p91
      %p93 = scmp.ne.s32.totalorder %s81, %s82
      %p94 = scmp.eq.s32.totalorder %s30, 1
      %p95 = por %p93, %p94
      %p97 = scmp.ne.s32.totalorder %s82, %s96
      %p98 = scmp.eq.s32.totalorder %s30, 0
      %p99 = por %p97, %p98
      %s101 = sadd.s32 %s100, 1
      %p104 = scmp.eq.s32.totalorder %s24, 1
      %p105 = scmp.ne.s32.totalorder %s100, %s102
      %p106 = scmp.eq.s32.totalorder %s24, 0
      %p107 = por %p105, %p106
      %p108 = scmp.ne.s32.totalorder %s100, %s102
      %p109 = scmp.eq.s32.totalorder %s29, 1
      %p110 = por %p108, %p109
      %p111 = scmp.ne.s32.totalorder %s102, %s103
      %p112 = scmp.eq.s32.totalorder %s29, 0
      %p113 = por %p111, %p112
      %p114 = scmp.ne.s32.totalorder %s102, %s103
      %p115 = scmp.eq.s32.totalorder %s30, 1
      %p116 = por %p114, %p115
      %p118 = scmp.ne.s32.totalorder %s103, %s117
      %p119 = scmp.eq.s32.totalorder %s30, 0
      %p120 = por %p118, %p119
      %s122 = sadd.s32 %s121, 1
      %p125 = scmp.eq.s32.totalorder %s24, 1
      %p126 = scmp.ne.s32.totalorder %s121, %s123
      %p127 = scmp.eq.s32.totalorder %s24, 0
      %p128 = por %p126, %p127
      %p129 = scmp.ne.s32.totalorder %s121, %s123
      %p130 = scmp.eq.s32.totalorder %s29, 1
      %p131 = por %p129, %p130
      %p132 = scmp.ne.s32.totalorder %s123, %s124
      %p133 = scmp.eq.s32.totalorder %s29, 0
      %p134 = por %p132, %p133
      %p135 = scmp.ne.s32.totalorder %s123, %s124
      %p136 = scmp.eq.s32.totalorder %s30, 1
      %p137 = por %p135, %p136
      %p139 = scmp.ne.s32.totalorder %s124, %s138
      %p140 = scmp.eq.s32.totalorder %s30, 0
      %p141 = por %p139, %p140
      %s143 = sadd.s32 %s142, 1
      %p146 = scmp.eq.s32.totalorder %s24, 1
      %p147 = scmp.ne.s32.totalorder %s142, %s144
      %p148 = scmp.eq.s32.totalorder %s24, 0
      %p149 = por %p147, %p148
      %p150 = scmp.ne.s32.totalorder %s142, %s144
      %p151 = scmp.eq.s32.totalorder %s29, 1
      %p152 = por %p150, %p151
      %p153 = scmp.ne.s32.totalorder %s144, %s145
      %p154 = scmp.eq.s32.totalorder %s29, 0
      %p155 = por %p153, %p154
      %p156 = scmp.ne.s32.totalorder %s144, %s145
      %p157 = scmp.eq.s32.totalorder %s30, 1
      %p158 = por %p156, %p157
      %p160 = scmp.ne.s32.totalorder %s145, %s159
      %p161 = scmp.eq.s32.totalorder %s30, 0
      %p162 = por %p160, %p161
      %s164 = sadd.s32 %s163, 1
      %p167 = scmp.eq.s32.totalorder %s24, 1
      %p168 = scmp.ne.s32.totalorder %s163, %s165
      %p169 = scmp.eq.s32.totalorder %s24, 0
      %p170 = por %p168, %p169
      %p171 = scmp.ne.s32.totalorder %s163, %s165
      %p172 = scmp.eq.s32.totalorder %s29, 1
      %p173 = por %p171, %p172
      %p174 = scmp.ne.s32.totalorder %s165, %s166
      %p175 = scmp.eq.s32.totalorder %s29, 0
      %p176 = por %p174, %p175
      %p177 = scmp.ne.s32.totalorder %s165, %s166
      %p178 = scmp.eq.s32.totalorder %s30, 1
      %p179 = por %p177, %p178
      %p181 = scmp.ne.s32.totalorder %s166, %s180
      %p182 = scmp.eq.s32.totalorder %s30, 0
      %p183 = por %p181, %p182
      %s185 = sadd.s32 %s184, 1
      %p188 = scmp.eq.s32.totalorder %s24, 1
      %p189 = scmp.ne.s32.totalorder %s184, %s186
      %p190 = scmp.eq.s32.totalorder %s24, 0
      %p191 = por %p189, %p190
      %p192 = scmp.ne.s32.totalorder %s184, %s186
      %p193 = scmp.eq.s32.totalorder %s29, 1
      %p194 = por %p192, %p193
      %p195 = scmp.ne.s32.totalorder %s186, %s187
      %p196 = scmp.eq.s32.totalorder %s29, 0
      %p197 = por %p195, %p196
      %p198 = scmp.ne.s32.totalorder %s186, %s187
      %p199 = scmp.eq.s32.totalorder %s30, 1
      %p200 = por %p198, %p199
      %p202 = scmp.ne.s32.totalorder %s187, %s201
      %p203 = scmp.eq.s32.totalorder %s30, 0
      %p204 = por %p202, %p203
      %s206 = sadd.s32 %s205, 1
      %p209 = scmp.eq.s32.totalorder %s24, 1
      %p210 = scmp.ne.s32.totalorder %s205, %s207
      %p211 = scmp.eq.s32.totalorder %s24, 0
      %p212 = por %p210, %p211
      %p213 = scmp.ne.s32.totalorder %s205, %s207
      %p214 = scmp.eq.s32.totalorder %s29, 1
      %p215 = por %p213, %p214
      %p216 = scmp.ne.s32.totalorder %s207, %s208
      %p217 = scmp.eq.s32.totalorder %s29, 0
      %p218 = por %p216, %p217
      %p219 = scmp.ne.s32.totalorder %s207, %s208
      %p220 = scmp.eq.s32.totalorder %s30, 1
      %p221 = por %p219, %p220
      %p223 = scmp.ne.s32.totalorder %s208, %s222
      %p224 = scmp.eq.s32.totalorder %s30, 0
      %p225 = por %p223, %p224
      %s227 = sadd.s32 %s226, 1
      %p230 = scmp.eq.s32.totalorder %s24, 1
      %p231 = scmp.ne.s32.totalorder %s226, %s228
      %p232 = scmp.eq.s32.totalorder %s24, 0
      %p233 = por %p231, %p232
      %p234 = scmp.ne.s32.totalorder %s226, %s228
      %p235 = scmp.eq.s32.totalorder %s29, 1
      %p236 = por %p234, %p235
      %p237 = scmp.ne.s32.totalorder %s228, %s229
      %p238 = scmp.eq.s32.totalorder %s29, 0
      %p239 = por %p237, %p238
      %p240 = scmp.ne.s32.totalorder %s228, %s229
      %p241 = scmp.eq.s32.totalorder %s30, 1
      %p242 = por %p240, %p241
      %p244 = scmp.ne.s32.totalorder %s229, %s243
      %p245 = scmp.eq.s32.totalorder %s30, 0
      %p246 = por %p244, %p245
      %s247 = ssub.s32 %s24, %s31
      %p248 = scmp.eq.s32.totalorder %s247, 0
      %s250 = sadd.s32 %s249, 1
      %s251 = scalar_select %p248, %s249, %s250
      %p254 = pneg %p248
      %p255 = scmp.eq.s32.totalorder %s24, 1
      %p256 = por %p254, %p255
      %p257 = scmp.ne.s32.totalorder %s249, %s252
      %p258 = scmp.eq.s32.totalorder %s24, 0
      %p259 = por %p257, %p258
      %p260 = scmp.ne.s32.totalorder %s249, %s252
      %p261 = scmp.eq.s32.totalorder %s29, 1
      %p262 = por %p260, %p261
      %p263 = scmp.ne.s32.totalorder %s252, %s253
      %p264 = scmp.eq.s32.totalorder %s29, 0
      %p265 = por %p263, %p264
      %p266 = scmp.ne.s32.totalorder %s252, %s253
      %p267 = scmp.eq.s32.totalorder %s30, 1
      %p268 = por %p266, %p267
      %p270 = scmp.ne.s32.totalorder %s253, %s269
      %p271 = scmp.eq.s32.totalorder %s30, 0
      %p272 = por %p270, %p271
      %p273 = scmp.le.s32.totalorder 1, %s24
      %p274 = scmp.lt.s32.totalorder %s24, 3
      %p275 = pnand %p273, %p274
      %p276 = pneg %p275
      // Predicated region
      $region9: #{glow_step_forward.1} parent=5 // pred_check
        _
      $region10: #{glow_step_forward.1} parent=5 // pred_check_branch
        %278 = sbr.rel (%p275) target = $region12
      $region11: #{glow_step_forward.1} parent=5 // pred_region
        %s279 = ssub.s32 %s24, 1
        // Predicated region
        $region13: #{glow_step_forward.1} parent=11 // pred_check
          %p280 = pneg %p71
        $region14: #{glow_step_forward.1} parent=11 // pred_check_branch
          %282 = sbr.rel (%p280) target = $region16
        $region15: #{glow_step_forward.1} parent=11 // pred_region
          %284 = vsyncadd [#allocation6], 0
          %s286 = sshll.u32 %s1, 4
          %s287 = int_to_ptr.vmem [resolvable:$true] %s286
          %289 = dma.vmem_to_smem %s287, 16, [#allocation4], [#allocation6]
        $region16: #{glow_step_forward.1} parent=11 // pred_fallthru
          _
        // Predicated region
        $region17: #{glow_step_forward.1} parent=11 // pred_check
          %p290 = pneg %p92
        $region18: #{glow_step_forward.1} parent=11 // pred_check_branch
          %292 = sbr.rel (%p290) target = $region20
        $region19: #{glow_step_forward.1} parent=11 // pred_region
          %294 = vsyncadd [#allocation8], 0
          %s296 = sshll.u32 %s2, 4
          %s297 = int_to_ptr.vmem [resolvable:$true] %s296
          %299 = dma.vmem_to_smem %s297, 16, [#allocation7], [#allocation8]
        $region20: #{glow_step_forward.1} parent=11 // pred_fallthru
          _
        // Predicated region
        $region21: #{glow_step_forward.1} parent=11 // pred_check
          %p300 = pneg %p113
        $region22: #{glow_step_forward.1} parent=11 // pred_check_branch
          %302 = sbr.rel (%p300) target = $region24
        $region23: #{glow_step_forward.1} parent=11 // pred_region
          %304 = vsyncadd [#allocation8], 0
          %s306 = sshll.u32 %s3, 4
          %s307 = int_to_ptr.vmem [resolvable:$true] %s306
          %309 = dma.vmem_to_smem %s307, 32, [#allocation9], [#allocation8]
        $region24: #{glow_step_forward.1} parent=11 // pred_fallthru
          _
        // Predicated region
        $region25: #{glow_step_forward.1} parent=11 // pred_check
          %p310 = pneg %p134
        $region26: #{glow_step_forward.1} parent=11 // pred_check_branch
          %312 = sbr.rel (%p310) target = $region28
        $region27: #{glow_step_forward.1} parent=11 // pred_region
          %314 = vsyncadd [#allocation11], 0
          %s316 = sshll.u32 %s4, 4
          %s317 = int_to_ptr.vmem [resolvable:$true] %s316
          %319 = dma.vmem_to_smem %s317, 16, [#allocation10], [#allocation11]
        $region28: #{glow_step_forward.1} parent=11 // pred_fallthru
          _
        // Predicated region
        $region29: #{glow_step_forward.1} parent=11 // pred_check
          %p320 = pneg %p155
        $region30: #{glow_step_forward.1} parent=11 // pred_check_branch
          %322 = sbr.rel (%p320) target = $region32
        $region31: #{glow_step_forward.1} parent=11 // pred_region
          %324 = vsyncadd [#allocation11], 0
          %s326 = sshll.u32 %s5, 4
          %s327 = int_to_ptr.vmem [resolvable:$true] %s326
          %329 = dma.vmem_to_smem %s327, 16, [#allocation12], [#allocation11]
        $region32: #{glow_step_forward.1} parent=11 // pred_fallthru
          _
        // Predicated region
        $region33: #{glow_step_forward.1} parent=11 // pred_check
          %p330 = pneg %p176
        $region34: #{glow_step_forward.1} parent=11 // pred_check_branch
          %332 = sbr.rel (%p330) target = $region36
        $region35: #{glow_step_forward.1} parent=11 // pred_region
          %334 = vsyncadd [#allocation14], 0
          %s336 = sshll.u32 %s6, 4
          %s337 = int_to_ptr.vmem [resolvable:$true] %s336
          %339 = dma.vmem_to_smem %s337, 16, [#allocation13], [#allocation14]
        $region36: #{glow_step_forward.1} parent=11 // pred_fallthru
          _
        // Predicated region
        $region37: #{glow_step_forward.1} parent=11 // pred_check
          %p340 = pneg %p197
        $region38: #{glow_step_forward.1} parent=11 // pred_check_branch
          %342 = sbr.rel (%p340) target = $region40
        $region39: #{glow_step_forward.1} parent=11 // pred_region
          %344 = vsyncadd [#allocation14], 0
          %s346 = sshll.u32 %s7, 4
          %s347 = int_to_ptr.vmem [resolvable:$true] %s346
          %349 = dma.vmem_to_smem %s347, 48, [#allocation15], [#allocation14]
        $region40: #{glow_step_forward.1} parent=11 // pred_fallthru
          _
        // Predicated region
        $region41: #{glow_step_forward.1} parent=11 // pred_check
          %p350 = pneg %p218
        $region42: #{glow_step_forward.1} parent=11 // pred_check_branch
          %352 = sbr.rel (%p350) target = $region44
        $region43: #{glow_step_forward.1} parent=11 // pred_region
          %354 = vsyncadd [#allocation17], 0
          %s356 = sshll.u32 %s8, 4
          %s357 = int_to_ptr.vmem [resolvable:$true] %s356
          %359 = dma.vmem_to_smem %s357, 16, [#allocation16], [#allocation17]
        $region44: #{glow_step_forward.1} parent=11 // pred_fallthru
          _
        // Predicated region
        $region45: #{glow_step_forward.1} parent=11 // pred_check
          %p360 = pneg %p239
        $region46: #{glow_step_forward.1} parent=11 // pred_check_branch
          %362 = sbr.rel (%p360) target = $region48
        $region47: #{glow_step_forward.1} parent=11 // pred_region
          %364 = vsyncadd [#allocation17], 0
          %s366 = sshll.u32 %s9, 4
          %s367 = int_to_ptr.vmem [resolvable:$true] %s366
          %369 = dma.vmem_to_smem %s367, 16, [#allocation18], [#allocation17]
        $region48: #{glow_step_forward.1} parent=11 // pred_fallthru
          _
      $region12: #{glow_step_forward.1} parent=5 // pred_fallthru
        _
      %p370 = scmp.lt.s32.totalorder %s24, 2
      // Predicated region
      $region49: #{glow_step_forward.1} parent=5 // pred_check
        %p371 = pneg %p370
      $region50: #{glow_step_forward.1} parent=5 // pred_check_branch
        %373 = sbr.rel (%p371) target = $region52
      $region51: #{glow_step_forward.1} parent=5 // pred_region
        // Predicated region
        $region53: #{glow_step_forward.1} parent=51 // pred_check
          %p374 = pneg %p44
        $region54: #{glow_step_forward.1} parent=51 // pred_check_branch
          %376 = sbr.rel (%p374) target = $region56
        $region55: #{glow_step_forward.1} parent=51 // pred_region
          %p377 = scmp.lt.s32.totalorder %s24, 1
          %s378 = scalar_select %p377, %s24, 1
          %s379 = smul.addr %s378, 8
          %s380 = smul.addr %s379, 8
          %s381 = scalar_lea.vmem %s0, %s380
        $region56: #{glow_step_forward.1} parent=51 // pred_fallthru
          _
      $region52: #{glow_step_forward.1} parent=5 // pred_fallthru
        _
      %p382 = scmp.le.s32.totalorder 1, %s24
      %p383 = scmp.lt.s32.totalorder %s24, 3
      %p384 = pnand %p382, %p383
      %p385 = pneg %p384
      // Predicated region
      $region57: #{glow_step_forward.1} parent=5 // pred_check
        _
      $region58: #{glow_step_forward.1} parent=5 // pred_check_branch
        %387 = sbr.rel (%p384) target = $region60
      $region59: #{glow_step_forward.1} parent=5 // pred_region
        %s388 = ssub.s32 %s24, 1
        // Predicated region
        $region61: #{glow_step_forward.1} parent=59 // pred_check
          %p389 = pneg %p71
        $region62: #{glow_step_forward.1} parent=59 // pred_check_branch
          %391 = sbr.rel (%p389) target = $region64
        $region63: #{glow_step_forward.1} parent=59 // pred_region
          %393 = dma.done [#allocation6], 16
        $region64: #{glow_step_forward.1} parent=59 // pred_fallthru
          _
        // Predicated region
        $region65: #{glow_step_forward.1} parent=59 // pred_check
          %p394 = pneg %p92
        $region66: #{glow_step_forward.1} parent=59 // pred_check_branch
          %396 = sbr.rel (%p394) target = $region68
        $region67: #{glow_step_forward.1} parent=59 // pred_region
          %398 = dma.done [#allocation8], 16
        $region68: #{glow_step_forward.1} parent=59 // pred_fallthru
          _
        // Predicated region
        $region69: #{glow_step_forward.1} parent=59 // pred_check
          %p399 = pneg %p113
        $region70: #{glow_step_forward.1} parent=59 // pred_check_branch
          %401 = sbr.rel (%p399) target = $region72
        $region71: #{glow_step_forward.1} parent=59 // pred_region
          %403 = dma.done [#allocation8], 32
        $region72: #{glow_step_forward.1} parent=59 // pred_fallthru
          _
        // Predicated region
        $region73: #{glow_step_forward.1} parent=59 // pred_check
          %p404 = pneg %p134
        $region74: #{glow_step_forward.1} parent=59 // pred_check_branch
          %406 = sbr.rel (%p404) target = $region76
        $region75: #{glow_step_forward.1} parent=59 // pred_region
          %408 = dma.done [#allocation11], 16
        $region76: #{glow_step_forward.1} parent=59 // pred_fallthru
          _
        // Predicated region
        $region77: #{glow_step_forward.1} parent=59 // pred_check
          %p409 = pneg %p155
        $region78: #{glow_step_forward.1} parent=59 // pred_check_branch
          %411 = sbr.rel (%p409) target = $region80
        $region79: #{glow_step_forward.1} parent=59 // pred_region
          %413 = dma.done [#allocation11], 16
        $region80: #{glow_step_forward.1} parent=59 // pred_fallthru
          _
        // Predicated region
        $region81: #{glow_step_forward.1} parent=59 // pred_check
          %p414 = pneg %p176
        $region82: #{glow_step_forward.1} parent=59 // pred_check_branch
          %416 = sbr.rel (%p414) target = $region84
        $region83: #{glow_step_forward.1} parent=59 // pred_region
          %418 = dma.done [#allocation14], 16
        $region84: #{glow_step_forward.1} parent=59 // pred_fallthru
          _
        // Predicated region
        $region85: #{glow_step_forward.1} parent=59 // pred_check
          %p419 = pneg %p197
        $region86: #{glow_step_forward.1} parent=59 // pred_check_branch
          %421 = sbr.rel (%p419) target = $region88
        $region87: #{glow_step_forward.1} parent=59 // pred_region
          %423 = dma.done [#allocation14], 48
        $region88: #{glow_step_forward.1} parent=59 // pred_fallthru
          _
        // Predicated region
        $region89: #{glow_step_forward.1} parent=59 // pred_check
          %p424 = pneg %p218
        $region90: #{glow_step_forward.1} parent=59 // pred_check_branch
          %426 = sbr.rel (%p424) target = $region92
        $region91: #{glow_step_forward.1} parent=59 // pred_region
          %428 = dma.done [#allocation17], 16
        $region92: #{glow_step_forward.1} parent=59 // pred_fallthru
          _
        // Predicated region
        $region93: #{glow_step_forward.1} parent=59 // pred_check
          %p429 = pneg %p239
        $region94: #{glow_step_forward.1} parent=59 // pred_check_branch
          %431 = sbr.rel (%p429) target = $region96
        $region95: #{glow_step_forward.1} parent=59 // pred_region
          %433 = dma.done [#allocation17], 16
        $region96: #{glow_step_forward.1} parent=59 // pred_fallthru
          _
        %434 = sfence
        %p435 = scmp.lt.s32.totalorder %s29, 1
        %s436 = scalar_select %p435, %s29, 1
        %s437 = smul.addr %s436, 8
        %s438 = smul.addr %s437, 8
        %s439 = scalar_lea.vmem %s0, %s438
        %p440 = pneg %p50
        %p441 = pneg %p47
        %p442 = pneg %p71
        %p443 = pneg %p68
        %p444 = pneg %p92
        %p445 = pneg %p89
        %p446 = pneg %p113
        %p447 = pneg %p110
        %p448 = pneg %p134
        %p449 = pneg %p131
        %p450 = pneg %p155
        %p451 = pneg %p152
        %p452 = pneg %p176
        %p453 = pneg %p173
        %p454 = pneg %p197
        %p455 = pneg %p194
        %p456 = pneg %p218
        %p457 = pneg %p215
        %p458 = pneg %p239
        %p459 = pneg %p236
        %p460 = pneg %p265
        %p461 = pneg %p262
        %s462 = sand.u32 %s252, 1
        %s463 = scalar_lea.sflag [#allocation5], %s462
        %s464 = sand.u32 %s252, 1
        %s465 = smul.addr %s464, 64
        %s466 = scalar_lea.vmem [#allocation19], %s465
        %p467 = scmp.lt.s32.totalorder %s29, 1
        %s468 = scalar_select %p467, %s29, 1
        %s469 = smul.addr %s468, 8
        %s470 = smul.addr %s469, 8
        %s471 = scalar_lea.vmem %s0, %s470
        %vm472 = vcmask 146432
        %473 = vst.msk [vmem:[#allocation2] sm:$0xff] %vm472, 0.0
        %474 = vst.msk [vmem:[#allocation2 + $0x8] sm:$0xff] %vm472, 0.0
        %vm475 = vcmask 140288
        %476 = vst.msk [vmem:[#allocation2 + $0x10] sm:$0x3] %vm475, 0.0
        %477 = vst.msk [vmem:[#allocation2 + $0x18] sm:$0xff] %vm472, 0.0
        %478 = vst.msk [vmem:[#allocation2 + $0x20] sm:$0xff] %vm472, 0.0
        %479 = vst.msk [vmem:[#allocation2 + $0x28] sm:$0x3] %vm475, 0.0
        %480 = vst.msk [vmem:[#allocation3] sm:$0xff] %vm472, 0.0
        %481 = vst.msk [vmem:[#allocation3 + $0x8] sm:$0xff] %vm472, 0.0
        %482 = vst.msk [vmem:[#allocation3 + $0x10] sm:$0x3] %vm475, 0.0
        %483 = vst.msk [vmem:[#allocation3 + $0x18] sm:$0xff] %vm472, 0.0
        %484 = vst.msk [vmem:[#allocation3 + $0x20] sm:$0xff] %vm472, 0.0
        %485 = vst.msk [vmem:[#allocation3 + $0x28] sm:$0x3] %vm475, 0.0
        %486 = vst.msk [vmem:[#allocation3 + $0x30] sm:$0xff] %vm472, 0.0
        %487 = vst.msk [vmem:[#allocation3 + $0x38] sm:$0xff] %vm472, 0.0
        %488 = vst.msk [vmem:[#allocation3 + $0x40] sm:$0x3] %vm475, 0.0
        %489 = vst.msk [vmem:[#allocation3 + $0x48] sm:$0xff] %vm472, 0.0
        %490 = vst.msk [vmem:[#allocation3 + $0x50] sm:$0xff] %vm472, 0.0
        %491 = vst.msk [vmem:[#allocation3 + $0x58] sm:$0x3] %vm475, 0.0
        %492 = vst.msk [vmem:[#allocation3 + $0x60] sm:$0xff] %vm472, 0.0
        %493 = vst.msk [vmem:[#allocation3 + $0x68] sm:$0xff] %vm472, 0.0
        %494 = vst.msk [vmem:[#allocation3 + $0x70] sm:$0x3] %vm475, 0.0
        %495 = vst.msk [vmem:[#allocation3 + $0x78] sm:$0xff] %vm472, 0.0
        %496 = vst.msk [vmem:[#allocation3 + $0x80] sm:$0xff] %vm472, 0.0
        %497 = vst.msk [vmem:[#allocation3 + $0x88] sm:$0x3] %vm475, 0.0
        %498 = vst.msk [vmem:[#allocation3 + $0x90] sm:$0xff] %vm472, 0.0
        %499 = vst.msk [vmem:[#allocation3 + $0x98] sm:$0xff] %vm472, 0.0
        %500 = vst.msk [vmem:[#allocation3 + $0xa0] sm:$0x3] %vm475, 0.0
        %501 = vst.msk [vmem:[#allocation3 + $0xa8] sm:$0xff] %vm472, 0.0
        %502 = vst.msk [vmem:[#allocation3 + $0xb0] sm:$0xff] %vm472, 0.0
        %503 = vst.msk [vmem:[#allocation3 + $0xb8] sm:$0x3] %vm475, 0.0
        %v504 = vld [vmem:[%s471] sm:$0xff]
        %v505 = vld [vmem:[%s471 + $0x8] sm:$0xff]
        %s506 = scalar_lea.vmem %s471, 16
        %v507 = vld [vmem:[%s506] sm:$0xff]
        %v508 = vld [vmem:[%s506 + $0x8] sm:$0xff]
        %s509 = scalar_lea.vmem %s471, 32
        %v510 = vld [vmem:[%s509] sm:$0xff]
        %v511 = vld [vmem:[%s509 + $0x8] sm:$0xff]
        %s512 = scalar_lea.vmem %s471, 48
        %v513 = vld [vmem:[%s512] sm:$0xff]
        %v514 = vld [vmem:[%s512 + $0x8] sm:$0xff]
        %s515 = sld [smem:[#allocation4]]
        %v516 = vstv %s515
        %v517 = vmul.f32 %v516, %v504
        %v518 = vmul.f32 %v516, %v505
        %s519 = sld [smem:[#allocation4 + $0x1]]
        %v520 = vstv %s519
        %v521 = vmul.f32 %v520, %v507
        %v522 = vmul.f32 %v520, %v508
        %v523 = vadd.f32 %v517, %v521
        %v524 = vadd.f32 %v518, %v522
        %s525 = sld [smem:[#allocation4 + $0x2]]
        %v526 = vstv %s525
        %v527 = vmul.f32 %v526, %v510
        %v528 = vmul.f32 %v526, %v511
        %v529 = vadd.f32 %v523, %v527
        %v530 = vadd.f32 %v524, %v528
        %s531 = sld [smem:[#allocation4 + $0x3]]
        %v532 = vstv %s531
        %v533 = vmul.f32 %v532, %v513
        %v534 = vmul.f32 %v532, %v514
        %v535 = vadd.f32 %v529, %v533
        %v536 = vadd.f32 %v530, %v534
        %s537 = sld [smem:[#allocation7]]
        %v538 = vstv %s537
        %v539 = vadd.f32 %v535, %v538
        %v540 = vadd.f32 %v536, %v538
        %s541 = sld [smem:[#allocation4 + $0x4]]
        %v542 = vstv %s541
        %v543 = vmul.f32 %v542, %v504
        %v544 = vmul.f32 %v542, %v505
        %s545 = sld [smem:[#allocation4 + $0x5]]
        %v546 = vstv %s545
        %v547 = vmul.f32 %v546, %v507
        %v548 = vmul.f32 %v546, %v508
        %v549 = vadd.f32 %v543, %v547
        %v550 = vadd.f32 %v544, %v548
        %s551 = sld [smem:[#allocation4 + $0x6]]
        %v552 = vstv %s551
        %v553 = vmul.f32 %v552, %v510
        %v554 = vmul.f32 %v552, %v511
        %v555 = vadd.f32 %v549, %v553
        %v556 = vadd.f32 %v550, %v554
        %s557 = sld [smem:[#allocation4 + $0x7]]
        %v558 = vstv %s557
        %v559 = vmul.f32 %v558, %v513
        %v560 = vmul.f32 %v558, %v514
        %v561 = vadd.f32 %v555, %v559
        %v562 = vadd.f32 %v556, %v560
        %s563 = sld [smem:[#allocation7 + $0x1]]
        %v564 = vstv %s563
        %v565 = vadd.f32 %v561, %v564
        %v566 = vadd.f32 %v562, %v564
        %s567 = sld [smem:[#allocation4 + $0x8]]
        %v568 = vstv %s567
        %v569 = vmul.f32 %v568, %v504
        %v570 = vmul.f32 %v568, %v505
        %s571 = sld [smem:[#allocation4 + $0x9]]
        %v572 = vstv %s571
        %v573 = vmul.f32 %v572, %v507
        %v574 = vmul.f32 %v572, %v508
        %v575 = vadd.f32 %v569, %v573
        %v576 = vadd.f32 %v570, %v574
        %s577 = sld [smem:[#allocation4 + $0xa]]
        %v578 = vstv %s577
        %v579 = vmul.f32 %v578, %v510
        %v580 = vmul.f32 %v578, %v511
        %v581 = vadd.f32 %v575, %v579
        %v582 = vadd.f32 %v576, %v580
        %s583 = sld [smem:[#allocation4 + $0xb]]
        %v584 = vstv %s583
        %v585 = vmul.f32 %v584, %v513
        %v586 = vmul.f32 %v584, %v514
        %v587 = vadd.f32 %v581, %v585
        %v588 = vadd.f32 %v582, %v586
        %s589 = sld [smem:[#allocation7 + $0x2]]
        %v590 = vstv %s589
        %v591 = vadd.f32 %v587, %v590
        %v592 = vadd.f32 %v588, %v590
        %s593 = sld [smem:[#allocation4 + $0xc]]
        %v594 = vstv %s593
        %v595 = vmul.f32 %v594, %v504
        %v596 = vmul.f32 %v594, %v505
        %s597 = sld [smem:[#allocation4 + $0xd]]
        %v598 = vstv %s597
        %v599 = vmul.f32 %v598, %v507
        %v600 = vmul.f32 %v598, %v508
        %v601 = vadd.f32 %v595, %v599
        %v602 = vadd.f32 %v596, %v600
        %s603 = sld [smem:[#allocation4 + $0xe]]
        %v604 = vstv %s603
        %v605 = vmul.f32 %v604, %v510
        %v606 = vmul.f32 %v604, %v511
        %v607 = vadd.f32 %v601, %v605
        %v608 = vadd.f32 %v602, %v606
        %s609 = sld [smem:[#allocation4 + $0xf]]
        %v610 = vstv %s609
        %v611 = vmul.f32 %v610, %v513
        %v612 = vmul.f32 %v610, %v514
        %v613 = vadd.f32 %v607, %v611
        %v614 = vadd.f32 %v608, %v612
        %s615 = sld [smem:[#allocation7 + $0x3]]
        %v616 = vstv %s615
        %v617 = vadd.f32 %v613, %v616
        %v618 = vadd.f32 %v614, %v616
        %vm619 = vcmask 130048
        %620 = vst.msk [vmem:[%s466] sm:$0xff] %vm619, %v539
        %621 = vst.msk [vmem:[%s466 + $0x8] sm:$0xff] %vm619, %v540
        %624 = vrot.lane.b32.xlu0 %v539, 1
        %v625 = vpop.permute.xlu0 %624
        %626 = vrot.lane.b32.xlu0 %v540, 1
        %v627 = vpop.permute.xlu0 %626
        %vm630 = vcmask 138248
        %631 = vst.msk [vmem:[#allocation2 + $0x1] sm:$0xff] %vm630, %v625
        %632 = vst.msk [vmem:[#allocation2 + $0x9] sm:$0xff] %vm630, %v627
        %s633 = scalar_lea.vmem %s466, 16 [#allocation19]
        %634 = vst.msk [vmem:[%s633] sm:$0xff] %vm619, %v565
        %635 = vst.msk [vmem:[%s633 + $0x8] sm:$0xff] %vm619, %v566
        %638 = vrot.lane.b32.xlu0 %v565, 1
        %v639 = vpop.permute.xlu0 %638
        %640 = vrot.lane.b32.xlu0 %v566, 1
        %v641 = vpop.permute.xlu0 %640
        %s644 = scalar_lea.vmem [#allocation2], 24
        %645 = vst.msk [vmem:[%s644 + $0x1] sm:$0xff] %vm630, %v639
        %646 = vst.msk [vmem:[%s644 + $0x9] sm:$0xff] %vm630, %v641
        %v647 = vld [vmem:[#allocation2] sm:$0xff]
        %v648 = vld [vmem:[#allocation2 + $0x8] sm:$0xff]
        %s649 = sld [smem:[#allocation9]]
        %v650 = vstv %s649
        %v651 = vmul.f32 %v650, %v647
        %v652 = vmul.f32 %v650, %v648
        %s653 = sld [smem:[#allocation9 + $0x1]]
        %v654 = vstv %s653
        %v655 = vmul.f32 %v654, %v647
        %v656 = vmul.f32 %v654, %v648
        %s657 = sld [smem:[#allocation9 + $0x2]]
        %v658 = vstv %s657
        %v659 = vmul.f32 %v658, %v647
        %v660 = vmul.f32 %v658, %v648
        %s661 = sld [smem:[#allocation9 + $0x3]]
        %v662 = vstv %s661
        %v663 = vmul.f32 %v662, %v647
        %v664 = vmul.f32 %v662, %v648
        %s665 = sld [smem:[#allocation9 + $0x4]]
        %v666 = vstv %s665
        %v667 = vmul.f32 %v666, %v647
        %v668 = vmul.f32 %v666, %v648
        %s669 = sld [smem:[#allocation9 + $0x5]]
        %v670 = vstv %s669
        %v671 = vmul.f32 %v670, %v647
        %v672 = vmul.f32 %v670, %v648
        %s673 = sld [smem:[#allocation9 + $0x6]]
        %v674 = vstv %s673
        %v675 = vmul.f32 %v674, %v647
        %v676 = vmul.f32 %v674, %v648
        %s677 = sld [smem:[#allocation9 + $0x7]]
        %v678 = vstv %s677
        %v679 = vmul.f32 %v678, %v647
        %v680 = vmul.f32 %v678, %v648
        %s681 = sld [smem:[#allocation9 + $0x10]]
        %v682 = vstv %s681
        %v683 = vmul.f32 %v682, %v647
        %v684 = vmul.f32 %v682, %v648
        %687 = vrot.lane.b32.xlu0 %v683, 127
        %v688 = vpop.permute.xlu0 %687
        %689 = vrot.lane.b32.xlu0 %v684, 127
        %v690 = vpop.permute.xlu0 %689
        %v693 = vadd.f32 %v651, %v688
        %v694 = vadd.f32 %v652, %v690
        %s695 = sld [smem:[#allocation9 + $0x11]]
        %v696 = vstv %s695
        %v697 = vmul.f32 %v696, %v647
        %v698 = vmul.f32 %v696, %v648
        %701 = vrot.lane.b32.xlu0 %v697, 127
        %v702 = vpop.permute.xlu0 %701
        %703 = vrot.lane.b32.xlu0 %v698, 127
        %v704 = vpop.permute.xlu0 %703
        %v707 = vadd.f32 %v655, %v702
        %v708 = vadd.f32 %v656, %v704
        %s709 = sld [smem:[#allocation9 + $0x12]]
        %v710 = vstv %s709
        %v711 = vmul.f32 %v710, %v647
        %v712 = vmul.f32 %v710, %v648
        %715 = vrot.lane.b32.xlu0 %v711, 127
        %v716 = vpop.permute.xlu0 %715
        %717 = vrot.lane.b32.xlu0 %v712, 127
        %v718 = vpop.permute.xlu0 %717
        %v721 = vadd.f32 %v659, %v716
        %v722 = vadd.f32 %v660, %v718
        %s723 = sld [smem:[#allocation9 + $0x13]]
        %v724 = vstv %s723
        %v725 = vmul.f32 %v724, %v647
        %v726 = vmul.f32 %v724, %v648
        %729 = vrot.lane.b32.xlu0 %v725, 127
        %v730 = vpop.permute.xlu0 %729
        %731 = vrot.lane.b32.xlu0 %v726, 127
        %v732 = vpop.permute.xlu0 %731
        %v735 = vadd.f32 %v663, %v730
        %v736 = vadd.f32 %v664, %v732
        %s737 = sld [smem:[#allocation9 + $0x14]]
        %v738 = vstv %s737
        %v739 = vmul.f32 %v738, %v647
        %v740 = vmul.f32 %v738, %v648
        %743 = vrot.lane.b32.xlu0 %v739, 127
        %v744 = vpop.permute.xlu0 %743
        %745 = vrot.lane.b32.xlu0 %v740, 127
        %v746 = vpop.permute.xlu0 %745
        %v749 = vadd.f32 %v667, %v744
        %v750 = vadd.f32 %v668, %v746
        %s751 = sld [smem:[#allocation9 + $0x15]]
        %v752 = vstv %s751
        %v753 = vmul.f32 %v752, %v647
        %v754 = vmul.f32 %v752, %v648
        %757 = vrot.lane.b32.xlu0 %v753, 127
        %v758 = vpop.permute.xlu0 %757
        %759 = vrot.lane.b32.xlu0 %v754, 127
        %v760 = vpop.permute.xlu0 %759
        %v763 = vadd.f32 %v671, %v758
        %v764 = vadd.f32 %v672, %v760
        %s765 = sld [smem:[#allocation9 + $0x16]]
        %v766 = vstv %s765
        %v767 = vmul.f32 %v766, %v647
        %v768 = vmul.f32 %v766, %v648
        %771 = vrot.lane.b32.xlu0 %v767, 127
        %v772 = vpop.permute.xlu0 %771
        %773 = vrot.lane.b32.xlu0 %v768, 127
        %v774 = vpop.permute.xlu0 %773
        %v777 = vadd.f32 %v675, %v772
        %v778 = vadd.f32 %v676, %v774
        %s779 = sld [smem:[#allocation9 + $0x17]]
        %v780 = vstv %s779
        %v781 = vmul.f32 %v780, %v647
        %v782 = vmul.f32 %v780, %v648
        %785 = vrot.lane.b32.xlu0 %v781, 127
        %v786 = vpop.permute.xlu0 %785
        %787 = vrot.lane.b32.xlu0 %v782, 127
        %v788 = vpop.permute.xlu0 %787
        %v791 = vadd.f32 %v679, %v786
        %v792 = vadd.f32 %v680, %v788
        %s793 = sld [smem:[#allocation9 + $0x20]]
        %v794 = vstv %s793
        %v795 = vmul.f32 %v794, %v647
        %v796 = vmul.f32 %v794, %v648
        %799 = vrot.lane.b32.xlu0 %v795, 126
        %v800 = vpop.permute.xlu0 %799
        %801 = vrot.lane.b32.xlu0 %v796, 126
        %v802 = vpop.permute.xlu0 %801
        %v805 = vadd.f32 %v693, %v800
        %v806 = vadd.f32 %v694, %v802
        %s807 = sld [smem:[#allocation9 + $0x21]]
        %v808 = vstv %s807
        %v809 = vmul.f32 %v808, %v647
        %v810 = vmul.f32 %v808, %v648
        %813 = vrot.lane.b32.xlu0 %v809, 126
        %v814 = vpop.permute.xlu0 %813
        %815 = vrot.lane.b32.xlu0 %v810, 126
        %v816 = vpop.permute.xlu0 %815
        %v819 = vadd.f32 %v707, %v814
        %v820 = vadd.f32 %v708, %v816
        %s821 = sld [smem:[#allocation9 + $0x22]]
        %v822 = vstv %s821
        %v823 = vmul.f32 %v822, %v647
        %v824 = vmul.f32 %v822, %v648
        %827 = vrot.lane.b32.xlu0 %v823, 126
        %v828 = vpop.permute.xlu0 %827
        %829 = vrot.lane.b32.xlu0 %v824, 126
        %v830 = vpop.permute.xlu0 %829
        %v833 = vadd.f32 %v721, %v828
        %v834 = vadd.f32 %v722, %v830
        %s835 = sld [smem:[#allocation9 + $0x23]]
        %v836 = vstv %s835
        %v837 = vmul.f32 %v836, %v647
        %v838 = vmul.f32 %v836, %v648
        %841 = vrot.lane.b32.xlu0 %v837, 126
        %v842 = vpop.permute.xlu0 %841
        %843 = vrot.lane.b32.xlu0 %v838, 126
        %v844 = vpop.permute.xlu0 %843
        %v847 = vadd.f32 %v735, %v842
        %v848 = vadd.f32 %v736, %v844
        %s849 = sld [smem:[#allocation9 + $0x24]]
        %v850 = vstv %s849
        %v851 = vmul.f32 %v850, %v647
        %v852 = vmul.f32 %v850, %v648
        %855 = vrot.lane.b32.xlu0 %v851, 126
        %v856 = vpop.permute.xlu0 %855
        %857 = vrot.lane.b32.xlu0 %v852, 126
        %v858 = vpop.permute.xlu0 %857
        %v861 = vadd.f32 %v749, %v856
        %v862 = vadd.f32 %v750, %v858
        %s863 = sld [smem:[#allocation9 + $0x25]]
        %v864 = vstv %s863
        %v865 = vmul.f32 %v864, %v647
        %v866 = vmul.f32 %v864, %v648
        %869 = vrot.lane.b32.xlu0 %v865, 126
        %v870 = vpop.permute.xlu0 %869
        %871 = vrot.lane.b32.xlu0 %v866, 126
        %v872 = vpop.permute.xlu0 %871
        %v875 = vadd.f32 %v763, %v870
        %v876 = vadd.f32 %v764, %v872
        %s877 = sld [smem:[#allocation9 + $0x26]]
        %v878 = vstv %s877
        %v879 = vmul.f32 %v878, %v647
        %v880 = vmul.f32 %v878, %v648
        %883 = vrot.lane.b32.xlu0 %v879, 126
        %v884 = vpop.permute.xlu0 %883
        %885 = vrot.lane.b32.xlu0 %v880, 126
        %v886 = vpop.permute.xlu0 %885
        %v889 = vadd.f32 %v777, %v884
        %v890 = vadd.f32 %v778, %v886
        %s891 = sld [smem:[#allocation9 + $0x27]]
        %v892 = vstv %s891
        %v893 = vmul.f32 %v892, %v647
        %v894 = vmul.f32 %v892, %v648
        %897 = vrot.lane.b32.xlu0 %v893, 126
        %v898 = vpop.permute.xlu0 %897
        %899 = vrot.lane.b32.xlu0 %v894, 126
        %v900 = vpop.permute.xlu0 %899
        %v903 = vadd.f32 %v791, %v898
        %v904 = vadd.f32 %v792, %v900
        %v905 = vld [vmem:[#allocation2 + $0x1] sm:$0xff]
        %v906 = vld [vmem:[#allocation2 + $0x9] sm:$0xff]
        %s907 = sld [smem:[#allocation9 + $0x30]]
        %v908 = vstv %s907
        %v909 = vmul.f32 %v908, %v905
        %v910 = vmul.f32 %v908, %v906
        %v911 = vadd.f32 %v805, %v909
        %v912 = vadd.f32 %v806, %v910
        %s913 = sld [smem:[#allocation9 + $0x31]]
        %v914 = vstv %s913
        %v915 = vmul.f32 %v914, %v905
        %v916 = vmul.f32 %v914, %v906
        %v917 = vadd.f32 %v819, %v915
        %v918 = vadd.f32 %v820, %v916
        %s919 = sld [smem:[#allocation9 + $0x32]]
        %v920 = vstv %s919
        %v921 = vmul.f32 %v920, %v905
        %v922 = vmul.f32 %v920, %v906
        %v923 = vadd.f32 %v833, %v921
        %v924 = vadd.f32 %v834, %v922
        %s925 = sld [smem:[#allocation9 + $0x33]]
        %v926 = vstv %s925
        %v927 = vmul.f32 %v926, %v905
        %v928 = vmul.f32 %v926, %v906
        %v929 = vadd.f32 %v847, %v927
        %v930 = vadd.f32 %v848, %v928
        %s931 = sld [smem:[#allocation9 + $0x34]]
        %v932 = vstv %s931
        %v933 = vmul.f32 %v932, %v905
        %v934 = vmul.f32 %v932, %v906
        %v935 = vadd.f32 %v861, %v933
        %v936 = vadd.f32 %v862, %v934
        %s937 = sld [smem:[#allocation9 + $0x35]]
        %v938 = vstv %s937
        %v939 = vmul.f32 %v938, %v905
        %v940 = vmul.f32 %v938, %v906
        %v941 = vadd.f32 %v875, %v939
        %v942 = vadd.f32 %v876, %v940
        %s943 = sld [smem:[#allocation9 + $0x36]]
        %v944 = vstv %s943
        %v945 = vmul.f32 %v944, %v905
        %v946 = vmul.f32 %v944, %v906
        %v947 = vadd.f32 %v889, %v945
        %v948 = vadd.f32 %v890, %v946
        %s949 = sld [smem:[#allocation9 + $0x37]]
        %v950 = vstv %s949
        %v951 = vmul.f32 %v950, %v905
        %v952 = vmul.f32 %v950, %v906
        %v953 = vadd.f32 %v903, %v951
        %v954 = vadd.f32 %v904, %v952
        %s955 = sld [smem:[#allocation9 + $0x40]]
        %v956 = vstv %s955
        %v957 = vmul.f32 %v956, %v905
        %v958 = vmul.f32 %v956, %v906
        %961 = vrot.lane.b32.xlu0 %v957, 127
        %v962 = vpop.permute.xlu0 %961
        %963 = vrot.lane.b32.xlu0 %v958, 127
        %v964 = vpop.permute.xlu0 %963
        %v967 = vadd.f32 %v911, %v962
        %v968 = vadd.f32 %v912, %v964
        %s969 = sld [smem:[#allocation9 + $0x41]]
        %v970 = vstv %s969
        %v971 = vmul.f32 %v970, %v905
        %v972 = vmul.f32 %v970, %v906
        %975 = vrot.lane.b32.xlu0 %v971, 127
        %v976 = vpop.permute.xlu0 %975
        %977 = vrot.lane.b32.xlu0 %v972, 127
        %v978 = vpop.permute.xlu0 %977
        %v981 = vadd.f32 %v917, %v976
        %v982 = vadd.f32 %v918, %v978
        %s983 = sld [smem:[#allocation9 + $0x42]]
        %v984 = vstv %s983
        %v985 = vmul.f32 %v984, %v905
        %v986 = vmul.f32 %v984, %v906
        %989 = vrot.lane.b32.xlu0 %v985, 127
        %v990 = vpop.permute.xlu0 %989
        %991 = vrot.lane.b32.xlu0 %v986, 127
        %v992 = vpop.permute.xlu0 %991
        %v995 = vadd.f32 %v923, %v990
        %v996 = vadd.f32 %v924, %v992
        %s997 = sld [smem:[#allocation9 + $0x43]]
        %v998 = vstv %s997
        %v999 = vmul.f32 %v998, %v905
        %v1000 = vmul.f32 %v998, %v906
        %1003 = vrot.lane.b32.xlu0 %v999, 127
        %v1004 = vpop.permute.xlu0 %1003
        %1005 = vrot.lane.b32.xlu0 %v1000, 127
        %v1006 = vpop.permute.xlu0 %1005
        %v1009 = vadd.f32 %v929, %v1004
        %v1010 = vadd.f32 %v930, %v1006
        %s1011 = sld [smem:[#allocation9 + $0x44]]
        %v1012 = vstv %s1011
        %v1013 = vmul.f32 %v1012, %v905
        %v1014 = vmul.f32 %v1012, %v906
        %1017 = vrot.lane.b32.xlu0 %v1013, 127
        %v1018 = vpop.permute.xlu0 %1017
        %1019 = vrot.lane.b32.xlu0 %v1014, 127
        %v1020 = vpop.permute.xlu0 %1019
        %v1023 = vadd.f32 %v935, %v1018
        %v1024 = vadd.f32 %v936, %v1020
        %s1025 = sld [smem:[#allocation9 + $0x45]]
        %v1026 = vstv %s1025
        %v1027 = vmul.f32 %v1026, %v905
        %v1028 = vmul.f32 %v1026, %v906
        %1031 = vrot.lane.b32.xlu0 %v1027, 127
        %v1032 = vpop.permute.xlu0 %1031
        %1033 = vrot.lane.b32.xlu0 %v1028, 127
        %v1034 = vpop.permute.xlu0 %1033
        %v1037 = vadd.f32 %v941, %v1032
        %v1038 = vadd.f32 %v942, %v1034
        %s1039 = sld [smem:[#allocation9 + $0x46]]
        %v1040 = vstv %s1039
        %v1041 = vmul.f32 %v1040, %v905
        %v1042 = vmul.f32 %v1040, %v906
        %1045 = vrot.lane.b32.xlu0 %v1041, 127
        %v1046 = vpop.permute.xlu0 %1045
        %1047 = vrot.lane.b32.xlu0 %v1042, 127
        %v1048 = vpop.permute.xlu0 %1047
        %v1051 = vadd.f32 %v947, %v1046
        %v1052 = vadd.f32 %v948, %v1048
        %s1053 = sld [smem:[#allocation9 + $0x47]]
        %v1054 = vstv %s1053
        %v1055 = vmul.f32 %v1054, %v905
        %v1056 = vmul.f32 %v1054, %v906
        %1059 = vrot.lane.b32.xlu0 %v1055, 127
        %v1060 = vpop.permute.xlu0 %1059
        %1061 = vrot.lane.b32.xlu0 %v1056, 127
        %v1062 = vpop.permute.xlu0 %1061
        %v1065 = vadd.f32 %v953, %v1060
        %v1066 = vadd.f32 %v954, %v1062
        %s1067 = sld [smem:[#allocation9 + $0x50]]
        %v1068 = vstv %s1067
        %v1069 = vmul.f32 %v1068, %v905
        %v1070 = vmul.f32 %v1068, %v906
        %1073 = vrot.lane.b32.xlu0 %v1069, 126
        %v1074 = vpop.permute.xlu0 %1073
        %1075 = vrot.lane.b32.xlu0 %v1070, 126
        %v1076 = vpop.permute.xlu0 %1075
        %v1079 = vadd.f32 %v967, %v1074
        %v1080 = vadd.f32 %v968, %v1076
        %s1081 = sld [smem:[#allocation9 + $0x51]]
        %v1082 = vstv %s1081
        %v1083 = vmul.f32 %v1082, %v905
        %v1084 = vmul.f32 %v1082, %v906
        %1087 = vrot.lane.b32.xlu0 %v1083, 126
        %v1088 = vpop.permute.xlu0 %1087
        %1089 = vrot.lane.b32.xlu0 %v1084, 126
        %v1090 = vpop.permute.xlu0 %1089
        %v1093 = vadd.f32 %v981, %v1088
        %v1094 = vadd.f32 %v982, %v1090
        %s1095 = sld [smem:[#allocation9 + $0x52]]
        %v1096 = vstv %s1095
        %v1097 = vmul.f32 %v1096, %v905
        %v1098 = vmul.f32 %v1096, %v906
        %1101 = vrot.lane.b32.xlu0 %v1097, 126
        %v1102 = vpop.permute.xlu0 %1101
        %1103 = vrot.lane.b32.xlu0 %v1098, 126
        %v1104 = vpop.permute.xlu0 %1103
        %v1107 = vadd.f32 %v995, %v1102
        %v1108 = vadd.f32 %v996, %v1104
        %s1109 = sld [smem:[#allocation9 + $0x53]]
        %v1110 = vstv %s1109
        %v1111 = vmul.f32 %v1110, %v905
        %v1112 = vmul.f32 %v1110, %v906
        %1115 = vrot.lane.b32.xlu0 %v1111, 126
        %v1116 = vpop.permute.xlu0 %1115
        %1117 = vrot.lane.b32.xlu0 %v1112, 126
        %v1118 = vpop.permute.xlu0 %1117
        %v1121 = vadd.f32 %v1009, %v1116
        %v1122 = vadd.f32 %v1010, %v1118
        %s1123 = sld [smem:[#allocation9 + $0x54]]
        %v1124 = vstv %s1123
        %v1125 = vmul.f32 %v1124, %v905
        %v1126 = vmul.f32 %v1124, %v906
        %1129 = vrot.lane.b32.xlu0 %v1125, 126
        %v1130 = vpop.permute.xlu0 %1129
        %1131 = vrot.lane.b32.xlu0 %v1126, 126
        %v1132 = vpop.permute.xlu0 %1131
        %v1135 = vadd.f32 %v1023, %v1130
        %v1136 = vadd.f32 %v1024, %v1132
        %s1137 = sld [smem:[#allocation9 + $0x55]]
        %v1138 = vstv %s1137
        %v1139 = vmul.f32 %v1138, %v905
        %v1140 = vmul.f32 %v1138, %v906
        %1143 = vrot.lane.b32.xlu0 %v1139, 126
        %v1144 = vpop.permute.xlu0 %1143
        %1145 = vrot.lane.b32.xlu0 %v1140, 126
        %v1146 = vpop.permute.xlu0 %1145
        %v1149 = vadd.f32 %v1037, %v1144
        %v1150 = vadd.f32 %v1038, %v1146
        %s1151 = sld [smem:[#allocation9 + $0x56]]
        %v1152 = vstv %s1151
        %v1153 = vmul.f32 %v1152, %v905
        %v1154 = vmul.f32 %v1152, %v906
        %1157 = vrot.lane.b32.xlu0 %v1153, 126
        %v1158 = vpop.permute.xlu0 %1157
        %1159 = vrot.lane.b32.xlu0 %v1154, 126
        %v1160 = vpop.permute.xlu0 %1159
        %v1163 = vadd.f32 %v1051, %v1158
        %v1164 = vadd.f32 %v1052, %v1160
        %s1165 = sld [smem:[#allocation9 + $0x57]]
        %v1166 = vstv %s1165
        %v1167 = vmul.f32 %v1166, %v905
        %v1168 = vmul.f32 %v1166, %v906
        %1171 = vrot.lane.b32.xlu0 %v1167, 126
        %v1172 = vpop.permute.xlu0 %1171
        %1173 = vrot.lane.b32.xlu0 %v1168, 126
        %v1174 = vpop.permute.xlu0 %1173
        %v1177 = vadd.f32 %v1065, %v1172
        %v1178 = vadd.f32 %v1066, %v1174
        %v1179 = vld [vmem:[#allocation2 + $0x2] sm:$0xff]
        %v1180 = vld [vmem:[#allocation2 + $0xa] sm:$0xff]
        %s1181 = sld [smem:[#allocation9 + $0x60]]
        %v1182 = vstv %s1181
        %v1183 = vmul.f32 %v1182, %v1179
        %v1184 = vmul.f32 %v1182, %v1180
        %v1185 = vadd.f32 %v1079, %v1183
        %v1186 = vadd.f32 %v1080, %v1184
        %s1187 = sld [smem:[#allocation9 + $0x61]]
        %v1188 = vstv %s1187
        %v1189 = vmul.f32 %v1188, %v1179
        %v1190 = vmul.f32 %v1188, %v1180
        %v1191 = vadd.f32 %v1093, %v1189
        %v1192 = vadd.f32 %v1094, %v1190
        %s1193 = sld [smem:[#allocation9 + $0x62]]
        %v1194 = vstv %s1193
        %v1195 = vmul.f32 %v1194, %v1179
        %v1196 = vmul.f32 %v1194, %v1180
        %v1197 = vadd.f32 %v1107, %v1195
        %v1198 = vadd.f32 %v1108, %v1196
        %s1199 = sld [smem:[#allocation9 + $0x63]]
        %v1200 = vstv %s1199
        %v1201 = vmul.f32 %v1200, %v1179
        %v1202 = vmul.f32 %v1200, %v1180
        %v1203 = vadd.f32 %v1121, %v1201
        %v1204 = vadd.f32 %v1122, %v1202
        %s1205 = sld [smem:[#allocation9 + $0x64]]
        %v1206 = vstv %s1205
        %v1207 = vmul.f32 %v1206, %v1179
        %v1208 = vmul.f32 %v1206, %v1180
        %v1209 = vadd.f32 %v1135, %v1207
        %v1210 = vadd.f32 %v1136, %v1208
        %s1211 = sld [smem:[#allocation9 + $0x65]]
        %v1212 = vstv %s1211
        %v1213 = vmul.f32 %v1212, %v1179
        %v1214 = vmul.f32 %v1212, %v1180
        %v1215 = vadd.f32 %v1149, %v1213
        %v1216 = vadd.f32 %v1150, %v1214
        %s1217 = sld [smem:[#allocation9 + $0x66]]
        %v1218 = vstv %s1217
        %v1219 = vmul.f32 %v1218, %v1179
        %v1220 = vmul.f32 %v1218, %v1180
        %v1221 = vadd.f32 %v1163, %v1219
        %v1222 = vadd.f32 %v1164, %v1220
        %s1223 = sld [smem:[#allocation9 + $0x67]]
        %v1224 = vstv %s1223
        %v1225 = vmul.f32 %v1224, %v1179
        %v1226 = vmul.f32 %v1224, %v1180
        %v1227 = vadd.f32 %v1177, %v1225
        %v1228 = vadd.f32 %v1178, %v1226
        %s1229 = sld [smem:[#allocation9 + $0x70]]
        %v1230 = vstv %s1229
        %v1231 = vmul.f32 %v1230, %v1179
        %v1232 = vmul.f32 %v1230, %v1180
        %1235 = vrot.lane.b32.xlu0 %v1231, 127
        %v1236 = vpop.permute.xlu0 %1235
        %1237 = vrot.lane.b32.xlu0 %v1232, 127
        %v1238 = vpop.permute.xlu0 %1237
        %v1241 = vadd.f32 %v1185, %v1236
        %v1242 = vadd.f32 %v1186, %v1238
        %s1243 = sld [smem:[#allocation9 + $0x71]]
        %v1244 = vstv %s1243
        %v1245 = vmul.f32 %v1244, %v1179
        %v1246 = vmul.f32 %v1244, %v1180
        %1249 = vrot.lane.b32.xlu0 %v1245, 127
        %v1250 = vpop.permute.xlu0 %1249
        %1251 = vrot.lane.b32.xlu0 %v1246, 127
        %v1252 = vpop.permute.xlu0 %1251
        %v1255 = vadd.f32 %v1191, %v1250
        %v1256 = vadd.f32 %v1192, %v1252
        %s1257 = sld [smem:[#allocation9 + $0x72]]
        %v1258 = vstv %s1257
        %v1259 = vmul.f32 %v1258, %v1179
        %v1260 = vmul.f32 %v1258, %v1180
        %1263 = vrot.lane.b32.xlu0 %v1259, 127
        %v1264 = vpop.permute.xlu0 %1263
        %1265 = vrot.lane.b32.xlu0 %v1260, 127
        %v1266 = vpop.permute.xlu0 %1265
        %v1269 = vadd.f32 %v1197, %v1264
        %v1270 = vadd.f32 %v1198, %v1266
        %s1271 = sld [smem:[#allocation9 + $0x73]]
        %v1272 = vstv %s1271
        %v1273 = vmul.f32 %v1272, %v1179
        %v1274 = vmul.f32 %v1272, %v1180
        %1277 = vrot.lane.b32.xlu0 %v1273, 127
        %v1278 = vpop.permute.xlu0 %1277
        %1279 = vrot.lane.b32.xlu0 %v1274, 127
        %v1280 = vpop.permute.xlu0 %1279
        %v1283 = vadd.f32 %v1203, %v1278
        %v1284 = vadd.f32 %v1204, %v1280
        %s1285 = sld [smem:[#allocation9 + $0x74]]
        %v1286 = vstv %s1285
        %v1287 = vmul.f32 %v1286, %v1179
        %v1288 = vmul.f32 %v1286, %v1180
        %1291 = vrot.lane.b32.xlu0 %v1287, 127
        %v1292 = vpop.permute.xlu0 %1291
        %1293 = vrot.lane.b32.xlu0 %v1288, 127
        %v1294 = vpop.permute.xlu0 %1293
        %v1297 = vadd.f32 %v1209, %v1292
        %v1298 = vadd.f32 %v1210, %v1294
        %s1299 = sld [smem:[#allocation9 + $0x75]]
        %v1300 = vstv %s1299
        %v1301 = vmul.f32 %v1300, %v1179
        %v1302 = vmul.f32 %v1300, %v1180
        %1305 = vrot.lane.b32.xlu0 %v1301, 127
        %v1306 = vpop.permute.xlu0 %1305
        %1307 = vrot.lane.b32.xlu0 %v1302, 127
        %v1308 = vpop.permute.xlu0 %1307
        %v1311 = vadd.f32 %v1215, %v1306
        %v1312 = vadd.f32 %v1216, %v1308
        %s1313 = sld [smem:[#allocation9 + $0x76]]
        %v1314 = vstv %s1313
        %v1315 = vmul.f32 %v1314, %v1179
        %v1316 = vmul.f32 %v1314, %v1180
        %1319 = vrot.lane.b32.xlu0 %v1315, 127
        %v1320 = vpop.permute.xlu0 %1319
        %1321 = vrot.lane.b32.xlu0 %v1316, 127
        %v1322 = vpop.permute.xlu0 %1321
        %v1325 = vadd.f32 %v1221, %v1320
        %v1326 = vadd.f32 %v1222, %v1322
        %s1327 = sld [smem:[#allocation9 + $0x77]]
        %v1328 = vstv %s1327
        %v1329 = vmul.f32 %v1328, %v1179
        %v1330 = vmul.f32 %v1328, %v1180
        %1333 = vrot.lane.b32.xlu0 %v1329, 127
        %v1334 = vpop.permute.xlu0 %1333
        %1335 = vrot.lane.b32.xlu0 %v1330, 127
        %v1336 = vpop.permute.xlu0 %1335
        %v1339 = vadd.f32 %v1227, %v1334
        %v1340 = vadd.f32 %v1228, %v1336
        %s1341 = sld [smem:[#allocation9 + $0x80]]
        %v1342 = vstv %s1341
        %v1343 = vmul.f32 %v1342, %v1179
        %v1344 = vmul.f32 %v1342, %v1180
        %1347 = vrot.lane.b32.xlu0 %v1343, 126
        %v1348 = vpop.permute.xlu0 %1347
        %1349 = vrot.lane.b32.xlu0 %v1344, 126
        %v1350 = vpop.permute.xlu0 %1349
        %v1353 = vadd.f32 %v1241, %v1348
        %v1354 = vadd.f32 %v1242, %v1350
        %s1355 = sld [smem:[#allocation9 + $0x81]]
        %v1356 = vstv %s1355
        %v1357 = vmul.f32 %v1356, %v1179
        %v1358 = vmul.f32 %v1356, %v1180
        %1361 = vrot.lane.b32.xlu0 %v1357, 126
        %v1362 = vpop.permute.xlu0 %1361
        %1363 = vrot.lane.b32.xlu0 %v1358, 126
        %v1364 = vpop.permute.xlu0 %1363
        %v1367 = vadd.f32 %v1255, %v1362
        %v1368 = vadd.f32 %v1256, %v1364
        %s1369 = sld [smem:[#allocation9 + $0x82]]
        %v1370 = vstv %s1369
        %v1371 = vmul.f32 %v1370, %v1179
        %v1372 = vmul.f32 %v1370, %v1180
        %1375 = vrot.lane.b32.xlu0 %v1371, 126
        %v1376 = vpop.permute.xlu0 %1375
        %1377 = vrot.lane.b32.xlu0 %v1372, 126
        %v1378 = vpop.permute.xlu0 %1377
        %v1381 = vadd.f32 %v1269, %v1376
        %v1382 = vadd.f32 %v1270, %v1378
        %s1383 = sld [smem:[#allocation9 + $0x83]]
        %v1384 = vstv %s1383
        %v1385 = vmul.f32 %v1384, %v1179
        %v1386 = vmul.f32 %v1384, %v1180
        %1389 = vrot.lane.b32.xlu0 %v1385, 126
        %v1390 = vpop.permute.xlu0 %1389
        %1391 = vrot.lane.b32.xlu0 %v1386, 126
        %v1392 = vpop.permute.xlu0 %1391
        %v1395 = vadd.f32 %v1283, %v1390
        %v1396 = vadd.f32 %v1284, %v1392
        %s1397 = sld [smem:[#allocation9 + $0x84]]
        %v1398 = vstv %s1397
        %v1399 = vmul.f32 %v1398, %v1179
        %v1400 = vmul.f32 %v1398, %v1180
        %1403 = vrot.lane.b32.xlu0 %v1399, 126
        %v1404 = vpop.permute.xlu0 %1403
        %1405 = vrot.lane.b32.xlu0 %v1400, 126
        %v1406 = vpop.permute.xlu0 %1405
        %v1409 = vadd.f32 %v1297, %v1404
        %v1410 = vadd.f32 %v1298, %v1406
        %s1411 = sld [smem:[#allocation9 + $0x85]]
        %v1412 = vstv %s1411
        %v1413 = vmul.f32 %v1412, %v1179
        %v1414 = vmul.f32 %v1412, %v1180
        %1417 = vrot.lane.b32.xlu0 %v1413, 126
        %v1418 = vpop.permute.xlu0 %1417
        %1419 = vrot.lane.b32.xlu0 %v1414, 126
        %v1420 = vpop.permute.xlu0 %1419
        %v1423 = vadd.f32 %v1311, %v1418
        %v1424 = vadd.f32 %v1312, %v1420
        %s1425 = sld [smem:[#allocation9 + $0x86]]
        %v1426 = vstv %s1425
        %v1427 = vmul.f32 %v1426, %v1179
        %v1428 = vmul.f32 %v1426, %v1180
        %1431 = vrot.lane.b32.xlu0 %v1427, 126
        %v1432 = vpop.permute.xlu0 %1431
        %1433 = vrot.lane.b32.xlu0 %v1428, 126
        %v1434 = vpop.permute.xlu0 %1433
        %v1437 = vadd.f32 %v1325, %v1432
        %v1438 = vadd.f32 %v1326, %v1434
        %s1439 = sld [smem:[#allocation9 + $0x87]]
        %v1440 = vstv %s1439
        %v1441 = vmul.f32 %v1440, %v1179
        %v1442 = vmul.f32 %v1440, %v1180
        %1445 = vrot.lane.b32.xlu0 %v1441, 126
        %v1446 = vpop.permute.xlu0 %1445
        %1447 = vrot.lane.b32.xlu0 %v1442, 126
        %v1448 = vpop.permute.xlu0 %1447
        %v1451 = vadd.f32 %v1339, %v1446
        %v1452 = vadd.f32 %v1340, %v1448
        %v1453 = vld [vmem:[%s644] sm:$0xff]
        %v1454 = vld [vmem:[%s644 + $0x8] sm:$0xff]
        %s1455 = sld [smem:[#allocation9 + $0x8]]
        %v1456 = vstv %s1455
        %v1457 = vmul.f32 %v1456, %v1453
        %v1458 = vmul.f32 %v1456, %v1454
        %v1459 = vadd.f32 %v1353, %v1457
        %v1460 = vadd.f32 %v1354, %v1458
        %s1461 = sld [smem:[#allocation9 + $0x9]]
        %v1462 = vstv %s1461
        %v1463 = vmul.f32 %v1462, %v1453
        %v1464 = vmul.f32 %v1462, %v1454
        %v1465 = vadd.f32 %v1367, %v1463
        %v1466 = vadd.f32 %v1368, %v1464
        %s1467 = sld [smem:[#allocation9 + $0xa]]
        %v1468 = vstv %s1467
        %v1469 = vmul.f32 %v1468, %v1453
        %v1470 = vmul.f32 %v1468, %v1454
        %v1471 = vadd.f32 %v1381, %v1469
        %v1472 = vadd.f32 %v1382, %v1470
        %s1473 = sld [smem:[#allocation9 + $0xb]]
        %v1474 = vstv %s1473
        %v1475 = vmul.f32 %v1474, %v1453
        %v1476 = vmul.f32 %v1474, %v1454
        %v1477 = vadd.f32 %v1395, %v1475
        %v1478 = vadd.f32 %v1396, %v1476
        %s1479 = sld [smem:[#allocation9 + $0xc]]
        %v1480 = vstv %s1479
        %v1481 = vmul.f32 %v1480, %v1453
        %v1482 = vmul.f32 %v1480, %v1454
        %v1483 = vadd.f32 %v1409, %v1481
        %v1484 = vadd.f32 %v1410, %v1482
        %s1485 = sld [smem:[#allocation9 + $0xd]]
        %v1486 = vstv %s1485
        %v1487 = vmul.f32 %v1486, %v1453
        %v1488 = vmul.f32 %v1486, %v1454
        %v1489 = vadd.f32 %v1423, %v1487
        %v1490 = vadd.f32 %v1424, %v1488
        %s1491 = sld [smem:[#allocation9 + $0xe]]
        %v1492 = vstv %s1491
        %v1493 = vmul.f32 %v1492, %v1453
        %v1494 = vmul.f32 %v1492, %v1454
        %v1495 = vadd.f32 %v1437, %v1493
        %v1496 = vadd.f32 %v1438, %v1494
        %s1497 = sld [smem:[#allocation9 + $0xf]]
        %v1498 = vstv %s1497
        %v1499 = vmul.f32 %v1498, %v1453
        %v1500 = vmul.f32 %v1498, %v1454
        %v1501 = vadd.f32 %v1451, %v1499
        %v1502 = vadd.f32 %v1452, %v1500
        %s1503 = sld [smem:[#allocation9 + $0x18]]
        %v1504 = vstv %s1503
        %v1505 = vmul.f32 %v1504, %v1453
        %v1506 = vmul.f32 %v1504, %v1454
        %1509 = vrot.lane.b32.xlu0 %v1505, 127
        %v1510 = vpop.permute.xlu0 %1509
        %1511 = vrot.lane.b32.xlu0 %v1506, 127
        %v1512 = vpop.permute.xlu0 %1511
        %v1515 = vadd.f32 %v1459, %v1510
        %v1516 = vadd.f32 %v1460, %v1512
        %s1517 = sld [smem:[#allocation9 + $0x19]]
        %v1518 = vstv %s1517
        %v1519 = vmul.f32 %v1518, %v1453
        %v1520 = vmul.f32 %v1518, %v1454
        %1523 = vrot.lane.b32.xlu0 %v1519, 127
        %v1524 = vpop.permute.xlu0 %1523
        %1525 = vrot.lane.b32.xlu0 %v1520, 127
        %v1526 = vpop.permute.xlu0 %1525
        %v1529 = vadd.f32 %v1465, %v1524
        %v1530 = vadd.f32 %v1466, %v1526
        %s1531 = sld [smem:[#allocation9 + $0x1a]]
        %v1532 = vstv %s1531
        %v1533 = vmul.f32 %v1532, %v1453
        %v1534 = vmul.f32 %v1532, %v1454
        %1537 = vrot.lane.b32.xlu0 %v1533, 127
        %v1538 = vpop.permute.xlu0 %1537
        %1539 = vrot.lane.b32.xlu0 %v1534, 127
        %v1540 = vpop.permute.xlu0 %1539
        %v1543 = vadd.f32 %v1471, %v1538
        %v1544 = vadd.f32 %v1472, %v1540
        %s1545 = sld [smem:[#allocation9 + $0x1b]]
        %v1546 = vstv %s1545
        %v1547 = vmul.f32 %v1546, %v1453
        %v1548 = vmul.f32 %v1546, %v1454
        %1551 = vrot.lane.b32.xlu0 %v1547, 127
        %v1552 = vpop.permute.xlu0 %1551
        %1553 = vrot.lane.b32.xlu0 %v1548, 127
        %v1554 = vpop.permute.xlu0 %1553
        %v1557 = vadd.f32 %v1477, %v1552
        %v1558 = vadd.f32 %v1478, %v1554
        %s1559 = sld [smem:[#allocation9 + $0x1c]]
        %v1560 = vstv %s1559
        %v1561 = vmul.f32 %v1560, %v1453
        %v1562 = vmul.f32 %v1560, %v1454
        %1565 = vrot.lane.b32.xlu0 %v1561, 127
        %v1566 = vpop.permute.xlu0 %1565
        %1567 = vrot.lane.b32.xlu0 %v1562, 127
        %v1568 = vpop.permute.xlu0 %1567
        %v1571 = vadd.f32 %v1483, %v1566
        %v1572 = vadd.f32 %v1484, %v1568
        %s1573 = sld [smem:[#allocation9 + $0x1d]]
        %v1574 = vstv %s1573
        %v1575 = vmul.f32 %v1574, %v1453
        %v1576 = vmul.f32 %v1574, %v1454
        %1579 = vrot.lane.b32.xlu0 %v1575, 127
        %v1580 = vpop.permute.xlu0 %1579
        %1581 = vrot.lane.b32.xlu0 %v1576, 127
        %v1582 = vpop.permute.xlu0 %1581
        %v1585 = vadd.f32 %v1489, %v1580
        %v1586 = vadd.f32 %v1490, %v1582
        %s1587 = sld [smem:[#allocation9 + $0x1e]]
        %v1588 = vstv %s1587
        %v1589 = vmul.f32 %v1588, %v1453
        %v1590 = vmul.f32 %v1588, %v1454
        %1593 = vrot.lane.b32.xlu0 %v1589, 127
        %v1594 = vpop.permute.xlu0 %1593
        %1595 = vrot.lane.b32.xlu0 %v1590, 127
        %v1596 = vpop.permute.xlu0 %1595
        %v1599 = vadd.f32 %v1495, %v1594
        %v1600 = vadd.f32 %v1496, %v1596
        %s1601 = sld [smem:[#allocation9 + $0x1f]]
        %v1602 = vstv %s1601
        %v1603 = vmul.f32 %v1602, %v1453
        %v1604 = vmul.f32 %v1602, %v1454
        %1607 = vrot.lane.b32.xlu0 %v1603, 127
        %v1608 = vpop.permute.xlu0 %1607
        %1609 = vrot.lane.b32.xlu0 %v1604, 127
        %v1610 = vpop.permute.xlu0 %1609
        %v1613 = vadd.f32 %v1501, %v1608
        %v1614 = vadd.f32 %v1502, %v1610
        %s1615 = sld [smem:[#allocation9 + $0x28]]
        %v1616 = vstv %s1615
        %v1617 = vmul.f32 %v1616, %v1453
        %v1618 = vmul.f32 %v1616, %v1454
        %1621 = vrot.lane.b32.xlu0 %v1617, 126
        %v1622 = vpop.permute.xlu0 %1621
        %1623 = vrot.lane.b32.xlu0 %v1618, 126
        %v1624 = vpop.permute.xlu0 %1623
        %v1627 = vadd.f32 %v1515, %v1622
        %v1628 = vadd.f32 %v1516, %v1624
        %s1629 = sld [smem:[#allocation9 + $0x29]]
        %v1630 = vstv %s1629
        %v1631 = vmul.f32 %v1630, %v1453
        %v1632 = vmul.f32 %v1630, %v1454
        %1635 = vrot.lane.b32.xlu0 %v1631, 126
        %v1636 = vpop.permute.xlu0 %1635
        %1637 = vrot.lane.b32.xlu0 %v1632, 126
        %v1638 = vpop.permute.xlu0 %1637
        %v1641 = vadd.f32 %v1529, %v1636
        %v1642 = vadd.f32 %v1530, %v1638
        %s1643 = sld [smem:[#allocation9 + $0x2a]]
        %v1644 = vstv %s1643
        %v1645 = vmul.f32 %v1644, %v1453
        %v1646 = vmul.f32 %v1644, %v1454
        %1649 = vrot.lane.b32.xlu0 %v1645, 126
        %v1650 = vpop.permute.xlu0 %1649
        %1651 = vrot.lane.b32.xlu0 %v1646, 126
        %v1652 = vpop.permute.xlu0 %1651
        %v1655 = vadd.f32 %v1543, %v1650
        %v1656 = vadd.f32 %v1544, %v1652
        %s1657 = sld [smem:[#allocation9 + $0x2b]]
        %v1658 = vstv %s1657
        %v1659 = vmul.f32 %v1658, %v1453
        %v1660 = vmul.f32 %v1658, %v1454
        %1663 = vrot.lane.b32.xlu0 %v1659, 126
        %v1664 = vpop.permute.xlu0 %1663
        %1665 = vrot.lane.b32.xlu0 %v1660, 126
        %v1666 = vpop.permute.xlu0 %1665
        %v1669 = vadd.f32 %v1557, %v1664
        %v1670 = vadd.f32 %v1558, %v1666
        %s1671 = sld [smem:[#allocation9 + $0x2c]]
        %v1672 = vstv %s1671
        %v1673 = vmul.f32 %v1672, %v1453
        %v1674 = vmul.f32 %v1672, %v1454
        %1677 = vrot.lane.b32.xlu0 %v1673, 126
        %v1678 = vpop.permute.xlu0 %1677
        %1679 = vrot.lane.b32.xlu0 %v1674, 126
        %v1680 = vpop.permute.xlu0 %1679
        %v1683 = vadd.f32 %v1571, %v1678
        %v1684 = vadd.f32 %v1572, %v1680
        %s1685 = sld [smem:[#allocation9 + $0x2d]]
        %v1686 = vstv %s1685
        %v1687 = vmul.f32 %v1686, %v1453
        %v1688 = vmul.f32 %v1686, %v1454
        %1691 = vrot.lane.b32.xlu0 %v1687, 126
        %v1692 = vpop.permute.xlu0 %1691
        %1693 = vrot.lane.b32.xlu0 %v1688, 126
        %v1694 = vpop.permute.xlu0 %1693
        %v1697 = vadd.f32 %v1585, %v1692
        %v1698 = vadd.f32 %v1586, %v1694
        %s1699 = sld [smem:[#allocation9 + $0x2e]]
        %v1700 = vstv %s1699
        %v1701 = vmul.f32 %v1700, %v1453
        %v1702 = vmul.f32 %v1700, %v1454
        %1705 = vrot.lane.b32.xlu0 %v1701, 126
        %v1706 = vpop.permute.xlu0 %1705
        %1707 = vrot.lane.b32.xlu0 %v1702, 126
        %v1708 = vpop.permute.xlu0 %1707
        %v1711 = vadd.f32 %v1599, %v1706
        %v1712 = vadd.f32 %v1600, %v1708
        %s1713 = sld [smem:[#allocation9 + $0x2f]]
        %v1714 = vstv %s1713
        %v1715 = vmul.f32 %v1714, %v1453
        %v1716 = vmul.f32 %v1714, %v1454
        %1719 = vrot.lane.b32.xlu0 %v1715, 126
        %v1720 = vpop.permute.xlu0 %1719
        %1721 = vrot.lane.b32.xlu0 %v1716, 126
        %v1722 = vpop.permute.xlu0 %1721
        %v1725 = vadd.f32 %v1613, %v1720
        %v1726 = vadd.f32 %v1614, %v1722
        %v1727 = vld [vmem:[%s644 + $0x1] sm:$0xff]
        %v1728 = vld [vmem:[%s644 + $0x9] sm:$0xff]
        %s1729 = sld [smem:[#allocation9 + $0x38]]
        %v1730 = vstv %s1729
        %v1731 = vmul.f32 %v1730, %v1727
        %v1732 = vmul.f32 %v1730, %v1728
        %v1733 = vadd.f32 %v1627, %v1731
        %v1734 = vadd.f32 %v1628, %v1732
        %s1735 = sld [smem:[#allocation9 + $0x39]]
        %v1736 = vstv %s1735
        %v1737 = vmul.f32 %v1736, %v1727
        %v1738 = vmul.f32 %v1736, %v1728
        %v1739 = vadd.f32 %v1641, %v1737
        %v1740 = vadd.f32 %v1642, %v1738
        %s1741 = sld [smem:[#allocation9 + $0x3a]]
        %v1742 = vstv %s1741
        %v1743 = vmul.f32 %v1742, %v1727
        %v1744 = vmul.f32 %v1742, %v1728
        %v1745 = vadd.f32 %v1655, %v1743
        %v1746 = vadd.f32 %v1656, %v1744
        %s1747 = sld [smem:[#allocation9 + $0x3b]]
        %v1748 = vstv %s1747
        %v1749 = vmul.f32 %v1748, %v1727
        %v1750 = vmul.f32 %v1748, %v1728
        %v1751 = vadd.f32 %v1669, %v1749
        %v1752 = vadd.f32 %v1670, %v1750
        %s1753 = sld [smem:[#allocation9 + $0x3c]]
        %v1754 = vstv %s1753
        %v1755 = vmul.f32 %v1754, %v1727
        %v1756 = vmul.f32 %v1754, %v1728
        %v1757 = vadd.f32 %v1683, %v1755
        %v1758 = vadd.f32 %v1684, %v1756
        %s1759 = sld [smem:[#allocation9 + $0x3d]]
        %v1760 = vstv %s1759
        %v1761 = vmul.f32 %v1760, %v1727
        %v1762 = vmul.f32 %v1760, %v1728
        %v1763 = vadd.f32 %v1697, %v1761
        %v1764 = vadd.f32 %v1698, %v1762
        %s1765 = sld [smem:[#allocation9 + $0x3e]]
        %v1766 = vstv %s1765
        %v1767 = vmul.f32 %v1766, %v1727
        %v1768 = vmul.f32 %v1766, %v1728
        %v1769 = vadd.f32 %v1711, %v1767
        %v1770 = vadd.f32 %v1712, %v1768
        %s1771 = sld [smem:[#allocation9 + $0x3f]]
        %v1772 = vstv %s1771
        %v1773 = vmul.f32 %v1772, %v1727
        %v1774 = vmul.f32 %v1772, %v1728
        %v1775 = vadd.f32 %v1725, %v1773
        %v1776 = vadd.f32 %v1726, %v1774
        %s1777 = sld [smem:[#allocation9 + $0x48]]
        %v1778 = vstv %s1777
        %v1779 = vmul.f32 %v1778, %v1727
        %v1780 = vmul.f32 %v1778, %v1728
        %1783 = vrot.lane.b32.xlu0 %v1779, 127
        %v1784 = vpop.permute.xlu0 %1783
        %1785 = vrot.lane.b32.xlu0 %v1780, 127
        %v1786 = vpop.permute.xlu0 %1785
        %v1789 = vadd.f32 %v1733, %v1784
        %v1790 = vadd.f32 %v1734, %v1786
        %s1791 = sld [smem:[#allocation9 + $0x49]]
        %v1792 = vstv %s1791
        %v1793 = vmul.f32 %v1792, %v1727
        %v1794 = vmul.f32 %v1792, %v1728
        %1797 = vrot.lane.b32.xlu0 %v1793, 127
        %v1798 = vpop.permute.xlu0 %1797
        %1799 = vrot.lane.b32.xlu0 %v1794, 127
        %v1800 = vpop.permute.xlu0 %1799
        %v1803 = vadd.f32 %v1739, %v1798
        %v1804 = vadd.f32 %v1740, %v1800
        %s1805 = sld [smem:[#allocation9 + $0x4a]]
        %v1806 = vstv %s1805
        %v1807 = vmul.f32 %v1806, %v1727
        %v1808 = vmul.f32 %v1806, %v1728
        %1811 = vrot.lane.b32.xlu0 %v1807, 127
        %v1812 = vpop.permute.xlu0 %1811
        %1813 = vrot.lane.b32.xlu0 %v1808, 127
        %v1814 = vpop.permute.xlu0 %1813
        %v1817 = vadd.f32 %v1745, %v1812
        %v1818 = vadd.f32 %v1746, %v1814
        %s1819 = sld [smem:[#allocation9 + $0x4b]]
        %v1820 = vstv %s1819
        %v1821 = vmul.f32 %v1820, %v1727
        %v1822 = vmul.f32 %v1820, %v1728
        %1825 = vrot.lane.b32.xlu0 %v1821, 127
        %v1826 = vpop.permute.xlu0 %1825
        %1827 = vrot.lane.b32.xlu0 %v1822, 127
        %v1828 = vpop.permute.xlu0 %1827
        %v1831 = vadd.f32 %v1751, %v1826
        %v1832 = vadd.f32 %v1752, %v1828
        %s1833 = sld [smem:[#allocation9 + $0x4c]]
        %v1834 = vstv %s1833
        %v1835 = vmul.f32 %v1834, %v1727
        %v1836 = vmul.f32 %v1834, %v1728
        %1839 = vrot.lane.b32.xlu0 %v1835, 127
        %v1840 = vpop.permute.xlu0 %1839
        %1841 = vrot.lane.b32.xlu0 %v1836, 127
        %v1842 = vpop.permute.xlu0 %1841
        %v1845 = vadd.f32 %v1757, %v1840
        %v1846 = vadd.f32 %v1758, %v1842
        %s1847 = sld [smem:[#allocation9 + $0x4d]]
        %v1848 = vstv %s1847
        %v1849 = vmul.f32 %v1848, %v1727
        %v1850 = vmul.f32 %v1848, %v1728
        %1853 = vrot.lane.b32.xlu0 %v1849, 127
        %v1854 = vpop.permute.xlu0 %1853
        %1855 = vrot.lane.b32.xlu0 %v1850, 127
        %v1856 = vpop.permute.xlu0 %1855
        %v1859 = vadd.f32 %v1763, %v1854
        %v1860 = vadd.f32 %v1764, %v1856
        %s1861 = sld [smem:[#allocation9 + $0x4e]]
        %v1862 = vstv %s1861
        %v1863 = vmul.f32 %v1862, %v1727
        %v1864 = vmul.f32 %v1862, %v1728
        %1867 = vrot.lane.b32.xlu0 %v1863, 127
        %v1868 = vpop.permute.xlu0 %1867
        %1869 = vrot.lane.b32.xlu0 %v1864, 127
        %v1870 = vpop.permute.xlu0 %1869
        %v1873 = vadd.f32 %v1769, %v1868
        %v1874 = vadd.f32 %v1770, %v1870
        %s1875 = sld [smem:[#allocation9 + $0x4f]]
        %v1876 = vstv %s1875
        %v1877 = vmul.f32 %v1876, %v1727
        %v1878 = vmul.f32 %v1876, %v1728
        %1881 = vrot.lane.b32.xlu0 %v1877, 127
        %v1882 = vpop.permute.xlu0 %1881
        %1883 = vrot.lane.b32.xlu0 %v1878, 127
        %v1884 = vpop.permute.xlu0 %1883
        %v1887 = vadd.f32 %v1775, %v1882
        %v1888 = vadd.f32 %v1776, %v1884
        %s1889 = sld [smem:[#allocation9 + $0x58]]
        %v1890 = vstv %s1889
        %v1891 = vmul.f32 %v1890, %v1727
        %v1892 = vmul.f32 %v1890, %v1728
        %1895 = vrot.lane.b32.xlu0 %v1891, 126
        %v1896 = vpop.permute.xlu0 %1895
        %1897 = vrot.lane.b32.xlu0 %v1892, 126
        %v1898 = vpop.permute.xlu0 %1897
        %v1901 = vadd.f32 %v1789, %v1896
        %v1902 = vadd.f32 %v1790, %v1898
        %s1903 = sld [smem:[#allocation9 + $0x59]]
        %v1904 = vstv %s1903
        %v1905 = vmul.f32 %v1904, %v1727
        %v1906 = vmul.f32 %v1904, %v1728
        %1909 = vrot.lane.b32.xlu0 %v1905, 126
        %v1910 = vpop.permute.xlu0 %1909
        %1911 = vrot.lane.b32.xlu0 %v1906, 126
        %v1912 = vpop.permute.xlu0 %1911
        %v1915 = vadd.f32 %v1803, %v1910
        %v1916 = vadd.f32 %v1804, %v1912
        %s1917 = sld [smem:[#allocation9 + $0x5a]]
        %v1918 = vstv %s1917
        %v1919 = vmul.f32 %v1918, %v1727
        %v1920 = vmul.f32 %v1918, %v1728
        %1923 = vrot.lane.b32.xlu0 %v1919, 126
        %v1924 = vpop.permute.xlu0 %1923
        %1925 = vrot.lane.b32.xlu0 %v1920, 126
        %v1926 = vpop.permute.xlu0 %1925
        %v1929 = vadd.f32 %v1817, %v1924
        %v1930 = vadd.f32 %v1818, %v1926
        %s1931 = sld [smem:[#allocation9 + $0x5b]]
        %v1932 = vstv %s1931
        %v1933 = vmul.f32 %v1932, %v1727
        %v1934 = vmul.f32 %v1932, %v1728
        %1937 = vrot.lane.b32.xlu0 %v1933, 126
        %v1938 = vpop.permute.xlu0 %1937
        %1939 = vrot.lane.b32.xlu0 %v1934, 126
        %v1940 = vpop.permute.xlu0 %1939
        %v1943 = vadd.f32 %v1831, %v1938
        %v1944 = vadd.f32 %v1832, %v1940
        %s1945 = sld [smem:[#allocation9 + $0x5c]]
        %v1946 = vstv %s1945
        %v1947 = vmul.f32 %v1946, %v1727
        %v1948 = vmul.f32 %v1946, %v1728
        %1951 = vrot.lane.b32.xlu0 %v1947, 126
        %v1952 = vpop.permute.xlu0 %1951
        %1953 = vrot.lane.b32.xlu0 %v1948, 126
        %v1954 = vpop.permute.xlu0 %1953
        %v1957 = vadd.f32 %v1845, %v1952
        %v1958 = vadd.f32 %v1846, %v1954
        %s1959 = sld [smem:[#allocation9 + $0x5d]]
        %v1960 = vstv %s1959
        %v1961 = vmul.f32 %v1960, %v1727
        %v1962 = vmul.f32 %v1960, %v1728
        %1965 = vrot.lane.b32.xlu0 %v1961, 126
        %v1966 = vpop.permute.xlu0 %1965
        %1967 = vrot.lane.b32.xlu0 %v1962, 126
        %v1968 = vpop.permute.xlu0 %1967
        %v1971 = vadd.f32 %v1859, %v1966
        %v1972 = vadd.f32 %v1860, %v1968
        %s1973 = sld [smem:[#allocation9 + $0x5e]]
        %v1974 = vstv %s1973
        %v1975 = vmul.f32 %v1974, %v1727
        %v1976 = vmul.f32 %v1974, %v1728
        %1979 = vrot.lane.b32.xlu0 %v1975, 126
        %v1980 = vpop.permute.xlu0 %1979
        %1981 = vrot.lane.b32.xlu0 %v1976, 126
        %v1982 = vpop.permute.xlu0 %1981
        %v1985 = vadd.f32 %v1873, %v1980
        %v1986 = vadd.f32 %v1874, %v1982
        %s1987 = sld [smem:[#allocation9 + $0x5f]]
        %v1988 = vstv %s1987
        %v1989 = vmul.f32 %v1988, %v1727
        %v1990 = vmul.f32 %v1988, %v1728
        %1993 = vrot.lane.b32.xlu0 %v1989, 126
        %v1994 = vpop.permute.xlu0 %1993
        %1995 = vrot.lane.b32.xlu0 %v1990, 126
        %v1996 = vpop.permute.xlu0 %1995
        %v1999 = vadd.f32 %v1887, %v1994
        %v2000 = vadd.f32 %v1888, %v1996
        %v2001 = vld [vmem:[%s644 + $0x2] sm:$0xff]
        %v2002 = vld [vmem:[%s644 + $0xa] sm:$0xff]
        %s2003 = sld [smem:[#allocation9 + $0x68]]
        %v2004 = vstv %s2003
        %v2005 = vmul.f32 %v2004, %v2001
        %v2006 = vmul.f32 %v2004, %v2002
        %v2007 = vadd.f32 %v1901, %v2005
        %v2008 = vadd.f32 %v1902, %v2006
        %s2009 = sld [smem:[#allocation9 + $0x69]]
        %v2010 = vstv %s2009
        %v2011 = vmul.f32 %v2010, %v2001
        %v2012 = vmul.f32 %v2010, %v2002
        %v2013 = vadd.f32 %v1915, %v2011
        %v2014 = vadd.f32 %v1916, %v2012
        %s2015 = sld [smem:[#allocation9 + $0x6a]]
        %v2016 = vstv %s2015
        %v2017 = vmul.f32 %v2016, %v2001
        %v2018 = vmul.f32 %v2016, %v2002
        %v2019 = vadd.f32 %v1929, %v2017
        %v2020 = vadd.f32 %v1930, %v2018
        %s2021 = sld [smem:[#allocation9 + $0x6b]]
        %v2022 = vstv %s2021
        %v2023 = vmul.f32 %v2022, %v2001
        %v2024 = vmul.f32 %v2022, %v2002
        %v2025 = vadd.f32 %v1943, %v2023
        %v2026 = vadd.f32 %v1944, %v2024
        %s2027 = sld [smem:[#allocation9 + $0x6c]]
        %v2028 = vstv %s2027
        %v2029 = vmul.f32 %v2028, %v2001
        %v2030 = vmul.f32 %v2028, %v2002
        %v2031 = vadd.f32 %v1957, %v2029
        %v2032 = vadd.f32 %v1958, %v2030
        %s2033 = sld [smem:[#allocation9 + $0x6d]]
        %v2034 = vstv %s2033
        %v2035 = vmul.f32 %v2034, %v2001
        %v2036 = vmul.f32 %v2034, %v2002
        %v2037 = vadd.f32 %v1971, %v2035
        %v2038 = vadd.f32 %v1972, %v2036
        %s2039 = sld [smem:[#allocation9 + $0x6e]]
        %v2040 = vstv %s2039
        %v2041 = vmul.f32 %v2040, %v2001
        %v2042 = vmul.f32 %v2040, %v2002
        %v2043 = vadd.f32 %v1985, %v2041
        %v2044 = vadd.f32 %v1986, %v2042
        %s2045 = sld [smem:[#allocation9 + $0x6f]]
        %v2046 = vstv %s2045
        %v2047 = vmul.f32 %v2046, %v2001
        %v2048 = vmul.f32 %v2046, %v2002
        %v2049 = vadd.f32 %v1999, %v2047
        %v2050 = vadd.f32 %v2000, %v2048
        %s2051 = sld [smem:[#allocation9 + $0x78]]
        %v2052 = vstv %s2051
        %v2053 = vmul.f32 %v2052, %v2001
        %v2054 = vmul.f32 %v2052, %v2002
        %2057 = vrot.lane.b32.xlu0 %v2053, 127
        %v2058 = vpop.permute.xlu0 %2057
        %2059 = vrot.lane.b32.xlu0 %v2054, 127
        %v2060 = vpop.permute.xlu0 %2059
        %v2063 = vadd.f32 %v2007, %v2058
        %v2064 = vadd.f32 %v2008, %v2060
        %s2065 = sld [smem:[#allocation9 + $0x79]]
        %v2066 = vstv %s2065
        %v2067 = vmul.f32 %v2066, %v2001
        %v2068 = vmul.f32 %v2066, %v2002
        %2071 = vrot.lane.b32.xlu0 %v2067, 127
        %v2072 = vpop.permute.xlu0 %2071
        %2073 = vrot.lane.b32.xlu0 %v2068, 127
        %v2074 = vpop.permute.xlu0 %2073
        %v2077 = vadd.f32 %v2013, %v2072
        %v2078 = vadd.f32 %v2014, %v2074
        %s2079 = sld [smem:[#allocation9 + $0x7a]]
        %v2080 = vstv %s2079
        %v2081 = vmul.f32 %v2080, %v2001
        %v2082 = vmul.f32 %v2080, %v2002
        %2085 = vrot.lane.b32.xlu0 %v2081, 127
        %v2086 = vpop.permute.xlu0 %2085
        %2087 = vrot.lane.b32.xlu0 %v2082, 127
        %v2088 = vpop.permute.xlu0 %2087
        %v2091 = vadd.f32 %v2019, %v2086
        %v2092 = vadd.f32 %v2020, %v2088
        %s2093 = sld [smem:[#allocation9 + $0x7b]]
        %v2094 = vstv %s2093
        %v2095 = vmul.f32 %v2094, %v2001
        %v2096 = vmul.f32 %v2094, %v2002
        %2099 = vrot.lane.b32.xlu0 %v2095, 127
        %v2100 = vpop.permute.xlu0 %2099
        %2101 = vrot.lane.b32.xlu0 %v2096, 127
        %v2102 = vpop.permute.xlu0 %2101
        %v2105 = vadd.f32 %v2025, %v2100
        %v2106 = vadd.f32 %v2026, %v2102
        %s2107 = sld [smem:[#allocation9 + $0x7c]]
        %v2108 = vstv %s2107
        %v2109 = vmul.f32 %v2108, %v2001
        %v2110 = vmul.f32 %v2108, %v2002
        %2113 = vrot.lane.b32.xlu0 %v2109, 127
        %v2114 = vpop.permute.xlu0 %2113
        %2115 = vrot.lane.b32.xlu0 %v2110, 127
        %v2116 = vpop.permute.xlu0 %2115
        %v2119 = vadd.f32 %v2031, %v2114
        %v2120 = vadd.f32 %v2032, %v2116
        %s2121 = sld [smem:[#allocation9 + $0x7d]]
        %v2122 = vstv %s2121
        %v2123 = vmul.f32 %v2122, %v2001
        %v2124 = vmul.f32 %v2122, %v2002
        %2127 = vrot.lane.b32.xlu0 %v2123, 127
        %v2128 = vpop.permute.xlu0 %2127
        %2129 = vrot.lane.b32.xlu0 %v2124, 127
        %v2130 = vpop.permute.xlu0 %2129
        %v2133 = vadd.f32 %v2037, %v2128
        %v2134 = vadd.f32 %v2038, %v2130
        %s2135 = sld [smem:[#allocation9 + $0x7e]]
        %v2136 = vstv %s2135
        %v2137 = vmul.f32 %v2136, %v2001
        %v2138 = vmul.f32 %v2136, %v2002
        %2141 = vrot.lane.b32.xlu0 %v2137, 127
        %v2142 = vpop.permute.xlu0 %2141
        %2143 = vrot.lane.b32.xlu0 %v2138, 127
        %v2144 = vpop.permute.xlu0 %2143
        %v2147 = vadd.f32 %v2043, %v2142
        %v2148 = vadd.f32 %v2044, %v2144
        %s2149 = sld [smem:[#allocation9 + $0x7f]]
        %v2150 = vstv %s2149
        %v2151 = vmul.f32 %v2150, %v2001
        %v2152 = vmul.f32 %v2150, %v2002
        %2155 = vrot.lane.b32.xlu0 %v2151, 127
        %v2156 = vpop.permute.xlu0 %2155
        %2157 = vrot.lane.b32.xlu0 %v2152, 127
        %v2158 = vpop.permute.xlu0 %2157
        %v2161 = vadd.f32 %v2049, %v2156
        %v2162 = vadd.f32 %v2050, %v2158
        %s2163 = sld [smem:[#allocation9 + $0x88]]
        %v2164 = vstv %s2163
        %v2165 = vmul.f32 %v2164, %v2001
        %v2166 = vmul.f32 %v2164, %v2002
        %2169 = vrot.lane.b32.xlu0 %v2165, 126
        %v2170 = vpop.permute.xlu0 %2169
        %2171 = vrot.lane.b32.xlu0 %v2166, 126
        %v2172 = vpop.permute.xlu0 %2171
        %v2175 = vadd.f32 %v2063, %v2170
        %v2176 = vadd.f32 %v2064, %v2172
        %s2177 = sld [smem:[#allocation9 + $0x89]]
        %v2178 = vstv %s2177
        %v2179 = vmul.f32 %v2178, %v2001
        %v2180 = vmul.f32 %v2178, %v2002
        %2183 = vrot.lane.b32.xlu0 %v2179, 126
        %v2184 = vpop.permute.xlu0 %2183
        %2185 = vrot.lane.b32.xlu0 %v2180, 126
        %v2186 = vpop.permute.xlu0 %2185
        %v2189 = vadd.f32 %v2077, %v2184
        %v2190 = vadd.f32 %v2078, %v2186
        %s2191 = sld [smem:[#allocation9 + $0x8a]]
        %v2192 = vstv %s2191
        %v2193 = vmul.f32 %v2192, %v2001
        %v2194 = vmul.f32 %v2192, %v2002
        %2197 = vrot.lane.b32.xlu0 %v2193, 126
        %v2198 = vpop.permute.xlu0 %2197
        %2199 = vrot.lane.b32.xlu0 %v2194, 126
        %v2200 = vpop.permute.xlu0 %2199
        %v2203 = vadd.f32 %v2091, %v2198
        %v2204 = vadd.f32 %v2092, %v2200
        %s2205 = sld [smem:[#allocation9 + $0x8b]]
        %v2206 = vstv %s2205
        %v2207 = vmul.f32 %v2206, %v2001
        %v2208 = vmul.f32 %v2206, %v2002
        %2211 = vrot.lane.b32.xlu0 %v2207, 126
        %v2212 = vpop.permute.xlu0 %2211
        %2213 = vrot.lane.b32.xlu0 %v2208, 126
        %v2214 = vpop.permute.xlu0 %2213
        %v2217 = vadd.f32 %v2105, %v2212
        %v2218 = vadd.f32 %v2106, %v2214
        %s2219 = sld [smem:[#allocation9 + $0x8c]]
        %v2220 = vstv %s2219
        %v2221 = vmul.f32 %v2220, %v2001
        %v2222 = vmul.f32 %v2220, %v2002
        %2225 = vrot.lane.b32.xlu0 %v2221, 126
        %v2226 = vpop.permute.xlu0 %2225
        %2227 = vrot.lane.b32.xlu0 %v2222, 126
        %v2228 = vpop.permute.xlu0 %2227
        %v2231 = vadd.f32 %v2119, %v2226
        %v2232 = vadd.f32 %v2120, %v2228
        %s2233 = sld [smem:[#allocation9 + $0x8d]]
        %v2234 = vstv %s2233
        %v2235 = vmul.f32 %v2234, %v2001
        %v2236 = vmul.f32 %v2234, %v2002
        %2239 = vrot.lane.b32.xlu0 %v2235, 126
        %v2240 = vpop.permute.xlu0 %2239
        %2241 = vrot.lane.b32.xlu0 %v2236, 126
        %v2242 = vpop.permute.xlu0 %2241
        %v2245 = vadd.f32 %v2133, %v2240
        %v2246 = vadd.f32 %v2134, %v2242
        %s2247 = sld [smem:[#allocation9 + $0x8e]]
        %v2248 = vstv %s2247
        %v2249 = vmul.f32 %v2248, %v2001
        %v2250 = vmul.f32 %v2248, %v2002
        %2253 = vrot.lane.b32.xlu0 %v2249, 126
        %v2254 = vpop.permute.xlu0 %2253
        %2255 = vrot.lane.b32.xlu0 %v2250, 126
        %v2256 = vpop.permute.xlu0 %2255
        %v2259 = vadd.f32 %v2147, %v2254
        %v2260 = vadd.f32 %v2148, %v2256
        %s2261 = sld [smem:[#allocation9 + $0x8f]]
        %v2262 = vstv %s2261
        %v2263 = vmul.f32 %v2262, %v2001
        %v2264 = vmul.f32 %v2262, %v2002
        %2267 = vrot.lane.b32.xlu0 %v2263, 126
        %v2268 = vpop.permute.xlu0 %2267
        %2269 = vrot.lane.b32.xlu0 %v2264, 126
        %v2270 = vpop.permute.xlu0 %2269
        %v2273 = vadd.f32 %v2161, %v2268
        %v2274 = vadd.f32 %v2162, %v2270
        %s2275 = sld [smem:[#allocation10]]
        %v2276 = vstv %s2275
        %v2277 = vadd.f32 %v2175, %v2276
        %v2278 = vadd.f32 %v2176, %v2276
        %v2279 = vmax.f32 %v2277, 0.0
        %v2280 = vmax.f32 %v2278, 0.0
        %s2281 = sld [smem:[#allocation10 + $0x1]]
        %v2282 = vstv %s2281
        %v2283 = vadd.f32 %v2189, %v2282
        %v2284 = vadd.f32 %v2190, %v2282
        %v2285 = vmax.f32 %v2283, 0.0
        %v2286 = vmax.f32 %v2284, 0.0
        %s2287 = sld [smem:[#allocation10 + $0x2]]
        %v2288 = vstv %s2287
        %v2289 = vadd.f32 %v2203, %v2288
        %v2290 = vadd.f32 %v2204, %v2288
        %v2291 = vmax.f32 %v2289, 0.0
        %v2292 = vmax.f32 %v2290, 0.0
        %s2293 = sld [smem:[#allocation10 + $0x3]]
        %v2294 = vstv %s2293
        %v2295 = vadd.f32 %v2217, %v2294
        %v2296 = vadd.f32 %v2218, %v2294
        %v2297 = vmax.f32 %v2295, 0.0
        %v2298 = vmax.f32 %v2296, 0.0
        %s2299 = sld [smem:[#allocation10 + $0x4]]
        %v2300 = vstv %s2299
        %v2301 = vadd.f32 %v2231, %v2300
        %v2302 = vadd.f32 %v2232, %v2300
        %v2303 = vmax.f32 %v2301, 0.0
        %v2304 = vmax.f32 %v2302, 0.0
        %s2305 = sld [smem:[#allocation10 + $0x5]]
        %v2306 = vstv %s2305
        %v2307 = vadd.f32 %v2245, %v2306
        %v2308 = vadd.f32 %v2246, %v2306
        %v2309 = vmax.f32 %v2307, 0.0
        %v2310 = vmax.f32 %v2308, 0.0
        %s2311 = sld [smem:[#allocation10 + $0x6]]
        %v2312 = vstv %s2311
        %v2313 = vadd.f32 %v2259, %v2312
        %v2314 = vadd.f32 %v2260, %v2312
        %v2315 = vmax.f32 %v2313, 0.0
        %v2316 = vmax.f32 %v2314, 0.0
        %s2317 = sld [smem:[#allocation10 + $0x7]]
        %v2318 = vstv %s2317
        %v2319 = vadd.f32 %v2273, %v2318
        %v2320 = vadd.f32 %v2274, %v2318
        %v2321 = vmax.f32 %v2319, 0.0
        %v2322 = vmax.f32 %v2320, 0.0
        %s2323 = sld [smem:[#allocation12]]
        %v2324 = vstv %s2323
        %v2325 = vmul.f32 %v2324, %v2279
        %v2326 = vmul.f32 %v2324, %v2280
        %s2327 = sld [smem:[#allocation12 + $0x8]]
        %v2328 = vstv %s2327
        %v2329 = vmul.f32 %v2328, %v2285
        %v2330 = vmul.f32 %v2328, %v2286
        %v2331 = vadd.f32 %v2325, %v2329
        %v2332 = vadd.f32 %v2326, %v2330
        %s2333 = sld [smem:[#allocation12 + $0x10]]
        %v2334 = vstv %s2333
        %v2335 = vmul.f32 %v2334, %v2291
        %v2336 = vmul.f32 %v2334, %v2292
        %v2337 = vadd.f32 %v2331, %v2335
        %v2338 = vadd.f32 %v2332, %v2336
        %s2339 = sld [smem:[#allocation12 + $0x18]]
        %v2340 = vstv %s2339
        %v2341 = vmul.f32 %v2340, %v2297
        %v2342 = vmul.f32 %v2340, %v2298
        %v2343 = vadd.f32 %v2337, %v2341
        %v2344 = vadd.f32 %v2338, %v2342
        %s2345 = sld [smem:[#allocation12 + $0x20]]
        %v2346 = vstv %s2345
        %v2347 = vmul.f32 %v2346, %v2303
        %v2348 = vmul.f32 %v2346, %v2304
        %v2349 = vadd.f32 %v2343, %v2347
        %v2350 = vadd.f32 %v2344, %v2348
        %s2351 = sld [smem:[#allocation12 + $0x28]]
        %v2352 = vstv %s2351
        %v2353 = vmul.f32 %v2352, %v2309
        %v2354 = vmul.f32 %v2352, %v2310
        %v2355 = vadd.f32 %v2349, %v2353
        %v2356 = vadd.f32 %v2350, %v2354
        %s2357 = sld [smem:[#allocation12 + $0x30]]
        %v2358 = vstv %s2357
        %v2359 = vmul.f32 %v2358, %v2315
        %v2360 = vmul.f32 %v2358, %v2316
        %v2361 = vadd.f32 %v2355, %v2359
        %v2362 = vadd.f32 %v2356, %v2360
        %s2363 = sld [smem:[#allocation12 + $0x38]]
        %v2364 = vstv %s2363
        %v2365 = vmul.f32 %v2364, %v2321
        %v2366 = vmul.f32 %v2364, %v2322
        %v2367 = vadd.f32 %v2361, %v2365
        %v2368 = vadd.f32 %v2362, %v2366
        %s2369 = sld [smem:[#allocation13]]
        %v2370 = vstv %s2369
        %v2371 = vadd.f32 %v2367, %v2370
        %v2372 = vadd.f32 %v2368, %v2370
        %v2373 = vmax.f32 %v2371, 0.0
        %v2374 = vmax.f32 %v2372, 0.0
        %s2375 = sld [smem:[#allocation12 + $0x1]]
        %v2376 = vstv %s2375
        %v2377 = vmul.f32 %v2376, %v2279
        %v2378 = vmul.f32 %v2376, %v2280
        %s2379 = sld [smem:[#allocation12 + $0x9]]
        %v2380 = vstv %s2379
        %v2381 = vmul.f32 %v2380, %v2285
        %v2382 = vmul.f32 %v2380, %v2286
        %v2383 = vadd.f32 %v2377, %v2381
        %v2384 = vadd.f32 %v2378, %v2382
        %s2385 = sld [smem:[#allocation12 + $0x11]]
        %v2386 = vstv %s2385
        %v2387 = vmul.f32 %v2386, %v2291
        %v2388 = vmul.f32 %v2386, %v2292
        %v2389 = vadd.f32 %v2383, %v2387
        %v2390 = vadd.f32 %v2384, %v2388
        %s2391 = sld [smem:[#allocation12 + $0x19]]
        %v2392 = vstv %s2391
        %v2393 = vmul.f32 %v2392, %v2297
        %v2394 = vmul.f32 %v2392, %v2298
        %v2395 = vadd.f32 %v2389, %v2393
        %v2396 = vadd.f32 %v2390, %v2394
        %s2397 = sld [smem:[#allocation12 + $0x21]]
        %v2398 = vstv %s2397
        %v2399 = vmul.f32 %v2398, %v2303
        %v2400 = vmul.f32 %v2398, %v2304
        %v2401 = vadd.f32 %v2395, %v2399
        %v2402 = vadd.f32 %v2396, %v2400
        %s2403 = sld [smem:[#allocation12 + $0x29]]
        %v2404 = vstv %s2403
        %v2405 = vmul.f32 %v2404, %v2309
        %v2406 = vmul.f32 %v2404, %v2310
        %v2407 = vadd.f32 %v2401, %v2405
        %v2408 = vadd.f32 %v2402, %v2406
        %s2409 = sld [smem:[#allocation12 + $0x31]]
        %v2410 = vstv %s2409
        %v2411 = vmul.f32 %v2410, %v2315
        %v2412 = vmul.f32 %v2410, %v2316
        %v2413 = vadd.f32 %v2407, %v2411
        %v2414 = vadd.f32 %v2408, %v2412
        %s2415 = sld [smem:[#allocation12 + $0x39]]
        %v2416 = vstv %s2415
        %v2417 = vmul.f32 %v2416, %v2321
        %v2418 = vmul.f32 %v2416, %v2322
        %v2419 = vadd.f32 %v2413, %v2417
        %v2420 = vadd.f32 %v2414, %v2418
        %s2421 = sld [smem:[#allocation13 + $0x1]]
        %v2422 = vstv %s2421
        %v2423 = vadd.f32 %v2419, %v2422
        %v2424 = vadd.f32 %v2420, %v2422
        %v2425 = vmax.f32 %v2423, 0.0
        %v2426 = vmax.f32 %v2424, 0.0
        %s2427 = sld [smem:[#allocation12 + $0x2]]
        %v2428 = vstv %s2427
        %v2429 = vmul.f32 %v2428, %v2279
        %v2430 = vmul.f32 %v2428, %v2280
        %s2431 = sld [smem:[#allocation12 + $0xa]]
        %v2432 = vstv %s2431
        %v2433 = vmul.f32 %v2432, %v2285
        %v2434 = vmul.f32 %v2432, %v2286
        %v2435 = vadd.f32 %v2429, %v2433
        %v2436 = vadd.f32 %v2430, %v2434
        %s2437 = sld [smem:[#allocation12 + $0x12]]
        %v2438 = vstv %s2437
        %v2439 = vmul.f32 %v2438, %v2291
        %v2440 = vmul.f32 %v2438, %v2292
        %v2441 = vadd.f32 %v2435, %v2439
        %v2442 = vadd.f32 %v2436, %v2440
        %s2443 = sld [smem:[#allocation12 + $0x1a]]
        %v2444 = vstv %s2443
        %v2445 = vmul.f32 %v2444, %v2297
        %v2446 = vmul.f32 %v2444, %v2298
        %v2447 = vadd.f32 %v2441, %v2445
        %v2448 = vadd.f32 %v2442, %v2446
        %s2449 = sld [smem:[#allocation12 + $0x22]]
        %v2450 = vstv %s2449
        %v2451 = vmul.f32 %v2450, %v2303
        %v2452 = vmul.f32 %v2450, %v2304
        %v2453 = vadd.f32 %v2447, %v2451
        %v2454 = vadd.f32 %v2448, %v2452
        %s2455 = sld [smem:[#allocation12 + $0x2a]]
        %v2456 = vstv %s2455
        %v2457 = vmul.f32 %v2456, %v2309
        %v2458 = vmul.f32 %v2456, %v2310
        %v2459 = vadd.f32 %v2453, %v2457
        %v2460 = vadd.f32 %v2454, %v2458
        %s2461 = sld [smem:[#allocation12 + $0x32]]
        %v2462 = vstv %s2461
        %v2463 = vmul.f32 %v2462, %v2315
        %v2464 = vmul.f32 %v2462, %v2316
        %v2465 = vadd.f32 %v2459, %v2463
        %v2466 = vadd.f32 %v2460, %v2464
        %s2467 = sld [smem:[#allocation12 + $0x3a]]
        %v2468 = vstv %s2467
        %v2469 = vmul.f32 %v2468, %v2321
        %v2470 = vmul.f32 %v2468, %v2322
        %v2471 = vadd.f32 %v2465, %v2469
        %v2472 = vadd.f32 %v2466, %v2470
        %s2473 = sld [smem:[#allocation13 + $0x2]]
        %v2474 = vstv %s2473
        %v2475 = vadd.f32 %v2471, %v2474
        %v2476 = vadd.f32 %v2472, %v2474
        %v2477 = vmax.f32 %v2475, 0.0
        %v2478 = vmax.f32 %v2476, 0.0
        %s2479 = sld [smem:[#allocation12 + $0x3]]
        %v2480 = vstv %s2479
        %v2481 = vmul.f32 %v2480, %v2279
        %v2482 = vmul.f32 %v2480, %v2280
        %s2483 = sld [smem:[#allocation12 + $0xb]]
        %v2484 = vstv %s2483
        %v2485 = vmul.f32 %v2484, %v2285
        %v2486 = vmul.f32 %v2484, %v2286
        %v2487 = vadd.f32 %v2481, %v2485
        %v2488 = vadd.f32 %v2482, %v2486
        %s2489 = sld [smem:[#allocation12 + $0x13]]
        %v2490 = vstv %s2489
        %v2491 = vmul.f32 %v2490, %v2291
        %v2492 = vmul.f32 %v2490, %v2292
        %v2493 = vadd.f32 %v2487, %v2491
        %v2494 = vadd.f32 %v2488, %v2492
        %s2495 = sld [smem:[#allocation12 + $0x1b]]
        %v2496 = vstv %s2495
        %v2497 = vmul.f32 %v2496, %v2297
        %v2498 = vmul.f32 %v2496, %v2298
        %v2499 = vadd.f32 %v2493, %v2497
        %v2500 = vadd.f32 %v2494, %v2498
        %s2501 = sld [smem:[#allocation12 + $0x23]]
        %v2502 = vstv %s2501
        %v2503 = vmul.f32 %v2502, %v2303
        %v2504 = vmul.f32 %v2502, %v2304
        %v2505 = vadd.f32 %v2499, %v2503
        %v2506 = vadd.f32 %v2500, %v2504
        %s2507 = sld [smem:[#allocation12 + $0x2b]]
        %v2508 = vstv %s2507
        %v2509 = vmul.f32 %v2508, %v2309
        %v2510 = vmul.f32 %v2508, %v2310
        %v2511 = vadd.f32 %v2505, %v2509
        %v2512 = vadd.f32 %v2506, %v2510
        %s2513 = sld [smem:[#allocation12 + $0x33]]
        %v2514 = vstv %s2513
        %v2515 = vmul.f32 %v2514, %v2315
        %v2516 = vmul.f32 %v2514, %v2316
        %v2517 = vadd.f32 %v2511, %v2515
        %v2518 = vadd.f32 %v2512, %v2516
        %s2519 = sld [smem:[#allocation12 + $0x3b]]
        %v2520 = vstv %s2519
        %v2521 = vmul.f32 %v2520, %v2321
        %v2522 = vmul.f32 %v2520, %v2322
        %v2523 = vadd.f32 %v2517, %v2521
        %v2524 = vadd.f32 %v2518, %v2522
        %s2525 = sld [smem:[#allocation13 + $0x3]]
        %v2526 = vstv %s2525
        %v2527 = vadd.f32 %v2523, %v2526
        %v2528 = vadd.f32 %v2524, %v2526
        %v2529 = vmax.f32 %v2527, 0.0
        %v2530 = vmax.f32 %v2528, 0.0
        %s2531 = sld [smem:[#allocation12 + $0x4]]
        %v2532 = vstv %s2531
        %v2533 = vmul.f32 %v2532, %v2279
        %v2534 = vmul.f32 %v2532, %v2280
        %s2535 = sld [smem:[#allocation12 + $0xc]]
        %v2536 = vstv %s2535
        %v2537 = vmul.f32 %v2536, %v2285
        %v2538 = vmul.f32 %v2536, %v2286
        %v2539 = vadd.f32 %v2533, %v2537
        %v2540 = vadd.f32 %v2534, %v2538
        %s2541 = sld [smem:[#allocation12 + $0x14]]
        %v2542 = vstv %s2541
        %v2543 = vmul.f32 %v2542, %v2291
        %v2544 = vmul.f32 %v2542, %v2292
        %v2545 = vadd.f32 %v2539, %v2543
        %v2546 = vadd.f32 %v2540, %v2544
        %s2547 = sld [smem:[#allocation12 + $0x1c]]
        %v2548 = vstv %s2547
        %v2549 = vmul.f32 %v2548, %v2297
        %v2550 = vmul.f32 %v2548, %v2298
        %v2551 = vadd.f32 %v2545, %v2549
        %v2552 = vadd.f32 %v2546, %v2550
        %s2553 = sld [smem:[#allocation12 + $0x24]]
        %v2554 = vstv %s2553
        %v2555 = vmul.f32 %v2554, %v2303
        %v2556 = vmul.f32 %v2554, %v2304
        %v2557 = vadd.f32 %v2551, %v2555
        %v2558 = vadd.f32 %v2552, %v2556
        %s2559 = sld [smem:[#allocation12 + $0x2c]]
        %v2560 = vstv %s2559
        %v2561 = vmul.f32 %v2560, %v2309
        %v2562 = vmul.f32 %v2560, %v2310
        %v2563 = vadd.f32 %v2557, %v2561
        %v2564 = vadd.f32 %v2558, %v2562
        %s2565 = sld [smem:[#allocation12 + $0x34]]
        %v2566 = vstv %s2565
        %v2567 = vmul.f32 %v2566, %v2315
        %v2568 = vmul.f32 %v2566, %v2316
        %v2569 = vadd.f32 %v2563, %v2567
        %v2570 = vadd.f32 %v2564, %v2568
        %s2571 = sld [smem:[#allocation12 + $0x3c]]
        %v2572 = vstv %s2571
        %v2573 = vmul.f32 %v2572, %v2321
        %v2574 = vmul.f32 %v2572, %v2322
        %v2575 = vadd.f32 %v2569, %v2573
        %v2576 = vadd.f32 %v2570, %v2574
        %s2577 = sld [smem:[#allocation13 + $0x4]]
        %v2578 = vstv %s2577
        %v2579 = vadd.f32 %v2575, %v2578
        %v2580 = vadd.f32 %v2576, %v2578
        %v2581 = vmax.f32 %v2579, 0.0
        %v2582 = vmax.f32 %v2580, 0.0
        %s2583 = sld [smem:[#allocation12 + $0x5]]
        %v2584 = vstv %s2583
        %v2585 = vmul.f32 %v2584, %v2279
        %v2586 = vmul.f32 %v2584, %v2280
        %s2587 = sld [smem:[#allocation12 + $0xd]]
        %v2588 = vstv %s2587
        %v2589 = vmul.f32 %v2588, %v2285
        %v2590 = vmul.f32 %v2588, %v2286
        %v2591 = vadd.f32 %v2585, %v2589
        %v2592 = vadd.f32 %v2586, %v2590
        %s2593 = sld [smem:[#allocation12 + $0x15]]
        %v2594 = vstv %s2593
        %v2595 = vmul.f32 %v2594, %v2291
        %v2596 = vmul.f32 %v2594, %v2292
        %v2597 = vadd.f32 %v2591, %v2595
        %v2598 = vadd.f32 %v2592, %v2596
        %s2599 = sld [smem:[#allocation12 + $0x1d]]
        %v2600 = vstv %s2599
        %v2601 = vmul.f32 %v2600, %v2297
        %v2602 = vmul.f32 %v2600, %v2298
        %v2603 = vadd.f32 %v2597, %v2601
        %v2604 = vadd.f32 %v2598, %v2602
        %s2605 = sld [smem:[#allocation12 + $0x25]]
        %v2606 = vstv %s2605
        %v2607 = vmul.f32 %v2606, %v2303
        %v2608 = vmul.f32 %v2606, %v2304
        %v2609 = vadd.f32 %v2603, %v2607
        %v2610 = vadd.f32 %v2604, %v2608
        %s2611 = sld [smem:[#allocation12 + $0x2d]]
        %v2612 = vstv %s2611
        %v2613 = vmul.f32 %v2612, %v2309
        %v2614 = vmul.f32 %v2612, %v2310
        %v2615 = vadd.f32 %v2609, %v2613
        %v2616 = vadd.f32 %v2610, %v2614
        %s2617 = sld [smem:[#allocation12 + $0x35]]
        %v2618 = vstv %s2617
        %v2619 = vmul.f32 %v2618, %v2315
        %v2620 = vmul.f32 %v2618, %v2316
        %v2621 = vadd.f32 %v2615, %v2619
        %v2622 = vadd.f32 %v2616, %v2620
        %s2623 = sld [smem:[#allocation12 + $0x3d]]
        %v2624 = vstv %s2623
        %v2625 = vmul.f32 %v2624, %v2321
        %v2626 = vmul.f32 %v2624, %v2322
        %v2627 = vadd.f32 %v2621, %v2625
        %v2628 = vadd.f32 %v2622, %v2626
        %s2629 = sld [smem:[#allocation13 + $0x5]]
        %v2630 = vstv %s2629
        %v2631 = vadd.f32 %v2627, %v2630
        %v2632 = vadd.f32 %v2628, %v2630
        %v2633 = vmax.f32 %v2631, 0.0
        %v2634 = vmax.f32 %v2632, 0.0
        %s2635 = sld [smem:[#allocation12 + $0x6]]
        %v2636 = vstv %s2635
        %v2637 = vmul.f32 %v2636, %v2279
        %v2638 = vmul.f32 %v2636, %v2280
        %s2639 = sld [smem:[#allocation12 + $0xe]]
        %v2640 = vstv %s2639
        %v2641 = vmul.f32 %v2640, %v2285
        %v2642 = vmul.f32 %v2640, %v2286
        %v2643 = vadd.f32 %v2637, %v2641
        %v2644 = vadd.f32 %v2638, %v2642
        %s2645 = sld [smem:[#allocation12 + $0x16]]
        %v2646 = vstv %s2645
        %v2647 = vmul.f32 %v2646, %v2291
        %v2648 = vmul.f32 %v2646, %v2292
        %v2649 = vadd.f32 %v2643, %v2647
        %v2650 = vadd.f32 %v2644, %v2648
        %s2651 = sld [smem:[#allocation12 + $0x1e]]
        %v2652 = vstv %s2651
        %v2653 = vmul.f32 %v2652, %v2297
        %v2654 = vmul.f32 %v2652, %v2298
        %v2655 = vadd.f32 %v2649, %v2653
        %v2656 = vadd.f32 %v2650, %v2654
        %s2657 = sld [smem:[#allocation12 + $0x26]]
        %v2658 = vstv %s2657
        %v2659 = vmul.f32 %v2658, %v2303
        %v2660 = vmul.f32 %v2658, %v2304
        %v2661 = vadd.f32 %v2655, %v2659
        %v2662 = vadd.f32 %v2656, %v2660
        %s2663 = sld [smem:[#allocation12 + $0x2e]]
        %v2664 = vstv %s2663
        %v2665 = vmul.f32 %v2664, %v2309
        %v2666 = vmul.f32 %v2664, %v2310
        %v2667 = vadd.f32 %v2661, %v2665
        %v2668 = vadd.f32 %v2662, %v2666
        %s2669 = sld [smem:[#allocation12 + $0x36]]
        %v2670 = vstv %s2669
        %v2671 = vmul.f32 %v2670, %v2315
        %v2672 = vmul.f32 %v2670, %v2316
        %v2673 = vadd.f32 %v2667, %v2671
        %v2674 = vadd.f32 %v2668, %v2672
        %s2675 = sld [smem:[#allocation12 + $0x3e]]
        %v2676 = vstv %s2675
        %v2677 = vmul.f32 %v2676, %v2321
        %v2678 = vmul.f32 %v2676, %v2322
        %v2679 = vadd.f32 %v2673, %v2677
        %v2680 = vadd.f32 %v2674, %v2678
        %s2681 = sld [smem:[#allocation13 + $0x6]]
        %v2682 = vstv %s2681
        %v2683 = vadd.f32 %v2679, %v2682
        %v2684 = vadd.f32 %v2680, %v2682
        %v2685 = vmax.f32 %v2683, 0.0
        %v2686 = vmax.f32 %v2684, 0.0
        %s2687 = sld [smem:[#allocation12 + $0x7]]
        %v2688 = vstv %s2687
        %v2689 = vmul.f32 %v2688, %v2279
        %v2690 = vmul.f32 %v2688, %v2280
        %s2691 = sld [smem:[#allocation12 + $0xf]]
        %v2692 = vstv %s2691
        %v2693 = vmul.f32 %v2692, %v2285
        %v2694 = vmul.f32 %v2692, %v2286
        %v2695 = vadd.f32 %v2689, %v2693
        %v2696 = vadd.f32 %v2690, %v2694
        %s2697 = sld [smem:[#allocation12 + $0x17]]
        %v2698 = vstv %s2697
        %v2699 = vmul.f32 %v2698, %v2291
        %v2700 = vmul.f32 %v2698, %v2292
        %v2701 = vadd.f32 %v2695, %v2699
        %v2702 = vadd.f32 %v2696, %v2700
        %s2703 = sld [smem:[#allocation12 + $0x1f]]
        %v2704 = vstv %s2703
        %v2705 = vmul.f32 %v2704, %v2297
        %v2706 = vmul.f32 %v2704, %v2298
        %v2707 = vadd.f32 %v2701, %v2705
        %v2708 = vadd.f32 %v2702, %v2706
        %s2709 = sld [smem:[#allocation12 + $0x27]]
        %v2710 = vstv %s2709
        %v2711 = vmul.f32 %v2710, %v2303
        %v2712 = vmul.f32 %v2710, %v2304
        %v2713 = vadd.f32 %v2707, %v2711
        %v2714 = vadd.f32 %v2708, %v2712
        %s2715 = sld [smem:[#allocation12 + $0x2f]]
        %v2716 = vstv %s2715
        %v2717 = vmul.f32 %v2716, %v2309
        %v2718 = vmul.f32 %v2716, %v2310
        %v2719 = vadd.f32 %v2713, %v2717
        %v2720 = vadd.f32 %v2714, %v2718
        %s2721 = sld [smem:[#allocation12 + $0x37]]
        %v2722 = vstv %s2721
        %v2723 = vmul.f32 %v2722, %v2315
        %v2724 = vmul.f32 %v2722, %v2316
        %v2725 = vadd.f32 %v2719, %v2723
        %v2726 = vadd.f32 %v2720, %v2724
        %s2727 = sld [smem:[#allocation12 + $0x3f]]
        %v2728 = vstv %s2727
        %v2729 = vmul.f32 %v2728, %v2321
        %v2730 = vmul.f32 %v2728, %v2322
        %v2731 = vadd.f32 %v2725, %v2729
        %v2732 = vadd.f32 %v2726, %v2730
        %s2733 = sld [smem:[#allocation13 + $0x7]]
        %v2734 = vstv %s2733
        %v2735 = vadd.f32 %v2731, %v2734
        %v2736 = vadd.f32 %v2732, %v2734
        %v2737 = vmax.f32 %v2735, 0.0
        %v2738 = vmax.f32 %v2736, 0.0
        %s2739 = sld [smem:[#allocation12 + $0x40]]
        %v2740 = vstv %s2739
        %v2741 = vmul.f32 %v2740, %v2373
        %v2742 = vmul.f32 %v2740, %v2374
        %s2743 = sld [smem:[#allocation12 + $0x48]]
        %v2744 = vstv %s2743
        %v2745 = vmul.f32 %v2744, %v2425
        %v2746 = vmul.f32 %v2744, %v2426
        %v2747 = vadd.f32 %v2741, %v2745
        %v2748 = vadd.f32 %v2742, %v2746
        %s2749 = sld [smem:[#allocation12 + $0x50]]
        %v2750 = vstv %s2749
        %v2751 = vmul.f32 %v2750, %v2477
        %v2752 = vmul.f32 %v2750, %v2478
        %v2753 = vadd.f32 %v2747, %v2751
        %v2754 = vadd.f32 %v2748, %v2752
        %s2755 = sld [smem:[#allocation12 + $0x58]]
        %v2756 = vstv %s2755
        %v2757 = vmul.f32 %v2756, %v2529
        %v2758 = vmul.f32 %v2756, %v2530
        %v2759 = vadd.f32 %v2753, %v2757
        %v2760 = vadd.f32 %v2754, %v2758
        %s2761 = sld [smem:[#allocation12 + $0x60]]
        %v2762 = vstv %s2761
        %v2763 = vmul.f32 %v2762, %v2581
        %v2764 = vmul.f32 %v2762, %v2582
        %v2765 = vadd.f32 %v2759, %v2763
        %v2766 = vadd.f32 %v2760, %v2764
        %s2767 = sld [smem:[#allocation12 + $0x68]]
        %v2768 = vstv %s2767
        %v2769 = vmul.f32 %v2768, %v2633
        %v2770 = vmul.f32 %v2768, %v2634
        %v2771 = vadd.f32 %v2765, %v2769
        %v2772 = vadd.f32 %v2766, %v2770
        %s2773 = sld [smem:[#allocation12 + $0x70]]
        %v2774 = vstv %s2773
        %v2775 = vmul.f32 %v2774, %v2685
        %v2776 = vmul.f32 %v2774, %v2686
        %v2777 = vadd.f32 %v2771, %v2775
        %v2778 = vadd.f32 %v2772, %v2776
        %s2779 = sld [smem:[#allocation12 + $0x78]]
        %v2780 = vstv %s2779
        %v2781 = vmul.f32 %v2780, %v2737
        %v2782 = vmul.f32 %v2780, %v2738
        %v2783 = vadd.f32 %v2777, %v2781
        %v2784 = vadd.f32 %v2778, %v2782
        %s2785 = sld [smem:[#allocation13 + $0x8]]
        %v2786 = vstv %s2785
        %v2787 = vadd.f32 %v2783, %v2786
        %v2788 = vadd.f32 %v2784, %v2786
        %v2789 = vmax.f32 %v2787, 0.0
        %v2790 = vmax.f32 %v2788, 0.0
        %s2791 = sld [smem:[#allocation12 + $0x41]]
        %v2792 = vstv %s2791
        %v2793 = vmul.f32 %v2792, %v2373
        %v2794 = vmul.f32 %v2792, %v2374
        %s2795 = sld [smem:[#allocation12 + $0x49]]
        %v2796 = vstv %s2795
        %v2797 = vmul.f32 %v2796, %v2425
        %v2798 = vmul.f32 %v2796, %v2426
        %v2799 = vadd.f32 %v2793, %v2797
        %v2800 = vadd.f32 %v2794, %v2798
        %s2801 = sld [smem:[#allocation12 + $0x51]]
        %v2802 = vstv %s2801
        %v2803 = vmul.f32 %v2802, %v2477
        %v2804 = vmul.f32 %v2802, %v2478
        %v2805 = vadd.f32 %v2799, %v2803
        %v2806 = vadd.f32 %v2800, %v2804
        %s2807 = sld [smem:[#allocation12 + $0x59]]
        %v2808 = vstv %s2807
        %v2809 = vmul.f32 %v2808, %v2529
        %v2810 = vmul.f32 %v2808, %v2530
        %v2811 = vadd.f32 %v2805, %v2809
        %v2812 = vadd.f32 %v2806, %v2810
        %s2813 = sld [smem:[#allocation12 + $0x61]]
        %v2814 = vstv %s2813
        %v2815 = vmul.f32 %v2814, %v2581
        %v2816 = vmul.f32 %v2814, %v2582
        %v2817 = vadd.f32 %v2811, %v2815
        %v2818 = vadd.f32 %v2812, %v2816
        %s2819 = sld [smem:[#allocation12 + $0x69]]
        %v2820 = vstv %s2819
        %v2821 = vmul.f32 %v2820, %v2633
        %v2822 = vmul.f32 %v2820, %v2634
        %v2823 = vadd.f32 %v2817, %v2821
        %v2824 = vadd.f32 %v2818, %v2822
        %s2825 = sld [smem:[#allocation12 + $0x71]]
        %v2826 = vstv %s2825
        %v2827 = vmul.f32 %v2826, %v2685
        %v2828 = vmul.f32 %v2826, %v2686
        %v2829 = vadd.f32 %v2823, %v2827
        %v2830 = vadd.f32 %v2824, %v2828
        %s2831 = sld [smem:[#allocation12 + $0x79]]
        %v2832 = vstv %s2831
        %v2833 = vmul.f32 %v2832, %v2737
        %v2834 = vmul.f32 %v2832, %v2738
        %v2835 = vadd.f32 %v2829, %v2833
        %v2836 = vadd.f32 %v2830, %v2834
        %s2837 = sld [smem:[#allocation13 + $0x9]]
        %v2838 = vstv %s2837
        %v2839 = vadd.f32 %v2835, %v2838
        %v2840 = vadd.f32 %v2836, %v2838
        %v2841 = vmax.f32 %v2839, 0.0
        %v2842 = vmax.f32 %v2840, 0.0
        %s2843 = sld [smem:[#allocation12 + $0x42]]
        %v2844 = vstv %s2843
        %v2845 = vmul.f32 %v2844, %v2373
        %v2846 = vmul.f32 %v2844, %v2374
        %s2847 = sld [smem:[#allocation12 + $0x4a]]
        %v2848 = vstv %s2847
        %v2849 = vmul.f32 %v2848, %v2425
        %v2850 = vmul.f32 %v2848, %v2426
        %v2851 = vadd.f32 %v2845, %v2849
        %v2852 = vadd.f32 %v2846, %v2850
        %s2853 = sld [smem:[#allocation12 + $0x52]]
        %v2854 = vstv %s2853
        %v2855 = vmul.f32 %v2854, %v2477
        %v2856 = vmul.f32 %v2854, %v2478
        %v2857 = vadd.f32 %v2851, %v2855
        %v2858 = vadd.f32 %v2852, %v2856
        %s2859 = sld [smem:[#allocation12 + $0x5a]]
        %v2860 = vstv %s2859
        %v2861 = vmul.f32 %v2860, %v2529
        %v2862 = vmul.f32 %v2860, %v2530
        %v2863 = vadd.f32 %v2857, %v2861
        %v2864 = vadd.f32 %v2858, %v2862
        %s2865 = sld [smem:[#allocation12 + $0x62]]
        %v2866 = vstv %s2865
        %v2867 = vmul.f32 %v2866, %v2581
        %v2868 = vmul.f32 %v2866, %v2582
        %v2869 = vadd.f32 %v2863, %v2867
        %v2870 = vadd.f32 %v2864, %v2868
        %s2871 = sld [smem:[#allocation12 + $0x6a]]
        %v2872 = vstv %s2871
        %v2873 = vmul.f32 %v2872, %v2633
        %v2874 = vmul.f32 %v2872, %v2634
        %v2875 = vadd.f32 %v2869, %v2873
        %v2876 = vadd.f32 %v2870, %v2874
        %s2877 = sld [smem:[#allocation12 + $0x72]]
        %v2878 = vstv %s2877
        %v2879 = vmul.f32 %v2878, %v2685
        %v2880 = vmul.f32 %v2878, %v2686
        %v2881 = vadd.f32 %v2875, %v2879
        %v2882 = vadd.f32 %v2876, %v2880
        %s2883 = sld [smem:[#allocation12 + $0x7a]]
        %v2884 = vstv %s2883
        %v2885 = vmul.f32 %v2884, %v2737
        %v2886 = vmul.f32 %v2884, %v2738
        %v2887 = vadd.f32 %v2881, %v2885
        %v2888 = vadd.f32 %v2882, %v2886
        %s2889 = sld [smem:[#allocation13 + $0xa]]
        %v2890 = vstv %s2889
        %v2891 = vadd.f32 %v2887, %v2890
        %v2892 = vadd.f32 %v2888, %v2890
        %v2893 = vmax.f32 %v2891, 0.0
        %v2894 = vmax.f32 %v2892, 0.0
        %s2895 = sld [smem:[#allocation12 + $0x43]]
        %v2896 = vstv %s2895
        %v2897 = vmul.f32 %v2896, %v2373
        %v2898 = vmul.f32 %v2896, %v2374
        %s2899 = sld [smem:[#allocation12 + $0x4b]]
        %v2900 = vstv %s2899
        %v2901 = vmul.f32 %v2900, %v2425
        %v2902 = vmul.f32 %v2900, %v2426
        %v2903 = vadd.f32 %v2897, %v2901
        %v2904 = vadd.f32 %v2898, %v2902
        %s2905 = sld [smem:[#allocation12 + $0x53]]
        %v2906 = vstv %s2905
        %v2907 = vmul.f32 %v2906, %v2477
        %v2908 = vmul.f32 %v2906, %v2478
        %v2909 = vadd.f32 %v2903, %v2907
        %v2910 = vadd.f32 %v2904, %v2908
        %s2911 = sld [smem:[#allocation12 + $0x5b]]
        %v2912 = vstv %s2911
        %v2913 = vmul.f32 %v2912, %v2529
        %v2914 = vmul.f32 %v2912, %v2530
        %v2915 = vadd.f32 %v2909, %v2913
        %v2916 = vadd.f32 %v2910, %v2914
        %s2917 = sld [smem:[#allocation12 + $0x63]]
        %v2918 = vstv %s2917
        %v2919 = vmul.f32 %v2918, %v2581
        %v2920 = vmul.f32 %v2918, %v2582
        %v2921 = vadd.f32 %v2915, %v2919
        %v2922 = vadd.f32 %v2916, %v2920
        %s2923 = sld [smem:[#allocation12 + $0x6b]]
        %v2924 = vstv %s2923
        %v2925 = vmul.f32 %v2924, %v2633
        %v2926 = vmul.f32 %v2924, %v2634
        %v2927 = vadd.f32 %v2921, %v2925
        %v2928 = vadd.f32 %v2922, %v2926
        %s2929 = sld [smem:[#allocation12 + $0x73]]
        %v2930 = vstv %s2929
        %v2931 = vmul.f32 %v2930, %v2685
        %v2932 = vmul.f32 %v2930, %v2686
        %v2933 = vadd.f32 %v2927, %v2931
        %v2934 = vadd.f32 %v2928, %v2932
        %s2935 = sld [smem:[#allocation12 + $0x7b]]
        %v2936 = vstv %s2935
        %v2937 = vmul.f32 %v2936, %v2737
        %v2938 = vmul.f32 %v2936, %v2738
        %v2939 = vadd.f32 %v2933, %v2937
        %v2940 = vadd.f32 %v2934, %v2938
        %s2941 = sld [smem:[#allocation13 + $0xb]]
        %v2942 = vstv %s2941
        %v2943 = vadd.f32 %v2939, %v2942
        %v2944 = vadd.f32 %v2940, %v2942
        %v2945 = vmax.f32 %v2943, 0.0
        %v2946 = vmax.f32 %v2944, 0.0
        %s2947 = sld [smem:[#allocation12 + $0x44]]
        %v2948 = vstv %s2947
        %v2949 = vmul.f32 %v2948, %v2373
        %v2950 = vmul.f32 %v2948, %v2374
        %s2951 = sld [smem:[#allocation12 + $0x4c]]
        %v2952 = vstv %s2951
        %v2953 = vmul.f32 %v2952, %v2425
        %v2954 = vmul.f32 %v2952, %v2426
        %v2955 = vadd.f32 %v2949, %v2953
        %v2956 = vadd.f32 %v2950, %v2954
        %s2957 = sld [smem:[#allocation12 + $0x54]]
        %v2958 = vstv %s2957
        %v2959 = vmul.f32 %v2958, %v2477
        %v2960 = vmul.f32 %v2958, %v2478
        %v2961 = vadd.f32 %v2955, %v2959
        %v2962 = vadd.f32 %v2956, %v2960
        %s2963 = sld [smem:[#allocation12 + $0x5c]]
        %v2964 = vstv %s2963
        %v2965 = vmul.f32 %v2964, %v2529
        %v2966 = vmul.f32 %v2964, %v2530
        %v2967 = vadd.f32 %v2961, %v2965
        %v2968 = vadd.f32 %v2962, %v2966
        %s2969 = sld [smem:[#allocation12 + $0x64]]
        %v2970 = vstv %s2969
        %v2971 = vmul.f32 %v2970, %v2581
        %v2972 = vmul.f32 %v2970, %v2582
        %v2973 = vadd.f32 %v2967, %v2971
        %v2974 = vadd.f32 %v2968, %v2972
        %s2975 = sld [smem:[#allocation12 + $0x6c]]
        %v2976 = vstv %s2975
        %v2977 = vmul.f32 %v2976, %v2633
        %v2978 = vmul.f32 %v2976, %v2634
        %v2979 = vadd.f32 %v2973, %v2977
        %v2980 = vadd.f32 %v2974, %v2978
        %s2981 = sld [smem:[#allocation12 + $0x74]]
        %v2982 = vstv %s2981
        %v2983 = vmul.f32 %v2982, %v2685
        %v2984 = vmul.f32 %v2982, %v2686
        %v2985 = vadd.f32 %v2979, %v2983
        %v2986 = vadd.f32 %v2980, %v2984
        %s2987 = sld [smem:[#allocation12 + $0x7c]]
        %v2988 = vstv %s2987
        %v2989 = vmul.f32 %v2988, %v2737
        %v2990 = vmul.f32 %v2988, %v2738
        %v2991 = vadd.f32 %v2985, %v2989
        %v2992 = vadd.f32 %v2986, %v2990
        %s2993 = sld [smem:[#allocation13 + $0xc]]
        %v2994 = vstv %s2993
        %v2995 = vadd.f32 %v2991, %v2994
        %v2996 = vadd.f32 %v2992, %v2994
        %v2997 = vmax.f32 %v2995, 0.0
        %v2998 = vmax.f32 %v2996, 0.0
        %s2999 = sld [smem:[#allocation12 + $0x45]]
        %v3000 = vstv %s2999
        %v3001 = vmul.f32 %v3000, %v2373
        %v3002 = vmul.f32 %v3000, %v2374
        %s3003 = sld [smem:[#allocation12 + $0x4d]]
        %v3004 = vstv %s3003
        %v3005 = vmul.f32 %v3004, %v2425
        %v3006 = vmul.f32 %v3004, %v2426
        %v3007 = vadd.f32 %v3001, %v3005
        %v3008 = vadd.f32 %v3002, %v3006
        %s3009 = sld [smem:[#allocation12 + $0x55]]
        %v3010 = vstv %s3009
        %v3011 = vmul.f32 %v3010, %v2477
        %v3012 = vmul.f32 %v3010, %v2478
        %v3013 = vadd.f32 %v3007, %v3011
        %v3014 = vadd.f32 %v3008, %v3012
        %s3015 = sld [smem:[#allocation12 + $0x5d]]
        %v3016 = vstv %s3015
        %v3017 = vmul.f32 %v3016, %v2529
        %v3018 = vmul.f32 %v3016, %v2530
        %v3019 = vadd.f32 %v3013, %v3017
        %v3020 = vadd.f32 %v3014, %v3018
        %s3021 = sld [smem:[#allocation12 + $0x65]]
        %v3022 = vstv %s3021
        %v3023 = vmul.f32 %v3022, %v2581
        %v3024 = vmul.f32 %v3022, %v2582
        %v3025 = vadd.f32 %v3019, %v3023
        %v3026 = vadd.f32 %v3020, %v3024
        %s3027 = sld [smem:[#allocation12 + $0x6d]]
        %v3028 = vstv %s3027
        %v3029 = vmul.f32 %v3028, %v2633
        %v3030 = vmul.f32 %v3028, %v2634
        %v3031 = vadd.f32 %v3025, %v3029
        %v3032 = vadd.f32 %v3026, %v3030
        %s3033 = sld [smem:[#allocation12 + $0x75]]
        %v3034 = vstv %s3033
        %v3035 = vmul.f32 %v3034, %v2685
        %v3036 = vmul.f32 %v3034, %v2686
        %v3037 = vadd.f32 %v3031, %v3035
        %v3038 = vadd.f32 %v3032, %v3036
        %s3039 = sld [smem:[#allocation12 + $0x7d]]
        %v3040 = vstv %s3039
        %v3041 = vmul.f32 %v3040, %v2737
        %v3042 = vmul.f32 %v3040, %v2738
        %v3043 = vadd.f32 %v3037, %v3041
        %v3044 = vadd.f32 %v3038, %v3042
        %s3045 = sld [smem:[#allocation13 + $0xd]]
        %v3046 = vstv %s3045
        %v3047 = vadd.f32 %v3043, %v3046
        %v3048 = vadd.f32 %v3044, %v3046
        %v3049 = vmax.f32 %v3047, 0.0
        %v3050 = vmax.f32 %v3048, 0.0
        %s3051 = sld [smem:[#allocation12 + $0x46]]
        %v3052 = vstv %s3051
        %v3053 = vmul.f32 %v3052, %v2373
        %v3054 = vmul.f32 %v3052, %v2374
        %s3055 = sld [smem:[#allocation12 + $0x4e]]
        %v3056 = vstv %s3055
        %v3057 = vmul.f32 %v3056, %v2425
        %v3058 = vmul.f32 %v3056, %v2426
        %v3059 = vadd.f32 %v3053, %v3057
        %v3060 = vadd.f32 %v3054, %v3058
        %s3061 = sld [smem:[#allocation12 + $0x56]]
        %v3062 = vstv %s3061
        %v3063 = vmul.f32 %v3062, %v2477
        %v3064 = vmul.f32 %v3062, %v2478
        %v3065 = vadd.f32 %v3059, %v3063
        %v3066 = vadd.f32 %v3060, %v3064
        %s3067 = sld [smem:[#allocation12 + $0x5e]]
        %v3068 = vstv %s3067
        %v3069 = vmul.f32 %v3068, %v2529
        %v3070 = vmul.f32 %v3068, %v2530
        %v3071 = vadd.f32 %v3065, %v3069
        %v3072 = vadd.f32 %v3066, %v3070
        %s3073 = sld [smem:[#allocation12 + $0x66]]
        %v3074 = vstv %s3073
        %v3075 = vmul.f32 %v3074, %v2581
        %v3076 = vmul.f32 %v3074, %v2582
        %v3077 = vadd.f32 %v3071, %v3075
        %v3078 = vadd.f32 %v3072, %v3076
        %s3079 = sld [smem:[#allocation12 + $0x6e]]
        %v3080 = vstv %s3079
        %v3081 = vmul.f32 %v3080, %v2633
        %v3082 = vmul.f32 %v3080, %v2634
        %v3083 = vadd.f32 %v3077, %v3081
        %v3084 = vadd.f32 %v3078, %v3082
        %s3085 = sld [smem:[#allocation12 + $0x76]]
        %v3086 = vstv %s3085
        %v3087 = vmul.f32 %v3086, %v2685
        %v3088 = vmul.f32 %v3086, %v2686
        %v3089 = vadd.f32 %v3083, %v3087
        %v3090 = vadd.f32 %v3084, %v3088
        %s3091 = sld [smem:[#allocation12 + $0x7e]]
        %v3092 = vstv %s3091
        %v3093 = vmul.f32 %v3092, %v2737
        %v3094 = vmul.f32 %v3092, %v2738
        %v3095 = vadd.f32 %v3089, %v3093
        %v3096 = vadd.f32 %v3090, %v3094
        %s3097 = sld [smem:[#allocation13 + $0xe]]
        %v3098 = vstv %s3097
        %v3099 = vadd.f32 %v3095, %v3098
        %v3100 = vadd.f32 %v3096, %v3098
        %v3101 = vmax.f32 %v3099, 0.0
        %v3102 = vmax.f32 %v3100, 0.0
        %s3103 = sld [smem:[#allocation12 + $0x47]]
        %v3104 = vstv %s3103
        %v3105 = vmul.f32 %v3104, %v2373
        %v3106 = vmul.f32 %v3104, %v2374
        %s3107 = sld [smem:[#allocation12 + $0x4f]]
        %v3108 = vstv %s3107
        %v3109 = vmul.f32 %v3108, %v2425
        %v3110 = vmul.f32 %v3108, %v2426
        %v3111 = vadd.f32 %v3105, %v3109
        %v3112 = vadd.f32 %v3106, %v3110
        %s3113 = sld [smem:[#allocation12 + $0x57]]
        %v3114 = vstv %s3113
        %v3115 = vmul.f32 %v3114, %v2477
        %v3116 = vmul.f32 %v3114, %v2478
        %v3117 = vadd.f32 %v3111, %v3115
        %v3118 = vadd.f32 %v3112, %v3116
        %s3119 = sld [smem:[#allocation12 + $0x5f]]
        %v3120 = vstv %s3119
        %v3121 = vmul.f32 %v3120, %v2529
        %v3122 = vmul.f32 %v3120, %v2530
        %v3123 = vadd.f32 %v3117, %v3121
        %v3124 = vadd.f32 %v3118, %v3122
        %s3125 = sld [smem:[#allocation12 + $0x67]]
        %v3126 = vstv %s3125
        %v3127 = vmul.f32 %v3126, %v2581
        %v3128 = vmul.f32 %v3126, %v2582
        %v3129 = vadd.f32 %v3123, %v3127
        %v3130 = vadd.f32 %v3124, %v3128
        %s3131 = sld [smem:[#allocation12 + $0x6f]]
        %v3132 = vstv %s3131
        %v3133 = vmul.f32 %v3132, %v2633
        %v3134 = vmul.f32 %v3132, %v2634
        %v3135 = vadd.f32 %v3129, %v3133
        %v3136 = vadd.f32 %v3130, %v3134
        %s3137 = sld [smem:[#allocation12 + $0x77]]
        %v3138 = vstv %s3137
        %v3139 = vmul.f32 %v3138, %v2685
        %v3140 = vmul.f32 %v3138, %v2686
        %v3141 = vadd.f32 %v3135, %v3139
        %v3142 = vadd.f32 %v3136, %v3140
        %s3143 = sld [smem:[#allocation12 + $0x7f]]
        %v3144 = vstv %s3143
        %v3145 = vmul.f32 %v3144, %v2737
        %v3146 = vmul.f32 %v3144, %v2738
        %v3147 = vadd.f32 %v3141, %v3145
        %v3148 = vadd.f32 %v3142, %v3146
        %s3149 = sld [smem:[#allocation13 + $0xf]]
        %v3150 = vstv %s3149
        %v3151 = vadd.f32 %v3147, %v3150
        %v3152 = vadd.f32 %v3148, %v3150
        %v3153 = vmax.f32 %v3151, 0.0
        %v3154 = vmax.f32 %v3152, 0.0
        %3157 = vrot.lane.b32.xlu0 %v2789, 1
        %v3158 = vpop.permute.xlu0 %3157
        %3159 = vrot.lane.b32.xlu0 %v2790, 1
        %v3160 = vpop.permute.xlu0 %3159
        %3163 = vst.msk [vmem:[#allocation3 + $0x1] sm:$0xff] %vm630, %v3158
        %3164 = vst.msk [vmem:[#allocation3 + $0x9] sm:$0xff] %vm630, %v3160
        %3167 = vrot.lane.b32.xlu0 %v2841, 1
        %v3168 = vpop.permute.xlu0 %3167
        %3169 = vrot.lane.b32.xlu0 %v2842, 1
        %v3170 = vpop.permute.xlu0 %3169
        %s3173 = scalar_lea.vmem [#allocation3], 24
        %3174 = vst.msk [vmem:[%s3173 + $0x1] sm:$0xff] %vm630, %v3168
        %3175 = vst.msk [vmem:[%s3173 + $0x9] sm:$0xff] %vm630, %v3170
        %3178 = vrot.lane.b32.xlu0 %v2893, 1
        %v3179 = vpop.permute.xlu0 %3178
        %3180 = vrot.lane.b32.xlu0 %v2894, 1
        %v3181 = vpop.permute.xlu0 %3180
        %s3184 = scalar_lea.vmem [#allocation3], 48
        %3185 = vst.msk [vmem:[%s3184 + $0x1] sm:$0xff] %vm630, %v3179
        %3186 = vst.msk [vmem:[%s3184 + $0x9] sm:$0xff] %vm630, %v3181
        %3189 = vrot.lane.b32.xlu0 %v2945, 1
        %v3190 = vpop.permute.xlu0 %3189
        %3191 = vrot.lane.b32.xlu0 %v2946, 1
        %v3192 = vpop.permute.xlu0 %3191
        %s3195 = scalar_lea.vmem [#allocation3], 72
        %3196 = vst.msk [vmem:[%s3195 + $0x1] sm:$0xff] %vm630, %v3190
        %3197 = vst.msk [vmem:[%s3195 + $0x9] sm:$0xff] %vm630, %v3192
        %3200 = vrot.lane.b32.xlu0 %v2997, 1
        %v3201 = vpop.permute.xlu0 %3200
        %3202 = vrot.lane.b32.xlu0 %v2998, 1
        %v3203 = vpop.permute.xlu0 %3202
        %s3206 = scalar_lea.vmem [#allocation3], 96
        %3207 = vst.msk [vmem:[%s3206 + $0x1] sm:$0xff] %vm630, %v3201
        %3208 = vst.msk [vmem:[%s3206 + $0x9] sm:$0xff] %vm630, %v3203
        %3211 = vrot.lane.b32.xlu0 %v3049, 1
        %v3212 = vpop.permute.xlu0 %3211
        %3213 = vrot.lane.b32.xlu0 %v3050, 1
        %v3214 = vpop.permute.xlu0 %3213
        %s3217 = scalar_lea.vmem [#allocation3], 120
        %3218 = vst.msk [vmem:[%s3217 + $0x1] sm:$0xff] %vm630, %v3212
        %3219 = vst.msk [vmem:[%s3217 + $0x9] sm:$0xff] %vm630, %v3214
        %3222 = vrot.lane.b32.xlu0 %v3101, 1
        %v3223 = vpop.permute.xlu0 %3222
        %3224 = vrot.lane.b32.xlu0 %v3102, 1
        %v3225 = vpop.permute.xlu0 %3224
        %s3228 = scalar_lea.vmem [#allocation3], 144
        %3229 = vst.msk [vmem:[%s3228 + $0x1] sm:$0xff] %vm630, %v3223
        %3230 = vst.msk [vmem:[%s3228 + $0x9] sm:$0xff] %vm630, %v3225
        %3233 = vrot.lane.b32.xlu0 %v3153, 1
        %v3234 = vpop.permute.xlu0 %3233
        %3235 = vrot.lane.b32.xlu0 %v3154, 1
        %v3236 = vpop.permute.xlu0 %3235
        %s3239 = scalar_lea.vmem [#allocation3], 168
        %3240 = vst.msk [vmem:[%s3239 + $0x1] sm:$0xff] %vm630, %v3234
        %3241 = vst.msk [vmem:[%s3239 + $0x9] sm:$0xff] %vm630, %v3236
        %v3242 = vld [vmem:[#allocation3] sm:$0xff]
        %v3243 = vld [vmem:[#allocation3 + $0x8] sm:$0xff]
        %s3244 = sld [smem:[#allocation15]]
        %v3245 = vstv %s3244
        %v3246 = vmul.f32 %v3245, %v3242
        %v3247 = vmul.f32 %v3245, %v3243
        %s3248 = sld [smem:[#allocation15 + $0x1]]
        %v3249 = vstv %s3248
        %v3250 = vmul.f32 %v3249, %v3242
        %v3251 = vmul.f32 %v3249, %v3243
        %s3252 = sld [smem:[#allocation15 + $0x2]]
        %v3253 = vstv %s3252
        %v3254 = vmul.f32 %v3253, %v3242
        %v3255 = vmul.f32 %v3253, %v3243
        %s3256 = sld [smem:[#allocation15 + $0x3]]
        %v3257 = vstv %s3256
        %v3258 = vmul.f32 %v3257, %v3242
        %v3259 = vmul.f32 %v3257, %v3243
        %s3260 = sld [smem:[#allocation15 + $0x20]]
        %v3261 = vstv %s3260
        %v3262 = vmul.f32 %v3261, %v3242
        %v3263 = vmul.f32 %v3261, %v3243
        %3266 = vrot.lane.b32.xlu0 %v3262, 127
        %v3267 = vpop.permute.xlu0 %3266
        %3268 = vrot.lane.b32.xlu0 %v3263, 127
        %v3269 = vpop.permute.xlu0 %3268
        %v3272 = vadd.f32 %v3246, %v3267
        %v3273 = vadd.f32 %v3247, %v3269
        %s3274 = sld [smem:[#allocation15 + $0x21]]
        %v3275 = vstv %s3274
        %v3276 = vmul.f32 %v3275, %v3242
        %v3277 = vmul.f32 %v3275, %v3243
        %3280 = vrot.lane.b32.xlu0 %v3276, 127
        %v3281 = vpop.permute.xlu0 %3280
        %3282 = vrot.lane.b32.xlu0 %v3277, 127
        %v3283 = vpop.permute.xlu0 %3282
        %v3286 = vadd.f32 %v3250, %v3281
        %v3287 = vadd.f32 %v3251, %v3283
        %s3288 = sld [smem:[#allocation15 + $0x22]]
        %v3289 = vstv %s3288
        %v3290 = vmul.f32 %v3289, %v3242
        %v3291 = vmul.f32 %v3289, %v3243
        %3294 = vrot.lane.b32.xlu0 %v3290, 127
        %v3295 = vpop.permute.xlu0 %3294
        %3296 = vrot.lane.b32.xlu0 %v3291, 127
        %v3297 = vpop.permute.xlu0 %3296
        %v3300 = vadd.f32 %v3254, %v3295
        %v3301 = vadd.f32 %v3255, %v3297
        %s3302 = sld [smem:[#allocation15 + $0x23]]
        %v3303 = vstv %s3302
        %v3304 = vmul.f32 %v3303, %v3242
        %v3305 = vmul.f32 %v3303, %v3243
        %3308 = vrot.lane.b32.xlu0 %v3304, 127
        %v3309 = vpop.permute.xlu0 %3308
        %3310 = vrot.lane.b32.xlu0 %v3305, 127
        %v3311 = vpop.permute.xlu0 %3310
        %v3314 = vadd.f32 %v3258, %v3309
        %v3315 = vadd.f32 %v3259, %v3311
        %s3316 = sld [smem:[#allocation15 + $0x40]]
        %v3317 = vstv %s3316
        %v3318 = vmul.f32 %v3317, %v3242
        %v3319 = vmul.f32 %v3317, %v3243
        %3322 = vrot.lane.b32.xlu0 %v3318, 126
        %v3323 = vpop.permute.xlu0 %3322
        %3324 = vrot.lane.b32.xlu0 %v3319, 126
        %v3325 = vpop.permute.xlu0 %3324
        %v3328 = vadd.f32 %v3272, %v3323
        %v3329 = vadd.f32 %v3273, %v3325
        %s3330 = sld [smem:[#allocation15 + $0x41]]
        %v3331 = vstv %s3330
        %v3332 = vmul.f32 %v3331, %v3242
        %v3333 = vmul.f32 %v3331, %v3243
        %3336 = vrot.lane.b32.xlu0 %v3332, 126
        %v3337 = vpop.permute.xlu0 %3336
        %3338 = vrot.lane.b32.xlu0 %v3333, 126
        %v3339 = vpop.permute.xlu0 %3338
        %v3342 = vadd.f32 %v3286, %v3337
        %v3343 = vadd.f32 %v3287, %v3339
        %s3344 = sld [smem:[#allocation15 + $0x42]]
        %v3345 = vstv %s3344
        %v3346 = vmul.f32 %v3345, %v3242
        %v3347 = vmul.f32 %v3345, %v3243
        %3350 = vrot.lane.b32.xlu0 %v3346, 126
        %v3351 = vpop.permute.xlu0 %3350
        %3352 = vrot.lane.b32.xlu0 %v3347, 126
        %v3353 = vpop.permute.xlu0 %3352
        %v3356 = vadd.f32 %v3300, %v3351
        %v3357 = vadd.f32 %v3301, %v3353
        %s3358 = sld [smem:[#allocation15 + $0x43]]
        %v3359 = vstv %s3358
        %v3360 = vmul.f32 %v3359, %v3242
        %v3361 = vmul.f32 %v3359, %v3243
        %3364 = vrot.lane.b32.xlu0 %v3360, 126
        %v3365 = vpop.permute.xlu0 %3364
        %3366 = vrot.lane.b32.xlu0 %v3361, 126
        %v3367 = vpop.permute.xlu0 %3366
        %v3370 = vadd.f32 %v3314, %v3365
        %v3371 = vadd.f32 %v3315, %v3367
        %v3372 = vld [vmem:[#allocation3 + $0x1] sm:$0xff]
        %v3373 = vld [vmem:[#allocation3 + $0x9] sm:$0xff]
        %s3374 = sld [smem:[#allocation15 + $0x60]]
        %v3375 = vstv %s3374
        %v3376 = vmul.f32 %v3375, %v3372
        %v3377 = vmul.f32 %v3375, %v3373
        %v3378 = vadd.f32 %v3328, %v3376
        %v3379 = vadd.f32 %v3329, %v3377
        %s3380 = sld [smem:[#allocation15 + $0x61]]
        %v3381 = vstv %s3380
        %v3382 = vmul.f32 %v3381, %v3372
        %v3383 = vmul.f32 %v3381, %v3373
        %v3384 = vadd.f32 %v3342, %v3382
        %v3385 = vadd.f32 %v3343, %v3383
        %s3386 = sld [smem:[#allocation15 + $0x62]]
        %v3387 = vstv %s3386
        %v3388 = vmul.f32 %v3387, %v3372
        %v3389 = vmul.f32 %v3387, %v3373
        %v3390 = vadd.f32 %v3356, %v3388
        %v3391 = vadd.f32 %v3357, %v3389
        %s3392 = sld [smem:[#allocation15 + $0x63]]
        %v3393 = vstv %s3392
        %v3394 = vmul.f32 %v3393, %v3372
        %v3395 = vmul.f32 %v3393, %v3373
        %v3396 = vadd.f32 %v3370, %v3394
        %v3397 = vadd.f32 %v3371, %v3395
        %s3398 = sld [smem:[#allocation15 + $0x80]]
        %v3399 = vstv %s3398
        %v3400 = vmul.f32 %v3399, %v3372
        %v3401 = vmul.f32 %v3399, %v3373
        %3404 = vrot.lane.b32.xlu0 %v3400, 127
        %v3405 = vpop.permute.xlu0 %3404
        %3406 = vrot.lane.b32.xlu0 %v3401, 127
        %v3407 = vpop.permute.xlu0 %3406
        %v3410 = vadd.f32 %v3378, %v3405
        %v3411 = vadd.f32 %v3379, %v3407
        %s3412 = sld [smem:[#allocation15 + $0x81]]
        %v3413 = vstv %s3412
        %v3414 = vmul.f32 %v3413, %v3372
        %v3415 = vmul.f32 %v3413, %v3373
        %3418 = vrot.lane.b32.xlu0 %v3414, 127
        %v3419 = vpop.permute.xlu0 %3418
        %3420 = vrot.lane.b32.xlu0 %v3415, 127
        %v3421 = vpop.permute.xlu0 %3420
        %v3424 = vadd.f32 %v3384, %v3419
        %v3425 = vadd.f32 %v3385, %v3421
        %s3426 = sld [smem:[#allocation15 + $0x82]]
        %v3427 = vstv %s3426
        %v3428 = vmul.f32 %v3427, %v3372
        %v3429 = vmul.f32 %v3427, %v3373
        %3432 = vrot.lane.b32.xlu0 %v3428, 127
        %v3433 = vpop.permute.xlu0 %3432
        %3434 = vrot.lane.b32.xlu0 %v3429, 127
        %v3435 = vpop.permute.xlu0 %3434
        %v3438 = vadd.f32 %v3390, %v3433
        %v3439 = vadd.f32 %v3391, %v3435
        %s3440 = sld [smem:[#allocation15 + $0x83]]
        %v3441 = vstv %s3440
        %v3442 = vmul.f32 %v3441, %v3372
        %v3443 = vmul.f32 %v3441, %v3373
        %3446 = vrot.lane.b32.xlu0 %v3442, 127
        %v3447 = vpop.permute.xlu0 %3446
        %3448 = vrot.lane.b32.xlu0 %v3443, 127
        %v3449 = vpop.permute.xlu0 %3448
        %v3452 = vadd.f32 %v3396, %v3447
        %v3453 = vadd.f32 %v3397, %v3449
        %s3454 = sld [smem:[#allocation15 + $0xa0]]
        %v3455 = vstv %s3454
        %v3456 = vmul.f32 %v3455, %v3372
        %v3457 = vmul.f32 %v3455, %v3373
        %3460 = vrot.lane.b32.xlu0 %v3456, 126
        %v3461 = vpop.permute.xlu0 %3460
        %3462 = vrot.lane.b32.xlu0 %v3457, 126
        %v3463 = vpop.permute.xlu0 %3462
        %v3466 = vadd.f32 %v3410, %v3461
        %v3467 = vadd.f32 %v3411, %v3463
        %s3468 = sld [smem:[#allocation15 + $0xa1]]
        %v3469 = vstv %s3468
        %v3470 = vmul.f32 %v3469, %v3372
        %v3471 = vmul.f32 %v3469, %v3373
        %3474 = vrot.lane.b32.xlu0 %v3470, 126
        %v3475 = vpop.permute.xlu0 %3474
        %3476 = vrot.lane.b32.xlu0 %v3471, 126
        %v3477 = vpop.permute.xlu0 %3476
        %v3480 = vadd.f32 %v3424, %v3475
        %v3481 = vadd.f32 %v3425, %v3477
        %s3482 = sld [smem:[#allocation15 + $0xa2]]
        %v3483 = vstv %s3482
        %v3484 = vmul.f32 %v3483, %v3372
        %v3485 = vmul.f32 %v3483, %v3373
        %3488 = vrot.lane.b32.xlu0 %v3484, 126
        %v3489 = vpop.permute.xlu0 %3488
        %3490 = vrot.lane.b32.xlu0 %v3485, 126
        %v3491 = vpop.permute.xlu0 %3490
        %v3494 = vadd.f32 %v3438, %v3489
        %v3495 = vadd.f32 %v3439, %v3491
        %s3496 = sld [smem:[#allocation15 + $0xa3]]
        %v3497 = vstv %s3496
        %v3498 = vmul.f32 %v3497, %v3372
        %v3499 = vmul.f32 %v3497, %v3373
        %3502 = vrot.lane.b32.xlu0 %v3498, 126
        %v3503 = vpop.permute.xlu0 %3502
        %3504 = vrot.lane.b32.xlu0 %v3499, 126
        %v3505 = vpop.permute.xlu0 %3504
        %v3508 = vadd.f32 %v3452, %v3503
        %v3509 = vadd.f32 %v3453, %v3505
        %v3510 = vld [vmem:[#allocation3 + $0x2] sm:$0xff]
        %v3511 = vld [vmem:[#allocation3 + $0xa] sm:$0xff]
        %s3512 = sld [smem:[#allocation15 + $0xc0]]
        %v3513 = vstv %s3512
        %v3514 = vmul.f32 %v3513, %v3510
        %v3515 = vmul.f32 %v3513, %v3511
        %v3516 = vadd.f32 %v3466, %v3514
        %v3517 = vadd.f32 %v3467, %v3515
        %s3518 = sld [smem:[#allocation15 + $0xc1]]
        %v3519 = vstv %s3518
        %v3520 = vmul.f32 %v3519, %v3510
        %v3521 = vmul.f32 %v3519, %v3511
        %v3522 = vadd.f32 %v3480, %v3520
        %v3523 = vadd.f32 %v3481, %v3521
        %s3524 = sld [smem:[#allocation15 + $0xc2]]
        %v3525 = vstv %s3524
        %v3526 = vmul.f32 %v3525, %v3510
        %v3527 = vmul.f32 %v3525, %v3511
        %v3528 = vadd.f32 %v3494, %v3526
        %v3529 = vadd.f32 %v3495, %v3527
        %s3530 = sld [smem:[#allocation15 + $0xc3]]
        %v3531 = vstv %s3530
        %v3532 = vmul.f32 %v3531, %v3510
        %v3533 = vmul.f32 %v3531, %v3511
        %v3534 = vadd.f32 %v3508, %v3532
        %v3535 = vadd.f32 %v3509, %v3533
        %s3536 = sld [smem:[#allocation15 + $0xe0]]
        %v3537 = vstv %s3536
        %v3538 = vmul.f32 %v3537, %v3510
        %v3539 = vmul.f32 %v3537, %v3511
        %3542 = vrot.lane.b32.xlu0 %v3538, 127
        %v3543 = vpop.permute.xlu0 %3542
        %3544 = vrot.lane.b32.xlu0 %v3539, 127
        %v3545 = vpop.permute.xlu0 %3544
        %v3548 = vadd.f32 %v3516, %v3543
        %v3549 = vadd.f32 %v3517, %v3545
        %s3550 = sld [smem:[#allocation15 + $0xe1]]
        %v3551 = vstv %s3550
        %v3552 = vmul.f32 %v3551, %v3510
        %v3553 = vmul.f32 %v3551, %v3511
        %3556 = vrot.lane.b32.xlu0 %v3552, 127
        %v3557 = vpop.permute.xlu0 %3556
        %3558 = vrot.lane.b32.xlu0 %v3553, 127
        %v3559 = vpop.permute.xlu0 %3558
        %v3562 = vadd.f32 %v3522, %v3557
        %v3563 = vadd.f32 %v3523, %v3559
        %s3564 = sld [smem:[#allocation15 + $0xe2]]
        %v3565 = vstv %s3564
        %v3566 = vmul.f32 %v3565, %v3510
        %v3567 = vmul.f32 %v3565, %v3511
        %3570 = vrot.lane.b32.xlu0 %v3566, 127
        %v3571 = vpop.permute.xlu0 %3570
        %3572 = vrot.lane.b32.xlu0 %v3567, 127
        %v3573 = vpop.permute.xlu0 %3572
        %v3576 = vadd.f32 %v3528, %v3571
        %v3577 = vadd.f32 %v3529, %v3573
        %s3578 = sld [smem:[#allocation15 + $0xe3]]
        %v3579 = vstv %s3578
        %v3580 = vmul.f32 %v3579, %v3510
        %v3581 = vmul.f32 %v3579, %v3511
        %3584 = vrot.lane.b32.xlu0 %v3580, 127
        %v3585 = vpop.permute.xlu0 %3584
        %3586 = vrot.lane.b32.xlu0 %v3581, 127
        %v3587 = vpop.permute.xlu0 %3586
        %v3590 = vadd.f32 %v3534, %v3585
        %v3591 = vadd.f32 %v3535, %v3587
        %s3592 = sld [smem:[#allocation15 + $0x100]]
        %v3593 = vstv %s3592
        %v3594 = vmul.f32 %v3593, %v3510
        %v3595 = vmul.f32 %v3593, %v3511
        %3598 = vrot.lane.b32.xlu0 %v3594, 126
        %v3599 = vpop.permute.xlu0 %3598
        %3600 = vrot.lane.b32.xlu0 %v3595, 126
        %v3601 = vpop.permute.xlu0 %3600
        %v3604 = vadd.f32 %v3548, %v3599
        %v3605 = vadd.f32 %v3549, %v3601
        %s3606 = sld [smem:[#allocation15 + $0x101]]
        %v3607 = vstv %s3606
        %v3608 = vmul.f32 %v3607, %v3510
        %v3609 = vmul.f32 %v3607, %v3511
        %3612 = vrot.lane.b32.xlu0 %v3608, 126
        %v3613 = vpop.permute.xlu0 %3612
        %3614 = vrot.lane.b32.xlu0 %v3609, 126
        %v3615 = vpop.permute.xlu0 %3614
        %v3618 = vadd.f32 %v3562, %v3613
        %v3619 = vadd.f32 %v3563, %v3615
        %s3620 = sld [smem:[#allocation15 + $0x102]]
        %v3621 = vstv %s3620
        %v3622 = vmul.f32 %v3621, %v3510
        %v3623 = vmul.f32 %v3621, %v3511
        %3626 = vrot.lane.b32.xlu0 %v3622, 126
        %v3627 = vpop.permute.xlu0 %3626
        %3628 = vrot.lane.b32.xlu0 %v3623, 126
        %v3629 = vpop.permute.xlu0 %3628
        %v3632 = vadd.f32 %v3576, %v3627
        %v3633 = vadd.f32 %v3577, %v3629
        %s3634 = sld [smem:[#allocation15 + $0x103]]
        %v3635 = vstv %s3634
        %v3636 = vmul.f32 %v3635, %v3510
        %v3637 = vmul.f32 %v3635, %v3511
        %3640 = vrot.lane.b32.xlu0 %v3636, 126
        %v3641 = vpop.permute.xlu0 %3640
        %3642 = vrot.lane.b32.xlu0 %v3637, 126
        %v3643 = vpop.permute.xlu0 %3642
        %v3646 = vadd.f32 %v3590, %v3641
        %v3647 = vadd.f32 %v3591, %v3643
        %v3648 = vld [vmem:[%s3173] sm:$0xff]
        %v3649 = vld [vmem:[%s3173 + $0x8] sm:$0xff]
        %s3650 = sld [smem:[#allocation15 + $0x4]]
        %v3651 = vstv %s3650
        %v3652 = vmul.f32 %v3651, %v3648
        %v3653 = vmul.f32 %v3651, %v3649
        %v3654 = vadd.f32 %v3604, %v3652
        %v3655 = vadd.f32 %v3605, %v3653
        %s3656 = sld [smem:[#allocation15 + $0x5]]
        %v3657 = vstv %s3656
        %v3658 = vmul.f32 %v3657, %v3648
        %v3659 = vmul.f32 %v3657, %v3649
        %v3660 = vadd.f32 %v3618, %v3658
        %v3661 = vadd.f32 %v3619, %v3659
        %s3662 = sld [smem:[#allocation15 + $0x6]]
        %v3663 = vstv %s3662
        %v3664 = vmul.f32 %v3663, %v3648
        %v3665 = vmul.f32 %v3663, %v3649
        %v3666 = vadd.f32 %v3632, %v3664
        %v3667 = vadd.f32 %v3633, %v3665
        %s3668 = sld [smem:[#allocation15 + $0x7]]
        %v3669 = vstv %s3668
        %v3670 = vmul.f32 %v3669, %v3648
        %v3671 = vmul.f32 %v3669, %v3649
        %v3672 = vadd.f32 %v3646, %v3670
        %v3673 = vadd.f32 %v3647, %v3671
        %s3674 = sld [smem:[#allocation15 + $0x24]]
        %v3675 = vstv %s3674
        %v3676 = vmul.f32 %v3675, %v3648
        %v3677 = vmul.f32 %v3675, %v3649
        %3680 = vrot.lane.b32.xlu0 %v3676, 127
        %v3681 = vpop.permute.xlu0 %3680
        %3682 = vrot.lane.b32.xlu0 %v3677, 127
        %v3683 = vpop.permute.xlu0 %3682
        %v3686 = vadd.f32 %v3654, %v3681
        %v3687 = vadd.f32 %v3655, %v3683
        %s3688 = sld [smem:[#allocation15 + $0x25]]
        %v3689 = vstv %s3688
        %v3690 = vmul.f32 %v3689, %v3648
        %v3691 = vmul.f32 %v3689, %v3649
        %3694 = vrot.lane.b32.xlu0 %v3690, 127
        %v3695 = vpop.permute.xlu0 %3694
        %3696 = vrot.lane.b32.xlu0 %v3691, 127
        %v3697 = vpop.permute.xlu0 %3696
        %v3700 = vadd.f32 %v3660, %v3695
        %v3701 = vadd.f32 %v3661, %v3697
        %s3702 = sld [smem:[#allocation15 + $0x26]]
        %v3703 = vstv %s3702
        %v3704 = vmul.f32 %v3703, %v3648
        %v3705 = vmul.f32 %v3703, %v3649
        %3708 = vrot.lane.b32.xlu0 %v3704, 127
        %v3709 = vpop.permute.xlu0 %3708
        %3710 = vrot.lane.b32.xlu0 %v3705, 127
        %v3711 = vpop.permute.xlu0 %3710
        %v3714 = vadd.f32 %v3666, %v3709
        %v3715 = vadd.f32 %v3667, %v3711
        %s3716 = sld [smem:[#allocation15 + $0x27]]
        %v3717 = vstv %s3716
        %v3718 = vmul.f32 %v3717, %v3648
        %v3719 = vmul.f32 %v3717, %v3649
        %3722 = vrot.lane.b32.xlu0 %v3718, 127
        %v3723 = vpop.permute.xlu0 %3722
        %3724 = vrot.lane.b32.xlu0 %v3719, 127
        %v3725 = vpop.permute.xlu0 %3724
        %v3728 = vadd.f32 %v3672, %v3723
        %v3729 = vadd.f32 %v3673, %v3725
        %s3730 = sld [smem:[#allocation15 + $0x44]]
        %v3731 = vstv %s3730
        %v3732 = vmul.f32 %v3731, %v3648
        %v3733 = vmul.f32 %v3731, %v3649
        %3736 = vrot.lane.b32.xlu0 %v3732, 126
        %v3737 = vpop.permute.xlu0 %3736
        %3738 = vrot.lane.b32.xlu0 %v3733, 126
        %v3739 = vpop.permute.xlu0 %3738
        %v3742 = vadd.f32 %v3686, %v3737
        %v3743 = vadd.f32 %v3687, %v3739
        %s3744 = sld [smem:[#allocation15 + $0x45]]
        %v3745 = vstv %s3744
        %v3746 = vmul.f32 %v3745, %v3648
        %v3747 = vmul.f32 %v3745, %v3649
        %3750 = vrot.lane.b32.xlu0 %v3746, 126
        %v3751 = vpop.permute.xlu0 %3750
        %3752 = vrot.lane.b32.xlu0 %v3747, 126
        %v3753 = vpop.permute.xlu0 %3752
        %v3756 = vadd.f32 %v3700, %v3751
        %v3757 = vadd.f32 %v3701, %v3753
        %s3758 = sld [smem:[#allocation15 + $0x46]]
        %v3759 = vstv %s3758
        %v3760 = vmul.f32 %v3759, %v3648
        %v3761 = vmul.f32 %v3759, %v3649
        %3764 = vrot.lane.b32.xlu0 %v3760, 126
        %v3765 = vpop.permute.xlu0 %3764
        %3766 = vrot.lane.b32.xlu0 %v3761, 126
        %v3767 = vpop.permute.xlu0 %3766
        %v3770 = vadd.f32 %v3714, %v3765
        %v3771 = vadd.f32 %v3715, %v3767
        %s3772 = sld [smem:[#allocation15 + $0x47]]
        %v3773 = vstv %s3772
        %v3774 = vmul.f32 %v3773, %v3648
        %v3775 = vmul.f32 %v3773, %v3649
        %3778 = vrot.lane.b32.xlu0 %v3774, 126
        %v3779 = vpop.permute.xlu0 %3778
        %3780 = vrot.lane.b32.xlu0 %v3775, 126
        %v3781 = vpop.permute.xlu0 %3780
        %v3784 = vadd.f32 %v3728, %v3779
        %v3785 = vadd.f32 %v3729, %v3781
        %v3786 = vld [vmem:[%s3173 + $0x1] sm:$0xff]
        %v3787 = vld [vmem:[%s3173 + $0x9] sm:$0xff]
        %s3788 = sld [smem:[#allocation15 + $0x64]]
        %v3789 = vstv %s3788
        %v3790 = vmul.f32 %v3789, %v3786
        %v3791 = vmul.f32 %v3789, %v3787
        %v3792 = vadd.f32 %v3742, %v3790
        %v3793 = vadd.f32 %v3743, %v3791
        %s3794 = sld [smem:[#allocation15 + $0x65]]
        %v3795 = vstv %s3794
        %v3796 = vmul.f32 %v3795, %v3786
        %v3797 = vmul.f32 %v3795, %v3787
        %v3798 = vadd.f32 %v3756, %v3796
        %v3799 = vadd.f32 %v3757, %v3797
        %s3800 = sld [smem:[#allocation15 + $0x66]]
        %v3801 = vstv %s3800
        %v3802 = vmul.f32 %v3801, %v3786
        %v3803 = vmul.f32 %v3801, %v3787
        %v3804 = vadd.f32 %v3770, %v3802
        %v3805 = vadd.f32 %v3771, %v3803
        %s3806 = sld [smem:[#allocation15 + $0x67]]
        %v3807 = vstv %s3806
        %v3808 = vmul.f32 %v3807, %v3786
        %v3809 = vmul.f32 %v3807, %v3787
        %v3810 = vadd.f32 %v3784, %v3808
        %v3811 = vadd.f32 %v3785, %v3809
        %s3812 = sld [smem:[#allocation15 + $0x84]]
        %v3813 = vstv %s3812
        %v3814 = vmul.f32 %v3813, %v3786
        %v3815 = vmul.f32 %v3813, %v3787
        %3818 = vrot.lane.b32.xlu0 %v3814, 127
        %v3819 = vpop.permute.xlu0 %3818
        %3820 = vrot.lane.b32.xlu0 %v3815, 127
        %v3821 = vpop.permute.xlu0 %3820
        %v3824 = vadd.f32 %v3792, %v3819
        %v3825 = vadd.f32 %v3793, %v3821
        %s3826 = sld [smem:[#allocation15 + $0x85]]
        %v3827 = vstv %s3826
        %v3828 = vmul.f32 %v3827, %v3786
        %v3829 = vmul.f32 %v3827, %v3787
        %3832 = vrot.lane.b32.xlu0 %v3828, 127
        %v3833 = vpop.permute.xlu0 %3832
        %3834 = vrot.lane.b32.xlu0 %v3829, 127
        %v3835 = vpop.permute.xlu0 %3834
        %v3838 = vadd.f32 %v3798, %v3833
        %v3839 = vadd.f32 %v3799, %v3835
        %s3840 = sld [smem:[#allocation15 + $0x86]]
        %v3841 = vstv %s3840
        %v3842 = vmul.f32 %v3841, %v3786
        %v3843 = vmul.f32 %v3841, %v3787
        %3846 = vrot.lane.b32.xlu0 %v3842, 127
        %v3847 = vpop.permute.xlu0 %3846
        %3848 = vrot.lane.b32.xlu0 %v3843, 127
        %v3849 = vpop.permute.xlu0 %3848
        %v3852 = vadd.f32 %v3804, %v3847
        %v3853 = vadd.f32 %v3805, %v3849
        %s3854 = sld [smem:[#allocation15 + $0x87]]
        %v3855 = vstv %s3854
        %v3856 = vmul.f32 %v3855, %v3786
        %v3857 = vmul.f32 %v3855, %v3787
        %3860 = vrot.lane.b32.xlu0 %v3856, 127
        %v3861 = vpop.permute.xlu0 %3860
        %3862 = vrot.lane.b32.xlu0 %v3857, 127
        %v3863 = vpop.permute.xlu0 %3862
        %v3866 = vadd.f32 %v3810, %v3861
        %v3867 = vadd.f32 %v3811, %v3863
        %s3868 = sld [smem:[#allocation15 + $0xa4]]
        %v3869 = vstv %s3868
        %v3870 = vmul.f32 %v3869, %v3786
        %v3871 = vmul.f32 %v3869, %v3787
        %3874 = vrot.lane.b32.xlu0 %v3870, 126
        %v3875 = vpop.permute.xlu0 %3874
        %3876 = vrot.lane.b32.xlu0 %v3871, 126
        %v3877 = vpop.permute.xlu0 %3876
        %v3880 = vadd.f32 %v3824, %v3875
        %v3881 = vadd.f32 %v3825, %v3877
        %s3882 = sld [smem:[#allocation15 + $0xa5]]
        %v3883 = vstv %s3882
        %v3884 = vmul.f32 %v3883, %v3786
        %v3885 = vmul.f32 %v3883, %v3787
        %3888 = vrot.lane.b32.xlu0 %v3884, 126
        %v3889 = vpop.permute.xlu0 %3888
        %3890 = vrot.lane.b32.xlu0 %v3885, 126
        %v3891 = vpop.permute.xlu0 %3890
        %v3894 = vadd.f32 %v3838, %v3889
        %v3895 = vadd.f32 %v3839, %v3891
        %s3896 = sld [smem:[#allocation15 + $0xa6]]
        %v3897 = vstv %s3896
        %v3898 = vmul.f32 %v3897, %v3786
        %v3899 = vmul.f32 %v3897, %v3787
        %3902 = vrot.lane.b32.xlu0 %v3898, 126
        %v3903 = vpop.permute.xlu0 %3902
        %3904 = vrot.lane.b32.xlu0 %v3899, 126
        %v3905 = vpop.permute.xlu0 %3904
        %v3908 = vadd.f32 %v3852, %v3903
        %v3909 = vadd.f32 %v3853, %v3905
        %s3910 = sld [smem:[#allocation15 + $0xa7]]
        %v3911 = vstv %s3910
        %v3912 = vmul.f32 %v3911, %v3786
        %v3913 = vmul.f32 %v3911, %v3787
        %3916 = vrot.lane.b32.xlu0 %v3912, 126
        %v3917 = vpop.permute.xlu0 %3916
        %3918 = vrot.lane.b32.xlu0 %v3913, 126
        %v3919 = vpop.permute.xlu0 %3918
        %v3922 = vadd.f32 %v3866, %v3917
        %v3923 = vadd.f32 %v3867, %v3919
        %v3924 = vld [vmem:[%s3173 + $0x2] sm:$0xff]
        %v3925 = vld [vmem:[%s3173 + $0xa] sm:$0xff]
        %s3926 = sld [smem:[#allocation15 + $0xc4]]
        %v3927 = vstv %s3926
        %v3928 = vmul.f32 %v3927, %v3924
        %v3929 = vmul.f32 %v3927, %v3925
        %v3930 = vadd.f32 %v3880, %v3928
        %v3931 = vadd.f32 %v3881, %v3929
        %s3932 = sld [smem:[#allocation15 + $0xc5]]
        %v3933 = vstv %s3932
        %v3934 = vmul.f32 %v3933, %v3924
        %v3935 = vmul.f32 %v3933, %v3925
        %v3936 = vadd.f32 %v3894, %v3934
        %v3937 = vadd.f32 %v3895, %v3935
        %s3938 = sld [smem:[#allocation15 + $0xc6]]
        %v3939 = vstv %s3938
        %v3940 = vmul.f32 %v3939, %v3924
        %v3941 = vmul.f32 %v3939, %v3925
        %v3942 = vadd.f32 %v3908, %v3940
        %v3943 = vadd.f32 %v3909, %v3941
        %s3944 = sld [smem:[#allocation15 + $0xc7]]
        %v3945 = vstv %s3944
        %v3946 = vmul.f32 %v3945, %v3924
        %v3947 = vmul.f32 %v3945, %v3925
        %v3948 = vadd.f32 %v3922, %v3946
        %v3949 = vadd.f32 %v3923, %v3947
        %s3950 = sld [smem:[#allocation15 + $0xe4]]
        %v3951 = vstv %s3950
        %v3952 = vmul.f32 %v3951, %v3924
        %v3953 = vmul.f32 %v3951, %v3925
        %3956 = vrot.lane.b32.xlu0 %v3952, 127
        %v3957 = vpop.permute.xlu0 %3956
        %3958 = vrot.lane.b32.xlu0 %v3953, 127
        %v3959 = vpop.permute.xlu0 %3958
        %v3962 = vadd.f32 %v3930, %v3957
        %v3963 = vadd.f32 %v3931, %v3959
        %s3964 = sld [smem:[#allocation15 + $0xe5]]
        %v3965 = vstv %s3964
        %v3966 = vmul.f32 %v3965, %v3924
        %v3967 = vmul.f32 %v3965, %v3925
        %3970 = vrot.lane.b32.xlu0 %v3966, 127
        %v3971 = vpop.permute.xlu0 %3970
        %3972 = vrot.lane.b32.xlu0 %v3967, 127
        %v3973 = vpop.permute.xlu0 %3972
        %v3976 = vadd.f32 %v3936, %v3971
        %v3977 = vadd.f32 %v3937, %v3973
        %s3978 = sld [smem:[#allocation15 + $0xe6]]
        %v3979 = vstv %s3978
        %v3980 = vmul.f32 %v3979, %v3924
        %v3981 = vmul.f32 %v3979, %v3925
        %3984 = vrot.lane.b32.xlu0 %v3980, 127
        %v3985 = vpop.permute.xlu0 %3984
        %3986 = vrot.lane.b32.xlu0 %v3981, 127
        %v3987 = vpop.permute.xlu0 %3986
        %v3990 = vadd.f32 %v3942, %v3985
        %v3991 = vadd.f32 %v3943, %v3987
        %s3992 = sld [smem:[#allocation15 + $0xe7]]
        %v3993 = vstv %s3992
        %v3994 = vmul.f32 %v3993, %v3924
        %v3995 = vmul.f32 %v3993, %v3925
        %3998 = vrot.lane.b32.xlu0 %v3994, 127
        %v3999 = vpop.permute.xlu0 %3998
        %4000 = vrot.lane.b32.xlu0 %v3995, 127
        %v4001 = vpop.permute.xlu0 %4000
        %v4004 = vadd.f32 %v3948, %v3999
        %v4005 = vadd.f32 %v3949, %v4001
        %s4006 = sld [smem:[#allocation15 + $0x104]]
        %v4007 = vstv %s4006
        %v4008 = vmul.f32 %v4007, %v3924
        %v4009 = vmul.f32 %v4007, %v3925
        %4012 = vrot.lane.b32.xlu0 %v4008, 126
        %v4013 = vpop.permute.xlu0 %4012
        %4014 = vrot.lane.b32.xlu0 %v4009, 126
        %v4015 = vpop.permute.xlu0 %4014
        %v4018 = vadd.f32 %v3962, %v4013
        %v4019 = vadd.f32 %v3963, %v4015
        %s4020 = sld [smem:[#allocation15 + $0x105]]
        %v4021 = vstv %s4020
        %v4022 = vmul.f32 %v4021, %v3924
        %v4023 = vmul.f32 %v4021, %v3925
        %4026 = vrot.lane.b32.xlu0 %v4022, 126
        %v4027 = vpop.permute.xlu0 %4026
        %4028 = vrot.lane.b32.xlu0 %v4023, 126
        %v4029 = vpop.permute.xlu0 %4028
        %v4032 = vadd.f32 %v3976, %v4027
        %v4033 = vadd.f32 %v3977, %v4029
        %s4034 = sld [smem:[#allocation15 + $0x106]]
        %v4035 = vstv %s4034
        %v4036 = vmul.f32 %v4035, %v3924
        %v4037 = vmul.f32 %v4035, %v3925
        %4040 = vrot.lane.b32.xlu0 %v4036, 126
        %v4041 = vpop.permute.xlu0 %4040
        %4042 = vrot.lane.b32.xlu0 %v4037, 126
        %v4043 = vpop.permute.xlu0 %4042
        %v4046 = vadd.f32 %v3990, %v4041
        %v4047 = vadd.f32 %v3991, %v4043
        %s4048 = sld [smem:[#allocation15 + $0x107]]
        %v4049 = vstv %s4048
        %v4050 = vmul.f32 %v4049, %v3924
        %v4051 = vmul.f32 %v4049, %v3925
        %4054 = vrot.lane.b32.xlu0 %v4050, 126
        %v4055 = vpop.permute.xlu0 %4054
        %4056 = vrot.lane.b32.xlu0 %v4051, 126
        %v4057 = vpop.permute.xlu0 %4056
        %v4060 = vadd.f32 %v4004, %v4055
        %v4061 = vadd.f32 %v4005, %v4057
        %v4062 = vld [vmem:[%s3184] sm:$0xff]
        %v4063 = vld [vmem:[%s3184 + $0x8] sm:$0xff]
        %s4064 = sld [smem:[#allocation15 + $0x8]]
        %v4065 = vstv %s4064
        %v4066 = vmul.f32 %v4065, %v4062
        %v4067 = vmul.f32 %v4065, %v4063
        %v4068 = vadd.f32 %v4018, %v4066
        %v4069 = vadd.f32 %v4019, %v4067
        %s4070 = sld [smem:[#allocation15 + $0x9]]
        %v4071 = vstv %s4070
        %v4072 = vmul.f32 %v4071, %v4062
        %v4073 = vmul.f32 %v4071, %v4063
        %v4074 = vadd.f32 %v4032, %v4072
        %v4075 = vadd.f32 %v4033, %v4073
        %s4076 = sld [smem:[#allocation15 + $0xa]]
        %v4077 = vstv %s4076
        %v4078 = vmul.f32 %v4077, %v4062
        %v4079 = vmul.f32 %v4077, %v4063
        %v4080 = vadd.f32 %v4046, %v4078
        %v4081 = vadd.f32 %v4047, %v4079
        %s4082 = sld [smem:[#allocation15 + $0xb]]
        %v4083 = vstv %s4082
        %v4084 = vmul.f32 %v4083, %v4062
        %v4085 = vmul.f32 %v4083, %v4063
        %v4086 = vadd.f32 %v4060, %v4084
        %v4087 = vadd.f32 %v4061, %v4085
        %s4088 = sld [smem:[#allocation15 + $0x28]]
        %v4089 = vstv %s4088
        %v4090 = vmul.f32 %v4089, %v4062
        %v4091 = vmul.f32 %v4089, %v4063
        %4094 = vrot.lane.b32.xlu0 %v4090, 127
        %v4095 = vpop.permute.xlu0 %4094
        %4096 = vrot.lane.b32.xlu0 %v4091, 127
        %v4097 = vpop.permute.xlu0 %4096
        %v4100 = vadd.f32 %v4068, %v4095
        %v4101 = vadd.f32 %v4069, %v4097
        %s4102 = sld [smem:[#allocation15 + $0x29]]
        %v4103 = vstv %s4102
        %v4104 = vmul.f32 %v4103, %v4062
        %v4105 = vmul.f32 %v4103, %v4063
        %4108 = vrot.lane.b32.xlu0 %v4104, 127
        %v4109 = vpop.permute.xlu0 %4108
        %4110 = vrot.lane.b32.xlu0 %v4105, 127
        %v4111 = vpop.permute.xlu0 %4110
        %v4114 = vadd.f32 %v4074, %v4109
        %v4115 = vadd.f32 %v4075, %v4111
        %s4116 = sld [smem:[#allocation15 + $0x2a]]
        %v4117 = vstv %s4116
        %v4118 = vmul.f32 %v4117, %v4062
        %v4119 = vmul.f32 %v4117, %v4063
        %4122 = vrot.lane.b32.xlu0 %v4118, 127
        %v4123 = vpop.permute.xlu0 %4122
        %4124 = vrot.lane.b32.xlu0 %v4119, 127
        %v4125 = vpop.permute.xlu0 %4124
        %v4128 = vadd.f32 %v4080, %v4123
        %v4129 = vadd.f32 %v4081, %v4125
        %s4130 = sld [smem:[#allocation15 + $0x2b]]
        %v4131 = vstv %s4130
        %v4132 = vmul.f32 %v4131, %v4062
        %v4133 = vmul.f32 %v4131, %v4063
        %4136 = vrot.lane.b32.xlu0 %v4132, 127
        %v4137 = vpop.permute.xlu0 %4136
        %4138 = vrot.lane.b32.xlu0 %v4133, 127
        %v4139 = vpop.permute.xlu0 %4138
        %v4142 = vadd.f32 %v4086, %v4137
        %v4143 = vadd.f32 %v4087, %v4139
        %s4144 = sld [smem:[#allocation15 + $0x48]]
        %v4145 = vstv %s4144
        %v4146 = vmul.f32 %v4145, %v4062
        %v4147 = vmul.f32 %v4145, %v4063
        %4150 = vrot.lane.b32.xlu0 %v4146, 126
        %v4151 = vpop.permute.xlu0 %4150
        %4152 = vrot.lane.b32.xlu0 %v4147, 126
        %v4153 = vpop.permute.xlu0 %4152
        %v4156 = vadd.f32 %v4100, %v4151
        %v4157 = vadd.f32 %v4101, %v4153
        %s4158 = sld [smem:[#allocation15 + $0x49]]
        %v4159 = vstv %s4158
        %v4160 = vmul.f32 %v4159, %v4062
        %v4161 = vmul.f32 %v4159, %v4063
        %4164 = vrot.lane.b32.xlu0 %v4160, 126
        %v4165 = vpop.permute.xlu0 %4164
        %4166 = vrot.lane.b32.xlu0 %v4161, 126
        %v4167 = vpop.permute.xlu0 %4166
        %v4170 = vadd.f32 %v4114, %v4165
        %v4171 = vadd.f32 %v4115, %v4167
        %s4172 = sld [smem:[#allocation15 + $0x4a]]
        %v4173 = vstv %s4172
        %v4174 = vmul.f32 %v4173, %v4062
        %v4175 = vmul.f32 %v4173, %v4063
        %4178 = vrot.lane.b32.xlu0 %v4174, 126
        %v4179 = vpop.permute.xlu0 %4178
        %4180 = vrot.lane.b32.xlu0 %v4175, 126
        %v4181 = vpop.permute.xlu0 %4180
        %v4184 = vadd.f32 %v4128, %v4179
        %v4185 = vadd.f32 %v4129, %v4181
        %s4186 = sld [smem:[#allocation15 + $0x4b]]
        %v4187 = vstv %s4186
        %v4188 = vmul.f32 %v4187, %v4062
        %v4189 = vmul.f32 %v4187, %v4063
        %4192 = vrot.lane.b32.xlu0 %v4188, 126
        %v4193 = vpop.permute.xlu0 %4192
        %4194 = vrot.lane.b32.xlu0 %v4189, 126
        %v4195 = vpop.permute.xlu0 %4194
        %v4198 = vadd.f32 %v4142, %v4193
        %v4199 = vadd.f32 %v4143, %v4195
        %v4200 = vld [vmem:[%s3184 + $0x1] sm:$0xff]
        %v4201 = vld [vmem:[%s3184 + $0x9] sm:$0xff]
        %s4202 = sld [smem:[#allocation15 + $0x68]]
        %v4203 = vstv %s4202
        %v4204 = vmul.f32 %v4203, %v4200
        %v4205 = vmul.f32 %v4203, %v4201
        %v4206 = vadd.f32 %v4156, %v4204
        %v4207 = vadd.f32 %v4157, %v4205
        %s4208 = sld [smem:[#allocation15 + $0x69]]
        %v4209 = vstv %s4208
        %v4210 = vmul.f32 %v4209, %v4200
        %v4211 = vmul.f32 %v4209, %v4201
        %v4212 = vadd.f32 %v4170, %v4210
        %v4213 = vadd.f32 %v4171, %v4211
        %s4214 = sld [smem:[#allocation15 + $0x6a]]
        %v4215 = vstv %s4214
        %v4216 = vmul.f32 %v4215, %v4200
        %v4217 = vmul.f32 %v4215, %v4201
        %v4218 = vadd.f32 %v4184, %v4216
        %v4219 = vadd.f32 %v4185, %v4217
        %s4220 = sld [smem:[#allocation15 + $0x6b]]
        %v4221 = vstv %s4220
        %v4222 = vmul.f32 %v4221, %v4200
        %v4223 = vmul.f32 %v4221, %v4201
        %v4224 = vadd.f32 %v4198, %v4222
        %v4225 = vadd.f32 %v4199, %v4223
        %s4226 = sld [smem:[#allocation15 + $0x88]]
        %v4227 = vstv %s4226
        %v4228 = vmul.f32 %v4227, %v4200
        %v4229 = vmul.f32 %v4227, %v4201
        %4232 = vrot.lane.b32.xlu0 %v4228, 127
        %v4233 = vpop.permute.xlu0 %4232
        %4234 = vrot.lane.b32.xlu0 %v4229, 127
        %v4235 = vpop.permute.xlu0 %4234
        %v4238 = vadd.f32 %v4206, %v4233
        %v4239 = vadd.f32 %v4207, %v4235
        %s4240 = sld [smem:[#allocation15 + $0x89]]
        %v4241 = vstv %s4240
        %v4242 = vmul.f32 %v4241, %v4200
        %v4243 = vmul.f32 %v4241, %v4201
        %4246 = vrot.lane.b32.xlu0 %v4242, 127
        %v4247 = vpop.permute.xlu0 %4246
        %4248 = vrot.lane.b32.xlu0 %v4243, 127
        %v4249 = vpop.permute.xlu0 %4248
        %v4252 = vadd.f32 %v4212, %v4247
        %v4253 = vadd.f32 %v4213, %v4249
        %s4254 = sld [smem:[#allocation15 + $0x8a]]
        %v4255 = vstv %s4254
        %v4256 = vmul.f32 %v4255, %v4200
        %v4257 = vmul.f32 %v4255, %v4201
        %4260 = vrot.lane.b32.xlu0 %v4256, 127
        %v4261 = vpop.permute.xlu0 %4260
        %4262 = vrot.lane.b32.xlu0 %v4257, 127
        %v4263 = vpop.permute.xlu0 %4262
        %v4266 = vadd.f32 %v4218, %v4261
        %v4267 = vadd.f32 %v4219, %v4263
        %s4268 = sld [smem:[#allocation15 + $0x8b]]
        %v4269 = vstv %s4268
        %v4270 = vmul.f32 %v4269, %v4200
        %v4271 = vmul.f32 %v4269, %v4201
        %4274 = vrot.lane.b32.xlu0 %v4270, 127
        %v4275 = vpop.permute.xlu0 %4274
        %4276 = vrot.lane.b32.xlu0 %v4271, 127
        %v4277 = vpop.permute.xlu0 %4276
        %v4280 = vadd.f32 %v4224, %v4275
        %v4281 = vadd.f32 %v4225, %v4277
        %s4282 = sld [smem:[#allocation15 + $0xa8]]
        %v4283 = vstv %s4282
        %v4284 = vmul.f32 %v4283, %v4200
        %v4285 = vmul.f32 %v4283, %v4201
        %4288 = vrot.lane.b32.xlu0 %v4284, 126
        %v4289 = vpop.permute.xlu0 %4288
        %4290 = vrot.lane.b32.xlu0 %v4285, 126
        %v4291 = vpop.permute.xlu0 %4290
        %v4294 = vadd.f32 %v4238, %v4289
        %v4295 = vadd.f32 %v4239, %v4291
        %s4296 = sld [smem:[#allocation15 + $0xa9]]
        %v4297 = vstv %s4296
        %v4298 = vmul.f32 %v4297, %v4200
        %v4299 = vmul.f32 %v4297, %v4201
        %4302 = vrot.lane.b32.xlu0 %v4298, 126
        %v4303 = vpop.permute.xlu0 %4302
        %4304 = vrot.lane.b32.xlu0 %v4299, 126
        %v4305 = vpop.permute.xlu0 %4304
        %v4308 = vadd.f32 %v4252, %v4303
        %v4309 = vadd.f32 %v4253, %v4305
        %s4310 = sld [smem:[#allocation15 + $0xaa]]
        %v4311 = vstv %s4310
        %v4312 = vmul.f32 %v4311, %v4200
        %v4313 = vmul.f32 %v4311, %v4201
        %4316 = vrot.lane.b32.xlu0 %v4312, 126
        %v4317 = vpop.permute.xlu0 %4316
        %4318 = vrot.lane.b32.xlu0 %v4313, 126
        %v4319 = vpop.permute.xlu0 %4318
        %v4322 = vadd.f32 %v4266, %v4317
        %v4323 = vadd.f32 %v4267, %v4319
        %s4324 = sld [smem:[#allocation15 + $0xab]]
        %v4325 = vstv %s4324
        %v4326 = vmul.f32 %v4325, %v4200
        %v4327 = vmul.f32 %v4325, %v4201
        %4330 = vrot.lane.b32.xlu0 %v4326, 126
        %v4331 = vpop.permute.xlu0 %4330
        %4332 = vrot.lane.b32.xlu0 %v4327, 126
        %v4333 = vpop.permute.xlu0 %4332
        %v4336 = vadd.f32 %v4280, %v4331
        %v4337 = vadd.f32 %v4281, %v4333
        %v4338 = vld [vmem:[%s3184 + $0x2] sm:$0xff]
        %v4339 = vld [vmem:[%s3184 + $0xa] sm:$0xff]
        %s4340 = sld [smem:[#allocation15 + $0xc8]]
        %v4341 = vstv %s4340
        %v4342 = vmul.f32 %v4341, %v4338
        %v4343 = vmul.f32 %v4341, %v4339
        %v4344 = vadd.f32 %v4294, %v4342
        %v4345 = vadd.f32 %v4295, %v4343
        %s4346 = sld [smem:[#allocation15 + $0xc9]]
        %v4347 = vstv %s4346
        %v4348 = vmul.f32 %v4347, %v4338
        %v4349 = vmul.f32 %v4347, %v4339
        %v4350 = vadd.f32 %v4308, %v4348
        %v4351 = vadd.f32 %v4309, %v4349
        %s4352 = sld [smem:[#allocation15 + $0xca]]
        %v4353 = vstv %s4352
        %v4354 = vmul.f32 %v4353, %v4338
        %v4355 = vmul.f32 %v4353, %v4339
        %v4356 = vadd.f32 %v4322, %v4354
        %v4357 = vadd.f32 %v4323, %v4355
        %s4358 = sld [smem:[#allocation15 + $0xcb]]
        %v4359 = vstv %s4358
        %v4360 = vmul.f32 %v4359, %v4338
        %v4361 = vmul.f32 %v4359, %v4339
        %v4362 = vadd.f32 %v4336, %v4360
        %v4363 = vadd.f32 %v4337, %v4361
        %s4364 = sld [smem:[#allocation15 + $0xe8]]
        %v4365 = vstv %s4364
        %v4366 = vmul.f32 %v4365, %v4338
        %v4367 = vmul.f32 %v4365, %v4339
        %4370 = vrot.lane.b32.xlu0 %v4366, 127
        %v4371 = vpop.permute.xlu0 %4370
        %4372 = vrot.lane.b32.xlu0 %v4367, 127
        %v4373 = vpop.permute.xlu0 %4372
        %v4376 = vadd.f32 %v4344, %v4371
        %v4377 = vadd.f32 %v4345, %v4373
        %s4378 = sld [smem:[#allocation15 + $0xe9]]
        %v4379 = vstv %s4378
        %v4380 = vmul.f32 %v4379, %v4338
        %v4381 = vmul.f32 %v4379, %v4339
        %4384 = vrot.lane.b32.xlu0 %v4380, 127
        %v4385 = vpop.permute.xlu0 %4384
        %4386 = vrot.lane.b32.xlu0 %v4381, 127
        %v4387 = vpop.permute.xlu0 %4386
        %v4390 = vadd.f32 %v4350, %v4385
        %v4391 = vadd.f32 %v4351, %v4387
        %s4392 = sld [smem:[#allocation15 + $0xea]]
        %v4393 = vstv %s4392
        %v4394 = vmul.f32 %v4393, %v4338
        %v4395 = vmul.f32 %v4393, %v4339
        %4398 = vrot.lane.b32.xlu0 %v4394, 127
        %v4399 = vpop.permute.xlu0 %4398
        %4400 = vrot.lane.b32.xlu0 %v4395, 127
        %v4401 = vpop.permute.xlu0 %4400
        %v4404 = vadd.f32 %v4356, %v4399
        %v4405 = vadd.f32 %v4357, %v4401
        %s4406 = sld [smem:[#allocation15 + $0xeb]]
        %v4407 = vstv %s4406
        %v4408 = vmul.f32 %v4407, %v4338
        %v4409 = vmul.f32 %v4407, %v4339
        %4412 = vrot.lane.b32.xlu0 %v4408, 127
        %v4413 = vpop.permute.xlu0 %4412
        %4414 = vrot.lane.b32.xlu0 %v4409, 127
        %v4415 = vpop.permute.xlu0 %4414
        %v4418 = vadd.f32 %v4362, %v4413
        %v4419 = vadd.f32 %v4363, %v4415
        %s4420 = sld [smem:[#allocation15 + $0x108]]
        %v4421 = vstv %s4420
        %v4422 = vmul.f32 %v4421, %v4338
        %v4423 = vmul.f32 %v4421, %v4339
        %4426 = vrot.lane.b32.xlu0 %v4422, 126
        %v4427 = vpop.permute.xlu0 %4426
        %4428 = vrot.lane.b32.xlu0 %v4423, 126
        %v4429 = vpop.permute.xlu0 %4428
        %v4432 = vadd.f32 %v4376, %v4427
        %v4433 = vadd.f32 %v4377, %v4429
        %s4434 = sld [smem:[#allocation15 + $0x109]]
        %v4435 = vstv %s4434
        %v4436 = vmul.f32 %v4435, %v4338
        %v4437 = vmul.f32 %v4435, %v4339
        %4440 = vrot.lane.b32.xlu0 %v4436, 126
        %v4441 = vpop.permute.xlu0 %4440
        %4442 = vrot.lane.b32.xlu0 %v4437, 126
        %v4443 = vpop.permute.xlu0 %4442
        %v4446 = vadd.f32 %v4390, %v4441
        %v4447 = vadd.f32 %v4391, %v4443
        %s4448 = sld [smem:[#allocation15 + $0x10a]]
        %v4449 = vstv %s4448
        %v4450 = vmul.f32 %v4449, %v4338
        %v4451 = vmul.f32 %v4449, %v4339
        %4454 = vrot.lane.b32.xlu0 %v4450, 126
        %v4455 = vpop.permute.xlu0 %4454
        %4456 = vrot.lane.b32.xlu0 %v4451, 126
        %v4457 = vpop.permute.xlu0 %4456
        %v4460 = vadd.f32 %v4404, %v4455
        %v4461 = vadd.f32 %v4405, %v4457
        %s4462 = sld [smem:[#allocation15 + $0x10b]]
        %v4463 = vstv %s4462
        %v4464 = vmul.f32 %v4463, %v4338
        %v4465 = vmul.f32 %v4463, %v4339
        %4468 = vrot.lane.b32.xlu0 %v4464, 126
        %v4469 = vpop.permute.xlu0 %4468
        %4470 = vrot.lane.b32.xlu0 %v4465, 126
        %v4471 = vpop.permute.xlu0 %4470
        %v4474 = vadd.f32 %v4418, %v4469
        %v4475 = vadd.f32 %v4419, %v4471
        %v4476 = vld [vmem:[%s3195] sm:$0xff]
        %v4477 = vld [vmem:[%s3195 + $0x8] sm:$0xff]
        %s4478 = sld [smem:[#allocation15 + $0xc]]
        %v4479 = vstv %s4478
        %v4480 = vmul.f32 %v4479, %v4476
        %v4481 = vmul.f32 %v4479, %v4477
        %v4482 = vadd.f32 %v4432, %v4480
        %v4483 = vadd.f32 %v4433, %v4481
        %s4484 = sld [smem:[#allocation15 + $0xd]]
        %v4485 = vstv %s4484
        %v4486 = vmul.f32 %v4485, %v4476
        %v4487 = vmul.f32 %v4485, %v4477
        %v4488 = vadd.f32 %v4446, %v4486
        %v4489 = vadd.f32 %v4447, %v4487
        %s4490 = sld [smem:[#allocation15 + $0xe]]
        %v4491 = vstv %s4490
        %v4492 = vmul.f32 %v4491, %v4476
        %v4493 = vmul.f32 %v4491, %v4477
        %v4494 = vadd.f32 %v4460, %v4492
        %v4495 = vadd.f32 %v4461, %v4493
        %s4496 = sld [smem:[#allocation15 + $0xf]]
        %v4497 = vstv %s4496
        %v4498 = vmul.f32 %v4497, %v4476
        %v4499 = vmul.f32 %v4497, %v4477
        %v4500 = vadd.f32 %v4474, %v4498
        %v4501 = vadd.f32 %v4475, %v4499
        %s4502 = sld [smem:[#allocation15 + $0x2c]]
        %v4503 = vstv %s4502
        %v4504 = vmul.f32 %v4503, %v4476
        %v4505 = vmul.f32 %v4503, %v4477
        %4508 = vrot.lane.b32.xlu0 %v4504, 127
        %v4509 = vpop.permute.xlu0 %4508
        %4510 = vrot.lane.b32.xlu0 %v4505, 127
        %v4511 = vpop.permute.xlu0 %4510
        %v4514 = vadd.f32 %v4482, %v4509
        %v4515 = vadd.f32 %v4483, %v4511
        %s4516 = sld [smem:[#allocation15 + $0x2d]]
        %v4517 = vstv %s4516
        %v4518 = vmul.f32 %v4517, %v4476
        %v4519 = vmul.f32 %v4517, %v4477
        %4522 = vrot.lane.b32.xlu0 %v4518, 127
        %v4523 = vpop.permute.xlu0 %4522
        %4524 = vrot.lane.b32.xlu0 %v4519, 127
        %v4525 = vpop.permute.xlu0 %4524
        %v4528 = vadd.f32 %v4488, %v4523
        %v4529 = vadd.f32 %v4489, %v4525
        %s4530 = sld [smem:[#allocation15 + $0x2e]]
        %v4531 = vstv %s4530
        %v4532 = vmul.f32 %v4531, %v4476
        %v4533 = vmul.f32 %v4531, %v4477
        %4536 = vrot.lane.b32.xlu0 %v4532, 127
        %v4537 = vpop.permute.xlu0 %4536
        %4538 = vrot.lane.b32.xlu0 %v4533, 127
        %v4539 = vpop.permute.xlu0 %4538
        %v4542 = vadd.f32 %v4494, %v4537
        %v4543 = vadd.f32 %v4495, %v4539
        %s4544 = sld [smem:[#allocation15 + $0x2f]]
        %v4545 = vstv %s4544
        %v4546 = vmul.f32 %v4545, %v4476
        %v4547 = vmul.f32 %v4545, %v4477
        %4550 = vrot.lane.b32.xlu0 %v4546, 127
        %v4551 = vpop.permute.xlu0 %4550
        %4552 = vrot.lane.b32.xlu0 %v4547, 127
        %v4553 = vpop.permute.xlu0 %4552
        %v4556 = vadd.f32 %v4500, %v4551
        %v4557 = vadd.f32 %v4501, %v4553
        %s4558 = sld [smem:[#allocation15 + $0x4c]]
        %v4559 = vstv %s4558
        %v4560 = vmul.f32 %v4559, %v4476
        %v4561 = vmul.f32 %v4559, %v4477
        %4564 = vrot.lane.b32.xlu0 %v4560, 126
        %v4565 = vpop.permute.xlu0 %4564
        %4566 = vrot.lane.b32.xlu0 %v4561, 126
        %v4567 = vpop.permute.xlu0 %4566
        %v4570 = vadd.f32 %v4514, %v4565
        %v4571 = vadd.f32 %v4515, %v4567
        %s4572 = sld [smem:[#allocation15 + $0x4d]]
        %v4573 = vstv %s4572
        %v4574 = vmul.f32 %v4573, %v4476
        %v4575 = vmul.f32 %v4573, %v4477
        %4578 = vrot.lane.b32.xlu0 %v4574, 126
        %v4579 = vpop.permute.xlu0 %4578
        %4580 = vrot.lane.b32.xlu0 %v4575, 126
        %v4581 = vpop.permute.xlu0 %4580
        %v4584 = vadd.f32 %v4528, %v4579
        %v4585 = vadd.f32 %v4529, %v4581
        %s4586 = sld [smem:[#allocation15 + $0x4e]]
        %v4587 = vstv %s4586
        %v4588 = vmul.f32 %v4587, %v4476
        %v4589 = vmul.f32 %v4587, %v4477
        %4592 = vrot.lane.b32.xlu0 %v4588, 126
        %v4593 = vpop.permute.xlu0 %4592
        %4594 = vrot.lane.b32.xlu0 %v4589, 126
        %v4595 = vpop.permute.xlu0 %4594
        %v4598 = vadd.f32 %v4542, %v4593
        %v4599 = vadd.f32 %v4543, %v4595
        %s4600 = sld [smem:[#allocation15 + $0x4f]]
        %v4601 = vstv %s4600
        %v4602 = vmul.f32 %v4601, %v4476
        %v4603 = vmul.f32 %v4601, %v4477
        %4606 = vrot.lane.b32.xlu0 %v4602, 126
        %v4607 = vpop.permute.xlu0 %4606
        %4608 = vrot.lane.b32.xlu0 %v4603, 126
        %v4609 = vpop.permute.xlu0 %4608
        %v4612 = vadd.f32 %v4556, %v4607
        %v4613 = vadd.f32 %v4557, %v4609
        %v4614 = vld [vmem:[%s3195 + $0x1] sm:$0xff]
        %v4615 = vld [vmem:[%s3195 + $0x9] sm:$0xff]
        %s4616 = sld [smem:[#allocation15 + $0x6c]]
        %v4617 = vstv %s4616
        %v4618 = vmul.f32 %v4617, %v4614
        %v4619 = vmul.f32 %v4617, %v4615
        %v4620 = vadd.f32 %v4570, %v4618
        %v4621 = vadd.f32 %v4571, %v4619
        %s4622 = sld [smem:[#allocation15 + $0x6d]]
        %v4623 = vstv %s4622
        %v4624 = vmul.f32 %v4623, %v4614
        %v4625 = vmul.f32 %v4623, %v4615
        %v4626 = vadd.f32 %v4584, %v4624
        %v4627 = vadd.f32 %v4585, %v4625
        %s4628 = sld [smem:[#allocation15 + $0x6e]]
        %v4629 = vstv %s4628
        %v4630 = vmul.f32 %v4629, %v4614
        %v4631 = vmul.f32 %v4629, %v4615
        %v4632 = vadd.f32 %v4598, %v4630
        %v4633 = vadd.f32 %v4599, %v4631
        %s4634 = sld [smem:[#allocation15 + $0x6f]]
        %v4635 = vstv %s4634
        %v4636 = vmul.f32 %v4635, %v4614
        %v4637 = vmul.f32 %v4635, %v4615
        %v4638 = vadd.f32 %v4612, %v4636
        %v4639 = vadd.f32 %v4613, %v4637
        %s4640 = sld [smem:[#allocation15 + $0x8c]]
        %v4641 = vstv %s4640
        %v4642 = vmul.f32 %v4641, %v4614
        %v4643 = vmul.f32 %v4641, %v4615
        %4646 = vrot.lane.b32.xlu0 %v4642, 127
        %v4647 = vpop.permute.xlu0 %4646
        %4648 = vrot.lane.b32.xlu0 %v4643, 127
        %v4649 = vpop.permute.xlu0 %4648
        %v4652 = vadd.f32 %v4620, %v4647
        %v4653 = vadd.f32 %v4621, %v4649
        %s4654 = sld [smem:[#allocation15 + $0x8d]]
        %v4655 = vstv %s4654
        %v4656 = vmul.f32 %v4655, %v4614
        %v4657 = vmul.f32 %v4655, %v4615
        %4660 = vrot.lane.b32.xlu0 %v4656, 127
        %v4661 = vpop.permute.xlu0 %4660
        %4662 = vrot.lane.b32.xlu0 %v4657, 127
        %v4663 = vpop.permute.xlu0 %4662
        %v4666 = vadd.f32 %v4626, %v4661
        %v4667 = vadd.f32 %v4627, %v4663
        %s4668 = sld [smem:[#allocation15 + $0x8e]]
        %v4669 = vstv %s4668
        %v4670 = vmul.f32 %v4669, %v4614
        %v4671 = vmul.f32 %v4669, %v4615
        %4674 = vrot.lane.b32.xlu0 %v4670, 127
        %v4675 = vpop.permute.xlu0 %4674
        %4676 = vrot.lane.b32.xlu0 %v4671, 127
        %v4677 = vpop.permute.xlu0 %4676
        %v4680 = vadd.f32 %v4632, %v4675
        %v4681 = vadd.f32 %v4633, %v4677
        %s4682 = sld [smem:[#allocation15 + $0x8f]]
        %v4683 = vstv %s4682
        %v4684 = vmul.f32 %v4683, %v4614
        %v4685 = vmul.f32 %v4683, %v4615
        %4688 = vrot.lane.b32.xlu0 %v4684, 127
        %v4689 = vpop.permute.xlu0 %4688
        %4690 = vrot.lane.b32.xlu0 %v4685, 127
        %v4691 = vpop.permute.xlu0 %4690
        %v4694 = vadd.f32 %v4638, %v4689
        %v4695 = vadd.f32 %v4639, %v4691
        %s4696 = sld [smem:[#allocation15 + $0xac]]
        %v4697 = vstv %s4696
        %v4698 = vmul.f32 %v4697, %v4614
        %v4699 = vmul.f32 %v4697, %v4615
        %4702 = vrot.lane.b32.xlu0 %v4698, 126
        %v4703 = vpop.permute.xlu0 %4702
        %4704 = vrot.lane.b32.xlu0 %v4699, 126
        %v4705 = vpop.permute.xlu0 %4704
        %v4708 = vadd.f32 %v4652, %v4703
        %v4709 = vadd.f32 %v4653, %v4705
        %s4710 = sld [smem:[#allocation15 + $0xad]]
        %v4711 = vstv %s4710
        %v4712 = vmul.f32 %v4711, %v4614
        %v4713 = vmul.f32 %v4711, %v4615
        %4716 = vrot.lane.b32.xlu0 %v4712, 126
        %v4717 = vpop.permute.xlu0 %4716
        %4718 = vrot.lane.b32.xlu0 %v4713, 126
        %v4719 = vpop.permute.xlu0 %4718
        %v4722 = vadd.f32 %v4666, %v4717
        %v4723 = vadd.f32 %v4667, %v4719
        %s4724 = sld [smem:[#allocation15 + $0xae]]
        %v4725 = vstv %s4724
        %v4726 = vmul.f32 %v4725, %v4614
        %v4727 = vmul.f32 %v4725, %v4615
        %4730 = vrot.lane.b32.xlu0 %v4726, 126
        %v4731 = vpop.permute.xlu0 %4730
        %4732 = vrot.lane.b32.xlu0 %v4727, 126
        %v4733 = vpop.permute.xlu0 %4732
        %v4736 = vadd.f32 %v4680, %v4731
        %v4737 = vadd.f32 %v4681, %v4733
        %s4738 = sld [smem:[#allocation15 + $0xaf]]
        %v4739 = vstv %s4738
        %v4740 = vmul.f32 %v4739, %v4614
        %v4741 = vmul.f32 %v4739, %v4615
        %4744 = vrot.lane.b32.xlu0 %v4740, 126
        %v4745 = vpop.permute.xlu0 %4744
        %4746 = vrot.lane.b32.xlu0 %v4741, 126
        %v4747 = vpop.permute.xlu0 %4746
        %v4750 = vadd.f32 %v4694, %v4745
        %v4751 = vadd.f32 %v4695, %v4747
        %v4752 = vld [vmem:[%s3195 + $0x2] sm:$0xff]
        %v4753 = vld [vmem:[%s3195 + $0xa] sm:$0xff]
        %s4754 = sld [smem:[#allocation15 + $0xcc]]
        %v4755 = vstv %s4754
        %v4756 = vmul.f32 %v4755, %v4752
        %v4757 = vmul.f32 %v4755, %v4753
        %v4758 = vadd.f32 %v4708, %v4756
        %v4759 = vadd.f32 %v4709, %v4757
        %s4760 = sld [smem:[#allocation15 + $0xcd]]
        %v4761 = vstv %s4760
        %v4762 = vmul.f32 %v4761, %v4752
        %v4763 = vmul.f32 %v4761, %v4753
        %v4764 = vadd.f32 %v4722, %v4762
        %v4765 = vadd.f32 %v4723, %v4763
        %s4766 = sld [smem:[#allocation15 + $0xce]]
        %v4767 = vstv %s4766
        %v4768 = vmul.f32 %v4767, %v4752
        %v4769 = vmul.f32 %v4767, %v4753
        %v4770 = vadd.f32 %v4736, %v4768
        %v4771 = vadd.f32 %v4737, %v4769
        %s4772 = sld [smem:[#allocation15 + $0xcf]]
        %v4773 = vstv %s4772
        %v4774 = vmul.f32 %v4773, %v4752
        %v4775 = vmul.f32 %v4773, %v4753
        %v4776 = vadd.f32 %v4750, %v4774
        %v4777 = vadd.f32 %v4751, %v4775
        %s4778 = sld [smem:[#allocation15 + $0xec]]
        %v4779 = vstv %s4778
        %v4780 = vmul.f32 %v4779, %v4752
        %v4781 = vmul.f32 %v4779, %v4753
        %4784 = vrot.lane.b32.xlu0 %v4780, 127
        %v4785 = vpop.permute.xlu0 %4784
        %4786 = vrot.lane.b32.xlu0 %v4781, 127
        %v4787 = vpop.permute.xlu0 %4786
        %v4790 = vadd.f32 %v4758, %v4785
        %v4791 = vadd.f32 %v4759, %v4787
        %s4792 = sld [smem:[#allocation15 + $0xed]]
        %v4793 = vstv %s4792
        %v4794 = vmul.f32 %v4793, %v4752
        %v4795 = vmul.f32 %v4793, %v4753
        %4798 = vrot.lane.b32.xlu0 %v4794, 127
        %v4799 = vpop.permute.xlu0 %4798
        %4800 = vrot.lane.b32.xlu0 %v4795, 127
        %v4801 = vpop.permute.xlu0 %4800
        %v4804 = vadd.f32 %v4764, %v4799
        %v4805 = vadd.f32 %v4765, %v4801
        %s4806 = sld [smem:[#allocation15 + $0xee]]
        %v4807 = vstv %s4806
        %v4808 = vmul.f32 %v4807, %v4752
        %v4809 = vmul.f32 %v4807, %v4753
        %4812 = vrot.lane.b32.xlu0 %v4808, 127
        %v4813 = vpop.permute.xlu0 %4812
        %4814 = vrot.lane.b32.xlu0 %v4809, 127
        %v4815 = vpop.permute.xlu0 %4814
        %v4818 = vadd.f32 %v4770, %v4813
        %v4819 = vadd.f32 %v4771, %v4815
        %s4820 = sld [smem:[#allocation15 + $0xef]]
        %v4821 = vstv %s4820
        %v4822 = vmul.f32 %v4821, %v4752
        %v4823 = vmul.f32 %v4821, %v4753
        %4826 = vrot.lane.b32.xlu0 %v4822, 127
        %v4827 = vpop.permute.xlu0 %4826
        %4828 = vrot.lane.b32.xlu0 %v4823, 127
        %v4829 = vpop.permute.xlu0 %4828
        %v4832 = vadd.f32 %v4776, %v4827
        %v4833 = vadd.f32 %v4777, %v4829
        %s4834 = sld [smem:[#allocation15 + $0x10c]]
        %v4835 = vstv %s4834
        %v4836 = vmul.f32 %v4835, %v4752
        %v4837 = vmul.f32 %v4835, %v4753
        %4840 = vrot.lane.b32.xlu0 %v4836, 126
        %v4841 = vpop.permute.xlu0 %4840
        %4842 = vrot.lane.b32.xlu0 %v4837, 126
        %v4843 = vpop.permute.xlu0 %4842
        %v4846 = vadd.f32 %v4790, %v4841
        %v4847 = vadd.f32 %v4791, %v4843
        %s4848 = sld [smem:[#allocation15 + $0x10d]]
        %v4849 = vstv %s4848
        %v4850 = vmul.f32 %v4849, %v4752
        %v4851 = vmul.f32 %v4849, %v4753
        %4854 = vrot.lane.b32.xlu0 %v4850, 126
        %v4855 = vpop.permute.xlu0 %4854
        %4856 = vrot.lane.b32.xlu0 %v4851, 126
        %v4857 = vpop.permute.xlu0 %4856
        %v4860 = vadd.f32 %v4804, %v4855
        %v4861 = vadd.f32 %v4805, %v4857
        %s4862 = sld [smem:[#allocation15 + $0x10e]]
        %v4863 = vstv %s4862
        %v4864 = vmul.f32 %v4863, %v4752
        %v4865 = vmul.f32 %v4863, %v4753
        %4868 = vrot.lane.b32.xlu0 %v4864, 126
        %v4869 = vpop.permute.xlu0 %4868
        %4870 = vrot.lane.b32.xlu0 %v4865, 126
        %v4871 = vpop.permute.xlu0 %4870
        %v4874 = vadd.f32 %v4818, %v4869
        %v4875 = vadd.f32 %v4819, %v4871
        %s4876 = sld [smem:[#allocation15 + $0x10f]]
        %v4877 = vstv %s4876
        %v4878 = vmul.f32 %v4877, %v4752
        %v4879 = vmul.f32 %v4877, %v4753
        %4882 = vrot.lane.b32.xlu0 %v4878, 126
        %v4883 = vpop.permute.xlu0 %4882
        %4884 = vrot.lane.b32.xlu0 %v4879, 126
        %v4885 = vpop.permute.xlu0 %4884
        %v4888 = vadd.f32 %v4832, %v4883
        %v4889 = vadd.f32 %v4833, %v4885
        %v4890 = vld [vmem:[%s3206] sm:$0xff]
        %v4891 = vld [vmem:[%s3206 + $0x8] sm:$0xff]
        %s4892 = sld [smem:[#allocation15 + $0x10]]
        %v4893 = vstv %s4892
        %v4894 = vmul.f32 %v4893, %v4890
        %v4895 = vmul.f32 %v4893, %v4891
        %v4896 = vadd.f32 %v4846, %v4894
        %v4897 = vadd.f32 %v4847, %v4895
        %s4898 = sld [smem:[#allocation15 + $0x11]]
        %v4899 = vstv %s4898
        %v4900 = vmul.f32 %v4899, %v4890
        %v4901 = vmul.f32 %v4899, %v4891
        %v4902 = vadd.f32 %v4860, %v4900
        %v4903 = vadd.f32 %v4861, %v4901
        %s4904 = sld [smem:[#allocation15 + $0x12]]
        %v4905 = vstv %s4904
        %v4906 = vmul.f32 %v4905, %v4890
        %v4907 = vmul.f32 %v4905, %v4891
        %v4908 = vadd.f32 %v4874, %v4906
        %v4909 = vadd.f32 %v4875, %v4907
        %s4910 = sld [smem:[#allocation15 + $0x13]]
        %v4911 = vstv %s4910
        %v4912 = vmul.f32 %v4911, %v4890
        %v4913 = vmul.f32 %v4911, %v4891
        %v4914 = vadd.f32 %v4888, %v4912
        %v4915 = vadd.f32 %v4889, %v4913
        %s4916 = sld [smem:[#allocation15 + $0x30]]
        %v4917 = vstv %s4916
        %v4918 = vmul.f32 %v4917, %v4890
        %v4919 = vmul.f32 %v4917, %v4891
        %4922 = vrot.lane.b32.xlu0 %v4918, 127
        %v4923 = vpop.permute.xlu0 %4922
        %4924 = vrot.lane.b32.xlu0 %v4919, 127
        %v4925 = vpop.permute.xlu0 %4924
        %v4928 = vadd.f32 %v4896, %v4923
        %v4929 = vadd.f32 %v4897, %v4925
        %s4930 = sld [smem:[#allocation15 + $0x31]]
        %v4931 = vstv %s4930
        %v4932 = vmul.f32 %v4931, %v4890
        %v4933 = vmul.f32 %v4931, %v4891
        %4936 = vrot.lane.b32.xlu0 %v4932, 127
        %v4937 = vpop.permute.xlu0 %4936
        %4938 = vrot.lane.b32.xlu0 %v4933, 127
        %v4939 = vpop.permute.xlu0 %4938
        %v4942 = vadd.f32 %v4902, %v4937
        %v4943 = vadd.f32 %v4903, %v4939
        %s4944 = sld [smem:[#allocation15 + $0x32]]
        %v4945 = vstv %s4944
        %v4946 = vmul.f32 %v4945, %v4890
        %v4947 = vmul.f32 %v4945, %v4891
        %4950 = vrot.lane.b32.xlu0 %v4946, 127
        %v4951 = vpop.permute.xlu0 %4950
        %4952 = vrot.lane.b32.xlu0 %v4947, 127
        %v4953 = vpop.permute.xlu0 %4952
        %v4956 = vadd.f32 %v4908, %v4951
        %v4957 = vadd.f32 %v4909, %v4953
        %s4958 = sld [smem:[#allocation15 + $0x33]]
        %v4959 = vstv %s4958
        %v4960 = vmul.f32 %v4959, %v4890
        %v4961 = vmul.f32 %v4959, %v4891
        %4964 = vrot.lane.b32.xlu0 %v4960, 127
        %v4965 = vpop.permute.xlu0 %4964
        %4966 = vrot.lane.b32.xlu0 %v4961, 127
        %v4967 = vpop.permute.xlu0 %4966
        %v4970 = vadd.f32 %v4914, %v4965
        %v4971 = vadd.f32 %v4915, %v4967
        %s4972 = sld [smem:[#allocation15 + $0x50]]
        %v4973 = vstv %s4972
        %v4974 = vmul.f32 %v4973, %v4890
        %v4975 = vmul.f32 %v4973, %v4891
        %4978 = vrot.lane.b32.xlu0 %v4974, 126
        %v4979 = vpop.permute.xlu0 %4978
        %4980 = vrot.lane.b32.xlu0 %v4975, 126
        %v4981 = vpop.permute.xlu0 %4980
        %v4984 = vadd.f32 %v4928, %v4979
        %v4985 = vadd.f32 %v4929, %v4981
        %s4986 = sld [smem:[#allocation15 + $0x51]]
        %v4987 = vstv %s4986
        %v4988 = vmul.f32 %v4987, %v4890
        %v4989 = vmul.f32 %v4987, %v4891
        %4992 = vrot.lane.b32.xlu0 %v4988, 126
        %v4993 = vpop.permute.xlu0 %4992
        %4994 = vrot.lane.b32.xlu0 %v4989, 126
        %v4995 = vpop.permute.xlu0 %4994
        %v4998 = vadd.f32 %v4942, %v4993
        %v4999 = vadd.f32 %v4943, %v4995
        %s5000 = sld [smem:[#allocation15 + $0x52]]
        %v5001 = vstv %s5000
        %v5002 = vmul.f32 %v5001, %v4890
        %v5003 = vmul.f32 %v5001, %v4891
        %5006 = vrot.lane.b32.xlu0 %v5002, 126
        %v5007 = vpop.permute.xlu0 %5006
        %5008 = vrot.lane.b32.xlu0 %v5003, 126
        %v5009 = vpop.permute.xlu0 %5008
        %v5012 = vadd.f32 %v4956, %v5007
        %v5013 = vadd.f32 %v4957, %v5009
        %s5014 = sld [smem:[#allocation15 + $0x53]]
        %v5015 = vstv %s5014
        %v5016 = vmul.f32 %v5015, %v4890
        %v5017 = vmul.f32 %v5015, %v4891
        %5020 = vrot.lane.b32.xlu0 %v5016, 126
        %v5021 = vpop.permute.xlu0 %5020
        %5022 = vrot.lane.b32.xlu0 %v5017, 126
        %v5023 = vpop.permute.xlu0 %5022
        %v5026 = vadd.f32 %v4970, %v5021
        %v5027 = vadd.f32 %v4971, %v5023
        %v5028 = vld [vmem:[%s3206 + $0x1] sm:$0xff]
        %v5029 = vld [vmem:[%s3206 + $0x9] sm:$0xff]
        %s5030 = sld [smem:[#allocation15 + $0x70]]
        %v5031 = vstv %s5030
        %v5032 = vmul.f32 %v5031, %v5028
        %v5033 = vmul.f32 %v5031, %v5029
        %v5034 = vadd.f32 %v4984, %v5032
        %v5035 = vadd.f32 %v4985, %v5033
        %s5036 = sld [smem:[#allocation15 + $0x71]]
        %v5037 = vstv %s5036
        %v5038 = vmul.f32 %v5037, %v5028
        %v5039 = vmul.f32 %v5037, %v5029
        %v5040 = vadd.f32 %v4998, %v5038
        %v5041 = vadd.f32 %v4999, %v5039
        %s5042 = sld [smem:[#allocation15 + $0x72]]
        %v5043 = vstv %s5042
        %v5044 = vmul.f32 %v5043, %v5028
        %v5045 = vmul.f32 %v5043, %v5029
        %v5046 = vadd.f32 %v5012, %v5044
        %v5047 = vadd.f32 %v5013, %v5045
        %s5048 = sld [smem:[#allocation15 + $0x73]]
        %v5049 = vstv %s5048
        %v5050 = vmul.f32 %v5049, %v5028
        %v5051 = vmul.f32 %v5049, %v5029
        %v5052 = vadd.f32 %v5026, %v5050
        %v5053 = vadd.f32 %v5027, %v5051
        %s5054 = sld [smem:[#allocation15 + $0x90]]
        %v5055 = vstv %s5054
        %v5056 = vmul.f32 %v5055, %v5028
        %v5057 = vmul.f32 %v5055, %v5029
        %5060 = vrot.lane.b32.xlu0 %v5056, 127
        %v5061 = vpop.permute.xlu0 %5060
        %5062 = vrot.lane.b32.xlu0 %v5057, 127
        %v5063 = vpop.permute.xlu0 %5062
        %v5066 = vadd.f32 %v5034, %v5061
        %v5067 = vadd.f32 %v5035, %v5063
        %s5068 = sld [smem:[#allocation15 + $0x91]]
        %v5069 = vstv %s5068
        %v5070 = vmul.f32 %v5069, %v5028
        %v5071 = vmul.f32 %v5069, %v5029
        %5074 = vrot.lane.b32.xlu0 %v5070, 127
        %v5075 = vpop.permute.xlu0 %5074
        %5076 = vrot.lane.b32.xlu0 %v5071, 127
        %v5077 = vpop.permute.xlu0 %5076
        %v5080 = vadd.f32 %v5040, %v5075
        %v5081 = vadd.f32 %v5041, %v5077
        %s5082 = sld [smem:[#allocation15 + $0x92]]
        %v5083 = vstv %s5082
        %v5084 = vmul.f32 %v5083, %v5028
        %v5085 = vmul.f32 %v5083, %v5029
        %5088 = vrot.lane.b32.xlu0 %v5084, 127
        %v5089 = vpop.permute.xlu0 %5088
        %5090 = vrot.lane.b32.xlu0 %v5085, 127
        %v5091 = vpop.permute.xlu0 %5090
        %v5094 = vadd.f32 %v5046, %v5089
        %v5095 = vadd.f32 %v5047, %v5091
        %s5096 = sld [smem:[#allocation15 + $0x93]]
        %v5097 = vstv %s5096
        %v5098 = vmul.f32 %v5097, %v5028
        %v5099 = vmul.f32 %v5097, %v5029
        %5102 = vrot.lane.b32.xlu0 %v5098, 127
        %v5103 = vpop.permute.xlu0 %5102
        %5104 = vrot.lane.b32.xlu0 %v5099, 127
        %v5105 = vpop.permute.xlu0 %5104
        %v5108 = vadd.f32 %v5052, %v5103
        %v5109 = vadd.f32 %v5053, %v5105
        %s5110 = sld [smem:[#allocation15 + $0xb0]]
        %v5111 = vstv %s5110
        %v5112 = vmul.f32 %v5111, %v5028
        %v5113 = vmul.f32 %v5111, %v5029
        %5116 = vrot.lane.b32.xlu0 %v5112, 126
        %v5117 = vpop.permute.xlu0 %5116
        %5118 = vrot.lane.b32.xlu0 %v5113, 126
        %v5119 = vpop.permute.xlu0 %5118
        %v5122 = vadd.f32 %v5066, %v5117
        %v5123 = vadd.f32 %v5067, %v5119
        %s5124 = sld [smem:[#allocation15 + $0xb1]]
        %v5125 = vstv %s5124
        %v5126 = vmul.f32 %v5125, %v5028
        %v5127 = vmul.f32 %v5125, %v5029
        %5130 = vrot.lane.b32.xlu0 %v5126, 126
        %v5131 = vpop.permute.xlu0 %5130
        %5132 = vrot.lane.b32.xlu0 %v5127, 126
        %v5133 = vpop.permute.xlu0 %5132
        %v5136 = vadd.f32 %v5080, %v5131
        %v5137 = vadd.f32 %v5081, %v5133
        %s5138 = sld [smem:[#allocation15 + $0xb2]]
        %v5139 = vstv %s5138
        %v5140 = vmul.f32 %v5139, %v5028
        %v5141 = vmul.f32 %v5139, %v5029
        %5144 = vrot.lane.b32.xlu0 %v5140, 126
        %v5145 = vpop.permute.xlu0 %5144
        %5146 = vrot.lane.b32.xlu0 %v5141, 126
        %v5147 = vpop.permute.xlu0 %5146
        %v5150 = vadd.f32 %v5094, %v5145
        %v5151 = vadd.f32 %v5095, %v5147
        %s5152 = sld [smem:[#allocation15 + $0xb3]]
        %v5153 = vstv %s5152
        %v5154 = vmul.f32 %v5153, %v5028
        %v5155 = vmul.f32 %v5153, %v5029
        %5158 = vrot.lane.b32.xlu0 %v5154, 126
        %v5159 = vpop.permute.xlu0 %5158
        %5160 = vrot.lane.b32.xlu0 %v5155, 126
        %v5161 = vpop.permute.xlu0 %5160
        %v5164 = vadd.f32 %v5108, %v5159
        %v5165 = vadd.f32 %v5109, %v5161
        %v5166 = vld [vmem:[%s3206 + $0x2] sm:$0xff]
        %v5167 = vld [vmem:[%s3206 + $0xa] sm:$0xff]
        %s5168 = sld [smem:[#allocation15 + $0xd0]]
        %v5169 = vstv %s5168
        %v5170 = vmul.f32 %v5169, %v5166
        %v5171 = vmul.f32 %v5169, %v5167
        %v5172 = vadd.f32 %v5122, %v5170
        %v5173 = vadd.f32 %v5123, %v5171
        %s5174 = sld [smem:[#allocation15 + $0xd1]]
        %v5175 = vstv %s5174
        %v5176 = vmul.f32 %v5175, %v5166
        %v5177 = vmul.f32 %v5175, %v5167
        %v5178 = vadd.f32 %v5136, %v5176
        %v5179 = vadd.f32 %v5137, %v5177
        %s5180 = sld [smem:[#allocation15 + $0xd2]]
        %v5181 = vstv %s5180
        %v5182 = vmul.f32 %v5181, %v5166
        %v5183 = vmul.f32 %v5181, %v5167
        %v5184 = vadd.f32 %v5150, %v5182
        %v5185 = vadd.f32 %v5151, %v5183
        %s5186 = sld [smem:[#allocation15 + $0xd3]]
        %v5187 = vstv %s5186
        %v5188 = vmul.f32 %v5187, %v5166
        %v5189 = vmul.f32 %v5187, %v5167
        %v5190 = vadd.f32 %v5164, %v5188
        %v5191 = vadd.f32 %v5165, %v5189
        %s5192 = sld [smem:[#allocation15 + $0xf0]]
        %v5193 = vstv %s5192
        %v5194 = vmul.f32 %v5193, %v5166
        %v5195 = vmul.f32 %v5193, %v5167
        %5198 = vrot.lane.b32.xlu0 %v5194, 127
        %v5199 = vpop.permute.xlu0 %5198
        %5200 = vrot.lane.b32.xlu0 %v5195, 127
        %v5201 = vpop.permute.xlu0 %5200
        %v5204 = vadd.f32 %v5172, %v5199
        %v5205 = vadd.f32 %v5173, %v5201
        %s5206 = sld [smem:[#allocation15 + $0xf1]]
        %v5207 = vstv %s5206
        %v5208 = vmul.f32 %v5207, %v5166
        %v5209 = vmul.f32 %v5207, %v5167
        %5212 = vrot.lane.b32.xlu0 %v5208, 127
        %v5213 = vpop.permute.xlu0 %5212
        %5214 = vrot.lane.b32.xlu0 %v5209, 127
        %v5215 = vpop.permute.xlu0 %5214
        %v5218 = vadd.f32 %v5178, %v5213
        %v5219 = vadd.f32 %v5179, %v5215
        %s5220 = sld [smem:[#allocation15 + $0xf2]]
        %v5221 = vstv %s5220
        %v5222 = vmul.f32 %v5221, %v5166
        %v5223 = vmul.f32 %v5221, %v5167
        %5226 = vrot.lane.b32.xlu0 %v5222, 127
        %v5227 = vpop.permute.xlu0 %5226
        %5228 = vrot.lane.b32.xlu0 %v5223, 127
        %v5229 = vpop.permute.xlu0 %5228
        %v5232 = vadd.f32 %v5184, %v5227
        %v5233 = vadd.f32 %v5185, %v5229
        %s5234 = sld [smem:[#allocation15 + $0xf3]]
        %v5235 = vstv %s5234
        %v5236 = vmul.f32 %v5235, %v5166
        %v5237 = vmul.f32 %v5235, %v5167
        %5240 = vrot.lane.b32.xlu0 %v5236, 127
        %v5241 = vpop.permute.xlu0 %5240
        %5242 = vrot.lane.b32.xlu0 %v5237, 127
        %v5243 = vpop.permute.xlu0 %5242
        %v5246 = vadd.f32 %v5190, %v5241
        %v5247 = vadd.f32 %v5191, %v5243
        %s5248 = sld [smem:[#allocation15 + $0x110]]
        %v5249 = vstv %s5248
        %v5250 = vmul.f32 %v5249, %v5166
        %v5251 = vmul.f32 %v5249, %v5167
        %5254 = vrot.lane.b32.xlu0 %v5250, 126
        %v5255 = vpop.permute.xlu0 %5254
        %5256 = vrot.lane.b32.xlu0 %v5251, 126
        %v5257 = vpop.permute.xlu0 %5256
        %v5260 = vadd.f32 %v5204, %v5255
        %v5261 = vadd.f32 %v5205, %v5257
        %s5262 = sld [smem:[#allocation15 + $0x111]]
        %v5263 = vstv %s5262
        %v5264 = vmul.f32 %v5263, %v5166
        %v5265 = vmul.f32 %v5263, %v5167
        %5268 = vrot.lane.b32.xlu0 %v5264, 126
        %v5269 = vpop.permute.xlu0 %5268
        %5270 = vrot.lane.b32.xlu0 %v5265, 126
        %v5271 = vpop.permute.xlu0 %5270
        %v5274 = vadd.f32 %v5218, %v5269
        %v5275 = vadd.f32 %v5219, %v5271
        %s5276 = sld [smem:[#allocation15 + $0x112]]
        %v5277 = vstv %s5276
        %v5278 = vmul.f32 %v5277, %v5166
        %v5279 = vmul.f32 %v5277, %v5167
        %5282 = vrot.lane.b32.xlu0 %v5278, 126
        %v5283 = vpop.permute.xlu0 %5282
        %5284 = vrot.lane.b32.xlu0 %v5279, 126
        %v5285 = vpop.permute.xlu0 %5284
        %v5288 = vadd.f32 %v5232, %v5283
        %v5289 = vadd.f32 %v5233, %v5285
        %s5290 = sld [smem:[#allocation15 + $0x113]]
        %v5291 = vstv %s5290
        %v5292 = vmul.f32 %v5291, %v5166
        %v5293 = vmul.f32 %v5291, %v5167
        %5296 = vrot.lane.b32.xlu0 %v5292, 126
        %v5297 = vpop.permute.xlu0 %5296
        %5298 = vrot.lane.b32.xlu0 %v5293, 126
        %v5299 = vpop.permute.xlu0 %5298
        %v5302 = vadd.f32 %v5246, %v5297
        %v5303 = vadd.f32 %v5247, %v5299
        %v5304 = vld [vmem:[%s3217] sm:$0xff]
        %v5305 = vld [vmem:[%s3217 + $0x8] sm:$0xff]
        %s5306 = sld [smem:[#allocation15 + $0x14]]
        %v5307 = vstv %s5306
        %v5308 = vmul.f32 %v5307, %v5304
        %v5309 = vmul.f32 %v5307, %v5305
        %v5310 = vadd.f32 %v5260, %v5308
        %v5311 = vadd.f32 %v5261, %v5309
        %s5312 = sld [smem:[#allocation15 + $0x15]]
        %v5313 = vstv %s5312
        %v5314 = vmul.f32 %v5313, %v5304
        %v5315 = vmul.f32 %v5313, %v5305
        %v5316 = vadd.f32 %v5274, %v5314
        %v5317 = vadd.f32 %v5275, %v5315
        %s5318 = sld [smem:[#allocation15 + $0x16]]
        %v5319 = vstv %s5318
        %v5320 = vmul.f32 %v5319, %v5304
        %v5321 = vmul.f32 %v5319, %v5305
        %v5322 = vadd.f32 %v5288, %v5320
        %v5323 = vadd.f32 %v5289, %v5321
        %s5324 = sld [smem:[#allocation15 + $0x17]]
        %v5325 = vstv %s5324
        %v5326 = vmul.f32 %v5325, %v5304
        %v5327 = vmul.f32 %v5325, %v5305
        %v5328 = vadd.f32 %v5302, %v5326
        %v5329 = vadd.f32 %v5303, %v5327
        %s5330 = sld [smem:[#allocation15 + $0x34]]
        %v5331 = vstv %s5330
        %v5332 = vmul.f32 %v5331, %v5304
        %v5333 = vmul.f32 %v5331, %v5305
        %5336 = vrot.lane.b32.xlu0 %v5332, 127
        %v5337 = vpop.permute.xlu0 %5336
        %5338 = vrot.lane.b32.xlu0 %v5333, 127
        %v5339 = vpop.permute.xlu0 %5338
        %v5342 = vadd.f32 %v5310, %v5337
        %v5343 = vadd.f32 %v5311, %v5339
        %s5344 = sld [smem:[#allocation15 + $0x35]]
        %v5345 = vstv %s5344
        %v5346 = vmul.f32 %v5345, %v5304
        %v5347 = vmul.f32 %v5345, %v5305
        %5350 = vrot.lane.b32.xlu0 %v5346, 127
        %v5351 = vpop.permute.xlu0 %5350
        %5352 = vrot.lane.b32.xlu0 %v5347, 127
        %v5353 = vpop.permute.xlu0 %5352
        %v5356 = vadd.f32 %v5316, %v5351
        %v5357 = vadd.f32 %v5317, %v5353
        %s5358 = sld [smem:[#allocation15 + $0x36]]
        %v5359 = vstv %s5358
        %v5360 = vmul.f32 %v5359, %v5304
        %v5361 = vmul.f32 %v5359, %v5305
        %5364 = vrot.lane.b32.xlu0 %v5360, 127
        %v5365 = vpop.permute.xlu0 %5364
        %5366 = vrot.lane.b32.xlu0 %v5361, 127
        %v5367 = vpop.permute.xlu0 %5366
        %v5370 = vadd.f32 %v5322, %v5365
        %v5371 = vadd.f32 %v5323, %v5367
        %s5372 = sld [smem:[#allocation15 + $0x37]]
        %v5373 = vstv %s5372
        %v5374 = vmul.f32 %v5373, %v5304
        %v5375 = vmul.f32 %v5373, %v5305
        %5378 = vrot.lane.b32.xlu0 %v5374, 127
        %v5379 = vpop.permute.xlu0 %5378
        %5380 = vrot.lane.b32.xlu0 %v5375, 127
        %v5381 = vpop.permute.xlu0 %5380
        %v5384 = vadd.f32 %v5328, %v5379
        %v5385 = vadd.f32 %v5329, %v5381
        %s5386 = sld [smem:[#allocation15 + $0x54]]
        %v5387 = vstv %s5386
        %v5388 = vmul.f32 %v5387, %v5304
        %v5389 = vmul.f32 %v5387, %v5305
        %5392 = vrot.lane.b32.xlu0 %v5388, 126
        %v5393 = vpop.permute.xlu0 %5392
        %5394 = vrot.lane.b32.xlu0 %v5389, 126
        %v5395 = vpop.permute.xlu0 %5394
        %v5398 = vadd.f32 %v5342, %v5393
        %v5399 = vadd.f32 %v5343, %v5395
        %s5400 = sld [smem:[#allocation15 + $0x55]]
        %v5401 = vstv %s5400
        %v5402 = vmul.f32 %v5401, %v5304
        %v5403 = vmul.f32 %v5401, %v5305
        %5406 = vrot.lane.b32.xlu0 %v5402, 126
        %v5407 = vpop.permute.xlu0 %5406
        %5408 = vrot.lane.b32.xlu0 %v5403, 126
        %v5409 = vpop.permute.xlu0 %5408
        %v5412 = vadd.f32 %v5356, %v5407
        %v5413 = vadd.f32 %v5357, %v5409
        %s5414 = sld [smem:[#allocation15 + $0x56]]
        %v5415 = vstv %s5414
        %v5416 = vmul.f32 %v5415, %v5304
        %v5417 = vmul.f32 %v5415, %v5305
        %5420 = vrot.lane.b32.xlu0 %v5416, 126
        %v5421 = vpop.permute.xlu0 %5420
        %5422 = vrot.lane.b32.xlu0 %v5417, 126
        %v5423 = vpop.permute.xlu0 %5422
        %v5426 = vadd.f32 %v5370, %v5421
        %v5427 = vadd.f32 %v5371, %v5423
        %s5428 = sld [smem:[#allocation15 + $0x57]]
        %v5429 = vstv %s5428
        %v5430 = vmul.f32 %v5429, %v5304
        %v5431 = vmul.f32 %v5429, %v5305
        %5434 = vrot.lane.b32.xlu0 %v5430, 126
        %v5435 = vpop.permute.xlu0 %5434
        %5436 = vrot.lane.b32.xlu0 %v5431, 126
        %v5437 = vpop.permute.xlu0 %5436
        %v5440 = vadd.f32 %v5384, %v5435
        %v5441 = vadd.f32 %v5385, %v5437
        %v5442 = vld [vmem:[%s3217 + $0x1] sm:$0xff]
        %v5443 = vld [vmem:[%s3217 + $0x9] sm:$0xff]
        %s5444 = sld [smem:[#allocation15 + $0x74]]
        %v5445 = vstv %s5444
        %v5446 = vmul.f32 %v5445, %v5442
        %v5447 = vmul.f32 %v5445, %v5443
        %v5448 = vadd.f32 %v5398, %v5446
        %v5449 = vadd.f32 %v5399, %v5447
        %s5450 = sld [smem:[#allocation15 + $0x75]]
        %v5451 = vstv %s5450
        %v5452 = vmul.f32 %v5451, %v5442
        %v5453 = vmul.f32 %v5451, %v5443
        %v5454 = vadd.f32 %v5412, %v5452
        %v5455 = vadd.f32 %v5413, %v5453
        %s5456 = sld [smem:[#allocation15 + $0x76]]
        %v5457 = vstv %s5456
        %v5458 = vmul.f32 %v5457, %v5442
        %v5459 = vmul.f32 %v5457, %v5443
        %v5460 = vadd.f32 %v5426, %v5458
        %v5461 = vadd.f32 %v5427, %v5459
        %s5462 = sld [smem:[#allocation15 + $0x77]]
        %v5463 = vstv %s5462
        %v5464 = vmul.f32 %v5463, %v5442
        %v5465 = vmul.f32 %v5463, %v5443
        %v5466 = vadd.f32 %v5440, %v5464
        %v5467 = vadd.f32 %v5441, %v5465
        %s5468 = sld [smem:[#allocation15 + $0x94]]
        %v5469 = vstv %s5468
        %v5470 = vmul.f32 %v5469, %v5442
        %v5471 = vmul.f32 %v5469, %v5443
        %5474 = vrot.lane.b32.xlu0 %v5470, 127
        %v5475 = vpop.permute.xlu0 %5474
        %5476 = vrot.lane.b32.xlu0 %v5471, 127
        %v5477 = vpop.permute.xlu0 %5476
        %v5480 = vadd.f32 %v5448, %v5475
        %v5481 = vadd.f32 %v5449, %v5477
        %s5482 = sld [smem:[#allocation15 + $0x95]]
        %v5483 = vstv %s5482
        %v5484 = vmul.f32 %v5483, %v5442
        %v5485 = vmul.f32 %v5483, %v5443
        %5488 = vrot.lane.b32.xlu0 %v5484, 127
        %v5489 = vpop.permute.xlu0 %5488
        %5490 = vrot.lane.b32.xlu0 %v5485, 127
        %v5491 = vpop.permute.xlu0 %5490
        %v5494 = vadd.f32 %v5454, %v5489
        %v5495 = vadd.f32 %v5455, %v5491
        %s5496 = sld [smem:[#allocation15 + $0x96]]
        %v5497 = vstv %s5496
        %v5498 = vmul.f32 %v5497, %v5442
        %v5499 = vmul.f32 %v5497, %v5443
        %5502 = vrot.lane.b32.xlu0 %v5498, 127
        %v5503 = vpop.permute.xlu0 %5502
        %5504 = vrot.lane.b32.xlu0 %v5499, 127
        %v5505 = vpop.permute.xlu0 %5504
        %v5508 = vadd.f32 %v5460, %v5503
        %v5509 = vadd.f32 %v5461, %v5505
        %s5510 = sld [smem:[#allocation15 + $0x97]]
        %v5511 = vstv %s5510
        %v5512 = vmul.f32 %v5511, %v5442
        %v5513 = vmul.f32 %v5511, %v5443
        %5516 = vrot.lane.b32.xlu0 %v5512, 127
        %v5517 = vpop.permute.xlu0 %5516
        %5518 = vrot.lane.b32.xlu0 %v5513, 127
        %v5519 = vpop.permute.xlu0 %5518
        %v5522 = vadd.f32 %v5466, %v5517
        %v5523 = vadd.f32 %v5467, %v5519
        %s5524 = sld [smem:[#allocation15 + $0xb4]]
        %v5525 = vstv %s5524
        %v5526 = vmul.f32 %v5525, %v5442
        %v5527 = vmul.f32 %v5525, %v5443
        %5530 = vrot.lane.b32.xlu0 %v5526, 126
        %v5531 = vpop.permute.xlu0 %5530
        %5532 = vrot.lane.b32.xlu0 %v5527, 126
        %v5533 = vpop.permute.xlu0 %5532
        %v5536 = vadd.f32 %v5480, %v5531
        %v5537 = vadd.f32 %v5481, %v5533
        %s5538 = sld [smem:[#allocation15 + $0xb5]]
        %v5539 = vstv %s5538
        %v5540 = vmul.f32 %v5539, %v5442
        %v5541 = vmul.f32 %v5539, %v5443
        %5544 = vrot.lane.b32.xlu0 %v5540, 126
        %v5545 = vpop.permute.xlu0 %5544
        %5546 = vrot.lane.b32.xlu0 %v5541, 126
        %v5547 = vpop.permute.xlu0 %5546
        %v5550 = vadd.f32 %v5494, %v5545
        %v5551 = vadd.f32 %v5495, %v5547
        %s5552 = sld [smem:[#allocation15 + $0xb6]]
        %v5553 = vstv %s5552
        %v5554 = vmul.f32 %v5553, %v5442
        %v5555 = vmul.f32 %v5553, %v5443
        %5558 = vrot.lane.b32.xlu0 %v5554, 126
        %v5559 = vpop.permute.xlu0 %5558
        %5560 = vrot.lane.b32.xlu0 %v5555, 126
        %v5561 = vpop.permute.xlu0 %5560
        %v5564 = vadd.f32 %v5508, %v5559
        %v5565 = vadd.f32 %v5509, %v5561
        %s5566 = sld [smem:[#allocation15 + $0xb7]]
        %v5567 = vstv %s5566
        %v5568 = vmul.f32 %v5567, %v5442
        %v5569 = vmul.f32 %v5567, %v5443
        %5572 = vrot.lane.b32.xlu0 %v5568, 126
        %v5573 = vpop.permute.xlu0 %5572
        %5574 = vrot.lane.b32.xlu0 %v5569, 126
        %v5575 = vpop.permute.xlu0 %5574
        %v5578 = vadd.f32 %v5522, %v5573
        %v5579 = vadd.f32 %v5523, %v5575
        %v5580 = vld [vmem:[%s3217 + $0x2] sm:$0xff]
        %v5581 = vld [vmem:[%s3217 + $0xa] sm:$0xff]
        %s5582 = sld [smem:[#allocation15 + $0xd4]]
        %v5583 = vstv %s5582
        %v5584 = vmul.f32 %v5583, %v5580
        %v5585 = vmul.f32 %v5583, %v5581
        %v5586 = vadd.f32 %v5536, %v5584
        %v5587 = vadd.f32 %v5537, %v5585
        %s5588 = sld [smem:[#allocation15 + $0xd5]]
        %v5589 = vstv %s5588
        %v5590 = vmul.f32 %v5589, %v5580
        %v5591 = vmul.f32 %v5589, %v5581
        %v5592 = vadd.f32 %v5550, %v5590
        %v5593 = vadd.f32 %v5551, %v5591
        %s5594 = sld [smem:[#allocation15 + $0xd6]]
        %v5595 = vstv %s5594
        %v5596 = vmul.f32 %v5595, %v5580
        %v5597 = vmul.f32 %v5595, %v5581
        %v5598 = vadd.f32 %v5564, %v5596
        %v5599 = vadd.f32 %v5565, %v5597
        %s5600 = sld [smem:[#allocation15 + $0xd7]]
        %v5601 = vstv %s5600
        %v5602 = vmul.f32 %v5601, %v5580
        %v5603 = vmul.f32 %v5601, %v5581
        %v5604 = vadd.f32 %v5578, %v5602
        %v5605 = vadd.f32 %v5579, %v5603
        %s5606 = sld [smem:[#allocation15 + $0xf4]]
        %v5607 = vstv %s5606
        %v5608 = vmul.f32 %v5607, %v5580
        %v5609 = vmul.f32 %v5607, %v5581
        %5612 = vrot.lane.b32.xlu0 %v5608, 127
        %v5613 = vpop.permute.xlu0 %5612
        %5614 = vrot.lane.b32.xlu0 %v5609, 127
        %v5615 = vpop.permute.xlu0 %5614
        %v5618 = vadd.f32 %v5586, %v5613
        %v5619 = vadd.f32 %v5587, %v5615
        %s5620 = sld [smem:[#allocation15 + $0xf5]]
        %v5621 = vstv %s5620
        %v5622 = vmul.f32 %v5621, %v5580
        %v5623 = vmul.f32 %v5621, %v5581
        %5626 = vrot.lane.b32.xlu0 %v5622, 127
        %v5627 = vpop.permute.xlu0 %5626
        %5628 = vrot.lane.b32.xlu0 %v5623, 127
        %v5629 = vpop.permute.xlu0 %5628
        %v5632 = vadd.f32 %v5592, %v5627
        %v5633 = vadd.f32 %v5593, %v5629
        %s5634 = sld [smem:[#allocation15 + $0xf6]]
        %v5635 = vstv %s5634
        %v5636 = vmul.f32 %v5635, %v5580
        %v5637 = vmul.f32 %v5635, %v5581
        %5640 = vrot.lane.b32.xlu0 %v5636, 127
        %v5641 = vpop.permute.xlu0 %5640
        %5642 = vrot.lane.b32.xlu0 %v5637, 127
        %v5643 = vpop.permute.xlu0 %5642
        %v5646 = vadd.f32 %v5598, %v5641
        %v5647 = vadd.f32 %v5599, %v5643
        %s5648 = sld [smem:[#allocation15 + $0xf7]]
        %v5649 = vstv %s5648
        %v5650 = vmul.f32 %v5649, %v5580
        %v5651 = vmul.f32 %v5649, %v5581
        %5654 = vrot.lane.b32.xlu0 %v5650, 127
        %v5655 = vpop.permute.xlu0 %5654
        %5656 = vrot.lane.b32.xlu0 %v5651, 127
        %v5657 = vpop.permute.xlu0 %5656
        %v5660 = vadd.f32 %v5604, %v5655
        %v5661 = vadd.f32 %v5605, %v5657
        %s5662 = sld [smem:[#allocation15 + $0x114]]
        %v5663 = vstv %s5662
        %v5664 = vmul.f32 %v5663, %v5580
        %v5665 = vmul.f32 %v5663, %v5581
        %5668 = vrot.lane.b32.xlu0 %v5664, 126
        %v5669 = vpop.permute.xlu0 %5668
        %5670 = vrot.lane.b32.xlu0 %v5665, 126
        %v5671 = vpop.permute.xlu0 %5670
        %v5674 = vadd.f32 %v5618, %v5669
        %v5675 = vadd.f32 %v5619, %v5671
        %s5676 = sld [smem:[#allocation15 + $0x115]]
        %v5677 = vstv %s5676
        %v5678 = vmul.f32 %v5677, %v5580
        %v5679 = vmul.f32 %v5677, %v5581
        %5682 = vrot.lane.b32.xlu0 %v5678, 126
        %v5683 = vpop.permute.xlu0 %5682
        %5684 = vrot.lane.b32.xlu0 %v5679, 126
        %v5685 = vpop.permute.xlu0 %5684
        %v5688 = vadd.f32 %v5632, %v5683
        %v5689 = vadd.f32 %v5633, %v5685
        %s5690 = sld [smem:[#allocation15 + $0x116]]
        %v5691 = vstv %s5690
        %v5692 = vmul.f32 %v5691, %v5580
        %v5693 = vmul.f32 %v5691, %v5581
        %5696 = vrot.lane.b32.xlu0 %v5692, 126
        %v5697 = vpop.permute.xlu0 %5696
        %5698 = vrot.lane.b32.xlu0 %v5693, 126
        %v5699 = vpop.permute.xlu0 %5698
        %v5702 = vadd.f32 %v5646, %v5697
        %v5703 = vadd.f32 %v5647, %v5699
        %s5704 = sld [smem:[#allocation15 + $0x117]]
        %v5705 = vstv %s5704
        %v5706 = vmul.f32 %v5705, %v5580
        %v5707 = vmul.f32 %v5705, %v5581
        %5710 = vrot.lane.b32.xlu0 %v5706, 126
        %v5711 = vpop.permute.xlu0 %5710
        %5712 = vrot.lane.b32.xlu0 %v5707, 126
        %v5713 = vpop.permute.xlu0 %5712
        %v5716 = vadd.f32 %v5660, %v5711
        %v5717 = vadd.f32 %v5661, %v5713
        %v5718 = vld [vmem:[%s3228] sm:$0xff]
        %v5719 = vld [vmem:[%s3228 + $0x8] sm:$0xff]
        %s5720 = sld [smem:[#allocation15 + $0x18]]
        %v5721 = vstv %s5720
        %v5722 = vmul.f32 %v5721, %v5718
        %v5723 = vmul.f32 %v5721, %v5719
        %v5724 = vadd.f32 %v5674, %v5722
        %v5725 = vadd.f32 %v5675, %v5723
        %s5726 = sld [smem:[#allocation15 + $0x19]]
        %v5727 = vstv %s5726
        %v5728 = vmul.f32 %v5727, %v5718
        %v5729 = vmul.f32 %v5727, %v5719
        %v5730 = vadd.f32 %v5688, %v5728
        %v5731 = vadd.f32 %v5689, %v5729
        %s5732 = sld [smem:[#allocation15 + $0x1a]]
        %v5733 = vstv %s5732
        %v5734 = vmul.f32 %v5733, %v5718
        %v5735 = vmul.f32 %v5733, %v5719
        %v5736 = vadd.f32 %v5702, %v5734
        %v5737 = vadd.f32 %v5703, %v5735
        %s5738 = sld [smem:[#allocation15 + $0x1b]]
        %v5739 = vstv %s5738
        %v5740 = vmul.f32 %v5739, %v5718
        %v5741 = vmul.f32 %v5739, %v5719
        %v5742 = vadd.f32 %v5716, %v5740
        %v5743 = vadd.f32 %v5717, %v5741
        %s5744 = sld [smem:[#allocation15 + $0x38]]
        %v5745 = vstv %s5744
        %v5746 = vmul.f32 %v5745, %v5718
        %v5747 = vmul.f32 %v5745, %v5719
        %5750 = vrot.lane.b32.xlu0 %v5746, 127
        %v5751 = vpop.permute.xlu0 %5750
        %5752 = vrot.lane.b32.xlu0 %v5747, 127
        %v5753 = vpop.permute.xlu0 %5752
        %v5756 = vadd.f32 %v5724, %v5751
        %v5757 = vadd.f32 %v5725, %v5753
        %s5758 = sld [smem:[#allocation15 + $0x39]]
        %v5759 = vstv %s5758
        %v5760 = vmul.f32 %v5759, %v5718
        %v5761 = vmul.f32 %v5759, %v5719
        %5764 = vrot.lane.b32.xlu0 %v5760, 127
        %v5765 = vpop.permute.xlu0 %5764
        %5766 = vrot.lane.b32.xlu0 %v5761, 127
        %v5767 = vpop.permute.xlu0 %5766
        %v5770 = vadd.f32 %v5730, %v5765
        %v5771 = vadd.f32 %v5731, %v5767
        %s5772 = sld [smem:[#allocation15 + $0x3a]]
        %v5773 = vstv %s5772
        %v5774 = vmul.f32 %v5773, %v5718
        %v5775 = vmul.f32 %v5773, %v5719
        %5778 = vrot.lane.b32.xlu0 %v5774, 127
        %v5779 = vpop.permute.xlu0 %5778
        %5780 = vrot.lane.b32.xlu0 %v5775, 127
        %v5781 = vpop.permute.xlu0 %5780
        %v5784 = vadd.f32 %v5736, %v5779
        %v5785 = vadd.f32 %v5737, %v5781
        %s5786 = sld [smem:[#allocation15 + $0x3b]]
        %v5787 = vstv %s5786
        %v5788 = vmul.f32 %v5787, %v5718
        %v5789 = vmul.f32 %v5787, %v5719
        %5792 = vrot.lane.b32.xlu0 %v5788, 127
        %v5793 = vpop.permute.xlu0 %5792
        %5794 = vrot.lane.b32.xlu0 %v5789, 127
        %v5795 = vpop.permute.xlu0 %5794
        %v5798 = vadd.f32 %v5742, %v5793
        %v5799 = vadd.f32 %v5743, %v5795
        %s5800 = sld [smem:[#allocation15 + $0x58]]
        %v5801 = vstv %s5800
        %v5802 = vmul.f32 %v5801, %v5718
        %v5803 = vmul.f32 %v5801, %v5719
        %5806 = vrot.lane.b32.xlu0 %v5802, 126
        %v5807 = vpop.permute.xlu0 %5806
        %5808 = vrot.lane.b32.xlu0 %v5803, 126
        %v5809 = vpop.permute.xlu0 %5808
        %v5812 = vadd.f32 %v5756, %v5807
        %v5813 = vadd.f32 %v5757, %v5809
        %s5814 = sld [smem:[#allocation15 + $0x59]]
        %v5815 = vstv %s5814
        %v5816 = vmul.f32 %v5815, %v5718
        %v5817 = vmul.f32 %v5815, %v5719
        %5820 = vrot.lane.b32.xlu0 %v5816, 126
        %v5821 = vpop.permute.xlu0 %5820
        %5822 = vrot.lane.b32.xlu0 %v5817, 126
        %v5823 = vpop.permute.xlu0 %5822
        %v5826 = vadd.f32 %v5770, %v5821
        %v5827 = vadd.f32 %v5771, %v5823
        %s5828 = sld [smem:[#allocation15 + $0x5a]]
        %v5829 = vstv %s5828
        %v5830 = vmul.f32 %v5829, %v5718
        %v5831 = vmul.f32 %v5829, %v5719
        %5834 = vrot.lane.b32.xlu0 %v5830, 126
        %v5835 = vpop.permute.xlu0 %5834
        %5836 = vrot.lane.b32.xlu0 %v5831, 126
        %v5837 = vpop.permute.xlu0 %5836
        %v5840 = vadd.f32 %v5784, %v5835
        %v5841 = vadd.f32 %v5785, %v5837
        %s5842 = sld [smem:[#allocation15 + $0x5b]]
        %v5843 = vstv %s5842
        %v5844 = vmul.f32 %v5843, %v5718
        %v5845 = vmul.f32 %v5843, %v5719
        %5848 = vrot.lane.b32.xlu0 %v5844, 126
        %v5849 = vpop.permute.xlu0 %5848
        %5850 = vrot.lane.b32.xlu0 %v5845, 126
        %v5851 = vpop.permute.xlu0 %5850
        %v5854 = vadd.f32 %v5798, %v5849
        %v5855 = vadd.f32 %v5799, %v5851
        %v5856 = vld [vmem:[%s3228 + $0x1] sm:$0xff]
        %v5857 = vld [vmem:[%s3228 + $0x9] sm:$0xff]
        %s5858 = sld [smem:[#allocation15 + $0x78]]
        %v5859 = vstv %s5858
        %v5860 = vmul.f32 %v5859, %v5856
        %v5861 = vmul.f32 %v5859, %v5857
        %v5862 = vadd.f32 %v5812, %v5860
        %v5863 = vadd.f32 %v5813, %v5861
        %s5864 = sld [smem:[#allocation15 + $0x79]]
        %v5865 = vstv %s5864
        %v5866 = vmul.f32 %v5865, %v5856
        %v5867 = vmul.f32 %v5865, %v5857
        %v5868 = vadd.f32 %v5826, %v5866
        %v5869 = vadd.f32 %v5827, %v5867
        %s5870 = sld [smem:[#allocation15 + $0x7a]]
        %v5871 = vstv %s5870
        %v5872 = vmul.f32 %v5871, %v5856
        %v5873 = vmul.f32 %v5871, %v5857
        %v5874 = vadd.f32 %v5840, %v5872
        %v5875 = vadd.f32 %v5841, %v5873
        %s5876 = sld [smem:[#allocation15 + $0x7b]]
        %v5877 = vstv %s5876
        %v5878 = vmul.f32 %v5877, %v5856
        %v5879 = vmul.f32 %v5877, %v5857
        %v5880 = vadd.f32 %v5854, %v5878
        %v5881 = vadd.f32 %v5855, %v5879
        %s5882 = sld [smem:[#allocation15 + $0x98]]
        %v5883 = vstv %s5882
        %v5884 = vmul.f32 %v5883, %v5856
        %v5885 = vmul.f32 %v5883, %v5857
        %5888 = vrot.lane.b32.xlu0 %v5884, 127
        %v5889 = vpop.permute.xlu0 %5888
        %5890 = vrot.lane.b32.xlu0 %v5885, 127
        %v5891 = vpop.permute.xlu0 %5890
        %v5894 = vadd.f32 %v5862, %v5889
        %v5895 = vadd.f32 %v5863, %v5891
        %s5896 = sld [smem:[#allocation15 + $0x99]]
        %v5897 = vstv %s5896
        %v5898 = vmul.f32 %v5897, %v5856
        %v5899 = vmul.f32 %v5897, %v5857
        %5902 = vrot.lane.b32.xlu0 %v5898, 127
        %v5903 = vpop.permute.xlu0 %5902
        %5904 = vrot.lane.b32.xlu0 %v5899, 127
        %v5905 = vpop.permute.xlu0 %5904
        %v5908 = vadd.f32 %v5868, %v5903
        %v5909 = vadd.f32 %v5869, %v5905
        %s5910 = sld [smem:[#allocation15 + $0x9a]]
        %v5911 = vstv %s5910
        %v5912 = vmul.f32 %v5911, %v5856
        %v5913 = vmul.f32 %v5911, %v5857
        %5916 = vrot.lane.b32.xlu0 %v5912, 127
        %v5917 = vpop.permute.xlu0 %5916
        %5918 = vrot.lane.b32.xlu0 %v5913, 127
        %v5919 = vpop.permute.xlu0 %5918
        %v5922 = vadd.f32 %v5874, %v5917
        %v5923 = vadd.f32 %v5875, %v5919
        %s5924 = sld [smem:[#allocation15 + $0x9b]]
        %v5925 = vstv %s5924
        %v5926 = vmul.f32 %v5925, %v5856
        %v5927 = vmul.f32 %v5925, %v5857
        %5930 = vrot.lane.b32.xlu0 %v5926, 127
        %v5931 = vpop.permute.xlu0 %5930
        %5932 = vrot.lane.b32.xlu0 %v5927, 127
        %v5933 = vpop.permute.xlu0 %5932
        %v5936 = vadd.f32 %v5880, %v5931
        %v5937 = vadd.f32 %v5881, %v5933
        %s5938 = sld [smem:[#allocation15 + $0xb8]]
        %v5939 = vstv %s5938
        %v5940 = vmul.f32 %v5939, %v5856
        %v5941 = vmul.f32 %v5939, %v5857
        %5944 = vrot.lane.b32.xlu0 %v5940, 126
        %v5945 = vpop.permute.xlu0 %5944
        %5946 = vrot.lane.b32.xlu0 %v5941, 126
        %v5947 = vpop.permute.xlu0 %5946
        %v5950 = vadd.f32 %v5894, %v5945
        %v5951 = vadd.f32 %v5895, %v5947
        %s5952 = sld [smem:[#allocation15 + $0xb9]]
        %v5953 = vstv %s5952
        %v5954 = vmul.f32 %v5953, %v5856
        %v5955 = vmul.f32 %v5953, %v5857
        %5958 = vrot.lane.b32.xlu0 %v5954, 126
        %v5959 = vpop.permute.xlu0 %5958
        %5960 = vrot.lane.b32.xlu0 %v5955, 126
        %v5961 = vpop.permute.xlu0 %5960
        %v5964 = vadd.f32 %v5908, %v5959
        %v5965 = vadd.f32 %v5909, %v5961
        %s5966 = sld [smem:[#allocation15 + $0xba]]
        %v5967 = vstv %s5966
        %v5968 = vmul.f32 %v5967, %v5856
        %v5969 = vmul.f32 %v5967, %v5857
        %5972 = vrot.lane.b32.xlu0 %v5968, 126
        %v5973 = vpop.permute.xlu0 %5972
        %5974 = vrot.lane.b32.xlu0 %v5969, 126
        %v5975 = vpop.permute.xlu0 %5974
        %v5978 = vadd.f32 %v5922, %v5973
        %v5979 = vadd.f32 %v5923, %v5975
        %s5980 = sld [smem:[#allocation15 + $0xbb]]
        %v5981 = vstv %s5980
        %v5982 = vmul.f32 %v5981, %v5856
        %v5983 = vmul.f32 %v5981, %v5857
        %5986 = vrot.lane.b32.xlu0 %v5982, 126
        %v5987 = vpop.permute.xlu0 %5986
        %5988 = vrot.lane.b32.xlu0 %v5983, 126
        %v5989 = vpop.permute.xlu0 %5988
        %v5992 = vadd.f32 %v5936, %v5987
        %v5993 = vadd.f32 %v5937, %v5989
        %v5994 = vld [vmem:[%s3228 + $0x2] sm:$0xff]
        %v5995 = vld [vmem:[%s3228 + $0xa] sm:$0xff]
        %s5996 = sld [smem:[#allocation15 + $0xd8]]
        %v5997 = vstv %s5996
        %v5998 = vmul.f32 %v5997, %v5994
        %v5999 = vmul.f32 %v5997, %v5995
        %v6000 = vadd.f32 %v5950, %v5998
        %v6001 = vadd.f32 %v5951, %v5999
        %s6002 = sld [smem:[#allocation15 + $0xd9]]
        %v6003 = vstv %s6002
        %v6004 = vmul.f32 %v6003, %v5994
        %v6005 = vmul.f32 %v6003, %v5995
        %v6006 = vadd.f32 %v5964, %v6004
        %v6007 = vadd.f32 %v5965, %v6005
        %s6008 = sld [smem:[#allocation15 + $0xda]]
        %v6009 = vstv %s6008
        %v6010 = vmul.f32 %v6009, %v5994
        %v6011 = vmul.f32 %v6009, %v5995
        %v6012 = vadd.f32 %v5978, %v6010
        %v6013 = vadd.f32 %v5979, %v6011
        %s6014 = sld [smem:[#allocation15 + $0xdb]]
        %v6015 = vstv %s6014
        %v6016 = vmul.f32 %v6015, %v5994
        %v6017 = vmul.f32 %v6015, %v5995
        %v6018 = vadd.f32 %v5992, %v6016
        %v6019 = vadd.f32 %v5993, %v6017
        %s6020 = sld [smem:[#allocation15 + $0xf8]]
        %v6021 = vstv %s6020
        %v6022 = vmul.f32 %v6021, %v5994
        %v6023 = vmul.f32 %v6021, %v5995
        %6026 = vrot.lane.b32.xlu0 %v6022, 127
        %v6027 = vpop.permute.xlu0 %6026
        %6028 = vrot.lane.b32.xlu0 %v6023, 127
        %v6029 = vpop.permute.xlu0 %6028
        %v6032 = vadd.f32 %v6000, %v6027
        %v6033 = vadd.f32 %v6001, %v6029
        %s6034 = sld [smem:[#allocation15 + $0xf9]]
        %v6035 = vstv %s6034
        %v6036 = vmul.f32 %v6035, %v5994
        %v6037 = vmul.f32 %v6035, %v5995
        %6040 = vrot.lane.b32.xlu0 %v6036, 127
        %v6041 = vpop.permute.xlu0 %6040
        %6042 = vrot.lane.b32.xlu0 %v6037, 127
        %v6043 = vpop.permute.xlu0 %6042
        %v6046 = vadd.f32 %v6006, %v6041
        %v6047 = vadd.f32 %v6007, %v6043
        %s6048 = sld [smem:[#allocation15 + $0xfa]]
        %v6049 = vstv %s6048
        %v6050 = vmul.f32 %v6049, %v5994
        %v6051 = vmul.f32 %v6049, %v5995
        %6054 = vrot.lane.b32.xlu0 %v6050, 127
        %v6055 = vpop.permute.xlu0 %6054
        %6056 = vrot.lane.b32.xlu0 %v6051, 127
        %v6057 = vpop.permute.xlu0 %6056
        %v6060 = vadd.f32 %v6012, %v6055
        %v6061 = vadd.f32 %v6013, %v6057
        %s6062 = sld [smem:[#allocation15 + $0xfb]]
        %v6063 = vstv %s6062
        %v6064 = vmul.f32 %v6063, %v5994
        %v6065 = vmul.f32 %v6063, %v5995
        %6068 = vrot.lane.b32.xlu0 %v6064, 127
        %v6069 = vpop.permute.xlu0 %6068
        %6070 = vrot.lane.b32.xlu0 %v6065, 127
        %v6071 = vpop.permute.xlu0 %6070
        %v6074 = vadd.f32 %v6018, %v6069
        %v6075 = vadd.f32 %v6019, %v6071
        %s6076 = sld [smem:[#allocation15 + $0x118]]
        %v6077 = vstv %s6076
        %v6078 = vmul.f32 %v6077, %v5994
        %v6079 = vmul.f32 %v6077, %v5995
        %6082 = vrot.lane.b32.xlu0 %v6078, 126
        %v6083 = vpop.permute.xlu0 %6082
        %6084 = vrot.lane.b32.xlu0 %v6079, 126
        %v6085 = vpop.permute.xlu0 %6084
        %v6088 = vadd.f32 %v6032, %v6083
        %v6089 = vadd.f32 %v6033, %v6085
        %s6090 = sld [smem:[#allocation15 + $0x119]]
        %v6091 = vstv %s6090
        %v6092 = vmul.f32 %v6091, %v5994
        %v6093 = vmul.f32 %v6091, %v5995
        %6096 = vrot.lane.b32.xlu0 %v6092, 126
        %v6097 = vpop.permute.xlu0 %6096
        %6098 = vrot.lane.b32.xlu0 %v6093, 126
        %v6099 = vpop.permute.xlu0 %6098
        %v6102 = vadd.f32 %v6046, %v6097
        %v6103 = vadd.f32 %v6047, %v6099
        %s6104 = sld [smem:[#allocation15 + $0x11a]]
        %v6105 = vstv %s6104
        %v6106 = vmul.f32 %v6105, %v5994
        %v6107 = vmul.f32 %v6105, %v5995
        %6110 = vrot.lane.b32.xlu0 %v6106, 126
        %v6111 = vpop.permute.xlu0 %6110
        %6112 = vrot.lane.b32.xlu0 %v6107, 126
        %v6113 = vpop.permute.xlu0 %6112
        %v6116 = vadd.f32 %v6060, %v6111
        %v6117 = vadd.f32 %v6061, %v6113
        %s6118 = sld [smem:[#allocation15 + $0x11b]]
        %v6119 = vstv %s6118
        %v6120 = vmul.f32 %v6119, %v5994
        %v6121 = vmul.f32 %v6119, %v5995
        %6124 = vrot.lane.b32.xlu0 %v6120, 126
        %v6125 = vpop.permute.xlu0 %6124
        %6126 = vrot.lane.b32.xlu0 %v6121, 126
        %v6127 = vpop.permute.xlu0 %6126
        %v6130 = vadd.f32 %v6074, %v6125
        %v6131 = vadd.f32 %v6075, %v6127
        %v6132 = vld [vmem:[%s3239] sm:$0xff]
        %v6133 = vld [vmem:[%s3239 + $0x8] sm:$0xff]
        %s6134 = sld [smem:[#allocation15 + $0x1c]]
        %v6135 = vstv %s6134
        %v6136 = vmul.f32 %v6135, %v6132
        %v6137 = vmul.f32 %v6135, %v6133
        %v6138 = vadd.f32 %v6088, %v6136
        %v6139 = vadd.f32 %v6089, %v6137
        %s6140 = sld [smem:[#allocation15 + $0x1d]]
        %v6141 = vstv %s6140
        %v6142 = vmul.f32 %v6141, %v6132
        %v6143 = vmul.f32 %v6141, %v6133
        %v6144 = vadd.f32 %v6102, %v6142
        %v6145 = vadd.f32 %v6103, %v6143
        %s6146 = sld [smem:[#allocation15 + $0x1e]]
        %v6147 = vstv %s6146
        %v6148 = vmul.f32 %v6147, %v6132
        %v6149 = vmul.f32 %v6147, %v6133
        %v6150 = vadd.f32 %v6116, %v6148
        %v6151 = vadd.f32 %v6117, %v6149
        %s6152 = sld [smem:[#allocation15 + $0x1f]]
        %v6153 = vstv %s6152
        %v6154 = vmul.f32 %v6153, %v6132
        %v6155 = vmul.f32 %v6153, %v6133
        %v6156 = vadd.f32 %v6130, %v6154
        %v6157 = vadd.f32 %v6131, %v6155
        %s6158 = sld [smem:[#allocation15 + $0x3c]]
        %v6159 = vstv %s6158
        %v6160 = vmul.f32 %v6159, %v6132
        %v6161 = vmul.f32 %v6159, %v6133
        %6164 = vrot.lane.b32.xlu0 %v6160, 127
        %v6165 = vpop.permute.xlu0 %6164
        %6166 = vrot.lane.b32.xlu0 %v6161, 127
        %v6167 = vpop.permute.xlu0 %6166
        %v6170 = vadd.f32 %v6138, %v6165
        %v6171 = vadd.f32 %v6139, %v6167
        %s6172 = sld [smem:[#allocation15 + $0x3d]]
        %v6173 = vstv %s6172
        %v6174 = vmul.f32 %v6173, %v6132
        %v6175 = vmul.f32 %v6173, %v6133
        %6178 = vrot.lane.b32.xlu0 %v6174, 127
        %v6179 = vpop.permute.xlu0 %6178
        %6180 = vrot.lane.b32.xlu0 %v6175, 127
        %v6181 = vpop.permute.xlu0 %6180
        %v6184 = vadd.f32 %v6144, %v6179
        %v6185 = vadd.f32 %v6145, %v6181
        %s6186 = sld [smem:[#allocation15 + $0x3e]]
        %v6187 = vstv %s6186
        %v6188 = vmul.f32 %v6187, %v6132
        %v6189 = vmul.f32 %v6187, %v6133
        %6192 = vrot.lane.b32.xlu0 %v6188, 127
        %v6193 = vpop.permute.xlu0 %6192
        %6194 = vrot.lane.b32.xlu0 %v6189, 127
        %v6195 = vpop.permute.xlu0 %6194
        %v6198 = vadd.f32 %v6150, %v6193
        %v6199 = vadd.f32 %v6151, %v6195
        %s6200 = sld [smem:[#allocation15 + $0x3f]]
        %v6201 = vstv %s6200
        %v6202 = vmul.f32 %v6201, %v6132
        %v6203 = vmul.f32 %v6201, %v6133
        %6206 = vrot.lane.b32.xlu0 %v6202, 127
        %v6207 = vpop.permute.xlu0 %6206
        %6208 = vrot.lane.b32.xlu0 %v6203, 127
        %v6209 = vpop.permute.xlu0 %6208
        %v6212 = vadd.f32 %v6156, %v6207
        %v6213 = vadd.f32 %v6157, %v6209
        %s6214 = sld [smem:[#allocation15 + $0x5c]]
        %v6215 = vstv %s6214
        %v6216 = vmul.f32 %v6215, %v6132
        %v6217 = vmul.f32 %v6215, %v6133
        %6220 = vrot.lane.b32.xlu0 %v6216, 126
        %v6221 = vpop.permute.xlu0 %6220
        %6222 = vrot.lane.b32.xlu0 %v6217, 126
        %v6223 = vpop.permute.xlu0 %6222
        %v6226 = vadd.f32 %v6170, %v6221
        %v6227 = vadd.f32 %v6171, %v6223
        %s6228 = sld [smem:[#allocation15 + $0x5d]]
        %v6229 = vstv %s6228
        %v6230 = vmul.f32 %v6229, %v6132
        %v6231 = vmul.f32 %v6229, %v6133
        %6234 = vrot.lane.b32.xlu0 %v6230, 126
        %v6235 = vpop.permute.xlu0 %6234
        %6236 = vrot.lane.b32.xlu0 %v6231, 126
        %v6237 = vpop.permute.xlu0 %6236
        %v6240 = vadd.f32 %v6184, %v6235
        %v6241 = vadd.f32 %v6185, %v6237
        %s6242 = sld [smem:[#allocation15 + $0x5e]]
        %v6243 = vstv %s6242
        %v6244 = vmul.f32 %v6243, %v6132
        %v6245 = vmul.f32 %v6243, %v6133
        %6248 = vrot.lane.b32.xlu0 %v6244, 126
        %v6249 = vpop.permute.xlu0 %6248
        %6250 = vrot.lane.b32.xlu0 %v6245, 126
        %v6251 = vpop.permute.xlu0 %6250
        %v6254 = vadd.f32 %v6198, %v6249
        %v6255 = vadd.f32 %v6199, %v6251
        %s6256 = sld [smem:[#allocation15 + $0x5f]]
        %v6257 = vstv %s6256
        %v6258 = vmul.f32 %v6257, %v6132
        %v6259 = vmul.f32 %v6257, %v6133
        %6262 = vrot.lane.b32.xlu0 %v6258, 126
        %v6263 = vpop.permute.xlu0 %6262
        %6264 = vrot.lane.b32.xlu0 %v6259, 126
        %v6265 = vpop.permute.xlu0 %6264
        %v6268 = vadd.f32 %v6212, %v6263
        %v6269 = vadd.f32 %v6213, %v6265
        %v6270 = vld [vmem:[%s3239 + $0x1] sm:$0xff]
        %v6271 = vld [vmem:[%s3239 + $0x9] sm:$0xff]
        %s6272 = sld [smem:[#allocation15 + $0x7c]]
        %v6273 = vstv %s6272
        %v6274 = vmul.f32 %v6273, %v6270
        %v6275 = vmul.f32 %v6273, %v6271
        %v6276 = vadd.f32 %v6226, %v6274
        %v6277 = vadd.f32 %v6227, %v6275
        %s6278 = sld [smem:[#allocation15 + $0x7d]]
        %v6279 = vstv %s6278
        %v6280 = vmul.f32 %v6279, %v6270
        %v6281 = vmul.f32 %v6279, %v6271
        %v6282 = vadd.f32 %v6240, %v6280
        %v6283 = vadd.f32 %v6241, %v6281
        %s6284 = sld [smem:[#allocation15 + $0x7e]]
        %v6285 = vstv %s6284
        %v6286 = vmul.f32 %v6285, %v6270
        %v6287 = vmul.f32 %v6285, %v6271
        %v6288 = vadd.f32 %v6254, %v6286
        %v6289 = vadd.f32 %v6255, %v6287
        %s6290 = sld [smem:[#allocation15 + $0x7f]]
        %v6291 = vstv %s6290
        %v6292 = vmul.f32 %v6291, %v6270
        %v6293 = vmul.f32 %v6291, %v6271
        %v6294 = vadd.f32 %v6268, %v6292
        %v6295 = vadd.f32 %v6269, %v6293
        %s6296 = sld [smem:[#allocation15 + $0x9c]]
        %v6297 = vstv %s6296
        %v6298 = vmul.f32 %v6297, %v6270
        %v6299 = vmul.f32 %v6297, %v6271
        %6302 = vrot.lane.b32.xlu0 %v6298, 127
        %v6303 = vpop.permute.xlu0 %6302
        %6304 = vrot.lane.b32.xlu0 %v6299, 127
        %v6305 = vpop.permute.xlu0 %6304
        %v6308 = vadd.f32 %v6276, %v6303
        %v6309 = vadd.f32 %v6277, %v6305
        %s6310 = sld [smem:[#allocation15 + $0x9d]]
        %v6311 = vstv %s6310
        %v6312 = vmul.f32 %v6311, %v6270
        %v6313 = vmul.f32 %v6311, %v6271
        %6316 = vrot.lane.b32.xlu0 %v6312, 127
        %v6317 = vpop.permute.xlu0 %6316
        %6318 = vrot.lane.b32.xlu0 %v6313, 127
        %v6319 = vpop.permute.xlu0 %6318
        %v6322 = vadd.f32 %v6282, %v6317
        %v6323 = vadd.f32 %v6283, %v6319
        %s6324 = sld [smem:[#allocation15 + $0x9e]]
        %v6325 = vstv %s6324
        %v6326 = vmul.f32 %v6325, %v6270
        %v6327 = vmul.f32 %v6325, %v6271
        %6330 = vrot.lane.b32.xlu0 %v6326, 127
        %v6331 = vpop.permute.xlu0 %6330
        %6332 = vrot.lane.b32.xlu0 %v6327, 127
        %v6333 = vpop.permute.xlu0 %6332
        %v6336 = vadd.f32 %v6288, %v6331
        %v6337 = vadd.f32 %v6289, %v6333
        %s6338 = sld [smem:[#allocation15 + $0x9f]]
        %v6339 = vstv %s6338
        %v6340 = vmul.f32 %v6339, %v6270
        %v6341 = vmul.f32 %v6339, %v6271
        %6344 = vrot.lane.b32.xlu0 %v6340, 127
        %v6345 = vpop.permute.xlu0 %6344
        %6346 = vrot.lane.b32.xlu0 %v6341, 127
        %v6347 = vpop.permute.xlu0 %6346
        %v6350 = vadd.f32 %v6294, %v6345
        %v6351 = vadd.f32 %v6295, %v6347
        %s6352 = sld [smem:[#allocation15 + $0xbc]]
        %v6353 = vstv %s6352
        %v6354 = vmul.f32 %v6353, %v6270
        %v6355 = vmul.f32 %v6353, %v6271
        %6358 = vrot.lane.b32.xlu0 %v6354, 126
        %v6359 = vpop.permute.xlu0 %6358
        %6360 = vrot.lane.b32.xlu0 %v6355, 126
        %v6361 = vpop.permute.xlu0 %6360
        %v6364 = vadd.f32 %v6308, %v6359
        %v6365 = vadd.f32 %v6309, %v6361
        %s6366 = sld [smem:[#allocation15 + $0xbd]]
        %v6367 = vstv %s6366
        %v6368 = vmul.f32 %v6367, %v6270
        %v6369 = vmul.f32 %v6367, %v6271
        %6372 = vrot.lane.b32.xlu0 %v6368, 126
        %v6373 = vpop.permute.xlu0 %6372
        %6374 = vrot.lane.b32.xlu0 %v6369, 126
        %v6375 = vpop.permute.xlu0 %6374
        %v6378 = vadd.f32 %v6322, %v6373
        %v6379 = vadd.f32 %v6323, %v6375
        %s6380 = sld [smem:[#allocation15 + $0xbe]]
        %v6381 = vstv %s6380
        %v6382 = vmul.f32 %v6381, %v6270
        %v6383 = vmul.f32 %v6381, %v6271
        %6386 = vrot.lane.b32.xlu0 %v6382, 126
        %v6387 = vpop.permute.xlu0 %6386
        %6388 = vrot.lane.b32.xlu0 %v6383, 126
        %v6389 = vpop.permute.xlu0 %6388
        %v6392 = vadd.f32 %v6336, %v6387
        %v6393 = vadd.f32 %v6337, %v6389
        %s6394 = sld [smem:[#allocation15 + $0xbf]]
        %v6395 = vstv %s6394
        %v6396 = vmul.f32 %v6395, %v6270
        %v6397 = vmul.f32 %v6395, %v6271
        %6400 = vrot.lane.b32.xlu0 %v6396, 126
        %v6401 = vpop.permute.xlu0 %6400
        %6402 = vrot.lane.b32.xlu0 %v6397, 126
        %v6403 = vpop.permute.xlu0 %6402
        %v6406 = vadd.f32 %v6350, %v6401
        %v6407 = vadd.f32 %v6351, %v6403
        %v6408 = vld [vmem:[%s3239 + $0x2] sm:$0xff]
        %v6409 = vld [vmem:[%s3239 + $0xa] sm:$0xff]
        %s6410 = sld [smem:[#allocation15 + $0xdc]]
        %v6411 = vstv %s6410
        %v6412 = vmul.f32 %v6411, %v6408
        %v6413 = vmul.f32 %v6411, %v6409
        %v6414 = vadd.f32 %v6364, %v6412
        %v6415 = vadd.f32 %v6365, %v6413
        %s6416 = sld [smem:[#allocation15 + $0xdd]]
        %v6417 = vstv %s6416
        %v6418 = vmul.f32 %v6417, %v6408
        %v6419 = vmul.f32 %v6417, %v6409
        %v6420 = vadd.f32 %v6378, %v6418
        %v6421 = vadd.f32 %v6379, %v6419
        %s6422 = sld [smem:[#allocation15 + $0xde]]
        %v6423 = vstv %s6422
        %v6424 = vmul.f32 %v6423, %v6408
        %v6425 = vmul.f32 %v6423, %v6409
        %v6426 = vadd.f32 %v6392, %v6424
        %v6427 = vadd.f32 %v6393, %v6425
        %s6428 = sld [smem:[#allocation15 + $0xdf]]
        %v6429 = vstv %s6428
        %v6430 = vmul.f32 %v6429, %v6408
        %v6431 = vmul.f32 %v6429, %v6409
        %v6432 = vadd.f32 %v6406, %v6430
        %v6433 = vadd.f32 %v6407, %v6431
        %s6434 = sld [smem:[#allocation15 + $0xfc]]
        %v6435 = vstv %s6434
        %v6436 = vmul.f32 %v6435, %v6408
        %v6437 = vmul.f32 %v6435, %v6409
        %6440 = vrot.lane.b32.xlu0 %v6436, 127
        %v6441 = vpop.permute.xlu0 %6440
        %6442 = vrot.lane.b32.xlu0 %v6437, 127
        %v6443 = vpop.permute.xlu0 %6442
        %v6446 = vadd.f32 %v6414, %v6441
        %v6447 = vadd.f32 %v6415, %v6443
        %s6448 = sld [smem:[#allocation15 + $0xfd]]
        %v6449 = vstv %s6448
        %v6450 = vmul.f32 %v6449, %v6408
        %v6451 = vmul.f32 %v6449, %v6409
        %6454 = vrot.lane.b32.xlu0 %v6450, 127
        %v6455 = vpop.permute.xlu0 %6454
        %6456 = vrot.lane.b32.xlu0 %v6451, 127
        %v6457 = vpop.permute.xlu0 %6456
        %v6460 = vadd.f32 %v6420, %v6455
        %v6461 = vadd.f32 %v6421, %v6457
        %s6462 = sld [smem:[#allocation15 + $0xfe]]
        %v6463 = vstv %s6462
        %v6464 = vmul.f32 %v6463, %v6408
        %v6465 = vmul.f32 %v6463, %v6409
        %6468 = vrot.lane.b32.xlu0 %v6464, 127
        %v6469 = vpop.permute.xlu0 %6468
        %6470 = vrot.lane.b32.xlu0 %v6465, 127
        %v6471 = vpop.permute.xlu0 %6470
        %v6474 = vadd.f32 %v6426, %v6469
        %v6475 = vadd.f32 %v6427, %v6471
        %s6476 = sld [smem:[#allocation15 + $0xff]]
        %v6477 = vstv %s6476
        %v6478 = vmul.f32 %v6477, %v6408
        %v6479 = vmul.f32 %v6477, %v6409
        %6482 = vrot.lane.b32.xlu0 %v6478, 127
        %v6483 = vpop.permute.xlu0 %6482
        %6484 = vrot.lane.b32.xlu0 %v6479, 127
        %v6485 = vpop.permute.xlu0 %6484
        %v6488 = vadd.f32 %v6432, %v6483
        %v6489 = vadd.f32 %v6433, %v6485
        %s6490 = sld [smem:[#allocation15 + $0x11c]]
        %v6491 = vstv %s6490
        %v6492 = vmul.f32 %v6491, %v6408
        %v6493 = vmul.f32 %v6491, %v6409
        %6496 = vrot.lane.b32.xlu0 %v6492, 126
        %v6497 = vpop.permute.xlu0 %6496
        %6498 = vrot.lane.b32.xlu0 %v6493, 126
        %v6499 = vpop.permute.xlu0 %6498
        %v6502 = vadd.f32 %v6446, %v6497
        %v6503 = vadd.f32 %v6447, %v6499
        %s6504 = sld [smem:[#allocation15 + $0x11d]]
        %v6505 = vstv %s6504
        %v6506 = vmul.f32 %v6505, %v6408
        %v6507 = vmul.f32 %v6505, %v6409
        %6510 = vrot.lane.b32.xlu0 %v6506, 126
        %v6511 = vpop.permute.xlu0 %6510
        %6512 = vrot.lane.b32.xlu0 %v6507, 126
        %v6513 = vpop.permute.xlu0 %6512
        %v6516 = vadd.f32 %v6460, %v6511
        %v6517 = vadd.f32 %v6461, %v6513
        %s6518 = sld [smem:[#allocation15 + $0x11e]]
        %v6519 = vstv %s6518
        %v6520 = vmul.f32 %v6519, %v6408
        %v6521 = vmul.f32 %v6519, %v6409
        %6524 = vrot.lane.b32.xlu0 %v6520, 126
        %v6525 = vpop.permute.xlu0 %6524
        %6526 = vrot.lane.b32.xlu0 %v6521, 126
        %v6527 = vpop.permute.xlu0 %6526
        %v6530 = vadd.f32 %v6474, %v6525
        %v6531 = vadd.f32 %v6475, %v6527
        %s6532 = sld [smem:[#allocation15 + $0x11f]]
        %v6533 = vstv %s6532
        %v6534 = vmul.f32 %v6533, %v6408
        %v6535 = vmul.f32 %v6533, %v6409
        %6538 = vrot.lane.b32.xlu0 %v6534, 126
        %v6539 = vpop.permute.xlu0 %6538
        %6540 = vrot.lane.b32.xlu0 %v6535, 126
        %v6541 = vpop.permute.xlu0 %6540
        %v6544 = vadd.f32 %v6488, %v6539
        %v6545 = vadd.f32 %v6489, %v6541
        %s6546 = sld [smem:[#allocation16]]
        %v6547 = vstv %s6546
        %v6548 = vadd.f32 %v6502, %v6547
        %v6549 = vadd.f32 %v6503, %v6547
        %s6550 = sld [smem:[#allocation16 + $0x1]]
        %v6551 = vstv %s6550
        %v6552 = vadd.f32 %v6516, %v6551
        %v6553 = vadd.f32 %v6517, %v6551
        %s6554 = sld [smem:[#allocation16 + $0x2]]
        %v6555 = vstv %s6554
        %v6556 = vadd.f32 %v6530, %v6555
        %v6557 = vadd.f32 %v6531, %v6555
        %s6558 = sld [smem:[#allocation16 + $0x3]]
        %v6559 = vstv %s6558
        %v6560 = vadd.f32 %v6544, %v6559
        %v6561 = vadd.f32 %v6545, %v6559
        %s6562 = sld [smem:[#allocation18]]
        %v6563 = vtanh.pop %v6548
        %v6564 = vtanh.pop %v6549
        %v6565 = vstv %s6562
        %v6566 = vmul.f32 %v6565, %v6563
        %v6567 = vmul.f32 %v6565, %v6564
        %v6568 = vmul.f32 %v6566, 1.442695
        %v6569 = vpow.pop %v6568
        %v6570 = vmul.f32 %v6567, 1.442695
        %v6571 = vpow.pop %v6570
        %v6572 = vmul.f32 %v591, %v6569
        %v6573 = vmul.f32 %v592, %v6571
        %v6574 = vadd.f32 %v6572, %v6556
        %v6575 = vadd.f32 %v6573, %v6557
        %s6576 = scalar_lea.vmem %s466, 32 [#allocation19]
        %6577 = vst.msk [vmem:[%s6576] sm:$0xff] %vm619, %v6574
        %6578 = vst.msk [vmem:[%s6576 + $0x8] sm:$0xff] %vm619, %v6575
        %s6579 = sld [smem:[#allocation18 + $0x1]]
        %v6580 = vtanh.pop %v6552
        %v6581 = vtanh.pop %v6553
        %v6582 = vstv %s6579
        %v6583 = vmul.f32 %v6582, %v6580
        %v6584 = vmul.f32 %v6582, %v6581
        %v6585 = vmul.f32 %v6583, 1.442695
        %v6586 = vpow.pop %v6585
        %v6587 = vmul.f32 %v6584, 1.442695
        %v6588 = vpow.pop %v6587
        %v6589 = vmul.f32 %v617, %v6586
        %v6590 = vmul.f32 %v618, %v6588
        %v6591 = vadd.f32 %v6589, %v6560
        %v6592 = vadd.f32 %v6590, %v6561
        %s6593 = scalar_lea.vmem %s466, 48 [#allocation19]
        %6594 = vst.msk [vmem:[%s6593] sm:$0xff] %vm619, %v6591
        %6595 = vst.msk [vmem:[%s6593 + $0x8] sm:$0xff] %vm619, %v6592
        %s6596 = sand.u32 %s252, 1
        %s6597 = scalar_lea.sflag [#allocation5], %s6596
        %s6598 = sand.u32 %s252, 1
        %s6599 = smul.addr %s6598, 64
        %s6600 = scalar_lea.vmem [#allocation19], %s6599
        // Predicated region
        $region97: #{glow_step_forward.1} parent=59 // pred_check
          %p6601 = pneg %p262
        $region98: #{glow_step_forward.1} parent=59 // pred_check_branch
          %6603 = sbr.rel (%p6601) target = $region100
        $region99: #{glow_step_forward.1} parent=59 // pred_region
          %6605 = vsyncadd %s6597, 0
          %s6606 = smul.addr %s29, 8
          %s6607 = smul.addr %s6606, 8
          %s6608 = scalar_lea.hbm %s10, %s6607
          %s6609 = sshll.u32 %s6600, 4
          %s6610 = int_to_ptr.vmem [resolvable:$true] %s6609
          %s6611 = sshll.u32 %s6608, 4
          %s6612 = int_to_ptr.hbm [resolvable:$true] %s6611
          %6617 = dma.vmem_to_hbm [thread:$0]  %s6610, 1024, %s6612, %s6597, 128, 128, 8
        $region100: #{glow_step_forward.1} parent=59 // pred_fallthru
          _
      $region60: #{glow_step_forward.1} parent=5 // pred_fallthru
        _
      %p6618 = scmp.le.s32.totalorder 2, %s24
      // Predicated region
      $region101: #{glow_step_forward.1} parent=5 // pred_check
        %p6619 = pneg %p6618
      $region102: #{glow_step_forward.1} parent=5 // pred_check_branch
        %6621 = sbr.rel (%p6619) target = $region104
      $region103: #{glow_step_forward.1} parent=5 // pred_region
        %s6622 = ssub.s32 %s24, 2
        // Predicated region
        $region105: #{glow_step_forward.1} parent=103 // pred_check
          %p6623 = pneg %p268
        $region106: #{glow_step_forward.1} parent=103 // pred_check_branch
          %6625 = sbr.rel (%p6623) target = $region108
        $region107: #{glow_step_forward.1} parent=103 // pred_region
          %s6626 = sand.u32 %s253, 1
          %s6627 = scalar_lea.sflag [#allocation5], %s6626
          %s6628 = sand.u32 %s253, 1
          %s6629 = smul.addr %s6628, 64
          %s6630 = scalar_lea.vmem [#allocation19], %s6629
          %6632 = dma.done %s6627, 1024
        $region108: #{glow_step_forward.1} parent=103 // pred_fallthru
          _
      $region104: #{glow_step_forward.1} parent=5 // pred_fallthru
        _
    $region6: #{glow_step_forward.1} parent=1 // loop_footer
      %s28 = sadd.s32 1, %s24
    $region7: #{glow_step_forward.1} parent=1 // loop_footer_branch
      %23 = sbr.rel target = $region3
    $region8: #{glow_step_forward.1} parent=1 // loop_exit
      _
    %6633 = vsyncpa [#allocation5], 1
    %s6634 = scalar_lea.sflag [#allocation5], 1
    %6635 = vsyncpa %s6634, 1
    %6636 = vsyncpa [#allocation6], 1
    %s6637 = scalar_lea.sflag [#allocation6], 1
    %6638 = vsyncpa %s6637, 1
    %6639 = vsyncpa [#allocation8], 1
    %6640 = vsyncpa [#allocation11], 1
    %6641 = vsyncpa [#allocation14], 1
    %6642 = vsyncpa [#allocation17], 1

</llo_original>
